<compile_context>
chip_gen: v6e
topology: v6e:2x2x1
jax: 0.10.0
libtpu: 0.0.40
codegen_flags: <defaults>
</compile_context>

<pallas_src>
import functools

import jax
import jax.numpy as jnp
from jax.experimental import pallas as pl
from jax.experimental.pallas import tpu as pltpu


_MEAN = (0.485, 0.456, 0.406)
_STD = (0.229, 0.224, 0.225)


def _vmem_limit_bytes():
    # Generation-aware scoped-VMEM limit: ~3/4 of physical VMEM (96 MiB on
    # 128 MiB v5e/v6e, 48 MiB on 64 MiB v7x), conservative fallback otherwise.
    try:
        cap = int(getattr(pltpu.get_tpu_info(), "vmem_capacity_bytes"))
        if cap > 0:
            return min((cap * 3) // 4, 112 * 1024 * 1024)
    except Exception:
        pass
    return 48 * 1024 * 1024


def _pick_strip(h, w, cin, cout, need_even, cap=32, budget=12 * 1024 * 1024):
    # Largest strip height <= cap dividing H (even if a 2x2 pool follows) whose
    # per-strip working set (halo strip + im2col pieces + f32 accumulator)
    # stays within a budget that double-buffers comfortably on all generations.
    best = None
    for t in range(1, min(h, cap) + 1):
        if h % t or (need_even and t % 2):
            continue
        if best is None:
            best = t
        footprint = ((t + 2) * (w + 2) * cin * 2      # bf16 halo strip
                     + 3 * t * w * 3 * cin * 2        # bf16 im2col pieces
                     + t * w * cout * 4)              # f32 accumulator
        if footprint <= budget:
            best = t
    return best if best is not None else h


# --------------------------- Pallas kernels --------------------------------

def _im2col_matmul(rows, w_ref, th, W, Cin):
    # rows: (th+2, W+2, Cin) bf16, already zero-padded on both axes.
    # Per-ky kx-fused im2col -> three K=3*Cin MXU matmuls, f32 accumulation.
    def strip_for(ky):
        return jnp.concatenate(
            [rows[ky:ky + th, kx:kx + W, :] for kx in range(3)],
            axis=-1).reshape(th * W, 3 * Cin)

    acc = jnp.dot(strip_for(0), w_ref[0], preferred_element_type=jnp.float32)
    acc += jnp.dot(strip_for(1), w_ref[1], preferred_element_type=jnp.float32)
    acc += jnp.dot(strip_for(2), w_ref[2], preferred_element_type=jnp.float32)
    return acc                                            # (th*W, Cout) f32


def _pad_strip(top, body, bot, s, ns, th, W, Cin):
    # Build the (th+2, W+2, Cin) zero-padded strip from halo/body blocks; the
    # halo rows that fall outside the image (first/last strip) are zeroed.
    top = jnp.where(s == 0, jnp.zeros_like(top), top)           # (1, W, Cin)
    bot = jnp.where(s == ns - 1, jnp.zeros_like(bot), bot)      # (1, W, Cin)
    rows = jnp.concatenate([top, body, bot], axis=0)            # (th+2, W, Cin)
    zc = jnp.zeros((th + 2, 1, Cin), rows.dtype)
    return jnp.concatenate([zc, rows, zc], axis=1)              # (th+2, W+2, Cin)


def _conv3x3_strip_kernel(top_ref, x_ref, bot_ref, w_ref, b_ref, o_ref,
                          *, th, relu, pool):
    # Generic 3x3 same-conv on one halo row-strip, optional ReLU and fused
    # 2x2 maxpool store epilogue.
    #   top_ref/bot_ref: (1, 1, W, Cin) bf16 halo rows (clamped index_map)
    #   x_ref:           (1, th, W, Cin) bf16 body strip
    #   w_ref: (3, 3*Cin, Cout) bf16     b_ref: (1, Cout) f32
    #   o_ref: (1, th[/2], W[/2], Cout) bf16
    s = pl.program_id(1)
    ns = pl.num_programs(1)
    _, _, W, Cin = x_ref.shape
    Cout = w_ref.shape[-1]

    rows = _pad_strip(top_ref[0], x_ref[0], bot_ref[0], s, ns, th, W, Cin)
    acc = _im2col_matmul(rows, w_ref, th, W, Cin)

    y = acc + b_ref[...]                                  # f32 epilogue
    if relu:
        y = jnp.maximum(y, 0.0)
    y = y.reshape(th, W, Cout)
    if pool:
        y = y.reshape(th // 2, 2, W // 2, 2, Cout)        # fused MaxPool2d(2,2)
        y = jnp.max(jnp.max(y, axis=3), axis=1)
        o_ref[...] = y.reshape(1, th // 2, W // 2, Cout).astype(o_ref.dtype)
    else:
        o_ref[...] = y.reshape(1, th, W, Cout).astype(o_ref.dtype)


def _conv7_mse_kernel(ta_ref, xa_ref, ba_ref, tb_ref, xb_ref, bb_ref,
                      w_ref, o_ref, msum_ref, *, th):
    # Fused final conv (features[7], pre-ReLU) + per-pair MSE partial sums.
    # Linearity: conv(a)+bias - (conv(b)+bias) = conv(a-b), bias cancels, so
    # one conv on the difference suffices and the feature map never hits HBM.
    #   *a_ref / *b_ref: halo/body strips of feat[n] and feat[n+sep] (bf16)
    #   o_ref:  (1, 1, Cout) f32 per-pair sum-of-squares (lane-dense)
    #   msum_ref: (1, Cout) f32 VMEM accumulator across strips (per core)
    s = pl.program_id(1)
    ns = pl.num_programs(1)
    _, _, W, Cin = xa_ref.shape
    Cout = w_ref.shape[-1]

    def diff(a, b):
        return (a.astype(jnp.float32) - b.astype(jnp.float32)).astype(jnp.bfloat16)

    top = diff(ta_ref[0], tb_ref[0])
    body = diff(xa_ref[0], xb_ref[0])
    bot = diff(ba_ref[0], bb_ref[0])

    rows = _pad_strip(top, body, bot, s, ns, th, W, Cin)
    acc = _im2col_matmul(rows, w_ref, th, W, Cin)          # (th*W, Cout) f32

    partial = jnp.sum(acc * acc, axis=0, keepdims=True)    # (1, Cout) f32

    @pl.when(s == 0)
    def _():
        msum_ref[...] = partial

    @pl.when(s > 0)
    def _():
        msum_ref[...] = msum_ref[...] + partial

    @pl.when(s == ns - 1)
    def _():
        o_ref[...] = msum_ref[...].reshape(1, 1, Cout)


# --------------------------- pallas_call wrappers ----------------------------

def pallas_conv3x3(x, w, b, *, relu, pool):
    # x: (N, H, W, Cin) bf16; w: (3, 3*Cin, Cout) bf16; b: (1, Cout) f32.
    N, H, W, Cin = x.shape
    Cout = w.shape[-1]
    if pool:
        assert H % 2 == 0 and W % 2 == 0, "fused 2x2 pool needs even H, W"
    th = _pick_strip(H, W, Cin, Cout, need_even=pool)
    n_strips = H // th
    if pool:
        out_shape = (N, H // 2, W // 2, Cout)
        out_block = (1, th // 2, W // 2, Cout)
    else:
        out_shape = (N, H, W, Cout)
        out_block = (1, th, W, Cout)

    kernel = functools.partial(_conv3x3_strip_kernel, th=th, relu=relu, pool=pool)
    top_map = lambda n, s: (n, jnp.maximum(s * th - 1, 0), 0, 0)
    bot_map = lambda n, s: (n, jnp.minimum(s * th + th, H - 1), 0, 0)

    return pl.pallas_call(
        kernel,
        grid=(N, n_strips),
        in_specs=[
            pl.BlockSpec((1, 1, W, Cin), top_map),           # top halo row
            pl.BlockSpec((1, th, W, Cin), lambda n, s: (n, s, 0, 0)),
            pl.BlockSpec((1, 1, W, Cin), bot_map),           # bottom halo row
            pl.BlockSpec((3, 3 * Cin, Cout), lambda n, s: (0, 0, 0)),
            pl.BlockSpec((1, Cout), lambda n, s: (0, 0)),
        ],
        out_specs=pl.BlockSpec(out_block, lambda n, s: (n, s, 0, 0)),
        out_shape=jax.ShapeDtypeStruct(out_shape, jnp.bfloat16),
        compiler_params=pltpu.CompilerParams(
            dimension_semantics=("parallel", "parallel"),
            vmem_limit_bytes=_vmem_limit_bytes()),
    )(x, x, x, w, b)


def pallas_conv7_mse(feat, sep, w):
    # feat: (2*sep, H, W, 128) bf16 — output of conv5+ReLU (features[6]).
    # Returns scalar: mse(conv7(feat[:sep]), conv7(feat[sep:]), 'mean').
    N, H, W, Cin = feat.shape
    Cout = w.shape[-1]
    th = _pick_strip(H, W, Cin, Cout, need_even=False)
    n_strips = H // th
    kernel = functools.partial(_conv7_mse_kernel, th=th)

    def top_map(off):
        return lambda n, s: (n + off, jnp.maximum(s * th - 1, 0), 0, 0)

    def body_map(off):
        return lambda n, s: (n + off, s, 0, 0)

    def bot_map(off):
        return lambda n, s: (n + off, jnp.minimum(s * th + th, H - 1), 0, 0)

    out = pl.pallas_call(
        kernel,
        grid=(sep, n_strips),
        in_specs=[
            pl.BlockSpec((1, 1, W, Cin), top_map(0)),        # output half
            pl.BlockSpec((1, th, W, Cin), body_map(0)),
            pl.BlockSpec((1, 1, W, Cin), bot_map(0)),
            pl.BlockSpec((1, 1, W, Cin), top_map(sep)),      # target half
            pl.BlockSpec((1, th, W, Cin), body_map(sep)),
            pl.BlockSpec((1, 1, W, Cin), bot_map(sep)),
            pl.BlockSpec((3, 3 * Cin, Cout), lambda n, s: (0, 0, 0)),
        ],
        out_specs=pl.BlockSpec((1, 1, Cout), lambda n, s: (n, 0, 0)),
        out_shape=jax.ShapeDtypeStruct((sep, 1, Cout), jnp.float32),
        scratch_shapes=[pltpu.VMEM((1, Cout), jnp.float32)],
        compiler_params=pltpu.CompilerParams(
            dimension_semantics=("parallel", "arbitrary"),
            vmem_limit_bytes=_vmem_limit_bytes()),
    )(feat, feat, feat, feat, feat, feat, w)
    inv_count = 1.0 / float(sep * H * W * Cout)
    return jnp.sum(out) * inv_count


# --------------------------- VGGLoss forward ---------------------------------

def vgg_loss_forward(output, target, kparams):
    # VGGLoss.forward(input=None, output, target, type_per='normal') with
    # model='vgg16', layers=[3], layer_type='conv', shift=0, reduction='mean'.
    sep = output.shape[0]
    batch = jnp.concatenate([output, target], axis=0)            # NCHW
    x = jnp.transpose(batch, (0, 2, 3, 1)).astype(jnp.float32)   # -> NHWC
    # torchvision Normalize fused into the relayout (wrapper-side affine op);
    # no non-scalar constants are created inside any Pallas kernel.
    mean = jnp.asarray(_MEAN, jnp.float32)
    inv_std = jnp.asarray([1.0 / v for v in _STD], jnp.float32)
    x = ((x - mean) * inv_std).astype(jnp.bfloat16)

    h = pallas_conv3x3(x, kparams["w0"], kparams["b0"], relu=True, pool=False)  # [0] conv + [1] relu
    h = pallas_conv3x3(h, kparams["w2"], kparams["b2"], relu=True, pool=True)   # [2] conv + [3] relu + [4] pool
    h = pallas_conv3x3(h, kparams["w5"], kparams["b5"], relu=True, pool=False)  # [5] conv + [6] relu
    return pallas_conv7_mse(h, sep, kparams["w7"])                              # [7] conv (pre-relu) + mse(mean)


# --------------------------- deterministic params ----------------------------

def init_params(key):
    # TODO(synk): pretrained VGG16 weights replaced with deterministic random
    # init (no checkpoint loading / no network access).
    def conv(k, cin, cout):
        kw, kb = jax.random.split(k)
        w = jax.random.normal(kw, (9, cin, cout), jnp.float32) / jnp.sqrt(9.0 * cin)
        b = 0.01 * jax.random.normal(kb, (cout,), jnp.float32)
        return w, b

    k0, k2, k5, k7 = jax.random.split(key, 4)
    w0, b0 = conv(k0, 3, 64)      # features[0]: Conv2d(3, 64, 3, padding=1)
    w2, b2 = conv(k2, 64, 64)     # features[2]: Conv2d(64, 64, 3, padding=1)
    w5, b5 = conv(k5, 64, 128)    # features[5]: Conv2d(64, 128, 3, padding=1)
    w7, b7 = conv(k7, 128, 128)   # features[7]: Conv2d(128, 128, 3, padding=1)
    return dict(w0=w0, b0=b0, w2=w2, b2=b2, w5=w5, b5=b5, w7=w7, b7=b7)


def prepare_params(p):
    # Repack for the kernels: fold the kx taps into the matmul K dimension
    # ((9, Cin, Cout) -> (3, 3*Cin, Cout), taps row-major (ky, kx)) and cast
    # matmul operands to bf16 (f32 accumulation happens in-kernel).
    def fold(w):
        cin, cout = w.shape[1], w.shape[2]
        return w.reshape(3, 3 * cin, cout).astype(jnp.bfloat16)

    return dict(
        w0=fold(p["w0"]), b0=p["b0"].reshape(1, -1),
        w2=fold(p["w2"]), b2=p["b2"].reshape(1, -1),
        w5=fold(p["w5"]), b5=p["b5"].reshape(1, -1),
        w7=fold(p["w7"]),
        # b7 intentionally unused: the final layer is returned pre-ReLU, so its
        # bias cancels inside mse(feat_out - feat_tgt).
    )


if __name__ == "__main__":
    key = jax.random.PRNGKey(0)
    kp, ko, kt = jax.random.split(key, 3)
    params = prepare_params(init_params(kp))
    # PyTorch-convention NCHW image inputs in [0, 1].
    output = jax.random.uniform(ko, (2, 3, 16, 16), jnp.float32)
    target = jax.random.uniform(kt, (2, 3, 16, 16), jnp.float32)

    loss = jax.jit(vgg_loss_forward)(output, target, params)
    jax.block_until_ready(loss)
    assert loss.shape == () and bool(jnp.isfinite(loss))
    print("KERNEL_OK")
</pallas_src>

<mosaic_0001>
module attributes {stable_mosaic.version = 11 : i64} {
  func.func @_conv3x3_strip_kernel(%arg0: i32, %arg1: i32, %arg2: memref<1x1x16x3xbf16, #tpu.memory_space<vmem>>, %arg3: memref<1x16x16x3xbf16, #tpu.memory_space<vmem>>, %arg4: memref<1x1x16x3xbf16, #tpu.memory_space<vmem>>, %arg5: memref<3x9x64xbf16, #tpu.memory_space<vmem>>, %arg6: memref<1x64xf32, #tpu.memory_space<vmem>>, %arg7: memref<1x16x16x64xbf16, #tpu.memory_space<vmem>>) attributes {dimension_semantics = [#tpu.dimension_semantics<parallel>, #tpu.dimension_semantics<parallel>], iteration_bounds = array<i64: 4, 1>, scalar_prefetch = 0 : i64, scratch_operands = 0 : i64, tpu.core_type = #tpu.core_type<tc>, window_params = [{transform_indices = @transform_0, window_bounds = array<i64: 1, 1, 16, 3>}, {transform_indices = @transform_1, window_bounds = array<i64: 1, 16, 16, 3>}, {transform_indices = @transform_2, window_bounds = array<i64: 1, 1, 16, 3>}, {pipeline_mode = #tpu.pipeline_mode<synchronous>, transform_indices = @transform_3, window_bounds = array<i64: 3, 9, 64>}, {pipeline_mode = #tpu.pipeline_mode<synchronous>, transform_indices = @transform_4, window_bounds = array<i64: 1, 64>}, {transform_indices = @transform_5, window_bounds = array<i64: 1, 16, 16, 64>}]} {
    %c0 = arith.constant 0 : index
    %c0_0 = arith.constant 0 : index
    %c0_1 = arith.constant 0 : index
    %c0_2 = arith.constant 0 : index
    %0 = vector.load %arg2[%c0, %c0_0, %c0_1, %c0_2] : memref<1x1x16x3xbf16, #tpu.memory_space<vmem>>, vector<1x1x16x3xbf16>
    %1 = vector.shape_cast %0 : vector<1x1x16x3xbf16> to vector<1x16x3xbf16>
    %c0_3 = arith.constant 0 : index
    %c0_4 = arith.constant 0 : index
    %c0_5 = arith.constant 0 : index
    %c0_6 = arith.constant 0 : index
    %2 = vector.load %arg3[%c0_3, %c0_4, %c0_5, %c0_6] : memref<1x16x16x3xbf16, #tpu.memory_space<vmem>>, vector<1x16x16x3xbf16>
    %3 = vector.shape_cast %2 : vector<1x16x16x3xbf16> to vector<16x16x3xbf16>
    %c0_7 = arith.constant 0 : index
    %c0_8 = arith.constant 0 : index
    %c0_9 = arith.constant 0 : index
    %c0_10 = arith.constant 0 : index
    %4 = vector.load %arg4[%c0_7, %c0_8, %c0_9, %c0_10] : memref<1x1x16x3xbf16, #tpu.memory_space<vmem>>, vector<1x1x16x3xbf16>
    %5 = vector.shape_cast %4 : vector<1x1x16x3xbf16> to vector<1x16x3xbf16>
    %c0_i32 = arith.constant 0 : i32
    %6 = arith.cmpi eq, %arg1, %c0_i32 : i32
    %cst = arith.constant 0.000000e+00 : bf16
    %7 = vector.broadcast %cst : bf16 to vector<1x16x3xbf16>
    %8 = arith.select %6, %7, %1 : vector<1x16x3xbf16>
    %c0_i32_11 = arith.constant 0 : i32
    %9 = arith.cmpi eq, %arg1, %c0_i32_11 : i32
    %cst_12 = arith.constant 0.000000e+00 : bf16
    %10 = vector.broadcast %cst_12 : bf16 to vector<1x16x3xbf16>
    %11 = arith.select %9, %10, %5 : vector<1x16x3xbf16>
    %12 = tpu.concatenate %8, %3, %11 in 0 : vector<1x16x3xbf16>, vector<16x16x3xbf16>, vector<1x16x3xbf16> -> vector<18x16x3xbf16>
    %cst_13 = arith.constant 0.000000e+00 : bf16
    %13 = vector.broadcast %cst_13 : bf16 to vector<18x1x3xbf16>
    %14 = tpu.concatenate %13, %12, %13 in 1 : vector<18x1x3xbf16>, vector<18x16x3xbf16>, vector<18x1x3xbf16> -> vector<18x18x3xbf16>
    %15 = vector.extract_strided_slice %14 {offsets = [0, 0, 0], sizes = [16, 16, 3], strides = [1, 1, 1]} : vector<18x18x3xbf16> to vector<16x16x3xbf16>
    %16 = vector.extract_strided_slice %14 {offsets = [0, 1, 0], sizes = [16, 16, 3], strides = [1, 1, 1]} : vector<18x18x3xbf16> to vector<16x16x3xbf16>
    %17 = vector.extract_strided_slice %14 {offsets = [0, 2, 0], sizes = [16, 16, 3], strides = [1, 1, 1]} : vector<18x18x3xbf16> to vector<16x16x3xbf16>
    %18 = tpu.concatenate %15, %16, %17 in 2 : vector<16x16x3xbf16>, vector<16x16x3xbf16>, vector<16x16x3xbf16> -> vector<16x16x9xbf16>
    %19 = vector.shape_cast %18 : vector<16x16x9xbf16> to vector<256x9xbf16>
    %c0_14 = arith.constant 0 : index
    %c0_15 = arith.constant 0 : index
    %c0_16 = arith.constant 0 : index
    %20 = vector.load %arg5[%c0_14, %c0_15, %c0_16] : memref<3x9x64xbf16, #tpu.memory_space<vmem>>, vector<1x9x64xbf16>
    %21 = vector.shape_cast %20 : vector<1x9x64xbf16> to vector<9x64xbf16>
    %cst_17 = arith.constant dense<0.000000e+00> : vector<256x64xf32>
    %22 = tpu.matmul %19, %21, %cst_17 {dimension_numbers = #tpu.dot_dimension_numbers<[1], [0], [0], [1], [0, 0, 1, 1], [], []>} : vector<256x9xbf16>, vector<9x64xbf16>, vector<256x64xf32> -> vector<256x64xf32>
    %23 = vector.extract_strided_slice %14 {offsets = [1, 0, 0], sizes = [16, 16, 3], strides = [1, 1, 1]} : vector<18x18x3xbf16> to vector<16x16x3xbf16>
    %24 = vector.extract_strided_slice %14 {offsets = [1, 1, 0], sizes = [16, 16, 3], strides = [1, 1, 1]} : vector<18x18x3xbf16> to vector<16x16x3xbf16>
    %25 = vector.extract_strided_slice %14 {offsets = [1, 2, 0], sizes = [16, 16, 3], strides = [1, 1, 1]} : vector<18x18x3xbf16> to vector<16x16x3xbf16>
    %26 = tpu.concatenate %23, %24, %25 in 2 : vector<16x16x3xbf16>, vector<16x16x3xbf16>, vector<16x16x3xbf16> -> vector<16x16x9xbf16>
    %27 = vector.shape_cast %26 : vector<16x16x9xbf16> to vector<256x9xbf16>
    %c1 = arith.constant 1 : index
    %c0_18 = arith.constant 0 : index
    %c0_19 = arith.constant 0 : index
    %28 = vector.load %arg5[%c1, %c0_18, %c0_19] : memref<3x9x64xbf16, #tpu.memory_space<vmem>>, vector<1x9x64xbf16>
    %29 = vector.shape_cast %28 : vector<1x9x64xbf16> to vector<9x64xbf16>
    %cst_20 = arith.constant dense<0.000000e+00> : vector<256x64xf32>
    %30 = tpu.matmul %27, %29, %cst_20 {dimension_numbers = #tpu.dot_dimension_numbers<[1], [0], [0], [1], [0, 0, 1, 1], [], []>} : vector<256x9xbf16>, vector<9x64xbf16>, vector<256x64xf32> -> vector<256x64xf32>
    %31 = arith.addf %22, %30 : vector<256x64xf32>
    %32 = vector.extract_strided_slice %14 {offsets = [2, 0, 0], sizes = [16, 16, 3], strides = [1, 1, 1]} : vector<18x18x3xbf16> to vector<16x16x3xbf16>
    %33 = vector.extract_strided_slice %14 {offsets = [2, 1, 0], sizes = [16, 16, 3], strides = [1, 1, 1]} : vector<18x18x3xbf16> to vector<16x16x3xbf16>
    %34 = vector.extract_strided_slice %14 {offsets = [2, 2, 0], sizes = [16, 16, 3], strides = [1, 1, 1]} : vector<18x18x3xbf16> to vector<16x16x3xbf16>
    %35 = tpu.concatenate %32, %33, %34 in 2 : vector<16x16x3xbf16>, vector<16x16x3xbf16>, vector<16x16x3xbf16> -> vector<16x16x9xbf16>
    %36 = vector.shape_cast %35 : vector<16x16x9xbf16> to vector<256x9xbf16>
    %c2 = arith.constant 2 : index
    %c0_21 = arith.constant 0 : index
    %c0_22 = arith.constant 0 : index
    %37 = vector.load %arg5[%c2, %c0_21, %c0_22] : memref<3x9x64xbf16, #tpu.memory_space<vmem>>, vector<1x9x64xbf16>
    %38 = vector.shape_cast %37 : vector<1x9x64xbf16> to vector<9x64xbf16>
    %cst_23 = arith.constant dense<0.000000e+00> : vector<256x64xf32>
    %39 = tpu.matmul %36, %38, %cst_23 {dimension_numbers = #tpu.dot_dimension_numbers<[1], [0], [0], [1], [0, 0, 1, 1], [], []>} : vector<256x9xbf16>, vector<9x64xbf16>, vector<256x64xf32> -> vector<256x64xf32>
    %40 = arith.addf %31, %39 : vector<256x64xf32>
    %c0_24 = arith.constant 0 : index
    %c0_25 = arith.constant 0 : index
    %41 = vector.load %arg6[%c0_24, %c0_25] : memref<1x64xf32, #tpu.memory_space<vmem>>, vector<1x64xf32>
    %42 = vector.broadcast %41 : vector<1x64xf32> to vector<256x64xf32>
    %43 = arith.addf %40, %42 : vector<256x64xf32>
    %cst_26 = arith.constant 0.000000e+00 : f32
    %44 = vector.broadcast %cst_26 : f32 to vector<256x64xf32>
    %45 = arith.maximumf %43, %44 : vector<256x64xf32>
    %46 = vector.shape_cast %45 : vector<256x64xf32> to vector<16x16x64xf32>
    %47 = vector.shape_cast %46 : vector<16x16x64xf32> to vector<1x16x16x64xf32>
    %48 = arith.truncf %47 : vector<1x16x16x64xf32> to vector<1x16x16x64xbf16>
    %c0_27 = arith.constant 0 : index
    %c0_28 = arith.constant 0 : index
    %c0_29 = arith.constant 0 : index
    %c0_30 = arith.constant 0 : index
    %49 = vector.load %arg7[%c0_27, %c0_28, %c0_29, %c0_30] : memref<1x16x16x64xbf16, #tpu.memory_space<vmem>>, vector<1x16x16x64xbf16>
    tpu.vector_store %arg7[%c0_27, %c0_28, %c0_29, %c0_30], %48 {strides = array<i32>} : memref<1x16x16x64xbf16, #tpu.memory_space<vmem>>, vector<1x16x16x64xbf16>,
    return
  }
  func.func @transform_0(%arg0: i32, %arg1: i32) -> (i32, i32, i32, i32) {
    %c16_i32 = arith.constant 16 : i32
    %0 = arith.muli %arg1, %c16_i32 : i32
    %c1_i32 = arith.constant 1 : i32
    %1 = arith.subi %0, %c1_i32 : i32
    %c0_i32 = arith.constant 0 : i32
    %2 = arith.maxsi %1, %c0_i32 : i32
    %c0_i32_0 = arith.constant 0 : i32
    %c0_i32_1 = arith.constant 0 : i32
    %c0_i32_2 = arith.constant 0 : i32
    return %arg0, %2, %c0_i32_0, %c0_i32_1 : i32, i32, i32, i32
  }
  func.func @transform_1(%arg0: i32, %arg1: i32) -> (i32, i32, i32, i32) {
    %c0_i32 = arith.constant 0 : i32
    %c0_i32_0 = arith.constant 0 : i32
    %c0_i32_1 = arith.constant 0 : i32
    return %arg0, %arg1, %c0_i32, %c0_i32_0 : i32, i32, i32, i32
  }
  func.func @transform_2(%arg0: i32, %arg1: i32) -> (i32, i32, i32, i32) {
    %c16_i32 = arith.constant 16 : i32
    %0 = arith.muli %arg1, %c16_i32 : i32
    %c16_i32_0 = arith.constant 16 : i32
    %1 = arith.addi %0, %c16_i32_0 : i32
    %c15_i32 = arith.constant 15 : i32
    %2 = arith.minsi %1, %c15_i32 : i32
    %c0_i32 = arith.constant 0 : i32
    %c0_i32_1 = arith.constant 0 : i32
    %c0_i32_2 = arith.constant 0 : i32
    return %arg0, %2, %c0_i32, %c0_i32_1 : i32, i32, i32, i32
  }
  func.func @transform_3(%arg0: i32, %arg1: i32) -> (i32, i32, i32) {
    %c0_i32 = arith.constant 0 : i32
    %c0_i32_0 = arith.constant 0 : i32
    %c0_i32_1 = arith.constant 0 : i32
    %c0_i32_2 = arith.constant 0 : i32
    return %c0_i32, %c0_i32_0, %c0_i32_1 : i32, i32, i32
  }
  func.func @transform_4(%arg0: i32, %arg1: i32) -> (i32, i32) {
    %c0_i32 = arith.constant 0 : i32
    %c0_i32_0 = arith.constant 0 : i32
    %c0_i32_1 = arith.constant 0 : i32
    return %c0_i32, %c0_i32_0 : i32, i32
  }
  func.func @transform_5(%arg0: i32, %arg1: i32) -> (i32, i32, i32, i32) {
    %c0_i32 = arith.constant 0 : i32
    %c0_i32_0 = arith.constant 0 : i32
    %c0_i32_1 = arith.constant 0 : i32
    return %arg0, %arg1, %c0_i32, %c0_i32_0 : i32, i32, i32, i32
  }
}

module attributes {stable_mosaic.version = 11 : i64} {
  func.func @_conv3x3_strip_kernel(%arg0: i32, %arg1: i32, %arg2: memref<1x1x16x64xbf16, #tpu.memory_space<vmem>>, %arg3: memref<1x16x16x64xbf16, #tpu.memory_space<vmem>>, %arg4: memref<1x1x16x64xbf16, #tpu.memory_space<vmem>>, %arg5: memref<3x192x64xbf16, #tpu.memory_space<vmem>>, %arg6: memref<1x64xf32, #tpu.memory_space<vmem>>, %arg7: memref<1x8x8x64xbf16, #tpu.memory_space<vmem>>) attributes {dimension_semantics = [#tpu.dimension_semantics<parallel>, #tpu.dimension_semantics<parallel>], iteration_bounds = array<i64: 4, 1>, scalar_prefetch = 0 : i64, scratch_operands = 0 : i64, tpu.core_type = #tpu.core_type<tc>, window_params = [{transform_indices = @transform_0, window_bounds = array<i64: 1, 1, 16, 64>}, {transform_indices = @transform_1, window_bounds = array<i64: 1, 16, 16, 64>}, {transform_indices = @transform_2, window_bounds = array<i64: 1, 1, 16, 64>}, {pipeline_mode = #tpu.pipeline_mode<synchronous>, transform_indices = @transform_3, window_bounds = array<i64: 3, 192, 64>}, {pipeline_mode = #tpu.pipeline_mode<synchronous>, transform_indices = @transform_4, window_bounds = array<i64: 1, 64>}, {transform_indices = @transform_5, window_bounds = array<i64: 1, 8, 8, 64>}]} {
    %c0 = arith.constant 0 : index
    %c0_0 = arith.constant 0 : index
    %c0_1 = arith.constant 0 : index
    %c0_2 = arith.constant 0 : index
    %0 = vector.load %arg2[%c0, %c0_0, %c0_1, %c0_2] : memref<1x1x16x64xbf16, #tpu.memory_space<vmem>>, vector<1x1x16x64xbf16>
    %1 = vector.shape_cast %0 : vector<1x1x16x64xbf16> to vector<1x16x64xbf16>
    %c0_3 = arith.constant 0 : index
    %c0_4 = arith.constant 0 : index
    %c0_5 = arith.constant 0 : index
    %c0_6 = arith.constant 0 : index
    %2 = vector.load %arg3[%c0_3, %c0_4, %c0_5, %c0_6] : memref<1x16x16x64xbf16, #tpu.memory_space<vmem>>, vector<1x16x16x64xbf16>
    %3 = vector.shape_cast %2 : vector<1x16x16x64xbf16> to vector<16x16x64xbf16>
    %c0_7 = arith.constant 0 : index
    %c0_8 = arith.constant 0 : index
    %c0_9 = arith.constant 0 : index
    %c0_10 = arith.constant 0 : index
    %4 = vector.load %arg4[%c0_7, %c0_8, %c0_9, %c0_10] : memref<1x1x16x64xbf16, #tpu.memory_space<vmem>>, vector<1x1x16x64xbf16>
    %5 = vector.shape_cast %4 : vector<1x1x16x64xbf16> to vector<1x16x64xbf16>
    %c0_i32 = arith.constant 0 : i32
    %6 = arith.cmpi eq, %arg1, %c0_i32 : i32
    %cst = arith.constant 0.000000e+00 : bf16
    %7 = vector.broadcast %cst : bf16 to vector<1x16x64xbf16>
    %8 = arith.select %6, %7, %1 : vector<1x16x64xbf16>
    %c0_i32_11 = arith.constant 0 : i32
    %9 = arith.cmpi eq, %arg1, %c0_i32_11 : i32
    %cst_12 = arith.constant 0.000000e+00 : bf16
    %10 = vector.broadcast %cst_12 : bf16 to vector<1x16x64xbf16>
    %11 = arith.select %9, %10, %5 : vector<1x16x64xbf16>
    %12 = tpu.concatenate %8, %3, %11 in 0 : vector<1x16x64xbf16>, vector<16x16x64xbf16>, vector<1x16x64xbf16> -> vector<18x16x64xbf16>
    %cst_13 = arith.constant 0.000000e+00 : bf16
    %13 = vector.broadcast %cst_13 : bf16 to vector<18x1x64xbf16>
    %14 = tpu.concatenate %13, %12, %13 in 1 : vector<18x1x64xbf16>, vector<18x16x64xbf16>, vector<18x1x64xbf16> -> vector<18x18x64xbf16>
    %15 = vector.extract_strided_slice %14 {offsets = [0, 0, 0], sizes = [16, 16, 64], strides = [1, 1, 1]} : vector<18x18x64xbf16> to vector<16x16x64xbf16>
    %16 = vector.extract_strided_slice %14 {offsets = [0, 1, 0], sizes = [16, 16, 64], strides = [1, 1, 1]} : vector<18x18x64xbf16> to vector<16x16x64xbf16>
    %17 = vector.extract_strided_slice %14 {offsets = [0, 2, 0], sizes = [16, 16, 64], strides = [1, 1, 1]} : vector<18x18x64xbf16> to vector<16x16x64xbf16>
    %18 = tpu.concatenate %15, %16, %17 in 2 : vector<16x16x64xbf16>, vector<16x16x64xbf16>, vector<16x16x64xbf16> -> vector<16x16x192xbf16>
    %19 = vector.shape_cast %18 : vector<16x16x192xbf16> to vector<256x192xbf16>
    %c0_14 = arith.constant 0 : index
    %c0_15 = arith.constant 0 : index
    %c0_16 = arith.constant 0 : index
    %20 = vector.load %arg5[%c0_14, %c0_15, %c0_16] : memref<3x192x64xbf16, #tpu.memory_space<vmem>>, vector<1x192x64xbf16>
    %21 = vector.shape_cast %20 : vector<1x192x64xbf16> to vector<192x64xbf16>
    %cst_17 = arith.constant dense<0.000000e+00> : vector<256x64xf32>
    %22 = tpu.matmul %19, %21, %cst_17 {dimension_numbers = #tpu.dot_dimension_numbers<[1], [0], [0], [1], [0, 0, 1, 1], [], []>} : vector<256x192xbf16>, vector<192x64xbf16>, vector<256x64xf32> -> vector<256x64xf32>
    %23 = vector.extract_strided_slice %14 {offsets = [1, 0, 0], sizes = [16, 16, 64], strides = [1, 1, 1]} : vector<18x18x64xbf16> to vector<16x16x64xbf16>
    %24 = vector.extract_strided_slice %14 {offsets = [1, 1, 0], sizes = [16, 16, 64], strides = [1, 1, 1]} : vector<18x18x64xbf16> to vector<16x16x64xbf16>
    %25 = vector.extract_strided_slice %14 {offsets = [1, 2, 0], sizes = [16, 16, 64], strides = [1, 1, 1]} : vector<18x18x64xbf16> to vector<16x16x64xbf16>
    %26 = tpu.concatenate %23, %24, %25 in 2 : vector<16x16x64xbf16>, vector<16x16x64xbf16>, vector<16x16x64xbf16> -> vector<16x16x192xbf16>
    %27 = vector.shape_cast %26 : vector<16x16x192xbf16> to vector<256x192xbf16>
    %c1 = arith.constant 1 : index
    %c0_18 = arith.constant 0 : index
    %c0_19 = arith.constant 0 : index
    %28 = vector.load %arg5[%c1, %c0_18, %c0_19] : memref<3x192x64xbf16, #tpu.memory_space<vmem>>, vector<1x192x64xbf16>
    %29 = vector.shape_cast %28 : vector<1x192x64xbf16> to vector<192x64xbf16>
    %cst_20 = arith.constant dense<0.000000e+00> : vector<256x64xf32>
    %30 = tpu.matmul %27, %29, %cst_20 {dimension_numbers = #tpu.dot_dimension_numbers<[1], [0], [0], [1], [0, 0, 1, 1], [], []>} : vector<256x192xbf16>, vector<192x64xbf16>, vector<256x64xf32> -> vector<256x64xf32>
    %31 = arith.addf %22, %30 : vector<256x64xf32>
    %32 = vector.extract_strided_slice %14 {offsets = [2, 0, 0], sizes = [16, 16, 64], strides = [1, 1, 1]} : vector<18x18x64xbf16> to vector<16x16x64xbf16>
    %33 = vector.extract_strided_slice %14 {offsets = [2, 1, 0], sizes = [16, 16, 64], strides = [1, 1, 1]} : vector<18x18x64xbf16> to vector<16x16x64xbf16>
    %34 = vector.extract_strided_slice %14 {offsets = [2, 2, 0], sizes = [16, 16, 64], strides = [1, 1, 1]} : vector<18x18x64xbf16> to vector<16x16x64xbf16>
    %35 = tpu.concatenate %32, %33, %34 in 2 : vector<16x16x64xbf16>, vector<16x16x64xbf16>, vector<16x16x64xbf16> -> vector<16x16x192xbf16>
    %36 = vector.shape_cast %35 : vector<16x16x192xbf16> to vector<256x192xbf16>
    %c2 = arith.constant 2 : index
    %c0_21 = arith.constant 0 : index
    %c0_22 = arith.constant 0 : index
    %37 = vector.load %arg5[%c2, %c0_21, %c0_22] : memref<3x192x64xbf16, #tpu.memory_space<vmem>>, vector<1x192x64xbf16>
    %38 = vector.shape_cast %37 : vector<1x192x64xbf16> to vector<192x64xbf16>
    %cst_23 = arith.constant dense<0.000000e+00> : vector<256x64xf32>
    %39 = tpu.matmul %36, %38, %cst_23 {dimension_numbers = #tpu.dot_dimension_numbers<[1], [0], [0], [1], [0, 0, 1, 1], [], []>} : vector<256x192xbf16>, vector<192x64xbf16>, vector<256x64xf32> -> vector<256x64xf32>
    %40 = arith.addf %31, %39 : vector<256x64xf32>
    %c0_24 = arith.constant 0 : index
    %c0_25 = arith.constant 0 : index
    %41 = vector.load %arg6[%c0_24, %c0_25] : memref<1x64xf32, #tpu.memory_space<vmem>>, vector<1x64xf32>
    %42 = vector.broadcast %41 : vector<1x64xf32> to vector<256x64xf32>
    %43 = arith.addf %40, %42 : vector<256x64xf32>
    %cst_26 = arith.constant 0.000000e+00 : f32
    %44 = vector.broadcast %cst_26 : f32 to vector<256x64xf32>
    %45 = arith.maximumf %43, %44 : vector<256x64xf32>
    %46 = vector.shape_cast %45 : vector<256x64xf32> to vector<16x16x64xf32>
    %47 = vector.shape_cast %46 : vector<16x16x64xf32> to vector<8x2x8x2x64xf32>
    %cst_27 = arith.constant dense<0xFF800000> : vector<8x2x8x64xf32>
    %48 = vector.multi_reduction <maximumf>, %47, %cst_27 [3] : vector<8x2x8x2x64xf32> to vector<8x2x8x64xf32>
    %cst_28 = arith.constant dense<0xFF800000> : vector<8x8x64xf32>
    %49 = vector.multi_reduction <maximumf>, %48, %cst_28 [1] : vector<8x2x8x64xf32> to vector<8x8x64xf32>
    %50 = vector.shape_cast %49 : vector<8x8x64xf32> to vector<1x8x8x64xf32>
    %51 = arith.truncf %50 : vector<1x8x8x64xf32> to vector<1x8x8x64xbf16>
    %c0_29 = arith.constant 0 : index
    %c0_30 = arith.constant 0 : index
    %c0_31 = arith.constant 0 : index
    %c0_32 = arith.constant 0 : index
    %52 = vector.load %arg7[%c0_29, %c0_30, %c0_31, %c0_32] : memref<1x8x8x64xbf16, #tpu.memory_space<vmem>>, vector<1x8x8x64xbf16>
    tpu.vector_store %arg7[%c0_29, %c0_30, %c0_31, %c0_32], %51 {strides = array<i32>} : memref<1x8x8x64xbf16, #tpu.memory_space<vmem>>, vector<1x8x8x64xbf16>,
    return
  }
  func.func @transform_0(%arg0: i32, %arg1: i32) -> (i32, i32, i32, i32) {
    %c16_i32 = arith.constant 16 : i32
    %0 = arith.muli %arg1, %c16_i32 : i32
    %c1_i32 = arith.constant 1 : i32
    %1 = arith.subi %0, %c1_i32 : i32
    %c0_i32 = arith.constant 0 : i32
    %2 = arith.maxsi %1, %c0_i32 : i32
    %c0_i32_0 = arith.constant 0 : i32
    %c0_i32_1 = arith.constant 0 : i32
    %c0_i32_2 = arith.constant 0 : i32
    return %arg0, %2, %c0_i32_0, %c0_i32_1 : i32, i32, i32, i32
  }
  func.func @transform_1(%arg0: i32, %arg1: i32) -> (i32, i32, i32, i32) {
    %c0_i32 = arith.constant 0 : i32
    %c0_i32_0 = arith.constant 0 : i32
    %c0_i32_1 = arith.constant 0 : i32
    return %arg0, %arg1, %c0_i32, %c0_i32_0 : i32, i32, i32, i32
  }
  func.func @transform_2(%arg0: i32, %arg1: i32) -> (i32, i32, i32, i32) {
    %c16_i32 = arith.constant 16 : i32
    %0 = arith.muli %arg1, %c16_i32 : i32
    %c16_i32_0 = arith.constant 16 : i32
    %1 = arith.addi %0, %c16_i32_0 : i32
    %c15_i32 = arith.constant 15 : i32
    %2 = arith.minsi %1, %c15_i32 : i32
    %c0_i32 = arith.constant 0 : i32
    %c0_i32_1 = arith.constant 0 : i32
    %c0_i32_2 = arith.constant 0 : i32
    return %arg0, %2, %c0_i32, %c0_i32_1 : i32, i32, i32, i32
  }
  func.func @transform_3(%arg0: i32, %arg1: i32) -> (i32, i32, i32) {
    %c0_i32 = arith.constant 0 : i32
    %c0_i32_0 = arith.constant 0 : i32
    %c0_i32_1 = arith.constant 0 : i32
    %c0_i32_2 = arith.constant 0 : i32
    return %c0_i32, %c0_i32_0, %c0_i32_1 : i32, i32, i32
  }
  func.func @transform_4(%arg0: i32, %arg1: i32) -> (i32, i32) {
    %c0_i32 = arith.constant 0 : i32
    %c0_i32_0 = arith.constant 0 : i32
    %c0_i32_1 = arith.constant 0 : i32
    return %c0_i32, %c0_i32_0 : i32, i32
  }
  func.func @transform_5(%arg0: i32, %arg1: i32) -> (i32, i32, i32, i32) {
    %c0_i32 = arith.constant 0 : i32
    %c0_i32_0 = arith.constant 0 : i32
    %c0_i32_1 = arith.constant 0 : i32
    return %arg0, %arg1, %c0_i32, %c0_i32_0 : i32, i32, i32, i32
  }
}

module attributes {stable_mosaic.version = 11 : i64} {
  func.func @_conv3x3_strip_kernel(%arg0: i32, %arg1: i32, %arg2: memref<1x1x8x64xbf16, #tpu.memory_space<vmem>>, %arg3: memref<1x8x8x64xbf16, #tpu.memory_space<vmem>>, %arg4: memref<1x1x8x64xbf16, #tpu.memory_space<vmem>>, %arg5: memref<3x192x128xbf16, #tpu.memory_space<vmem>>, %arg6: memref<1x128xf32, #tpu.memory_space<vmem>>, %arg7: memref<1x8x8x128xbf16, #tpu.memory_space<vmem>>) attributes {dimension_semantics = [#tpu.dimension_semantics<parallel>, #tpu.dimension_semantics<parallel>], iteration_bounds = array<i64: 4, 1>, scalar_prefetch = 0 : i64, scratch_operands = 0 : i64, tpu.core_type = #tpu.core_type<tc>, window_params = [{transform_indices = @transform_0, window_bounds = array<i64: 1, 1, 8, 64>}, {transform_indices = @transform_1, window_bounds = array<i64: 1, 8, 8, 64>}, {transform_indices = @transform_2, window_bounds = array<i64: 1, 1, 8, 64>}, {pipeline_mode = #tpu.pipeline_mode<synchronous>, transform_indices = @transform_3, window_bounds = array<i64: 3, 192, 128>}, {pipeline_mode = #tpu.pipeline_mode<synchronous>, transform_indices = @transform_4, window_bounds = array<i64: 1, 128>}, {transform_indices = @transform_5, window_bounds = array<i64: 1, 8, 8, 128>}]} {
    %c0 = arith.constant 0 : index
    %c0_0 = arith.constant 0 : index
    %c0_1 = arith.constant 0 : index
    %c0_2 = arith.constant 0 : index
    %0 = vector.load %arg2[%c0, %c0_0, %c0_1, %c0_2] : memref<1x1x8x64xbf16, #tpu.memory_space<vmem>>, vector<1x1x8x64xbf16>
    %1 = vector.shape_cast %0 : vector<1x1x8x64xbf16> to vector<1x8x64xbf16>
    %c0_3 = arith.constant 0 : index
    %c0_4 = arith.constant 0 : index
    %c0_5 = arith.constant 0 : index
    %c0_6 = arith.constant 0 : index
    %2 = vector.load %arg3[%c0_3, %c0_4, %c0_5, %c0_6] : memref<1x8x8x64xbf16, #tpu.memory_space<vmem>>, vector<1x8x8x64xbf16>
    %3 = vector.shape_cast %2 : vector<1x8x8x64xbf16> to vector<8x8x64xbf16>
    %c0_7 = arith.constant 0 : index
    %c0_8 = arith.constant 0 : index
    %c0_9 = arith.constant 0 : index
    %c0_10 = arith.constant 0 : index
    %4 = vector.load %arg4[%c0_7, %c0_8, %c0_9, %c0_10] : memref<1x1x8x64xbf16, #tpu.memory_space<vmem>>, vector<1x1x8x64xbf16>
    %5 = vector.shape_cast %4 : vector<1x1x8x64xbf16> to vector<1x8x64xbf16>
    %c0_i32 = arith.constant 0 : i32
    %6 = arith.cmpi eq, %arg1, %c0_i32 : i32
    %cst = arith.constant 0.000000e+00 : bf16
    %7 = vector.broadcast %cst : bf16 to vector<1x8x64xbf16>
    %8 = arith.select %6, %7, %1 : vector<1x8x64xbf16>
    %c0_i32_11 = arith.constant 0 : i32
    %9 = arith.cmpi eq, %arg1, %c0_i32_11 : i32
    %cst_12 = arith.constant 0.000000e+00 : bf16
    %10 = vector.broadcast %cst_12 : bf16 to vector<1x8x64xbf16>
    %11 = arith.select %9, %10, %5 : vector<1x8x64xbf16>
    %12 = tpu.concatenate %8, %3, %11 in 0 : vector<1x8x64xbf16>, vector<8x8x64xbf16>, vector<1x8x64xbf16> -> vector<10x8x64xbf16>
    %cst_13 = arith.constant 0.000000e+00 : bf16
    %13 = vector.broadcast %cst_13 : bf16 to vector<10x1x64xbf16>
    %14 = tpu.concatenate %13, %12, %13 in 1 : vector<10x1x64xbf16>, vector<10x8x64xbf16>, vector<10x1x64xbf16> -> vector<10x10x64xbf16>
    %15 = vector.extract_strided_slice %14 {offsets = [0, 0, 0], sizes = [8, 8, 64], strides = [1, 1, 1]} : vector<10x10x64xbf16> to vector<8x8x64xbf16>
    %16 = vector.extract_strided_slice %14 {offsets = [0, 1, 0], sizes = [8, 8, 64], strides = [1, 1, 1]} : vector<10x10x64xbf16> to vector<8x8x64xbf16>
    %17 = vector.extract_strided_slice %14 {offsets = [0, 2, 0], sizes = [8, 8, 64], strides = [1, 1, 1]} : vector<10x10x64xbf16> to vector<8x8x64xbf16>
    %18 = tpu.concatenate %15, %16, %17 in 2 : vector<8x8x64xbf16>, vector<8x8x64xbf16>, vector<8x8x64xbf16> -> vector<8x8x192xbf16>
    %19 = vector.shape_cast %18 : vector<8x8x192xbf16> to vector<64x192xbf16>
    %c0_14 = arith.constant 0 : index
    %c0_15 = arith.constant 0 : index
    %c0_16 = arith.constant 0 : index
    %20 = vector.load %arg5[%c0_14, %c0_15, %c0_16] : memref<3x192x128xbf16, #tpu.memory_space<vmem>>, vector<1x192x128xbf16>
    %21 = vector.shape_cast %20 : vector<1x192x128xbf16> to vector<192x128xbf16>
    %cst_17 = arith.constant dense<0.000000e+00> : vector<64x128xf32>
    %22 = tpu.matmul %19, %21, %cst_17 {dimension_numbers = #tpu.dot_dimension_numbers<[1], [0], [0], [1], [0, 0, 1, 1], [], []>} : vector<64x192xbf16>, vector<192x128xbf16>, vector<64x128xf32> -> vector<64x128xf32>
    %23 = vector.extract_strided_slice %14 {offsets = [1, 0, 0], sizes = [8, 8, 64], strides = [1, 1, 1]} : vector<10x10x64xbf16> to vector<8x8x64xbf16>
    %24 = vector.extract_strided_slice %14 {offsets = [1, 1, 0], sizes = [8, 8, 64], strides = [1, 1, 1]} : vector<10x10x64xbf16> to vector<8x8x64xbf16>
    %25 = vector.extract_strided_slice %14 {offsets = [1, 2, 0], sizes = [8, 8, 64], strides = [1, 1, 1]} : vector<10x10x64xbf16> to vector<8x8x64xbf16>
    %26 = tpu.concatenate %23, %24, %25 in 2 : vector<8x8x64xbf16>, vector<8x8x64xbf16>, vector<8x8x64xbf16> -> vector<8x8x192xbf16>
    %27 = vector.shape_cast %26 : vector<8x8x192xbf16> to vector<64x192xbf16>
    %c1 = arith.constant 1 : index
    %c0_18 = arith.constant 0 : index
    %c0_19 = arith.constant 0 : index
    %28 = vector.load %arg5[%c1, %c0_18, %c0_19] : memref<3x192x128xbf16, #tpu.memory_space<vmem>>, vector<1x192x128xbf16>
    %29 = vector.shape_cast %28 : vector<1x192x128xbf16> to vector<192x128xbf16>
    %cst_20 = arith.constant dense<0.000000e+00> : vector<64x128xf32>
    %30 = tpu.matmul %27, %29, %cst_20 {dimension_numbers = #tpu.dot_dimension_numbers<[1], [0], [0], [1], [0, 0, 1, 1], [], []>} : vector<64x192xbf16>, vector<192x128xbf16>, vector<64x128xf32> -> vector<64x128xf32>
    %31 = arith.addf %22, %30 : vector<64x128xf32>
    %32 = vector.extract_strided_slice %14 {offsets = [2, 0, 0], sizes = [8, 8, 64], strides = [1, 1, 1]} : vector<10x10x64xbf16> to vector<8x8x64xbf16>
    %33 = vector.extract_strided_slice %14 {offsets = [2, 1, 0], sizes = [8, 8, 64], strides = [1, 1, 1]} : vector<10x10x64xbf16> to vector<8x8x64xbf16>
    %34 = vector.extract_strided_slice %14 {offsets = [2, 2, 0], sizes = [8, 8, 64], strides = [1, 1, 1]} : vector<10x10x64xbf16> to vector<8x8x64xbf16>
    %35 = tpu.concatenate %32, %33, %34 in 2 : vector<8x8x64xbf16>, vector<8x8x64xbf16>, vector<8x8x64xbf16> -> vector<8x8x192xbf16>
    %36 = vector.shape_cast %35 : vector<8x8x192xbf16> to vector<64x192xbf16>
    %c2 = arith.constant 2 : index
    %c0_21 = arith.constant 0 : index
    %c0_22 = arith.constant 0 : index
    %37 = vector.load %arg5[%c2, %c0_21, %c0_22] : memref<3x192x128xbf16, #tpu.memory_space<vmem>>, vector<1x192x128xbf16>
    %38 = vector.shape_cast %37 : vector<1x192x128xbf16> to vector<192x128xbf16>
    %cst_23 = arith.constant dense<0.000000e+00> : vector<64x128xf32>
    %39 = tpu.matmul %36, %38, %cst_23 {dimension_numbers = #tpu.dot_dimension_numbers<[1], [0], [0], [1], [0, 0, 1, 1], [], []>} : vector<64x192xbf16>, vector<192x128xbf16>, vector<64x128xf32> -> vector<64x128xf32>
    %40 = arith.addf %31, %39 : vector<64x128xf32>
    %c0_24 = arith.constant 0 : index
    %c0_25 = arith.constant 0 : index
    %41 = vector.load %arg6[%c0_24, %c0_25] : memref<1x128xf32, #tpu.memory_space<vmem>>, vector<1x128xf32>
    %42 = vector.broadcast %41 : vector<1x128xf32> to vector<64x128xf32>
    %43 = arith.addf %40, %42 : vector<64x128xf32>
    %cst_26 = arith.constant 0.000000e+00 : f32
    %44 = vector.broadcast %cst_26 : f32 to vector<64x128xf32>
    %45 = arith.maximumf %43, %44 : vector<64x128xf32>
    %46 = vector.shape_cast %45 : vector<64x128xf32> to vector<8x8x128xf32>
    %47 = vector.shape_cast %46 : vector<8x8x128xf32> to vector<1x8x8x128xf32>
    %48 = arith.truncf %47 : vector<1x8x8x128xf32> to vector<1x8x8x128xbf16>
    %c0_27 = arith.constant 0 : index
    %c0_28 = arith.constant 0 : index
    %c0_29 = arith.constant 0 : index
    %c0_30 = arith.constant 0 : index
    %49 = vector.load %arg7[%c0_27, %c0_28, %c0_29, %c0_30] : memref<1x8x8x128xbf16, #tpu.memory_space<vmem>>, vector<1x8x8x128xbf16>
    tpu.vector_store %arg7[%c0_27, %c0_28, %c0_29, %c0_30], %48 {strides = array<i32>} : memref<1x8x8x128xbf16, #tpu.memory_space<vmem>>, vector<1x8x8x128xbf16>,
    return
  }
  func.func @transform_0(%arg0: i32, %arg1: i32) -> (i32, i32, i32, i32) {
    %c8_i32 = arith.constant 8 : i32
    %0 = arith.muli %arg1, %c8_i32 : i32
    %c1_i32 = arith.constant 1 : i32
    %1 = arith.subi %0, %c1_i32 : i32
    %c0_i32 = arith.constant 0 : i32
    %2 = arith.maxsi %1, %c0_i32 : i32
    %c0_i32_0 = arith.constant 0 : i32
    %c0_i32_1 = arith.constant 0 : i32
    %c0_i32_2 = arith.constant 0 : i32
    return %arg0, %2, %c0_i32_0, %c0_i32_1 : i32, i32, i32, i32
  }
  func.func @transform_1(%arg0: i32, %arg1: i32) -> (i32, i32, i32, i32) {
    %c0_i32 = arith.constant 0 : i32
    %c0_i32_0 = arith.constant 0 : i32
    %c0_i32_1 = arith.constant 0 : i32
    return %arg0, %arg1, %c0_i32, %c0_i32_0 : i32, i32, i32, i32
  }
  func.func @transform_2(%arg0: i32, %arg1: i32) -> (i32, i32, i32, i32) {
    %c8_i32 = arith.constant 8 : i32
    %0 = arith.muli %arg1, %c8_i32 : i32
    %c8_i32_0 = arith.constant 8 : i32
    %1 = arith.addi %0, %c8_i32_0 : i32
    %c7_i32 = arith.constant 7 : i32
    %2 = arith.minsi %1, %c7_i32 : i32
    %c0_i32 = arith.constant 0 : i32
    %c0_i32_1 = arith.constant 0 : i32
    %c0_i32_2 = arith.constant 0 : i32
    return %arg0, %2, %c0_i32, %c0_i32_1 : i32, i32, i32, i32
  }
  func.func @transform_3(%arg0: i32, %arg1: i32) -> (i32, i32, i32) {
    %c0_i32 = arith.constant 0 : i32
    %c0_i32_0 = arith.constant 0 : i32
    %c0_i32_1 = arith.constant 0 : i32
    %c0_i32_2 = arith.constant 0 : i32
    return %c0_i32, %c0_i32_0, %c0_i32_1 : i32, i32, i32
  }
  func.func @transform_4(%arg0: i32, %arg1: i32) -> (i32, i32) {
    %c0_i32 = arith.constant 0 : i32
    %c0_i32_0 = arith.constant 0 : i32
    %c0_i32_1 = arith.constant 0 : i32
    return %c0_i32, %c0_i32_0 : i32, i32
  }
  func.func @transform_5(%arg0: i32, %arg1: i32) -> (i32, i32, i32, i32) {
    %c0_i32 = arith.constant 0 : i32
    %c0_i32_0 = arith.constant 0 : i32
    %c0_i32_1 = arith.constant 0 : i32
    return %arg0, %arg1, %c0_i32, %c0_i32_0 : i32, i32, i32, i32
  }
}

module attributes {stable_mosaic.version = 11 : i64} {
  func.func @_conv7_mse_kernel(%arg0: i32, %arg1: i32, %arg2: memref<1x1x8x128xbf16, #tpu.memory_space<vmem>>, %arg3: memref<1x8x8x128xbf16, #tpu.memory_space<vmem>>, %arg4: memref<1x1x8x128xbf16, #tpu.memory_space<vmem>>, %arg5: memref<1x1x8x128xbf16, #tpu.memory_space<vmem>>, %arg6: memref<1x8x8x128xbf16, #tpu.memory_space<vmem>>, %arg7: memref<1x1x8x128xbf16, #tpu.memory_space<vmem>>, %arg8: memref<3x384x128xbf16, #tpu.memory_space<vmem>>, %arg9: memref<1x1x128xf32, #tpu.memory_space<vmem>>, %arg10: memref<1x128xf32, #tpu.memory_space<vmem>>) attributes {dimension_semantics = [#tpu.dimension_semantics<parallel>, #tpu.dimension_semantics<arbitrary>], iteration_bounds = array<i64: 2, 1>, scalar_prefetch = 0 : i64, scratch_operands = 1 : i64, tpu.core_type = #tpu.core_type<tc>, window_params = [{transform_indices = @transform_0, window_bounds = array<i64: 1, 1, 8, 128>}, {transform_indices = @transform_1, window_bounds = array<i64: 1, 8, 8, 128>}, {transform_indices = @transform_2, window_bounds = array<i64: 1, 1, 8, 128>}, {transform_indices = @transform_3, window_bounds = array<i64: 1, 1, 8, 128>}, {transform_indices = @transform_4, window_bounds = array<i64: 1, 8, 8, 128>}, {transform_indices = @transform_5, window_bounds = array<i64: 1, 1, 8, 128>}, {pipeline_mode = #tpu.pipeline_mode<synchronous>, transform_indices = @transform_6, window_bounds = array<i64: 3, 384, 128>}, {transform_indices = @transform_7, window_bounds = array<i64: 1, 1, 128>}]} {
    %c0 = arith.constant 0 : index
    %c0_0 = arith.constant 0 : index
    %c0_1 = arith.constant 0 : index
    %c0_2 = arith.constant 0 : index
    %0 = vector.load %arg2[%c0, %c0_0, %c0_1, %c0_2] : memref<1x1x8x128xbf16, #tpu.memory_space<vmem>>, vector<1x1x8x128xbf16>
    %1 = vector.shape_cast %0 : vector<1x1x8x128xbf16> to vector<1x8x128xbf16>
    %c0_3 = arith.constant 0 : index
    %c0_4 = arith.constant 0 : index
    %c0_5 = arith.constant 0 : index
    %c0_6 = arith.constant 0 : index
    %2 = vector.load %arg5[%c0_3, %c0_4, %c0_5, %c0_6] : memref<1x1x8x128xbf16, #tpu.memory_space<vmem>>, vector<1x1x8x128xbf16>
    %3 = vector.shape_cast %2 : vector<1x1x8x128xbf16> to vector<1x8x128xbf16>
    %4 = arith.extf %1 : vector<1x8x128xbf16> to vector<1x8x128xf32>
    %5 = arith.extf %3 : vector<1x8x128xbf16> to vector<1x8x128xf32>
    %6 = arith.subf %4, %5 : vector<1x8x128xf32>
    %7 = arith.truncf %6 : vector<1x8x128xf32> to vector<1x8x128xbf16>
    %c0_7 = arith.constant 0 : index
    %c0_8 = arith.constant 0 : index
    %c0_9 = arith.constant 0 : index
    %c0_10 = arith.constant 0 : index
    %8 = vector.load %arg3[%c0_7, %c0_8, %c0_9, %c0_10] : memref<1x8x8x128xbf16, #tpu.memory_space<vmem>>, vector<1x8x8x128xbf16>
    %9 = vector.shape_cast %8 : vector<1x8x8x128xbf16> to vector<8x8x128xbf16>
    %c0_11 = arith.constant 0 : index
    %c0_12 = arith.constant 0 : index
    %c0_13 = arith.constant 0 : index
    %c0_14 = arith.constant 0 : index
    %10 = vector.load %arg6[%c0_11, %c0_12, %c0_13, %c0_14] : memref<1x8x8x128xbf16, #tpu.memory_space<vmem>>, vector<1x8x8x128xbf16>
    %11 = vector.shape_cast %10 : vector<1x8x8x128xbf16> to vector<8x8x128xbf16>
    %12 = arith.extf %9 : vector<8x8x128xbf16> to vector<8x8x128xf32>
    %13 = arith.extf %11 : vector<8x8x128xbf16> to vector<8x8x128xf32>
    %14 = arith.subf %12, %13 : vector<8x8x128xf32>
    %15 = arith.truncf %14 : vector<8x8x128xf32> to vector<8x8x128xbf16>
    %c0_15 = arith.constant 0 : index
    %c0_16 = arith.constant 0 : index
    %c0_17 = arith.constant 0 : index
    %c0_18 = arith.constant 0 : index
    %16 = vector.load %arg4[%c0_15, %c0_16, %c0_17, %c0_18] : memref<1x1x8x128xbf16, #tpu.memory_space<vmem>>, vector<1x1x8x128xbf16>
    %17 = vector.shape_cast %16 : vector<1x1x8x128xbf16> to vector<1x8x128xbf16>
    %c0_19 = arith.constant 0 : index
    %c0_20 = arith.constant 0 : index
    %c0_21 = arith.constant 0 : index
    %c0_22 = arith.constant 0 : index
    %18 = vector.load %arg7[%c0_19, %c0_20, %c0_21, %c0_22] : memref<1x1x8x128xbf16, #tpu.memory_space<vmem>>, vector<1x1x8x128xbf16>
    %19 = vector.shape_cast %18 : vector<1x1x8x128xbf16> to vector<1x8x128xbf16>
    %20 = arith.extf %17 : vector<1x8x128xbf16> to vector<1x8x128xf32>
    %21 = arith.extf %19 : vector<1x8x128xbf16> to vector<1x8x128xf32>
    %22 = arith.subf %20, %21 : vector<1x8x128xf32>
    %23 = arith.truncf %22 : vector<1x8x128xf32> to vector<1x8x128xbf16>
    %c0_i32 = arith.constant 0 : i32
    %24 = arith.cmpi eq, %arg1, %c0_i32 : i32
    %cst = arith.constant 0.000000e+00 : bf16
    %25 = vector.broadcast %cst : bf16 to vector<1x8x128xbf16>
    %26 = arith.select %24, %25, %7 : vector<1x8x128xbf16>
    %c0_i32_23 = arith.constant 0 : i32
    %27 = arith.cmpi eq, %arg1, %c0_i32_23 : i32
    %cst_24 = arith.constant 0.000000e+00 : bf16
    %28 = vector.broadcast %cst_24 : bf16 to vector<1x8x128xbf16>
    %29 = arith.select %27, %28, %23 : vector<1x8x128xbf16>
    %30 = tpu.concatenate %26, %15, %29 in 0 : vector<1x8x128xbf16>, vector<8x8x128xbf16>, vector<1x8x128xbf16> -> vector<10x8x128xbf16>
    %cst_25 = arith.constant 0.000000e+00 : bf16
    %31 = vector.broadcast %cst_25 : bf16 to vector<10x1x128xbf16>
    %32 = tpu.concatenate %31, %30, %31 in 1 : vector<10x1x128xbf16>, vector<10x8x128xbf16>, vector<10x1x128xbf16> -> vector<10x10x128xbf16>
    %33 = vector.extract_strided_slice %32 {offsets = [0, 0, 0], sizes = [8, 8, 128], strides = [1, 1, 1]} : vector<10x10x128xbf16> to vector<8x8x128xbf16>
    %34 = vector.extract_strided_slice %32 {offsets = [0, 1, 0], sizes = [8, 8, 128], strides = [1, 1, 1]} : vector<10x10x128xbf16> to vector<8x8x128xbf16>
    %35 = vector.extract_strided_slice %32 {offsets = [0, 2, 0], sizes = [8, 8, 128], strides = [1, 1, 1]} : vector<10x10x128xbf16> to vector<8x8x128xbf16>
    %36 = tpu.concatenate %33, %34, %35 in 2 : vector<8x8x128xbf16>, vector<8x8x128xbf16>, vector<8x8x128xbf16> -> vector<8x8x384xbf16>
    %37 = vector.shape_cast %36 : vector<8x8x384xbf16> to vector<64x384xbf16>
    %c0_26 = arith.constant 0 : index
    %c0_27 = arith.constant 0 : index
    %c0_28 = arith.constant 0 : index
    %38 = vector.load %arg8[%c0_26, %c0_27, %c0_28] : memref<3x384x128xbf16, #tpu.memory_space<vmem>>, vector<1x384x128xbf16>
    %39 = vector.shape_cast %38 : vector<1x384x128xbf16> to vector<384x128xbf16>
    %cst_29 = arith.constant dense<0.000000e+00> : vector<64x128xf32>
    %40 = tpu.matmul %37, %39, %cst_29 {dimension_numbers = #tpu.dot_dimension_numbers<[1], [0], [0], [1], [0, 0, 1, 1], [], []>} : vector<64x384xbf16>, vector<384x128xbf16>, vector<64x128xf32> -> vector<64x128xf32>
    %41 = vector.extract_strided_slice %32 {offsets = [1, 0, 0], sizes = [8, 8, 128], strides = [1, 1, 1]} : vector<10x10x128xbf16> to vector<8x8x128xbf16>
    %42 = vector.extract_strided_slice %32 {offsets = [1, 1, 0], sizes = [8, 8, 128], strides = [1, 1, 1]} : vector<10x10x128xbf16> to vector<8x8x128xbf16>
    %43 = vector.extract_strided_slice %32 {offsets = [1, 2, 0], sizes = [8, 8, 128], strides = [1, 1, 1]} : vector<10x10x128xbf16> to vector<8x8x128xbf16>
    %44 = tpu.concatenate %41, %42, %43 in 2 : vector<8x8x128xbf16>, vector<8x8x128xbf16>, vector<8x8x128xbf16> -> vector<8x8x384xbf16>
    %45 = vector.shape_cast %44 : vector<8x8x384xbf16> to vector<64x384xbf16>
    %c1 = arith.constant 1 : index
    %c0_30 = arith.constant 0 : index
    %c0_31 = arith.constant 0 : index
    %46 = vector.load %arg8[%c1, %c0_30, %c0_31] : memref<3x384x128xbf16, #tpu.memory_space<vmem>>, vector<1x384x128xbf16>
    %47 = vector.shape_cast %46 : vector<1x384x128xbf16> to vector<384x128xbf16>
    %cst_32 = arith.constant dense<0.000000e+00> : vector<64x128xf32>
    %48 = tpu.matmul %45, %47, %cst_32 {dimension_numbers = #tpu.dot_dimension_numbers<[1], [0], [0], [1], [0, 0, 1, 1], [], []>} : vector<64x384xbf16>, vector<384x128xbf16>, vector<64x128xf32> -> vector<64x128xf32>
    %49 = arith.addf %40, %48 : vector<64x128xf32>
    %50 = vector.extract_strided_slice %32 {offsets = [2, 0, 0], sizes = [8, 8, 128], strides = [1, 1, 1]} : vector<10x10x128xbf16> to vector<8x8x128xbf16>
    %51 = vector.extract_strided_slice %32 {offsets = [2, 1, 0], sizes = [8, 8, 128], strides = [1, 1, 1]} : vector<10x10x128xbf16> to vector<8x8x128xbf16>
    %52 = vector.extract_strided_slice %32 {offsets = [2, 2, 0], sizes = [8, 8, 128], strides = [1, 1, 1]} : vector<10x10x128xbf16> to vector<8x8x128xbf16>
    %53 = tpu.concatenate %50, %51, %52 in 2 : vector<8x8x128xbf16>, vector<8x8x128xbf16>, vector<8x8x128xbf16> -> vector<8x8x384xbf16>
    %54 = vector.shape_cast %53 : vector<8x8x384xbf16> to vector<64x384xbf16>
    %c2 = arith.constant 2 : index
    %c0_33 = arith.constant 0 : index
    %c0_34 = arith.constant 0 : index
    %55 = vector.load %arg8[%c2, %c0_33, %c0_34] : memref<3x384x128xbf16, #tpu.memory_space<vmem>>, vector<1x384x128xbf16>
    %56 = vector.shape_cast %55 : vector<1x384x128xbf16> to vector<384x128xbf16>
    %cst_35 = arith.constant dense<0.000000e+00> : vector<64x128xf32>
    %57 = tpu.matmul %54, %56, %cst_35 {dimension_numbers = #tpu.dot_dimension_numbers<[1], [0], [0], [1], [0, 0, 1, 1], [], []>} : vector<64x384xbf16>, vector<384x128xbf16>, vector<64x128xf32> -> vector<64x128xf32>
    %58 = arith.addf %49, %57 : vector<64x128xf32>
    %59 = arith.mulf %58, %58 : vector<64x128xf32>
    %cst_36 = arith.constant dense<0.000000e+00> : vector<128xf32>
    %60 = vector.multi_reduction <add>, %59, %cst_36 [0] : vector<64x128xf32> to vector<128xf32>
    %61 = vector.shape_cast %60 : vector<128xf32> to vector<1x128xf32>
    %c0_i32_37 = arith.constant 0 : i32
    %62 = arith.cmpi eq, %arg1, %c0_i32_37 : i32
    %63 = arith.extui %62 : i1 to i32
    %c0_i32_38 = arith.constant 0 : i32
    %64 = arith.cmpi ne, %63, %c0_i32_38 : i32
    scf.if %64 {
      %c0_43 = arith.constant 0 : index
      %c0_44 = arith.constant 0 : index
      %71 = vector.load %arg10[%c0_43, %c0_44] : memref<1x128xf32, #tpu.memory_space<vmem>>, vector<1x128xf32>
      tpu.vector_store %arg10[%c0_43, %c0_44], %61 {strides = array<i32>} : memref<1x128xf32, #tpu.memory_space<vmem>>, vector<1x128xf32>,
    } else {
    }
    %c0_i32_39 = arith.constant 0 : i32
    %65 = arith.cmpi sgt, %arg1, %c0_i32_39 : i32
    %66 = arith.extui %65 : i1 to i32
    %c0_i32_40 = arith.constant 0 : i32
    %67 = arith.cmpi ne, %66, %c0_i32_40 : i32
    scf.if %67 {
      %c0_43 = arith.constant 0 : index
      %c0_44 = arith.constant 0 : index
      %71 = vector.load %arg10[%c0_43, %c0_44] : memref<1x128xf32, #tpu.memory_space<vmem>>, vector<1x128xf32>
      %72 = arith.addf %71, %61 : vector<1x128xf32>
      %c0_45 = arith.constant 0 : index
      %c0_46 = arith.constant 0 : index
      %73 = vector.load %arg10[%c0_45, %c0_46] : memref<1x128xf32, #tpu.memory_space<vmem>>, vector<1x128xf32>
      tpu.vector_store %arg10[%c0_45, %c0_46], %72 {strides = array<i32>} : memref<1x128xf32, #tpu.memory_space<vmem>>, vector<1x128xf32>,
    } else {
    }
    %c0_i32_41 = arith.constant 0 : i32
    %68 = arith.cmpi eq, %arg1, %c0_i32_41 : i32
    %69 = arith.extui %68 : i1 to i32
    %c0_i32_42 = arith.constant 0 : i32
    %70 = arith.cmpi ne, %69, %c0_i32_42 : i32
    scf.if %70 {
      %c0_43 = arith.constant 0 : index
      %c0_44 = arith.constant 0 : index
      %71 = vector.load %arg10[%c0_43, %c0_44] : memref<1x128xf32, #tpu.memory_space<vmem>>, vector<1x128xf32>
      %72 = vector.shape_cast %71 : vector<1x128xf32> to vector<1x1x128xf32>
      %c0_45 = arith.constant 0 : index
      %c0_46 = arith.constant 0 : index
      %c0_47 = arith.constant 0 : index
      %73 = vector.load %arg9[%c0_45, %c0_46, %c0_47] : memref<1x1x128xf32, #tpu.memory_space<vmem>>, vector<1x1x128xf32>
      tpu.vector_store %arg9[%c0_45, %c0_46, %c0_47], %72 {strides = array<i32>} : memref<1x1x128xf32, #tpu.memory_space<vmem>>, vector<1x1x128xf32>,
    } else {
    }
    return
  }
  func.func @transform_0(%arg0: i32, %arg1: i32) -> (i32, i32, i32, i32) {
    %c0_i32 = arith.constant 0 : i32
    %0 = arith.addi %arg0, %c0_i32 : i32
    %c8_i32 = arith.constant 8 : i32
    %1 = arith.muli %arg1, %c8_i32 : i32
    %c1_i32 = arith.constant 1 : i32
    %2 = arith.subi %1, %c1_i32 : i32
    %c0_i32_0 = arith.constant 0 : i32
    %3 = arith.maxsi %2, %c0_i32_0 : i32
    %c0_i32_1 = arith.constant 0 : i32
    %c0_i32_2 = arith.constant 0 : i32
    %c0_i32_3 = arith.constant 0 : i32
    return %0, %3, %c0_i32_1, %c0_i32_2 : i32, i32, i32, i32
  }
  func.func @transform_1(%arg0: i32, %arg1: i32) -> (i32, i32, i32, i32) {
    %c0_i32 = arith.constant 0 : i32
    %0 = arith.addi %arg0, %c0_i32 : i32
    %c0_i32_0 = arith.constant 0 : i32
    %c0_i32_1 = arith.constant 0 : i32
    %c0_i32_2 = arith.constant 0 : i32
    return %0, %arg1, %c0_i32_0, %c0_i32_1 : i32, i32, i32, i32
  }
  func.func @transform_2(%arg0: i32, %arg1: i32) -> (i32, i32, i32, i32) {
    %c0_i32 = arith.constant 0 : i32
    %0 = arith.addi %arg0, %c0_i32 : i32
    %c8_i32 = arith.constant 8 : i32
    %1 = arith.muli %arg1, %c8_i32 : i32
    %c8_i32_0 = arith.constant 8 : i32
    %2 = arith.addi %1, %c8_i32_0 : i32
    %c7_i32 = arith.constant 7 : i32
    %3 = arith.minsi %2, %c7_i32 : i32
    %c0_i32_1 = arith.constant 0 : i32
    %c0_i32_2 = arith.constant 0 : i32
    %c0_i32_3 = arith.constant 0 : i32
    return %0, %3, %c0_i32_1, %c0_i32_2 : i32, i32, i32, i32
  }
  func.func @transform_3(%arg0: i32, %arg1: i32) -> (i32, i32, i32, i32) {
    %c2_i32 = arith.constant 2 : i32
    %0 = arith.addi %arg0, %c2_i32 : i32
    %c8_i32 = arith.constant 8 : i32
    %1 = arith.muli %arg1, %c8_i32 : i32
    %c1_i32 = arith.constant 1 : i32
    %2 = arith.subi %1, %c1_i32 : i32
    %c0_i32 = arith.constant 0 : i32
    %3 = arith.maxsi %2, %c0_i32 : i32
    %c0_i32_0 = arith.constant 0 : i32
    %c0_i32_1 = arith.constant 0 : i32
    %c0_i32_2 = arith.constant 0 : i32
    return %0, %3, %c0_i32_0, %c0_i32_1 : i32, i32, i32, i32
  }
  func.func @transform_4(%arg0: i32, %arg1: i32) -> (i32, i32, i32, i32) {
    %c2_i32 = arith.constant 2 : i32
    %0 = arith.addi %arg0, %c2_i32 : i32
    %c0_i32 = arith.constant 0 : i32
    %c0_i32_0 = arith.constant 0 : i32
    %c0_i32_1 = arith.constant 0 : i32
    return %0, %arg1, %c0_i32, %c0_i32_0 : i32, i32, i32, i32
  }
  func.func @transform_5(%arg0: i32, %arg1: i32) -> (i32, i32, i32, i32) {
    %c2_i32 = arith.constant 2 : i32
    %0 = arith.addi %arg0, %c2_i32 : i32
    %c8_i32 = arith.constant 8 : i32
    %1 = arith.muli %arg1, %c8_i32 : i32
    %c8_i32_0 = arith.constant 8 : i32
    %2 = arith.addi %1, %c8_i32_0 : i32
    %c7_i32 = arith.constant 7 : i32
    %3 = arith.minsi %2, %c7_i32 : i32
    %c0_i32 = arith.constant 0 : i32
    %c0_i32_1 = arith.constant 0 : i32
    %c0_i32_2 = arith.constant 0 : i32
    return %0, %3, %c0_i32, %c0_i32_1 : i32, i32, i32, i32
  }
  func.func @transform_6(%arg0: i32, %arg1: i32) -> (i32, i32, i32) {
    %c0_i32 = arith.constant 0 : i32
    %c0_i32_0 = arith.constant 0 : i32
    %c0_i32_1 = arith.constant 0 : i32
    %c0_i32_2 = arith.constant 0 : i32
    return %c0_i32, %c0_i32_0, %c0_i32_1 : i32, i32, i32
  }
  func.func @transform_7(%arg0: i32, %arg1: i32) -> (i32, i32, i32) {
    %c0_i32 = arith.constant 0 : i32
    %c0_i32_0 = arith.constant 0 : i32
    %c0_i32_1 = arith.constant 0 : i32
    return %arg0, %c0_i32, %c0_i32_0 : i32, i32, i32
  }
}

</mosaic_0001>

<llo_original>
// kernel: vgg_loss_forward.4
$region0: #{vgg_loss_forward.4}
  #allocation0 [shape = 'u32[]', space=smem, size = 0x4, offset = 0x4, fixed_abs, tag = 'smem constant byte address 0x4 - core index']
  #allocation1 [shape = 'u32[144,128]{1,0:T(1,128)}', space=vmem, size = 0x12000, scoped, tag = 'internal scratch']
  %s0 = inlined_call_operand.vmem [shape: bf16[4,16,16,3], index: 0, kind: input, shape index: {}, may-alias: {0,1,2}]
  %s1 = inlined_call_operand.vmem [shape: bf16[4,16,16,3], index: 1, kind: input, shape index: {}, may-alias: {0,1,2}]
  %s2 = inlined_call_operand.vmem [shape: bf16[4,16,16,3], index: 2, kind: input, shape index: {}, may-alias: {0,1,2}]
  %s3 = inlined_call_operand.vmem [shape: bf16[3,9,64], index: 3, kind: input, shape index: {}]
  %s4 = inlined_call_operand.vmem [shape: f32[1,64], index: 4, kind: input, shape index: {}]
  %s5 = inlined_call_operand.vmem [shape: bf16[4,16,16,64], index: 5, kind: output, shape index: {}]
  %s6 = sld [smem:[#allocation0]]
  $region53: #{vgg_loss_forward.4} parent=0
    _
  %s8 = ssub.s32 1, %s6
  %s9 = scalar_select 0, %s8, %s6
  loop: start=0, step=1, limit=6
  $region2: #{vgg_loss_forward.4} parent=0 // loop_pre_header
    _
  $region3: #{vgg_loss_forward.4} parent=0 // loop_header
    %s11 = sphi 0, %s15
    %p12 = scmp.ge.s32.totalorder %s11, 6
    %s18 = sphi 0, %s30
    %s19 = sphi 0, %s26
    %s20 = sphi 0, %s18
    %s21 = sphi 0, %s19
    %s22 = sphi 0, %s20
    %s23 = sphi 0, %s21
    %s43 = sphi 0, %s45
    %s46 = sphi 0, %s43
    %s47 = sphi 0, %s46
    %s63 = sphi 0, %s47
    %s71 = sphi 0, %s73
    %s74 = sphi 0, %s71
    %s75 = sphi 0, %s74
    %s91 = sphi 0, %s75
    %s107 = sphi 0, %s109
    %s110 = sphi 0, %s107
    %s111 = sphi 0, %s110
    %s127 = sphi 0, %s111
    %s131 = sphi 0, %s131
    %s133 = sphi 0, %s131
    %s134 = sphi 0, %s133
    %s148 = sphi 0, %s134
    %s152 = sphi 0, %s152
    %s154 = sphi 0, %s152
    %s155 = sphi 0, %s154
    %s169 = sphi 0, %s155
    %s177 = sphi 0, %s179
    %s180 = sphi 0, %s177
    %s181 = sphi 0, %s180
    %s197 = sphi 0, %s181
  $region4: #{vgg_loss_forward.4} parent=0 // loop_header_branch
    %14 = sbr.rel (%p12) target = $region8
  $region5: #{vgg_loss_forward.4} parent=0 // loop_body
    %s16 = ssub.s32 %s11, 1
    %s17 = ssub.s32 %s11, 2
    %s24 = sadd.s32 1, %s19
    %p25 = scmp.ge.s32.totalorder %s24, 1
    %s26 = scalar_select %p25, 0, %s24
    %s27 = sadd.s32 1, %s18
    %s28 = scalar_select %p25, %s27, %s18
    %p29 = scmp.ge.s32.totalorder %s28, 4
    %s30 = scalar_select %p29, 0, %s28
    %s31 = smul.u32 %s19, 16
    %s32 = ssub.s32 %s31, 1
    %p33 = scmp.gt.s32.totalorder %s32, 0
    %s34 = scalar_select %p33, %s32, 0
    %s35 = smul.u32 %s26, 16
    %s36 = ssub.s32 %s35, 1
    %p37 = scmp.gt.s32.totalorder %s36, 0
    %s38 = scalar_select %p37, %s36, 0
    %s39 = ssub.s32 %s18, %s30
    %s40 = ssub.s32 %s34, %s38
    %s41 = sor.u32 %s39, %s40
    %p42 = scmp.eq.s32.totalorder %s41, 0
    %s44 = sadd.s32 %s43, 1
    %s45 = scalar_select %p42, %s43, %s44
    %p48 = pneg %p42
    %p49 = scmp.eq.s32.totalorder %s11, 3
    %p50 = por %p48, %p49
    %p51 = scmp.ne.s32.totalorder %s43, %s46
    %p52 = scmp.eq.s32.totalorder %s11, 0
    %p53 = por %p51, %p52
    %p54 = scmp.ne.s32.totalorder %s43, %s46
    %p55 = scmp.eq.s32.totalorder %s16, 3
    %p56 = por %p54, %p55
    %p57 = scmp.ne.s32.totalorder %s46, %s47
    %p58 = scmp.eq.s32.totalorder %s16, 0
    %p59 = por %p57, %p58
    %p60 = scmp.ne.s32.totalorder %s46, %s47
    %p61 = scmp.eq.s32.totalorder %s17, 3
    %p62 = por %p60, %p61
    %p64 = scmp.ne.s32.totalorder %s47, %s63
    %p65 = scmp.eq.s32.totalorder %s17, 0
    %p66 = por %p64, %p65
    %s67 = ssub.s32 %s18, %s30
    %s68 = ssub.s32 %s19, %s26
    %s69 = sor.u32 %s67, %s68
    %p70 = scmp.eq.s32.totalorder %s69, 0
    %s72 = sadd.s32 %s71, 1
    %s73 = scalar_select %p70, %s71, %s72
    %p76 = pneg %p70
    %p77 = scmp.eq.s32.totalorder %s11, 3
    %p78 = por %p76, %p77
    %p79 = scmp.ne.s32.totalorder %s71, %s74
    %p80 = scmp.eq.s32.totalorder %s11, 0
    %p81 = por %p79, %p80
    %p82 = scmp.ne.s32.totalorder %s71, %s74
    %p83 = scmp.eq.s32.totalorder %s16, 3
    %p84 = por %p82, %p83
    %p85 = scmp.ne.s32.totalorder %s74, %s75
    %p86 = scmp.eq.s32.totalorder %s16, 0
    %p87 = por %p85, %p86
    %p88 = scmp.ne.s32.totalorder %s74, %s75
    %p89 = scmp.eq.s32.totalorder %s17, 3
    %p90 = por %p88, %p89
    %p92 = scmp.ne.s32.totalorder %s75, %s91
    %p93 = scmp.eq.s32.totalorder %s17, 0
    %p94 = por %p92, %p93
    %s95 = smul.u32 %s19, 16
    %s96 = sadd.s32 %s95, 16
    %p97 = scmp.lt.s32.totalorder %s96, 15
    %s98 = scalar_select %p97, %s96, 15
    %s99 = smul.u32 %s26, 16
    %s100 = sadd.s32 %s99, 16
    %p101 = scmp.lt.s32.totalorder %s100, 15
    %s102 = scalar_select %p101, %s100, 15
    %s103 = ssub.s32 %s18, %s30
    %s104 = ssub.s32 %s98, %s102
    %s105 = sor.u32 %s103, %s104
    %p106 = scmp.eq.s32.totalorder %s105, 0
    %s108 = sadd.s32 %s107, 1
    %s109 = scalar_select %p106, %s107, %s108
    %p112 = pneg %p106
    %p113 = scmp.eq.s32.totalorder %s11, 3
    %p114 = por %p112, %p113
    %p115 = scmp.ne.s32.totalorder %s107, %s110
    %p116 = scmp.eq.s32.totalorder %s11, 0
    %p117 = por %p115, %p116
    %p118 = scmp.ne.s32.totalorder %s107, %s110
    %p119 = scmp.eq.s32.totalorder %s16, 3
    %p120 = por %p118, %p119
    %p121 = scmp.ne.s32.totalorder %s110, %s111
    %p122 = scmp.eq.s32.totalorder %s16, 0
    %p123 = por %p121, %p122
    %p124 = scmp.ne.s32.totalorder %s110, %s111
    %p125 = scmp.eq.s32.totalorder %s17, 3
    %p126 = por %p124, %p125
    %p128 = scmp.ne.s32.totalorder %s111, %s127
    %p129 = scmp.eq.s32.totalorder %s17, 0
    %p130 = por %p128, %p129
    %s132 = sadd.s32 %s131, 1
    %p135 = scmp.eq.s32.totalorder %s11, 3
    %p136 = scmp.ne.s32.totalorder %s131, %s133
    %p137 = scmp.eq.s32.totalorder %s11, 0
    %p138 = por %p136, %p137
    %p139 = scmp.ne.s32.totalorder %s131, %s133
    %p140 = scmp.eq.s32.totalorder %s16, 3
    %p141 = por %p139, %p140
    %p142 = scmp.ne.s32.totalorder %s133, %s134
    %p143 = scmp.eq.s32.totalorder %s16, 0
    %p144 = por %p142, %p143
    %p145 = scmp.ne.s32.totalorder %s133, %s134
    %p146 = scmp.eq.s32.totalorder %s17, 3
    %p147 = por %p145, %p146
    %p149 = scmp.ne.s32.totalorder %s134, %s148
    %p150 = scmp.eq.s32.totalorder %s17, 0
    %p151 = por %p149, %p150
    %s153 = sadd.s32 %s152, 1
    %p156 = scmp.eq.s32.totalorder %s11, 3
    %p157 = scmp.ne.s32.totalorder %s152, %s154
    %p158 = scmp.eq.s32.totalorder %s11, 0
    %p159 = por %p157, %p158
    %p160 = scmp.ne.s32.totalorder %s152, %s154
    %p161 = scmp.eq.s32.totalorder %s16, 3
    %p162 = por %p160, %p161
    %p163 = scmp.ne.s32.totalorder %s154, %s155
    %p164 = scmp.eq.s32.totalorder %s16, 0
    %p165 = por %p163, %p164
    %p166 = scmp.ne.s32.totalorder %s154, %s155
    %p167 = scmp.eq.s32.totalorder %s17, 3
    %p168 = por %p166, %p167
    %p170 = scmp.ne.s32.totalorder %s155, %s169
    %p171 = scmp.eq.s32.totalorder %s17, 0
    %p172 = por %p170, %p171
    %s173 = ssub.s32 %s18, %s30
    %s174 = ssub.s32 %s19, %s26
    %s175 = sor.u32 %s173, %s174
    %p176 = scmp.eq.s32.totalorder %s175, 0
    %s178 = sadd.s32 %s177, 1
    %s179 = scalar_select %p176, %s177, %s178
    %p182 = pneg %p176
    %p183 = scmp.eq.s32.totalorder %s11, 3
    %p184 = por %p182, %p183
    %p185 = scmp.ne.s32.totalorder %s177, %s180
    %p186 = scmp.eq.s32.totalorder %s11, 0
    %p187 = por %p185, %p186
    %p188 = scmp.ne.s32.totalorder %s177, %s180
    %p189 = scmp.eq.s32.totalorder %s16, 3
    %p190 = por %p188, %p189
    %p191 = scmp.ne.s32.totalorder %s180, %s181
    %p192 = scmp.eq.s32.totalorder %s16, 0
    %p193 = por %p191, %p192
    %p194 = scmp.ne.s32.totalorder %s180, %s181
    %p195 = scmp.eq.s32.totalorder %s17, 3
    %p196 = por %p194, %p195
    %p198 = scmp.ne.s32.totalorder %s181, %s197
    %p199 = scmp.eq.s32.totalorder %s17, 0
    %p200 = por %p198, %p199
    %p201 = scmp.le.s32.totalorder 1, %s11
    %p202 = scmp.lt.s32.totalorder %s11, 5
    %p203 = pnand %p201, %p202
    %p204 = pneg %p203
    // Predicated region
    $region9: #{vgg_loss_forward.4} parent=5 // pred_check
      _
    $region10: #{vgg_loss_forward.4} parent=5 // pred_check_branch
      %206 = sbr.rel (%p203) target = $region12
    $region11: #{vgg_loss_forward.4} parent=5 // pred_region
      %s207 = ssub.s32 %s11, 1
      // Predicated region
      $region13: #{vgg_loss_forward.4} parent=11 // pred_check
        %p208 = pneg %p144
      $region14: #{vgg_loss_forward.4} parent=11 // pred_check_branch
        %210 = sbr.rel (%p208) target = $region16
      $region15: #{vgg_loss_forward.4} parent=11 // pred_region
        _
      $region16: #{vgg_loss_forward.4} parent=11 // pred_fallthru
        _
      // Predicated region
      $region17: #{vgg_loss_forward.4} parent=11 // pred_check
        %p211 = pneg %p165
      $region18: #{vgg_loss_forward.4} parent=11 // pred_check_branch
        %213 = sbr.rel (%p211) target = $region20
      $region19: #{vgg_loss_forward.4} parent=11 // pred_region
        _
      $region20: #{vgg_loss_forward.4} parent=11 // pred_fallthru
        _
    $region12: #{vgg_loss_forward.4} parent=5 // pred_fallthru
      _
    %p214 = scmp.lt.s32.totalorder %s11, 4
    // Predicated region
    $region21: #{vgg_loss_forward.4} parent=5 // pred_check
      %p215 = pneg %p214
    $region22: #{vgg_loss_forward.4} parent=5 // pred_check_branch
      %217 = sbr.rel (%p215) target = $region24
    $region23: #{vgg_loss_forward.4} parent=5 // pred_region
      // Predicated region
      $region25: #{vgg_loss_forward.4} parent=23 // pred_check
        %p218 = pneg %p53
      $region26: #{vgg_loss_forward.4} parent=23 // pred_check_branch
        %220 = sbr.rel (%p218) target = $region28
      $region27: #{vgg_loss_forward.4} parent=23 // pred_region
        %s221 = smul.u32 %s19, 16
        %s222 = ssub.s32 %s221, 1
        %p223 = scmp.gt.s32.totalorder %s222, 0
        %s224 = scalar_select %p223, %s222, 0
        %p225 = scmp.lt.s32.totalorder %s18, 3
        %s226 = scalar_select %p225, %s18, 3
        %p227 = scmp.lt.s32.totalorder %s224, 15
        %s228 = scalar_select %p227, %s224, 15
        %s229 = smul.addr %s228, 2
        %s230 = smul.addr %s226, 32
        %s231 = sadd.s32 %s229, %s230
        %s232 = smul.addr %s231, 4
        %s233 = scalar_lea.vmem %s0, %s232
        %s234 = smul.u32 %s19, 16
        %s235 = ssub.s32 %s234, 1
        %p236 = scmp.gt.s32.totalorder %s235, 0
        %s237 = scalar_select %p236, %s235, 0
      $region28: #{vgg_loss_forward.4} parent=23 // pred_fallthru
        _
      // Predicated region
      $region29: #{vgg_loss_forward.4} parent=23 // pred_check
        %p238 = pneg %p81
      $region30: #{vgg_loss_forward.4} parent=23 // pred_check_branch
        %240 = sbr.rel (%p238) target = $region32
      $region31: #{vgg_loss_forward.4} parent=23 // pred_region
        %s241 = smul.u32 16, %s19
        %p242 = scmp.lt.s32.totalorder %s18, 3
        %s243 = scalar_select %p242, %s18, 3
        %p244 = scmp.lt.s32.totalorder %s241, 15
        %s245 = scalar_select %p244, %s241, 15
        %s246 = smul.addr %s245, 2
        %s247 = smul.addr %s243, 32
        %s248 = sadd.s32 %s246, %s247
        %s249 = smul.addr %s248, 4
        %s250 = scalar_lea.vmem %s1, %s249
        %s251 = smul.u32 16, %s19
      $region32: #{vgg_loss_forward.4} parent=23 // pred_fallthru
        _
      // Predicated region
      $region33: #{vgg_loss_forward.4} parent=23 // pred_check
        %p252 = pneg %p117
      $region34: #{vgg_loss_forward.4} parent=23 // pred_check_branch
        %254 = sbr.rel (%p252) target = $region36
      $region35: #{vgg_loss_forward.4} parent=23 // pred_region
        %s255 = smul.u32 %s19, 16
        %s256 = sadd.s32 %s255, 16
        %p257 = scmp.lt.s32.totalorder %s256, 15
        %s258 = scalar_select %p257, %s256, 15
        %p259 = scmp.lt.s32.totalorder %s18, 3
        %s260 = scalar_select %p259, %s18, 3
        %p261 = scmp.lt.s32.totalorder %s258, 15
        %s262 = scalar_select %p261, %s258, 15
        %s263 = smul.addr %s262, 2
        %s264 = smul.addr %s260, 32
        %s265 = sadd.s32 %s263, %s264
        %s266 = smul.addr %s265, 4
        %s267 = scalar_lea.vmem %s2, %s266
        %s268 = smul.u32 %s19, 16
        %s269 = sadd.s32 %s268, 16
        %p270 = scmp.lt.s32.totalorder %s269, 15
        %s271 = scalar_select %p270, %s269, 15
      $region36: #{vgg_loss_forward.4} parent=23 // pred_fallthru
        _
    $region24: #{vgg_loss_forward.4} parent=5 // pred_fallthru
      _
    %p272 = scmp.le.s32.totalorder 1, %s11
    %p273 = scmp.lt.s32.totalorder %s11, 5
    %p274 = pnand %p272, %p273
    %p275 = pneg %p274
    // Predicated region
    $region37: #{vgg_loss_forward.4} parent=5 // pred_check
      _
    $region38: #{vgg_loss_forward.4} parent=5 // pred_check_branch
      %277 = sbr.rel (%p274) target = $region40
    $region39: #{vgg_loss_forward.4} parent=5 // pred_region
      %s278 = ssub.s32 %s11, 1
      %s279 = smul.u32 %s21, 16
      %s280 = ssub.s32 %s279, 1
      %p281 = scmp.gt.s32.totalorder %s280, 0
      %s282 = scalar_select %p281, %s280, 0
      %p283 = scmp.lt.s32.totalorder %s20, 3
      %s284 = scalar_select %p283, %s20, 3
      %p285 = scmp.lt.s32.totalorder %s282, 15
      %s286 = scalar_select %p285, %s282, 15
      %s287 = smul.addr %s286, 2
      %s288 = smul.addr %s284, 32
      %s289 = sadd.s32 %s287, %s288
      %s290 = smul.addr %s289, 4
      %s291 = scalar_lea.vmem %s0, %s290
      %p292 = pneg %p59
      %p293 = pneg %p56
      %s294 = smul.u32 16, %s21
      %p295 = scmp.lt.s32.totalorder %s20, 3
      %s296 = scalar_select %p295, %s20, 3
      %p297 = scmp.lt.s32.totalorder %s294, 15
      %s298 = scalar_select %p297, %s294, 15
      %s299 = smul.addr %s298, 2
      %s300 = smul.addr %s296, 32
      %s301 = sadd.s32 %s299, %s300
      %s302 = smul.addr %s301, 4
      %s303 = scalar_lea.vmem %s1, %s302
      %p304 = pneg %p87
      %p305 = pneg %p84
      %s306 = smul.u32 %s21, 16
      %s307 = sadd.s32 %s306, 16
      %p308 = scmp.lt.s32.totalorder %s307, 15
      %s309 = scalar_select %p308, %s307, 15
      %p310 = scmp.lt.s32.totalorder %s20, 3
      %s311 = scalar_select %p310, %s20, 3
      %p312 = scmp.lt.s32.totalorder %s309, 15
      %s313 = scalar_select %p312, %s309, 15
      %s314 = smul.addr %s313, 2
      %s315 = smul.addr %s311, 32
      %s316 = sadd.s32 %s314, %s315
      %s317 = smul.addr %s316, 4
      %s318 = scalar_lea.vmem %s2, %s317
      %p319 = pneg %p123
      %p320 = pneg %p120
      %p321 = pneg %p144
      %p322 = pneg %p141
      %p323 = pneg %p165
      %p324 = pneg %p162
      %p325 = pneg %p193
      %p326 = pneg %p190
      %s327 = smul.u32 16, %s21
      %p328 = scmp.lt.s32.totalorder %s20, 3
      %s329 = scalar_select %p328, %s20, 3
      %p330 = scmp.lt.s32.totalorder %s327, 15
      %s331 = scalar_select %p330, %s327, 15
      %s332 = smul.addr %s331, 2
      %s333 = smul.addr %s329, 32
      %s334 = sadd.s32 %s332, %s333
      %s335 = smul.addr %s334, 4
      %s336 = scalar_lea.vmem %s5, %s335
      %s337 = smul.u32 %s21, 16
      %s338 = ssub.s32 %s337, 1
      %p339 = scmp.gt.s32.totalorder %s338, 0
      %s340 = scalar_select %p339, %s338, 0
      %p341 = scmp.lt.s32.totalorder %s20, 3
      %s342 = scalar_select %p341, %s20, 3
      %p343 = scmp.lt.s32.totalorder %s340, 15
      %s344 = scalar_select %p343, %s340, 15
      %s345 = smul.addr %s344, 2
      %s346 = smul.addr %s342, 32
      %s347 = sadd.s32 %s345, %s346
      %s348 = smul.addr %s347, 4
      %s349 = scalar_lea.vmem %s0, %s348
      %s350 = smul.u32 %s21, 16
      %s351 = ssub.s32 %s350, 1
      %p352 = scmp.gt.s32.totalorder %s351, 0
      %s353 = scalar_select %p352, %s351, 0
      %s354 = smul.u32 16, %s21
      %p355 = scmp.lt.s32.totalorder %s20, 3
      %s356 = scalar_select %p355, %s20, 3
      %p357 = scmp.lt.s32.totalorder %s354, 15
      %s358 = scalar_select %p357, %s354, 15
      %s359 = smul.addr %s358, 2
      %s360 = smul.addr %s356, 32
      %s361 = sadd.s32 %s359, %s360
      %s362 = smul.addr %s361, 4
      %s363 = scalar_lea.vmem %s1, %s362
      %s364 = smul.u32 16, %s21
      %s365 = smul.u32 %s21, 16
      %s366 = sadd.s32 %s365, 16
      %p367 = scmp.lt.s32.totalorder %s366, 15
      %s368 = scalar_select %p367, %s366, 15
      %p369 = scmp.lt.s32.totalorder %s20, 3
      %s370 = scalar_select %p369, %s20, 3
      %p371 = scmp.lt.s32.totalorder %s368, 15
      %s372 = scalar_select %p371, %s368, 15
      %s373 = smul.addr %s372, 2
      %s374 = smul.addr %s370, 32
      %s375 = sadd.s32 %s373, %s374
      %s376 = smul.addr %s375, 4
      %s377 = scalar_lea.vmem %s2, %s376
      %s378 = smul.u32 %s21, 16
      %s379 = sadd.s32 %s378, 16
      %p380 = scmp.lt.s32.totalorder %s379, 15
      %s381 = scalar_select %p380, %s379, 15
      %s382 = smul.u32 16, %s21
      %p383 = scmp.lt.s32.totalorder %s20, 3
      %s384 = scalar_select %p383, %s20, 3
      %p385 = scmp.lt.s32.totalorder %s382, 15
      %s386 = scalar_select %p385, %s382, 15
      %s387 = smul.addr %s386, 2
      %s388 = smul.addr %s384, 32
      %s389 = sadd.s32 %s387, %s388
      %s390 = smul.addr %s389, 4
      %s391 = scalar_lea.vmem %s5, %s390
      %s392 = smul.u32 16, %s21
      %v394 = vld [vmem:[%s349] sm:$0xf]
      %v395 = vld [vmem:[%s349 + $0x4] sm:$0xf]
      %v396 = vld [vmem:[%s363] sm:$0xf]
      %v397 = vld [vmem:[%s363 + $0x4] sm:$0xf]
      %v398 = vld [vmem:[%s363 + $0x8] sm:$0xf]
      %v399 = vld [vmem:[%s363 + $0xc] sm:$0xf]
      %v400 = vld [vmem:[%s363 + $0x10] sm:$0xf]
      %v401 = vld [vmem:[%s363 + $0x14] sm:$0xf]
      %v402 = vld [vmem:[%s363 + $0x18] sm:$0xf]
      %v403 = vld [vmem:[%s363 + $0x1c] sm:$0xf]
      %v404 = vld [vmem:[%s363 + $0x20] sm:$0xf]
      %v405 = vld [vmem:[%s363 + $0x24] sm:$0xf]
      %v406 = vld [vmem:[%s363 + $0x28] sm:$0xf]
      %v407 = vld [vmem:[%s363 + $0x2c] sm:$0xf]
      %v408 = vld [vmem:[%s363 + $0x30] sm:$0xf]
      %v409 = vld [vmem:[%s363 + $0x34] sm:$0xf]
      %v410 = vld [vmem:[%s363 + $0x38] sm:$0xf]
      %v411 = vld [vmem:[%s363 + $0x3c] sm:$0xf]
      %v412 = vld [vmem:[%s363 + $0x40] sm:$0xf]
      %v413 = vld [vmem:[%s363 + $0x44] sm:$0xf]
      %v414 = vld [vmem:[%s363 + $0x48] sm:$0xf]
      %v415 = vld [vmem:[%s363 + $0x4c] sm:$0xf]
      %v416 = vld [vmem:[%s363 + $0x50] sm:$0xf]
      %v417 = vld [vmem:[%s363 + $0x54] sm:$0xf]
      %v418 = vld [vmem:[%s363 + $0x58] sm:$0xf]
      %v419 = vld [vmem:[%s363 + $0x5c] sm:$0xf]
      %v420 = vld [vmem:[%s363 + $0x60] sm:$0xf]
      %v421 = vld [vmem:[%s363 + $0x64] sm:$0xf]
      %v422 = vld [vmem:[%s363 + $0x68] sm:$0xf]
      %v423 = vld [vmem:[%s363 + $0x6c] sm:$0xf]
      %v424 = vld [vmem:[%s363 + $0x70] sm:$0xf]
      %v425 = vld [vmem:[%s363 + $0x74] sm:$0xf]
      %v426 = vld [vmem:[%s363 + $0x78] sm:$0xf]
      %v427 = vld [vmem:[%s363 + $0x7c] sm:$0xf]
      %v428 = vld [vmem:[%s377] sm:$0xf]
      %v429 = vld [vmem:[%s377 + $0x4] sm:$0xf]
      %p430 = scmp.eq.s32.totalorder %s21, 0
      %s431 = scalar_select %p430, 1, 0
      %v432 = vstv %s431
      %vm433 = vcmp.eq.s32.totalorder %v432, 1
      %v434 = vsel %vm433, 0, %v394
      %v435 = vsel %vm433, 0, %v395
      %v436 = vsel %vm433, 0, %v428
      %v437 = vsel %vm433, 0, %v429
      %v474 = vunpack.c.l.b16 %v434
      %v475 = vunpack.c.l.b16 %v435
      %v476 = vunpack.c.l.b16 %v396
      %v477 = vunpack.c.l.b16 %v397
      %v478 = vunpack.c.l.b16 %v398
      %v479 = vunpack.c.l.b16 %v399
      %v480 = vunpack.c.l.b16 %v400
      %v481 = vunpack.c.l.b16 %v401
      %v482 = vunpack.c.l.b16 %v402
      %v483 = vunpack.c.l.b16 %v403
      %v484 = vunpack.c.l.b16 %v404
      %v485 = vunpack.c.l.b16 %v405
      %v486 = vunpack.c.l.b16 %v406
      %v487 = vunpack.c.l.b16 %v407
      %v488 = vunpack.c.l.b16 %v408
      %v489 = vunpack.c.l.b16 %v409
      %v490 = vunpack.c.l.b16 %v410
      %v491 = vunpack.c.l.b16 %v411
      %v492 = vunpack.c.l.b16 %v412
      %v493 = vunpack.c.l.b16 %v413
      %v494 = vunpack.c.l.b16 %v414
      %v495 = vunpack.c.l.b16 %v415
      %v496 = vunpack.c.l.b16 %v416
      %v497 = vunpack.c.l.b16 %v417
      %v498 = vunpack.c.l.b16 %v418
      %v499 = vunpack.c.l.b16 %v419
      %v500 = vunpack.c.l.b16 %v420
      %v501 = vunpack.c.l.b16 %v421
      %v502 = vunpack.c.l.b16 %v422
      %v503 = vunpack.c.l.b16 %v423
      %v504 = vunpack.c.l.b16 %v424
      %v505 = vunpack.c.l.b16 %v425
      %v506 = vunpack.c.l.b16 %v426
      %v507 = vunpack.c.l.b16 %v427
      %v508 = vunpack.c.l.b16 %v436
      %v509 = vunpack.c.l.b16 %v437
      %v510 = vpack.c.b16 %v475, %v474
      %v511 = vpack.c.b16 %v477, %v476
      %v512 = vpack.c.b16 %v479, %v478
      %v513 = vpack.c.b16 %v481, %v480
      %v514 = vpack.c.b16 %v483, %v482
      %v515 = vpack.c.b16 %v485, %v484
      %v516 = vpack.c.b16 %v487, %v486
      %v517 = vpack.c.b16 %v489, %v488
      %v518 = vpack.c.b16 %v491, %v490
      %v519 = vpack.c.b16 %v493, %v492
      %v520 = vpack.c.b16 %v495, %v494
      %v521 = vpack.c.b16 %v497, %v496
      %v522 = vpack.c.b16 %v499, %v498
      %v523 = vpack.c.b16 %v501, %v500
      %v524 = vpack.c.b16 %v503, %v502
      %v525 = vpack.c.b16 %v505, %v504
      %v526 = vpack.c.b16 %v507, %v506
      %v527 = vpack.c.b16 %v509, %v508
      %v529 = vshrl.u32 %v510, 16
      %v531 = vrot.slane %v529, 7
      %v532 = vshll.u32 %v510, 16
      %v534 = vor.u32 %v531, %v532
      %v536 = vshrl.u32 %v511, 16
      %v538 = vrot.slane %v536, 7
      %v539 = vshll.u32 %v511, 16
      %v541 = vor.u32 %v538, %v539
      %v543 = vshrl.u32 %v512, 16
      %v545 = vrot.slane %v543, 7
      %v546 = vshll.u32 %v512, 16
      %v548 = vor.u32 %v545, %v546
      %v550 = vshrl.u32 %v513, 16
      %v552 = vrot.slane %v550, 7
      %v553 = vshll.u32 %v513, 16
      %v555 = vor.u32 %v552, %v553
      %v557 = vshrl.u32 %v514, 16
      %v559 = vrot.slane %v557, 7
      %v560 = vshll.u32 %v514, 16
      %v562 = vor.u32 %v559, %v560
      %v564 = vshrl.u32 %v515, 16
      %v566 = vrot.slane %v564, 7
      %v567 = vshll.u32 %v515, 16
      %v569 = vor.u32 %v566, %v567
      %v571 = vshrl.u32 %v516, 16
      %v573 = vrot.slane %v571, 7
      %v574 = vshll.u32 %v516, 16
      %v576 = vor.u32 %v573, %v574
      %v578 = vshrl.u32 %v517, 16
      %v580 = vrot.slane %v578, 7
      %v581 = vshll.u32 %v517, 16
      %v583 = vor.u32 %v580, %v581
      %v585 = vshrl.u32 %v518, 16
      %v587 = vrot.slane %v585, 7
      %v588 = vshll.u32 %v518, 16
      %v590 = vor.u32 %v587, %v588
      %v592 = vshrl.u32 %v519, 16
      %v594 = vrot.slane %v592, 7
      %v595 = vshll.u32 %v519, 16
      %v597 = vor.u32 %v594, %v595
      %v599 = vshrl.u32 %v520, 16
      %v601 = vrot.slane %v599, 7
      %v602 = vshll.u32 %v520, 16
      %v604 = vor.u32 %v601, %v602
      %v606 = vshrl.u32 %v521, 16
      %v608 = vrot.slane %v606, 7
      %v609 = vshll.u32 %v521, 16
      %v611 = vor.u32 %v608, %v609
      %v613 = vshrl.u32 %v522, 16
      %v615 = vrot.slane %v613, 7
      %v616 = vshll.u32 %v522, 16
      %v618 = vor.u32 %v615, %v616
      %v620 = vshrl.u32 %v523, 16
      %v622 = vrot.slane %v620, 7
      %v623 = vshll.u32 %v523, 16
      %v625 = vor.u32 %v622, %v623
      %v627 = vshrl.u32 %v524, 16
      %v629 = vrot.slane %v627, 7
      %v630 = vshll.u32 %v524, 16
      %v632 = vor.u32 %v629, %v630
      %v634 = vshrl.u32 %v525, 16
      %v636 = vrot.slane %v634, 7
      %v637 = vshll.u32 %v525, 16
      %v639 = vor.u32 %v636, %v637
      %v641 = vshrl.u32 %v526, 16
      %v643 = vrot.slane %v641, 7
      %v644 = vshll.u32 %v526, 16
      %v646 = vor.u32 %v643, %v644
      %v648 = vshrl.u32 %v527, 16
      %v650 = vrot.slane %v648, 7
      %v651 = vshll.u32 %v527, 16
      %v653 = vor.u32 %v650, %v651
      %vm690 = vcmask 1040384
      %vm691 = vsmask.f32 256
      %vm692 = vmand %vm690, %vm691
      %v693 = vsel %vm692, 0, %v534
      %v694 = vsel %vm692, 0, %v541
      %v695 = vsel %vm692, 0, %v548
      %v696 = vsel %vm692, 0, %v555
      %v697 = vsel %vm692, 0, %v562
      %v698 = vsel %vm692, 0, %v569
      %v699 = vsel %vm692, 0, %v576
      %v700 = vsel %vm692, 0, %v583
      %v701 = vsel %vm692, 0, %v590
      %v702 = vsel %vm692, 0, %v597
      %v703 = vsel %vm692, 0, %v604
      %v704 = vsel %vm692, 0, %v611
      %v705 = vsel %vm692, 0, %v618
      %v706 = vsel %vm692, 0, %v625
      %v707 = vsel %vm692, 0, %v632
      %v708 = vsel %vm692, 0, %v639
      %v709 = vsel %vm692, 0, %v646
      %v710 = vsel %vm692, 0, %v653
      %v711 = vsel %vm692, %v531, 0
      %v712 = vsel %vm692, %v538, 0
      %v713 = vsel %vm692, %v545, 0
      %v714 = vsel %vm692, %v552, 0
      %v715 = vsel %vm692, %v559, 0
      %v716 = vsel %vm692, %v566, 0
      %v717 = vsel %vm692, %v573, 0
      %v718 = vsel %vm692, %v580, 0
      %v719 = vsel %vm692, %v587, 0
      %v720 = vsel %vm692, %v594, 0
      %v721 = vsel %vm692, %v601, 0
      %v722 = vsel %vm692, %v608, 0
      %v723 = vsel %vm692, %v615, 0
      %v724 = vsel %vm692, %v622, 0
      %v725 = vsel %vm692, %v629, 0
      %v726 = vsel %vm692, %v636, 0
      %v727 = vsel %vm692, %v643, 0
      %v728 = vsel %vm692, %v650, 0
      %vm729 = vsmask.f32 7424
      %v731 = vshrl.u32 %v693, 16
      %v733 = vshll.u32 %v693, 16
      %v735 = vrot.slane %v733, 1
      %v736 = vor.u32 %v731, %v735
      %v738 = vshll.u32 %v711, 16
      %v740 = vrot.slane %v738, 1
      %v741 = vsel %vm729, %v736, %v740
      %v743 = vshrl.u32 %v694, 16
      %v745 = vshll.u32 %v694, 16
      %v747 = vrot.slane %v745, 1
      %v748 = vor.u32 %v743, %v747
      %v750 = vshll.u32 %v712, 16
      %v752 = vrot.slane %v750, 1
      %v753 = vsel %vm729, %v748, %v752
      %v755 = vshrl.u32 %v695, 16
      %v757 = vshll.u32 %v695, 16
      %v759 = vrot.slane %v757, 1
      %v760 = vor.u32 %v755, %v759
      %v762 = vshll.u32 %v713, 16
      %v764 = vrot.slane %v762, 1
      %v765 = vsel %vm729, %v760, %v764
      %v767 = vshrl.u32 %v696, 16
      %v769 = vshll.u32 %v696, 16
      %v771 = vrot.slane %v769, 1
      %v772 = vor.u32 %v767, %v771
      %v774 = vshll.u32 %v714, 16
      %v776 = vrot.slane %v774, 1
      %v777 = vsel %vm729, %v772, %v776
      %v779 = vshrl.u32 %v697, 16
      %v781 = vshll.u32 %v697, 16
      %v783 = vrot.slane %v781, 1
      %v784 = vor.u32 %v779, %v783
      %v786 = vshll.u32 %v715, 16
      %v788 = vrot.slane %v786, 1
      %v789 = vsel %vm729, %v784, %v788
      %v791 = vshrl.u32 %v698, 16
      %v793 = vshll.u32 %v698, 16
      %v795 = vrot.slane %v793, 1
      %v796 = vor.u32 %v791, %v795
      %v798 = vshll.u32 %v716, 16
      %v800 = vrot.slane %v798, 1
      %v801 = vsel %vm729, %v796, %v800
      %v803 = vshrl.u32 %v699, 16
      %v805 = vshll.u32 %v699, 16
      %v807 = vrot.slane %v805, 1
      %v808 = vor.u32 %v803, %v807
      %v810 = vshll.u32 %v717, 16
      %v812 = vrot.slane %v810, 1
      %v813 = vsel %vm729, %v808, %v812
      %v815 = vshrl.u32 %v700, 16
      %v817 = vshll.u32 %v700, 16
      %v819 = vrot.slane %v817, 1
      %v820 = vor.u32 %v815, %v819
      %v822 = vshll.u32 %v718, 16
      %v824 = vrot.slane %v822, 1
      %v825 = vsel %vm729, %v820, %v824
      %v827 = vshrl.u32 %v701, 16
      %v829 = vshll.u32 %v701, 16
      %v831 = vrot.slane %v829, 1
      %v832 = vor.u32 %v827, %v831
      %v834 = vshll.u32 %v719, 16
      %v836 = vrot.slane %v834, 1
      %v837 = vsel %vm729, %v832, %v836
      %v839 = vshrl.u32 %v702, 16
      %v841 = vshll.u32 %v702, 16
      %v843 = vrot.slane %v841, 1
      %v844 = vor.u32 %v839, %v843
      %v846 = vshll.u32 %v720, 16
      %v848 = vrot.slane %v846, 1
      %v849 = vsel %vm729, %v844, %v848
      %v851 = vshrl.u32 %v703, 16
      %v853 = vshll.u32 %v703, 16
      %v855 = vrot.slane %v853, 1
      %v856 = vor.u32 %v851, %v855
      %v858 = vshll.u32 %v721, 16
      %v860 = vrot.slane %v858, 1
      %v861 = vsel %vm729, %v856, %v860
      %v863 = vshrl.u32 %v704, 16
      %v865 = vshll.u32 %v704, 16
      %v867 = vrot.slane %v865, 1
      %v868 = vor.u32 %v863, %v867
      %v870 = vshll.u32 %v722, 16
      %v872 = vrot.slane %v870, 1
      %v873 = vsel %vm729, %v868, %v872
      %v875 = vshrl.u32 %v705, 16
      %v877 = vshll.u32 %v705, 16
      %v879 = vrot.slane %v877, 1
      %v880 = vor.u32 %v875, %v879
      %v882 = vshll.u32 %v723, 16
      %v884 = vrot.slane %v882, 1
      %v885 = vsel %vm729, %v880, %v884
      %v887 = vshrl.u32 %v706, 16
      %v889 = vshll.u32 %v706, 16
      %v891 = vrot.slane %v889, 1
      %v892 = vor.u32 %v887, %v891
      %v894 = vshll.u32 %v724, 16
      %v896 = vrot.slane %v894, 1
      %v897 = vsel %vm729, %v892, %v896
      %v899 = vshrl.u32 %v707, 16
      %v901 = vshll.u32 %v707, 16
      %v903 = vrot.slane %v901, 1
      %v904 = vor.u32 %v899, %v903
      %v906 = vshll.u32 %v725, 16
      %v908 = vrot.slane %v906, 1
      %v909 = vsel %vm729, %v904, %v908
      %v911 = vshrl.u32 %v708, 16
      %v913 = vshll.u32 %v708, 16
      %v915 = vrot.slane %v913, 1
      %v916 = vor.u32 %v911, %v915
      %v918 = vshll.u32 %v726, 16
      %v920 = vrot.slane %v918, 1
      %v921 = vsel %vm729, %v916, %v920
      %922 = vrot.lane.b32.xlu0 %v741, 3
      %v923 = vpop.permute.xlu0 %922
      %924 = vrot.lane.b32.xlu0 %v753, 3
      %v925 = vpop.permute.xlu0 %924
      %926 = vrot.lane.b32.xlu0 %v765, 3
      %v927 = vpop.permute.xlu0 %926
      %928 = vrot.lane.b32.xlu0 %v777, 3
      %v929 = vpop.permute.xlu0 %928
      %930 = vrot.lane.b32.xlu0 %v789, 3
      %v931 = vpop.permute.xlu0 %930
      %932 = vrot.lane.b32.xlu0 %v801, 3
      %v933 = vpop.permute.xlu0 %932
      %934 = vrot.lane.b32.xlu0 %v813, 3
      %v935 = vpop.permute.xlu0 %934
      %936 = vrot.lane.b32.xlu0 %v825, 3
      %v937 = vpop.permute.xlu0 %936
      %938 = vrot.lane.b32.xlu0 %v837, 3
      %v939 = vpop.permute.xlu0 %938
      %940 = vrot.lane.b32.xlu0 %v849, 3
      %v941 = vpop.permute.xlu0 %940
      %942 = vrot.lane.b32.xlu0 %v861, 3
      %v943 = vpop.permute.xlu0 %942
      %944 = vrot.lane.b32.xlu0 %v873, 3
      %v945 = vpop.permute.xlu0 %944
      %946 = vrot.lane.b32.xlu0 %v885, 3
      %v947 = vpop.permute.xlu0 %946
      %948 = vrot.lane.b32.xlu0 %v897, 3
      %v949 = vpop.permute.xlu0 %948
      %950 = vrot.lane.b32.xlu0 %v909, 3
      %v951 = vpop.permute.xlu0 %950
      %952 = vrot.lane.b32.xlu0 %v921, 3
      %v953 = vpop.permute.xlu0 %952
      %vm986 = vcmask 1046528
      %v987 = vrot.slane %v693, 1
      %v988 = vrot.slane %v711, 1
      %v989 = vsel %vm986, %v987, %v988
      %v990 = vrot.slane %v694, 1
      %v991 = vrot.slane %v712, 1
      %v992 = vsel %vm986, %v990, %v991
      %v993 = vrot.slane %v695, 1
      %v994 = vrot.slane %v713, 1
      %v995 = vsel %vm986, %v993, %v994
      %v996 = vrot.slane %v696, 1
      %v997 = vrot.slane %v714, 1
      %v998 = vsel %vm986, %v996, %v997
      %v999 = vrot.slane %v697, 1
      %v1000 = vrot.slane %v715, 1
      %v1001 = vsel %vm986, %v999, %v1000
      %v1002 = vrot.slane %v698, 1
      %v1003 = vrot.slane %v716, 1
      %v1004 = vsel %vm986, %v1002, %v1003
      %v1005 = vrot.slane %v699, 1
      %v1006 = vrot.slane %v717, 1
      %v1007 = vsel %vm986, %v1005, %v1006
      %v1008 = vrot.slane %v700, 1
      %v1009 = vrot.slane %v718, 1
      %v1010 = vsel %vm986, %v1008, %v1009
      %v1011 = vrot.slane %v701, 1
      %v1012 = vrot.slane %v719, 1
      %v1013 = vsel %vm986, %v1011, %v1012
      %v1014 = vrot.slane %v702, 1
      %v1015 = vrot.slane %v720, 1
      %v1016 = vsel %vm986, %v1014, %v1015
      %v1017 = vrot.slane %v703, 1
      %v1018 = vrot.slane %v721, 1
      %v1019 = vsel %vm986, %v1017, %v1018
      %v1020 = vrot.slane %v704, 1
      %v1021 = vrot.slane %v722, 1
      %v1022 = vsel %vm986, %v1020, %v1021
      %v1023 = vrot.slane %v705, 1
      %v1024 = vrot.slane %v723, 1
      %v1025 = vsel %vm986, %v1023, %v1024
      %v1026 = vrot.slane %v706, 1
      %v1027 = vrot.slane %v724, 1
      %v1028 = vsel %vm986, %v1026, %v1027
      %v1029 = vrot.slane %v707, 1
      %v1030 = vrot.slane %v725, 1
      %v1031 = vsel %vm986, %v1029, %v1030
      %v1032 = vrot.slane %v708, 1
      %v1033 = vrot.slane %v726, 1
      %v1034 = vsel %vm986, %v1032, %v1033
      %1035 = vrot.lane.b32.xlu0 %v989, 6
      %v1036 = vpop.permute.xlu0 %1035
      %1037 = vrot.lane.b32.xlu0 %v992, 6
      %v1038 = vpop.permute.xlu0 %1037
      %1039 = vrot.lane.b32.xlu0 %v995, 6
      %v1040 = vpop.permute.xlu0 %1039
      %1041 = vrot.lane.b32.xlu0 %v998, 6
      %v1042 = vpop.permute.xlu0 %1041
      %1043 = vrot.lane.b32.xlu0 %v1001, 6
      %v1044 = vpop.permute.xlu0 %1043
      %1045 = vrot.lane.b32.xlu0 %v1004, 6
      %v1046 = vpop.permute.xlu0 %1045
      %1047 = vrot.lane.b32.xlu0 %v1007, 6
      %v1048 = vpop.permute.xlu0 %1047
      %1049 = vrot.lane.b32.xlu0 %v1010, 6
      %v1050 = vpop.permute.xlu0 %1049
      %1051 = vrot.lane.b32.xlu0 %v1013, 6
      %v1052 = vpop.permute.xlu0 %1051
      %1053 = vrot.lane.b32.xlu0 %v1016, 6
      %v1054 = vpop.permute.xlu0 %1053
      %1055 = vrot.lane.b32.xlu0 %v1019, 6
      %v1056 = vpop.permute.xlu0 %1055
      %1057 = vrot.lane.b32.xlu0 %v1022, 6
      %v1058 = vpop.permute.xlu0 %1057
      %1059 = vrot.lane.b32.xlu0 %v1025, 6
      %v1060 = vpop.permute.xlu0 %1059
      %1061 = vrot.lane.b32.xlu0 %v1028, 6
      %v1062 = vpop.permute.xlu0 %1061
      %1063 = vrot.lane.b32.xlu0 %v1031, 6
      %v1064 = vpop.permute.xlu0 %1063
      %1065 = vrot.lane.b32.xlu0 %v1034, 6
      %v1066 = vpop.permute.xlu0 %1065
      %vm1067 = vcmask 23552
      %v1069 = vsel %vm1067, %v693, %v923
      %v1071 = vsel %vm1067, %v694, %v925
      %v1073 = vsel %vm1067, %v695, %v927
      %v1075 = vsel %vm1067, %v696, %v929
      %v1077 = vsel %vm1067, %v697, %v931
      %v1079 = vsel %vm1067, %v698, %v933
      %v1081 = vsel %vm1067, %v699, %v935
      %v1083 = vsel %vm1067, %v700, %v937
      %v1085 = vsel %vm1067, %v701, %v939
      %v1087 = vsel %vm1067, %v702, %v941
      %v1089 = vsel %vm1067, %v703, %v943
      %v1091 = vsel %vm1067, %v704, %v945
      %v1093 = vsel %vm1067, %v705, %v947
      %v1095 = vsel %vm1067, %v706, %v949
      %v1097 = vsel %vm1067, %v707, %v951
      %v1099 = vsel %vm1067, %v708, %v953
      %vm1100 = vcmask 48128
      %v1102 = vsel %vm1100, %v1069, %v1036
      %v1104 = vsel %vm1100, %v1071, %v1038
      %v1106 = vsel %vm1100, %v1073, %v1040
      %v1108 = vsel %vm1100, %v1075, %v1042
      %v1110 = vsel %vm1100, %v1077, %v1044
      %v1112 = vsel %vm1100, %v1079, %v1046
      %v1114 = vsel %vm1100, %v1081, %v1048
      %v1116 = vsel %vm1100, %v1083, %v1050
      %v1118 = vsel %vm1100, %v1085, %v1052
      %v1120 = vsel %vm1100, %v1087, %v1054
      %v1122 = vsel %vm1100, %v1089, %v1056
      %v1124 = vsel %vm1100, %v1091, %v1058
      %v1126 = vsel %vm1100, %v1093, %v1060
      %v1128 = vsel %vm1100, %v1095, %v1062
      %v1130 = vsel %vm1100, %v1097, %v1064
      %v1132 = vsel %vm1100, %v1099, %v1066
      %v1133 = vld [vmem:[%s3] sm:$0xf]
      %v1134 = vld [vmem:[%s3 + $0x4] sm:$0x1]
      %v1136 = vshrl.u32 %v709, 16
      %v1138 = vshll.u32 %v709, 16
      %v1140 = vrot.slane %v1138, 1
      %v1141 = vor.u32 %v1136, %v1140
      %v1143 = vshll.u32 %v727, 16
      %v1145 = vrot.slane %v1143, 1
      %v1146 = vsel %vm729, %v1141, %v1145
      %1147 = vrot.lane.b32.xlu0 %v1146, 3
      %v1148 = vpop.permute.xlu0 %1147
      %v1151 = vrot.slane %v709, 1
      %v1152 = vrot.slane %v727, 1
      %v1153 = vsel %vm986, %v1151, %v1152
      %1154 = vrot.lane.b32.xlu0 %v1153, 6
      %v1155 = vpop.permute.xlu0 %1154
      %v1157 = vsel %vm1067, %v709, %v1148
      %v1159 = vsel %vm1100, %v1157, %v1155
      %s1160 = scalar_lea.vmem %s3, 8
      %v1161 = vld [vmem:[%s1160] sm:$0xf]
      %v1162 = vld [vmem:[%s1160 + $0x4] sm:$0x1]
      %v1165 = vunpack.c.l.b16 %v1161
      %v1166 = vunpack.c.l.b16 %v1162
      %v1167 = vpack.c.b16 %v1166, %v1165
      %vm1168 = vcmask 72704
      %v1169 = vsel %vm1168, %v1104, 0
      %v1171 = vsel %vm1168, %v1106, 0
      %v1173 = vsel %vm1168, %v1108, 0
      %v1175 = vsel %vm1168, %v1110, 0
      %v1177 = vsel %vm1168, %v1112, 0
      %v1179 = vsel %vm1168, %v1114, 0
      %v1181 = vsel %vm1168, %v1116, 0
      %v1183 = vsel %vm1168, %v1118, 0
      %v1185 = vsel %vm1168, %v1120, 0
      %v1187 = vsel %vm1168, %v1122, 0
      %v1189 = vsel %vm1168, %v1124, 0
      %v1191 = vsel %vm1168, %v1126, 0
      %v1193 = vsel %vm1168, %v1128, 0
      %v1195 = vsel %vm1168, %v1130, 0
      %v1197 = vsel %vm1168, %v1132, 0
      %v1199 = vsel %vm1168, %v1159, 0
      %vm1201 = vcmask 1043456
      %vm1202 = vcmask 1044480
      %v1203 = vsel %vm1201, 4294967295, 65535
      %v1204 = vsel %vm1202, %v1203, 0
      %v1206 = vand.u32 %v1167, %v1204
      %1208 = vmatprep.subr.bf16.mxu0 0
      %1209 = vmatpush1.bf16.msra.mxu0 0
      %1210 = vmatprep.subr.bf16.mxu0 0
      %1211 = vmatpush1.bf16.msra.mxu0 0
      %1212 = vmatprep.subr.bf16.mxu0 0
      %1213 = vmatpush1.bf16.msra.mxu0 0
      %1214 = vmatprep.subr.bf16.mxu0 0
      %1215 = vmatpush1.bf16.msra.mxu0 0
      %1216 = vmatprep.subr.bf16.mxu0 0
      %1217 = vmatpush1.bf16.msra.mxu0 0
      %1218 = vmatprep.subr.bf16.mxu0 0
      %1219 = vmatpush1.bf16.msra.mxu0 0
      %1220 = vmatprep.subr.bf16.mxu0 0
      %1221 = vmatpush1.bf16.msra.mxu0 0
      %1222 = vmatprep.subr.bf16.mxu0 0
      %1223 = vmatpush1.bf16.msra.mxu0 %v1206
      %1224 = vmatprep.subr.bf16.mxu0 0
      %1225 = vmatpush2.bf16.msra.mxu0 0
      %1226 = vmatprep.subr.bf16.mxu0 0
      %1227 = vmatpush2.bf16.msra.mxu0 0
      %1228 = vmatprep.subr.bf16.mxu0 0
      %1229 = vmatpush2.bf16.msra.mxu0 0
      %1230 = vmatprep.subr.bf16.mxu0 0
      %1231 = vmatpush2.bf16.msra.mxu0 0
      %1232 = vmatprep.subr.bf16.mxu0 0
      %1233 = vmatpush2.bf16.msra.mxu0 0
      %1234 = vmatprep.subr.bf16.mxu0 0
      %1235 = vmatpush2.bf16.msra.mxu0 0
      %1236 = vmatprep.subr.bf16.mxu0 0
      %1237 = vmatpush2.bf16.msra.mxu0 0
      %1238 = vmatprep.subr.bf16.mxu0 0
      %1239 = vmatpush2.bf16.msra.mxu0 0
      %1240 = vmatprep.mubr.bf16.mxu0 0
      %1241 = vmatmul.mubr.bf16.gmra.mxu0 %v1169
      %v1242 = vpop.f32.mrf.mxu0
      %v1243 = vadd.f32 0.0, %v1242
      %v1244 = vpop.f32.mrf.mxu0
      %v1245 = vpop.f32.mrf.mxu0
      %v1246 = vadd.f32 0.0, %v1245
      %v1247 = vpop.f32.mrf.mxu0
      %1248 = vmatprep.mubr.bf16.mxu0 0
      %1249 = vmatmul.mubr.bf16.gmra.mxu0 %v1171
      %v1250 = vpop.f32.mrf.mxu0
      %v1251 = vadd.f32 0.0, %v1250
      %v1252 = vpop.f32.mrf.mxu0
      %v1253 = vpop.f32.mrf.mxu0
      %v1254 = vadd.f32 0.0, %v1253
      %v1255 = vpop.f32.mrf.mxu0
      %1256 = vmatprep.mubr.bf16.mxu0 0
      %1257 = vmatmul.mubr.bf16.gmra.mxu0 %v1173
      %v1258 = vpop.f32.mrf.mxu0
      %v1259 = vadd.f32 0.0, %v1258
      %v1260 = vpop.f32.mrf.mxu0
      %v1261 = vpop.f32.mrf.mxu0
      %v1262 = vadd.f32 0.0, %v1261
      %v1263 = vpop.f32.mrf.mxu0
      %1264 = vmatprep.mubr.bf16.mxu0 0
      %1265 = vmatmul.mubr.bf16.gmra.mxu0 %v1175
      %v1266 = vpop.f32.mrf.mxu0
      %v1267 = vadd.f32 0.0, %v1266
      %v1268 = vpop.f32.mrf.mxu0
      %v1269 = vpop.f32.mrf.mxu0
      %v1270 = vadd.f32 0.0, %v1269
      %v1271 = vpop.f32.mrf.mxu0
      %1272 = vmatprep.mubr.bf16.mxu0 0
      %1273 = vmatmul.mubr.bf16.gmra.mxu0 %v1177
      %v1274 = vpop.f32.mrf.mxu0
      %v1275 = vadd.f32 0.0, %v1274
      %v1276 = vpop.f32.mrf.mxu0
      %v1277 = vpop.f32.mrf.mxu0
      %v1278 = vadd.f32 0.0, %v1277
      %v1279 = vpop.f32.mrf.mxu0
      %1280 = vmatprep.mubr.bf16.mxu0 0
      %1281 = vmatmul.mubr.bf16.gmra.mxu0 %v1179
      %v1282 = vpop.f32.mrf.mxu0
      %v1283 = vadd.f32 0.0, %v1282
      %v1284 = vpop.f32.mrf.mxu0
      %v1285 = vpop.f32.mrf.mxu0
      %v1286 = vadd.f32 0.0, %v1285
      %v1287 = vpop.f32.mrf.mxu0
      %1288 = vmatprep.mubr.bf16.mxu0 0
      %1289 = vmatmul.mubr.bf16.gmra.mxu0 %v1181
      %v1290 = vpop.f32.mrf.mxu0
      %v1291 = vadd.f32 0.0, %v1290
      %v1292 = vpop.f32.mrf.mxu0
      %v1293 = vpop.f32.mrf.mxu0
      %v1294 = vadd.f32 0.0, %v1293
      %v1295 = vpop.f32.mrf.mxu0
      %1296 = vmatprep.mubr.bf16.mxu0 0
      %1297 = vmatmul.mubr.bf16.gmra.mxu0 %v1183
      %v1298 = vpop.f32.mrf.mxu0
      %v1299 = vadd.f32 0.0, %v1298
      %v1300 = vpop.f32.mrf.mxu0
      %v1301 = vpop.f32.mrf.mxu0
      %v1302 = vadd.f32 0.0, %v1301
      %v1303 = vpop.f32.mrf.mxu0
      %1304 = vmatprep.mubr.bf16.mxu0 0
      %1305 = vmatmul.mubr.bf16.gmra.mxu0 %v1185
      %v1306 = vpop.f32.mrf.mxu0
      %v1307 = vadd.f32 0.0, %v1306
      %v1308 = vpop.f32.mrf.mxu0
      %v1309 = vpop.f32.mrf.mxu0
      %v1310 = vadd.f32 0.0, %v1309
      %v1311 = vpop.f32.mrf.mxu0
      %1312 = vmatprep.mubr.bf16.mxu0 0
      %1313 = vmatmul.mubr.bf16.gmra.mxu0 %v1187
      %v1314 = vpop.f32.mrf.mxu0
      %v1315 = vadd.f32 0.0, %v1314
      %v1316 = vpop.f32.mrf.mxu0
      %v1317 = vpop.f32.mrf.mxu0
      %v1318 = vadd.f32 0.0, %v1317
      %v1319 = vpop.f32.mrf.mxu0
      %1320 = vmatprep.mubr.bf16.mxu0 0
      %1321 = vmatmul.mubr.bf16.gmra.mxu0 %v1189
      %v1322 = vpop.f32.mrf.mxu0
      %v1323 = vadd.f32 0.0, %v1322
      %v1324 = vpop.f32.mrf.mxu0
      %v1325 = vpop.f32.mrf.mxu0
      %v1326 = vadd.f32 0.0, %v1325
      %v1327 = vpop.f32.mrf.mxu0
      %1328 = vmatprep.mubr.bf16.mxu0 0
      %1329 = vmatmul.mubr.bf16.gmra.mxu0 %v1191
      %v1330 = vpop.f32.mrf.mxu0
      %v1331 = vadd.f32 0.0, %v1330
      %v1332 = vpop.f32.mrf.mxu0
      %v1333 = vpop.f32.mrf.mxu0
      %v1334 = vadd.f32 0.0, %v1333
      %v1335 = vpop.f32.mrf.mxu0
      %1336 = vmatprep.mubr.bf16.mxu0 0
      %1337 = vmatmul.mubr.bf16.gmra.mxu0 %v1193
      %v1338 = vpop.f32.mrf.mxu0
      %v1339 = vadd.f32 0.0, %v1338
      %v1340 = vpop.f32.mrf.mxu0
      %v1341 = vpop.f32.mrf.mxu0
      %v1342 = vadd.f32 0.0, %v1341
      %v1343 = vpop.f32.mrf.mxu0
      %1344 = vmatprep.mubr.bf16.mxu0 0
      %1345 = vmatmul.mubr.bf16.gmra.mxu0 %v1195
      %v1346 = vpop.f32.mrf.mxu0
      %v1347 = vadd.f32 0.0, %v1346
      %v1348 = vpop.f32.mrf.mxu0
      %v1349 = vpop.f32.mrf.mxu0
      %v1350 = vadd.f32 0.0, %v1349
      %v1351 = vpop.f32.mrf.mxu0
      %1352 = vmatprep.mubr.bf16.mxu0 0
      %1353 = vmatmul.mubr.bf16.gmra.mxu0 %v1197
      %v1354 = vpop.f32.mrf.mxu0
      %v1355 = vadd.f32 0.0, %v1354
      %v1356 = vpop.f32.mrf.mxu0
      %v1357 = vpop.f32.mrf.mxu0
      %v1358 = vadd.f32 0.0, %v1357
      %v1359 = vpop.f32.mrf.mxu0
      %1360 = vmatprep.mubr.bf16.mxu0 0
      %1361 = vmatmul.mubr.bf16.gmra.mxu0 %v1199
      %v1362 = vpop.f32.mrf.mxu0
      %v1363 = vadd.f32 0.0, %v1362
      %v1364 = vpop.f32.mrf.mxu0
      %v1365 = vpop.f32.mrf.mxu0
      %v1366 = vadd.f32 0.0, %v1365
      %v1367 = vpop.f32.mrf.mxu0
      %1368 = vdwg.mxu0
      %v1371 = vunpack.c.l.b16 %v1133
      %v1372 = vunpack.c.l.b16 %v1134
      %v1373 = vpack.c.b16 %v1372, %v1371
      %v1374 = vsel %vm1168, %v1102, 0
      %v1377 = vand.u32 %v1373, %v1204
      %1379 = vmatprep.subr.bf16.mxu0 0
      %1380 = vmatpush1.bf16.msra.mxu0 0
      %1381 = vmatprep.subr.bf16.mxu0 0
      %1382 = vmatpush1.bf16.msra.mxu0 0
      %1383 = vmatprep.subr.bf16.mxu0 0
      %1384 = vmatpush1.bf16.msra.mxu0 0
      %1385 = vmatprep.subr.bf16.mxu0 0
      %1386 = vmatpush1.bf16.msra.mxu0 0
      %1387 = vmatprep.subr.bf16.mxu0 0
      %1388 = vmatpush1.bf16.msra.mxu0 0
      %1389 = vmatprep.subr.bf16.mxu0 0
      %1390 = vmatpush1.bf16.msra.mxu0 0
      %1391 = vmatprep.subr.bf16.mxu0 0
      %1392 = vmatpush1.bf16.msra.mxu0 0
      %1393 = vmatprep.subr.bf16.mxu0 0
      %1394 = vmatpush1.bf16.msra.mxu0 %v1377
      %1395 = vmatprep.subr.bf16.mxu0 0
      %1396 = vmatpush2.bf16.msra.mxu0 0
      %1397 = vmatprep.subr.bf16.mxu0 0
      %1398 = vmatpush2.bf16.msra.mxu0 0
      %1399 = vmatprep.subr.bf16.mxu0 0
      %1400 = vmatpush2.bf16.msra.mxu0 0
      %1401 = vmatprep.subr.bf16.mxu0 0
      %1402 = vmatpush2.bf16.msra.mxu0 0
      %1403 = vmatprep.subr.bf16.mxu0 0
      %1404 = vmatpush2.bf16.msra.mxu0 0
      %1405 = vmatprep.subr.bf16.mxu0 0
      %1406 = vmatpush2.bf16.msra.mxu0 0
      %1407 = vmatprep.subr.bf16.mxu0 0
      %1408 = vmatpush2.bf16.msra.mxu0 0
      %1409 = vmatprep.subr.bf16.mxu0 0
      %1410 = vmatpush2.bf16.msra.mxu0 0
      %1411 = vmatprep.mubr.bf16.mxu0 0
      %1412 = vmatmul.mubr.bf16.gmra.mxu0 %v1374
      %v1413 = vpop.f32.mrf.mxu0
      %v1414 = vadd.f32 %v1243, %v1413
      %v1415 = vpop.f32.mrf.mxu0
      %v1416 = vpop.f32.mrf.mxu0
      %v1417 = vadd.f32 %v1246, %v1416
      %v1418 = vpop.f32.mrf.mxu0
      %1419 = vmatprep.mubr.bf16.mxu0 0
      %1420 = vmatmul.mubr.bf16.gmra.mxu0 %v1169
      %v1421 = vpop.f32.mrf.mxu0
      %v1422 = vadd.f32 %v1251, %v1421
      %v1423 = vpop.f32.mrf.mxu0
      %v1424 = vpop.f32.mrf.mxu0
      %v1425 = vadd.f32 %v1254, %v1424
      %v1426 = vpop.f32.mrf.mxu0
      %1427 = vmatprep.mubr.bf16.mxu0 0
      %1428 = vmatmul.mubr.bf16.gmra.mxu0 %v1171
      %v1429 = vpop.f32.mrf.mxu0
      %v1430 = vadd.f32 %v1259, %v1429
      %v1431 = vpop.f32.mrf.mxu0
      %v1432 = vpop.f32.mrf.mxu0
      %v1433 = vadd.f32 %v1262, %v1432
      %v1434 = vpop.f32.mrf.mxu0
      %1435 = vmatprep.mubr.bf16.mxu0 0
      %1436 = vmatmul.mubr.bf16.gmra.mxu0 %v1173
      %v1437 = vpop.f32.mrf.mxu0
      %v1438 = vadd.f32 %v1267, %v1437
      %v1439 = vpop.f32.mrf.mxu0
      %v1440 = vpop.f32.mrf.mxu0
      %v1441 = vadd.f32 %v1270, %v1440
      %v1442 = vpop.f32.mrf.mxu0
      %1443 = vmatprep.mubr.bf16.mxu0 0
      %1444 = vmatmul.mubr.bf16.gmra.mxu0 %v1175
      %v1445 = vpop.f32.mrf.mxu0
      %v1446 = vadd.f32 %v1275, %v1445
      %v1447 = vpop.f32.mrf.mxu0
      %v1448 = vpop.f32.mrf.mxu0
      %v1449 = vadd.f32 %v1278, %v1448
      %v1450 = vpop.f32.mrf.mxu0
      %1451 = vmatprep.mubr.bf16.mxu0 0
      %1452 = vmatmul.mubr.bf16.gmra.mxu0 %v1177
      %v1453 = vpop.f32.mrf.mxu0
      %v1454 = vadd.f32 %v1283, %v1453
      %v1455 = vpop.f32.mrf.mxu0
      %v1456 = vpop.f32.mrf.mxu0
      %v1457 = vadd.f32 %v1286, %v1456
      %v1458 = vpop.f32.mrf.mxu0
      %1459 = vmatprep.mubr.bf16.mxu0 0
      %1460 = vmatmul.mubr.bf16.gmra.mxu0 %v1179
      %v1461 = vpop.f32.mrf.mxu0
      %v1462 = vadd.f32 %v1291, %v1461
      %v1463 = vpop.f32.mrf.mxu0
      %v1464 = vpop.f32.mrf.mxu0
      %v1465 = vadd.f32 %v1294, %v1464
      %v1466 = vpop.f32.mrf.mxu0
      %1467 = vmatprep.mubr.bf16.mxu0 0
      %1468 = vmatmul.mubr.bf16.gmra.mxu0 %v1181
      %v1469 = vpop.f32.mrf.mxu0
      %v1470 = vadd.f32 %v1299, %v1469
      %v1471 = vpop.f32.mrf.mxu0
      %v1472 = vpop.f32.mrf.mxu0
      %v1473 = vadd.f32 %v1302, %v1472
      %v1474 = vpop.f32.mrf.mxu0
      %1475 = vmatprep.mubr.bf16.mxu0 0
      %1476 = vmatmul.mubr.bf16.gmra.mxu0 %v1183
      %v1477 = vpop.f32.mrf.mxu0
      %v1478 = vadd.f32 %v1307, %v1477
      %v1479 = vpop.f32.mrf.mxu0
      %v1480 = vpop.f32.mrf.mxu0
      %v1481 = vadd.f32 %v1310, %v1480
      %v1482 = vpop.f32.mrf.mxu0
      %1483 = vmatprep.mubr.bf16.mxu0 0
      %1484 = vmatmul.mubr.bf16.gmra.mxu0 %v1185
      %v1485 = vpop.f32.mrf.mxu0
      %v1486 = vadd.f32 %v1315, %v1485
      %v1487 = vpop.f32.mrf.mxu0
      %v1488 = vpop.f32.mrf.mxu0
      %v1489 = vadd.f32 %v1318, %v1488
      %v1490 = vpop.f32.mrf.mxu0
      %1491 = vmatprep.mubr.bf16.mxu0 0
      %1492 = vmatmul.mubr.bf16.gmra.mxu0 %v1187
      %v1493 = vpop.f32.mrf.mxu0
      %v1494 = vadd.f32 %v1323, %v1493
      %v1495 = vpop.f32.mrf.mxu0
      %v1496 = vpop.f32.mrf.mxu0
      %v1497 = vadd.f32 %v1326, %v1496
      %v1498 = vpop.f32.mrf.mxu0
      %1499 = vmatprep.mubr.bf16.mxu0 0
      %1500 = vmatmul.mubr.bf16.gmra.mxu0 %v1189
      %v1501 = vpop.f32.mrf.mxu0
      %v1502 = vadd.f32 %v1331, %v1501
      %v1503 = vpop.f32.mrf.mxu0
      %v1504 = vpop.f32.mrf.mxu0
      %v1505 = vadd.f32 %v1334, %v1504
      %v1506 = vpop.f32.mrf.mxu0
      %1507 = vmatprep.mubr.bf16.mxu0 0
      %1508 = vmatmul.mubr.bf16.gmra.mxu0 %v1191
      %v1509 = vpop.f32.mrf.mxu0
      %v1510 = vadd.f32 %v1339, %v1509
      %v1511 = vpop.f32.mrf.mxu0
      %v1512 = vpop.f32.mrf.mxu0
      %v1513 = vadd.f32 %v1342, %v1512
      %v1514 = vpop.f32.mrf.mxu0
      %1515 = vmatprep.mubr.bf16.mxu0 0
      %1516 = vmatmul.mubr.bf16.gmra.mxu0 %v1193
      %v1517 = vpop.f32.mrf.mxu0
      %v1518 = vadd.f32 %v1347, %v1517
      %v1519 = vpop.f32.mrf.mxu0
      %v1520 = vpop.f32.mrf.mxu0
      %v1521 = vadd.f32 %v1350, %v1520
      %v1522 = vpop.f32.mrf.mxu0
      %1523 = vmatprep.mubr.bf16.mxu0 0
      %1524 = vmatmul.mubr.bf16.gmra.mxu0 %v1195
      %v1525 = vpop.f32.mrf.mxu0
      %v1526 = vadd.f32 %v1355, %v1525
      %v1527 = vpop.f32.mrf.mxu0
      %v1528 = vpop.f32.mrf.mxu0
      %v1529 = vadd.f32 %v1358, %v1528
      %v1530 = vpop.f32.mrf.mxu0
      %1531 = vmatprep.mubr.bf16.mxu0 0
      %1532 = vmatmul.mubr.bf16.gmra.mxu0 %v1197
      %v1533 = vpop.f32.mrf.mxu0
      %v1534 = vadd.f32 %v1363, %v1533
      %v1535 = vpop.f32.mrf.mxu0
      %v1536 = vpop.f32.mrf.mxu0
      %v1537 = vadd.f32 %v1366, %v1536
      %v1538 = vpop.f32.mrf.mxu0
      %1539 = vdwg.mxu0
      %v1541 = vshrl.u32 %v710, 16
      %v1543 = vshll.u32 %v710, 16
      %v1545 = vrot.slane %v1543, 1
      %v1546 = vor.u32 %v1541, %v1545
      %v1548 = vshll.u32 %v728, 16
      %v1550 = vrot.slane %v1548, 1
      %v1551 = vsel %vm729, %v1546, %v1550
      %1552 = vrot.lane.b32.xlu0 %v1551, 3
      %v1553 = vpop.permute.xlu0 %1552
      %v1556 = vrot.slane %v710, 1
      %v1557 = vrot.slane %v728, 1
      %v1558 = vsel %vm986, %v1556, %v1557
      %1559 = vrot.lane.b32.xlu0 %v1558, 6
      %v1560 = vpop.permute.xlu0 %1559
      %v1562 = vsel %vm1067, %v710, %v1553
      %v1564 = vsel %vm1100, %v1562, %v1560
      %s1565 = scalar_lea.vmem %s3, 16
      %v1566 = vld [vmem:[%s1565] sm:$0xf]
      %v1567 = vld [vmem:[%s1565 + $0x4] sm:$0x1]
      %v1570 = vunpack.c.l.b16 %v1566
      %v1571 = vunpack.c.l.b16 %v1567
      %v1572 = vpack.c.b16 %v1571, %v1570
      %v1573 = vsel %vm1168, %v1564, 0
      %v1576 = vand.u32 %v1572, %v1204
      %1578 = vmatprep.subr.bf16.mxu0 0
      %1579 = vmatpush1.bf16.msra.mxu0 0
      %1580 = vmatprep.subr.bf16.mxu0 0
      %1581 = vmatpush1.bf16.msra.mxu0 0
      %1582 = vmatprep.subr.bf16.mxu0 0
      %1583 = vmatpush1.bf16.msra.mxu0 0
      %1584 = vmatprep.subr.bf16.mxu0 0
      %1585 = vmatpush1.bf16.msra.mxu0 0
      %1586 = vmatprep.subr.bf16.mxu0 0
      %1587 = vmatpush1.bf16.msra.mxu0 0
      %1588 = vmatprep.subr.bf16.mxu0 0
      %1589 = vmatpush1.bf16.msra.mxu0 0
      %1590 = vmatprep.subr.bf16.mxu0 0
      %1591 = vmatpush1.bf16.msra.mxu0 0
      %1592 = vmatprep.subr.bf16.mxu0 0
      %1593 = vmatpush1.bf16.msra.mxu0 %v1576
      %1594 = vmatprep.subr.bf16.mxu0 0
      %1595 = vmatpush2.bf16.msra.mxu0 0
      %1596 = vmatprep.subr.bf16.mxu0 0
      %1597 = vmatpush2.bf16.msra.mxu0 0
      %1598 = vmatprep.subr.bf16.mxu0 0
      %1599 = vmatpush2.bf16.msra.mxu0 0
      %1600 = vmatprep.subr.bf16.mxu0 0
      %1601 = vmatpush2.bf16.msra.mxu0 0
      %1602 = vmatprep.subr.bf16.mxu0 0
      %1603 = vmatpush2.bf16.msra.mxu0 0
      %1604 = vmatprep.subr.bf16.mxu0 0
      %1605 = vmatpush2.bf16.msra.mxu0 0
      %1606 = vmatprep.subr.bf16.mxu0 0
      %1607 = vmatpush2.bf16.msra.mxu0 0
      %1608 = vmatprep.subr.bf16.mxu0 0
      %1609 = vmatpush2.bf16.msra.mxu0 0
      %1610 = vmatprep.mubr.bf16.mxu0 0
      %1611 = vmatmul.mubr.bf16.gmra.mxu0 %v1171
      %v1612 = vpop.f32.mrf.mxu0
      %v1613 = vadd.f32 0.0, %v1612
      %v1614 = vpop.f32.mrf.mxu0
      %v1615 = vpop.f32.mrf.mxu0
      %v1616 = vadd.f32 0.0, %v1615
      %v1617 = vpop.f32.mrf.mxu0
      %1618 = vmatprep.mubr.bf16.mxu0 0
      %1619 = vmatmul.mubr.bf16.gmra.mxu0 %v1173
      %v1620 = vpop.f32.mrf.mxu0
      %v1621 = vadd.f32 0.0, %v1620
      %v1622 = vpop.f32.mrf.mxu0
      %v1623 = vpop.f32.mrf.mxu0
      %v1624 = vadd.f32 0.0, %v1623
      %v1625 = vpop.f32.mrf.mxu0
      %1626 = vmatprep.mubr.bf16.mxu0 0
      %1627 = vmatmul.mubr.bf16.gmra.mxu0 %v1175
      %v1628 = vpop.f32.mrf.mxu0
      %v1629 = vadd.f32 0.0, %v1628
      %v1630 = vpop.f32.mrf.mxu0
      %v1631 = vpop.f32.mrf.mxu0
      %v1632 = vadd.f32 0.0, %v1631
      %v1633 = vpop.f32.mrf.mxu0
      %1634 = vmatprep.mubr.bf16.mxu0 0
      %1635 = vmatmul.mubr.bf16.gmra.mxu0 %v1177
      %v1636 = vpop.f32.mrf.mxu0
      %v1637 = vadd.f32 0.0, %v1636
      %v1638 = vpop.f32.mrf.mxu0
      %v1639 = vpop.f32.mrf.mxu0
      %v1640 = vadd.f32 0.0, %v1639
      %v1641 = vpop.f32.mrf.mxu0
      %1642 = vmatprep.mubr.bf16.mxu0 0
      %1643 = vmatmul.mubr.bf16.gmra.mxu0 %v1179
      %v1644 = vpop.f32.mrf.mxu0
      %v1645 = vadd.f32 0.0, %v1644
      %v1646 = vpop.f32.mrf.mxu0
      %v1647 = vpop.f32.mrf.mxu0
      %v1648 = vadd.f32 0.0, %v1647
      %v1649 = vpop.f32.mrf.mxu0
      %1650 = vmatprep.mubr.bf16.mxu0 0
      %1651 = vmatmul.mubr.bf16.gmra.mxu0 %v1181
      %v1652 = vpop.f32.mrf.mxu0
      %v1653 = vadd.f32 0.0, %v1652
      %v1654 = vpop.f32.mrf.mxu0
      %v1655 = vpop.f32.mrf.mxu0
      %v1656 = vadd.f32 0.0, %v1655
      %v1657 = vpop.f32.mrf.mxu0
      %1658 = vmatprep.mubr.bf16.mxu0 0
      %1659 = vmatmul.mubr.bf16.gmra.mxu0 %v1183
      %v1660 = vpop.f32.mrf.mxu0
      %v1661 = vadd.f32 0.0, %v1660
      %v1662 = vpop.f32.mrf.mxu0
      %v1663 = vpop.f32.mrf.mxu0
      %v1664 = vadd.f32 0.0, %v1663
      %v1665 = vpop.f32.mrf.mxu0
      %1666 = vmatprep.mubr.bf16.mxu0 0
      %1667 = vmatmul.mubr.bf16.gmra.mxu0 %v1185
      %v1668 = vpop.f32.mrf.mxu0
      %v1669 = vadd.f32 0.0, %v1668
      %v1670 = vpop.f32.mrf.mxu0
      %v1671 = vpop.f32.mrf.mxu0
      %v1672 = vadd.f32 0.0, %v1671
      %v1673 = vpop.f32.mrf.mxu0
      %1674 = vmatprep.mubr.bf16.mxu0 0
      %1675 = vmatmul.mubr.bf16.gmra.mxu0 %v1187
      %v1676 = vpop.f32.mrf.mxu0
      %v1677 = vadd.f32 0.0, %v1676
      %v1678 = vpop.f32.mrf.mxu0
      %v1679 = vpop.f32.mrf.mxu0
      %v1680 = vadd.f32 0.0, %v1679
      %v1681 = vpop.f32.mrf.mxu0
      %1682 = vmatprep.mubr.bf16.mxu0 0
      %1683 = vmatmul.mubr.bf16.gmra.mxu0 %v1189
      %v1684 = vpop.f32.mrf.mxu0
      %v1685 = vadd.f32 0.0, %v1684
      %v1686 = vpop.f32.mrf.mxu0
      %v1687 = vpop.f32.mrf.mxu0
      %v1688 = vadd.f32 0.0, %v1687
      %v1689 = vpop.f32.mrf.mxu0
      %1690 = vmatprep.mubr.bf16.mxu0 0
      %1691 = vmatmul.mubr.bf16.gmra.mxu0 %v1191
      %v1692 = vpop.f32.mrf.mxu0
      %v1693 = vadd.f32 0.0, %v1692
      %v1694 = vpop.f32.mrf.mxu0
      %v1695 = vpop.f32.mrf.mxu0
      %v1696 = vadd.f32 0.0, %v1695
      %v1697 = vpop.f32.mrf.mxu0
      %1698 = vmatprep.mubr.bf16.mxu0 0
      %1699 = vmatmul.mubr.bf16.gmra.mxu0 %v1193
      %v1700 = vpop.f32.mrf.mxu0
      %v1701 = vadd.f32 0.0, %v1700
      %v1702 = vpop.f32.mrf.mxu0
      %v1703 = vpop.f32.mrf.mxu0
      %v1704 = vadd.f32 0.0, %v1703
      %v1705 = vpop.f32.mrf.mxu0
      %1706 = vmatprep.mubr.bf16.mxu0 0
      %1707 = vmatmul.mubr.bf16.gmra.mxu0 %v1195
      %v1708 = vpop.f32.mrf.mxu0
      %v1709 = vadd.f32 0.0, %v1708
      %v1710 = vpop.f32.mrf.mxu0
      %v1711 = vpop.f32.mrf.mxu0
      %v1712 = vadd.f32 0.0, %v1711
      %v1713 = vpop.f32.mrf.mxu0
      %1714 = vmatprep.mubr.bf16.mxu0 0
      %1715 = vmatmul.mubr.bf16.gmra.mxu0 %v1197
      %v1716 = vpop.f32.mrf.mxu0
      %v1717 = vadd.f32 0.0, %v1716
      %v1718 = vpop.f32.mrf.mxu0
      %v1719 = vpop.f32.mrf.mxu0
      %v1720 = vadd.f32 0.0, %v1719
      %v1721 = vpop.f32.mrf.mxu0
      %1722 = vmatprep.mubr.bf16.mxu0 0
      %1723 = vmatmul.mubr.bf16.gmra.mxu0 %v1199
      %v1724 = vpop.f32.mrf.mxu0
      %v1725 = vadd.f32 0.0, %v1724
      %v1726 = vpop.f32.mrf.mxu0
      %v1727 = vpop.f32.mrf.mxu0
      %v1728 = vadd.f32 0.0, %v1727
      %v1729 = vpop.f32.mrf.mxu0
      %1730 = vmatprep.mubr.bf16.mxu0 0
      %1731 = vmatmul.mubr.bf16.gmra.mxu0 %v1573
      %v1732 = vpop.f32.mrf.mxu0
      %v1733 = vadd.f32 0.0, %v1732
      %v1734 = vpop.f32.mrf.mxu0
      %v1735 = vpop.f32.mrf.mxu0
      %v1736 = vadd.f32 0.0, %v1735
      %v1737 = vpop.f32.mrf.mxu0
      %1738 = vdwg.mxu0
      %v1739 = vadd.f32 %v1414, %v1613
      %v1740 = vadd.f32 %v1417, %v1616
      %v1741 = vadd.f32 %v1422, %v1621
      %v1742 = vadd.f32 %v1425, %v1624
      %v1743 = vadd.f32 %v1430, %v1629
      %v1744 = vadd.f32 %v1433, %v1632
      %v1745 = vadd.f32 %v1438, %v1637
      %v1746 = vadd.f32 %v1441, %v1640
      %v1747 = vadd.f32 %v1446, %v1645
      %v1748 = vadd.f32 %v1449, %v1648
      %v1749 = vadd.f32 %v1454, %v1653
      %v1750 = vadd.f32 %v1457, %v1656
      %v1751 = vadd.f32 %v1462, %v1661
      %v1752 = vadd.f32 %v1465, %v1664
      %v1753 = vadd.f32 %v1470, %v1669
      %v1754 = vadd.f32 %v1473, %v1672
      %v1755 = vadd.f32 %v1478, %v1677
      %v1756 = vadd.f32 %v1481, %v1680
      %v1757 = vadd.f32 %v1486, %v1685
      %v1758 = vadd.f32 %v1489, %v1688
      %v1759 = vadd.f32 %v1494, %v1693
      %v1760 = vadd.f32 %v1497, %v1696
      %v1761 = vadd.f32 %v1502, %v1701
      %v1762 = vadd.f32 %v1505, %v1704
      %v1763 = vadd.f32 %v1510, %v1709
      %v1764 = vadd.f32 %v1513, %v1712
      %v1765 = vadd.f32 %v1518, %v1717
      %v1766 = vadd.f32 %v1521, %v1720
      %v1767 = vadd.f32 %v1526, %v1725
      %v1768 = vadd.f32 %v1529, %v1728
      %v1769 = vadd.f32 %v1534, %v1733
      %v1770 = vadd.f32 %v1537, %v1736
      %v1771 = vld [vmem:[%s4] sm:$0x1]
      %v1773 = vlaneseq
      %v1774 = vshrl.u32 %v1773, 7
      %v1775 = vsub.s32 0, %v1774
      %v1776 = vrot.slane %v1771, %v1775
      %v1778 = vadd.f32 %v1739, %v1776
      %v1779 = vadd.f32 %v1740, %v1776
      %v1780 = vadd.f32 %v1741, %v1776
      %v1781 = vadd.f32 %v1742, %v1776
      %v1782 = vadd.f32 %v1743, %v1776
      %v1783 = vadd.f32 %v1744, %v1776
      %v1784 = vadd.f32 %v1745, %v1776
      %v1785 = vadd.f32 %v1746, %v1776
      %v1786 = vadd.f32 %v1747, %v1776
      %v1787 = vadd.f32 %v1748, %v1776
      %v1788 = vadd.f32 %v1749, %v1776
      %v1789 = vadd.f32 %v1750, %v1776
      %v1790 = vadd.f32 %v1751, %v1776
      %v1791 = vadd.f32 %v1752, %v1776
      %v1792 = vadd.f32 %v1753, %v1776
      %v1793 = vadd.f32 %v1754, %v1776
      %v1794 = vadd.f32 %v1755, %v1776
      %v1795 = vadd.f32 %v1756, %v1776
      %v1796 = vadd.f32 %v1757, %v1776
      %v1797 = vadd.f32 %v1758, %v1776
      %v1798 = vadd.f32 %v1759, %v1776
      %v1799 = vadd.f32 %v1760, %v1776
      %v1800 = vadd.f32 %v1761, %v1776
      %v1801 = vadd.f32 %v1762, %v1776
      %v1802 = vadd.f32 %v1763, %v1776
      %v1803 = vadd.f32 %v1764, %v1776
      %v1804 = vadd.f32 %v1765, %v1776
      %v1805 = vadd.f32 %v1766, %v1776
      %v1806 = vadd.f32 %v1767, %v1776
      %v1807 = vadd.f32 %v1768, %v1776
      %v1808 = vadd.f32 %v1769, %v1776
      %v1809 = vadd.f32 %v1770, %v1776
      %v1810 = vmax.f32 %v1778, 0.0
      %v1811 = vmax.f32 %v1779, 0.0
      %v1812 = vmax.f32 %v1780, 0.0
      %v1813 = vmax.f32 %v1781, 0.0
      %v1814 = vmax.f32 %v1782, 0.0
      %v1815 = vmax.f32 %v1783, 0.0
      %v1816 = vmax.f32 %v1784, 0.0
      %v1817 = vmax.f32 %v1785, 0.0
      %v1818 = vmax.f32 %v1786, 0.0
      %v1819 = vmax.f32 %v1787, 0.0
      %v1820 = vmax.f32 %v1788, 0.0
      %v1821 = vmax.f32 %v1789, 0.0
      %v1822 = vmax.f32 %v1790, 0.0
      %v1823 = vmax.f32 %v1791, 0.0
      %v1824 = vmax.f32 %v1792, 0.0
      %v1825 = vmax.f32 %v1793, 0.0
      %v1826 = vmax.f32 %v1794, 0.0
      %v1827 = vmax.f32 %v1795, 0.0
      %v1828 = vmax.f32 %v1796, 0.0
      %v1829 = vmax.f32 %v1797, 0.0
      %v1830 = vmax.f32 %v1798, 0.0
      %v1831 = vmax.f32 %v1799, 0.0
      %v1832 = vmax.f32 %v1800, 0.0
      %v1833 = vmax.f32 %v1801, 0.0
      %v1834 = vmax.f32 %v1802, 0.0
      %v1835 = vmax.f32 %v1803, 0.0
      %v1836 = vmax.f32 %v1804, 0.0
      %v1837 = vmax.f32 %v1805, 0.0
      %v1838 = vmax.f32 %v1806, 0.0
      %v1839 = vmax.f32 %v1807, 0.0
      %v1840 = vmax.f32 %v1808, 0.0
      %v1841 = vmax.f32 %v1809, 0.0
      %v1842 = vpack.c.bf16 %v1811, %v1810
      %v1843 = vpack.c.bf16 %v1813, %v1812
      %v1844 = vpack.c.bf16 %v1815, %v1814
      %v1845 = vpack.c.bf16 %v1817, %v1816
      %v1846 = vpack.c.bf16 %v1819, %v1818
      %v1847 = vpack.c.bf16 %v1821, %v1820
      %v1848 = vpack.c.bf16 %v1823, %v1822
      %v1849 = vpack.c.bf16 %v1825, %v1824
      %v1850 = vpack.c.bf16 %v1827, %v1826
      %v1851 = vpack.c.bf16 %v1829, %v1828
      %v1852 = vpack.c.bf16 %v1831, %v1830
      %v1853 = vpack.c.bf16 %v1833, %v1832
      %v1854 = vpack.c.bf16 %v1835, %v1834
      %v1855 = vpack.c.bf16 %v1837, %v1836
      %v1856 = vpack.c.bf16 %v1839, %v1838
      %v1857 = vpack.c.bf16 %v1841, %v1840
      %v1874 = vunpack.c.l.b16 %v1842
      %v1875 = vunpack.c.h.b16 %v1842
      %v1876 = vunpack.c.l.b16 %v1843
      %v1877 = vunpack.c.h.b16 %v1843
      %v1878 = vunpack.c.l.b16 %v1844
      %v1879 = vunpack.c.h.b16 %v1844
      %v1880 = vunpack.c.l.b16 %v1845
      %v1881 = vunpack.c.h.b16 %v1845
      %v1882 = vunpack.c.l.b16 %v1846
      %v1883 = vunpack.c.h.b16 %v1846
      %v1884 = vunpack.c.l.b16 %v1847
      %v1885 = vunpack.c.h.b16 %v1847
      %v1886 = vunpack.c.l.b16 %v1848
      %v1887 = vunpack.c.h.b16 %v1848
      %v1888 = vunpack.c.l.b16 %v1849
      %v1889 = vunpack.c.h.b16 %v1849
      %v1890 = vunpack.c.l.b16 %v1850
      %v1891 = vunpack.c.h.b16 %v1850
      %v1892 = vunpack.c.l.b16 %v1851
      %v1893 = vunpack.c.h.b16 %v1851
      %v1894 = vunpack.c.l.b16 %v1852
      %v1895 = vunpack.c.h.b16 %v1852
      %v1896 = vunpack.c.l.b16 %v1853
      %v1897 = vunpack.c.h.b16 %v1853
      %v1898 = vunpack.c.l.b16 %v1854
      %v1899 = vunpack.c.h.b16 %v1854
      %v1900 = vunpack.c.l.b16 %v1855
      %v1901 = vunpack.c.h.b16 %v1855
      %v1902 = vunpack.c.l.b16 %v1856
      %v1903 = vunpack.c.h.b16 %v1856
      %v1904 = vunpack.c.l.b16 %v1857
      %v1905 = vunpack.c.h.b16 %v1857
      %v1906 = vpack.c.b16 %v1874, %v1874
      %v1907 = vpack.c.b16 %v1875, %v1875
      %v1908 = vpack.c.b16 %v1876, %v1876
      %v1909 = vpack.c.b16 %v1877, %v1877
      %v1910 = vpack.c.b16 %v1878, %v1878
      %v1911 = vpack.c.b16 %v1879, %v1879
      %v1912 = vpack.c.b16 %v1880, %v1880
      %v1913 = vpack.c.b16 %v1881, %v1881
      %v1914 = vpack.c.b16 %v1882, %v1882
      %v1915 = vpack.c.b16 %v1883, %v1883
      %v1916 = vpack.c.b16 %v1884, %v1884
      %v1917 = vpack.c.b16 %v1885, %v1885
      %v1918 = vpack.c.b16 %v1886, %v1886
      %v1919 = vpack.c.b16 %v1887, %v1887
      %v1920 = vpack.c.b16 %v1888, %v1888
      %v1921 = vpack.c.b16 %v1889, %v1889
      %v1922 = vpack.c.b16 %v1890, %v1890
      %v1923 = vpack.c.b16 %v1891, %v1891
      %v1924 = vpack.c.b16 %v1892, %v1892
      %v1925 = vpack.c.b16 %v1893, %v1893
      %v1926 = vpack.c.b16 %v1894, %v1894
      %v1927 = vpack.c.b16 %v1895, %v1895
      %v1928 = vpack.c.b16 %v1896, %v1896
      %v1929 = vpack.c.b16 %v1897, %v1897
      %v1930 = vpack.c.b16 %v1898, %v1898
      %v1931 = vpack.c.b16 %v1899, %v1899
      %v1932 = vpack.c.b16 %v1900, %v1900
      %v1933 = vpack.c.b16 %v1901, %v1901
      %v1934 = vpack.c.b16 %v1902, %v1902
      %v1935 = vpack.c.b16 %v1903, %v1903
      %v1936 = vpack.c.b16 %v1904, %v1904
      %v1937 = vpack.c.b16 %v1905, %v1905
      %vm1970 = vcmask 519168
      %1971 = vst.msk [vmem:[%s391] sm:$0xf] %vm1970, %v1906
      %1972 = vst.msk [vmem:[%s391 + $0x4] sm:$0xf] %vm1970, %v1907
      %1973 = vst.msk [vmem:[%s391 + $0x8] sm:$0xf] %vm1970, %v1908
      %1974 = vst.msk [vmem:[%s391 + $0xc] sm:$0xf] %vm1970, %v1909
      %1975 = vst.msk [vmem:[%s391 + $0x10] sm:$0xf] %vm1970, %v1910
      %1976 = vst.msk [vmem:[%s391 + $0x14] sm:$0xf] %vm1970, %v1911
      %1977 = vst.msk [vmem:[%s391 + $0x18] sm:$0xf] %vm1970, %v1912
      %1978 = vst.msk [vmem:[%s391 + $0x1c] sm:$0xf] %vm1970, %v1913
      %1979 = vst.msk [vmem:[%s391 + $0x20] sm:$0xf] %vm1970, %v1914
      %1980 = vst.msk [vmem:[%s391 + $0x24] sm:$0xf] %vm1970, %v1915
      %1981 = vst.msk [vmem:[%s391 + $0x28] sm:$0xf] %vm1970, %v1916
      %1982 = vst.msk [vmem:[%s391 + $0x2c] sm:$0xf] %vm1970, %v1917
      %1983 = vst.msk [vmem:[%s391 + $0x30] sm:$0xf] %vm1970, %v1918
      %1984 = vst.msk [vmem:[%s391 + $0x34] sm:$0xf] %vm1970, %v1919
      %1985 = vst.msk [vmem:[%s391 + $0x38] sm:$0xf] %vm1970, %v1920
      %1986 = vst.msk [vmem:[%s391 + $0x3c] sm:$0xf] %vm1970, %v1921
      %1987 = vst.msk [vmem:[%s391 + $0x40] sm:$0xf] %vm1970, %v1922
      %1988 = vst.msk [vmem:[%s391 + $0x44] sm:$0xf] %vm1970, %v1923
      %1989 = vst.msk [vmem:[%s391 + $0x48] sm:$0xf] %vm1970, %v1924
      %1990 = vst.msk [vmem:[%s391 + $0x4c] sm:$0xf] %vm1970, %v1925
      %1991 = vst.msk [vmem:[%s391 + $0x50] sm:$0xf] %vm1970, %v1926
      %1992 = vst.msk [vmem:[%s391 + $0x54] sm:$0xf] %vm1970, %v1927
      %1993 = vst.msk [vmem:[%s391 + $0x58] sm:$0xf] %vm1970, %v1928
      %1994 = vst.msk [vmem:[%s391 + $0x5c] sm:$0xf] %vm1970, %v1929
      %1995 = vst.msk [vmem:[%s391 + $0x60] sm:$0xf] %vm1970, %v1930
      %1996 = vst.msk [vmem:[%s391 + $0x64] sm:$0xf] %vm1970, %v1931
      %1997 = vst.msk [vmem:[%s391 + $0x68] sm:$0xf] %vm1970, %v1932
      %1998 = vst.msk [vmem:[%s391 + $0x6c] sm:$0xf] %vm1970, %v1933
      %1999 = vst.msk [vmem:[%s391 + $0x70] sm:$0xf] %vm1970, %v1934
      %2000 = vst.msk [vmem:[%s391 + $0x74] sm:$0xf] %vm1970, %v1935
      %2001 = vst.msk [vmem:[%s391 + $0x78] sm:$0xf] %vm1970, %v1936
      %2002 = vst.msk [vmem:[%s391 + $0x7c] sm:$0xf] %vm1970, %v1937
      %s2003 = smul.u32 16, %s21
      %p2004 = scmp.lt.s32.totalorder %s20, 3
      %s2005 = scalar_select %p2004, %s20, 3
      %p2006 = scmp.lt.s32.totalorder %s2003, 15
      %s2007 = scalar_select %p2006, %s2003, 15
      %s2008 = smul.addr %s2007, 2
      %s2009 = smul.addr %s2005, 32
      %s2010 = sadd.s32 %s2008, %s2009
      %s2011 = smul.addr %s2010, 4
      %s2012 = scalar_lea.vmem %s5, %s2011
      // Predicated region
      $region41: #{vgg_loss_forward.4} parent=39 // pred_check
        %p2013 = pneg %p190
      $region42: #{vgg_loss_forward.4} parent=39 // pred_check_branch
        %2015 = sbr.rel (%p2013) target = $region44
      $region43: #{vgg_loss_forward.4} parent=39 // pred_region
        %s2016 = smul.u32 16, %s21
      $region44: #{vgg_loss_forward.4} parent=39 // pred_fallthru
        _
    $region40: #{vgg_loss_forward.4} parent=5 // pred_fallthru
      _
    %p2017 = scmp.le.s32.totalorder 2, %s11
    // Predicated region
    $region45: #{vgg_loss_forward.4} parent=5 // pred_check
      %p2018 = pneg %p2017
    $region46: #{vgg_loss_forward.4} parent=5 // pred_check_branch
      %2020 = sbr.rel (%p2018) target = $region48
    $region47: #{vgg_loss_forward.4} parent=5 // pred_region
      %s2021 = ssub.s32 %s11, 2
      // Predicated region
      $region49: #{vgg_loss_forward.4} parent=47 // pred_check
        %p2022 = pneg %p196
      $region50: #{vgg_loss_forward.4} parent=47 // pred_check_branch
        %2024 = sbr.rel (%p2022) target = $region52
      $region51: #{vgg_loss_forward.4} parent=47 // pred_region
        %s2025 = smul.u32 16, %s23
        %p2026 = scmp.lt.s32.totalorder %s22, 3
        %s2027 = scalar_select %p2026, %s22, 3
        %p2028 = scmp.lt.s32.totalorder %s2025, 15
        %s2029 = scalar_select %p2028, %s2025, 15
        %s2030 = smul.addr %s2029, 2
        %s2031 = smul.addr %s2027, 32
        %s2032 = sadd.s32 %s2030, %s2031
        %s2033 = smul.addr %s2032, 4
        %s2034 = scalar_lea.vmem %s5, %s2033
      $region52: #{vgg_loss_forward.4} parent=47 // pred_fallthru
        _
    $region48: #{vgg_loss_forward.4} parent=5 // pred_fallthru
      _
  $region6: #{vgg_loss_forward.4} parent=0 // loop_footer
    %s15 = sadd.s32 1, %s11
  $region7: #{vgg_loss_forward.4} parent=0 // loop_footer_branch
    %10 = sbr.rel target = $region3
  $region8: #{vgg_loss_forward.4} parent=0 // loop_exit
    _

// kernel: vgg_loss_forward.6
$region0: #{vgg_loss_forward.6}
  #allocation0 [shape = 'u32[]', space=smem, size = 0x4, offset = 0x4, fixed_abs, tag = 'smem constant byte address 0x4 - core index']
  #allocation1 [shape = 'u32[144,128]{1,0:T(1,128)}', space=vmem, size = 0x12000, scoped, tag = 'internal scratch']
  %s0 = inlined_call_operand.vmem [shape: bf16[4,8,8,64], index: 0, kind: input, shape index: {}, may-alias: {0,1,2}]
  %s1 = inlined_call_operand.vmem [shape: bf16[4,8,8,64], index: 1, kind: input, shape index: {}, may-alias: {0,1,2}]
  %s2 = inlined_call_operand.vmem [shape: bf16[4,8,8,64], index: 2, kind: input, shape index: {}, may-alias: {0,1,2}]
  %s3 = inlined_call_operand.vmem [shape: bf16[3,192,128], index: 3, kind: input, shape index: {}]
  %s4 = inlined_call_operand.vmem [shape: f32[1,128], index: 4, kind: input, shape index: {}]
  %s5 = inlined_call_operand.vmem [shape: bf16[4,8,8,128], index: 5, kind: output, shape index: {}]
  %s6 = sld [smem:[#allocation0]]
  $region53: #{vgg_loss_forward.6} parent=0
    _
  %s8 = ssub.s32 1, %s6
  %s9 = scalar_select 0, %s8, %s6
  loop: start=0, step=1, limit=6
  $region2: #{vgg_loss_forward.6} parent=0 // loop_pre_header
    _
  $region3: #{vgg_loss_forward.6} parent=0 // loop_header
    %s11 = sphi 0, %s15
    %p12 = scmp.ge.s32.totalorder %s11, 6
    %s18 = sphi 0, %s30
    %s19 = sphi 0, %s26
    %s20 = sphi 0, %s18
    %s21 = sphi 0, %s19
    %s22 = sphi 0, %s20
    %s23 = sphi 0, %s21
    %s43 = sphi 0, %s45
    %s46 = sphi 0, %s43
    %s47 = sphi 0, %s46
    %s63 = sphi 0, %s47
    %s71 = sphi 0, %s73
    %s74 = sphi 0, %s71
    %s75 = sphi 0, %s74
    %s91 = sphi 0, %s75
    %s107 = sphi 0, %s109
    %s110 = sphi 0, %s107
    %s111 = sphi 0, %s110
    %s127 = sphi 0, %s111
    %s131 = sphi 0, %s131
    %s133 = sphi 0, %s131
    %s134 = sphi 0, %s133
    %s148 = sphi 0, %s134
    %s152 = sphi 0, %s152
    %s154 = sphi 0, %s152
    %s155 = sphi 0, %s154
    %s169 = sphi 0, %s155
    %s177 = sphi 0, %s179
    %s180 = sphi 0, %s177
    %s181 = sphi 0, %s180
    %s197 = sphi 0, %s181
  $region4: #{vgg_loss_forward.6} parent=0 // loop_header_branch
    %14 = sbr.rel (%p12) target = $region8
  $region5: #{vgg_loss_forward.6} parent=0 // loop_body
    %s16 = ssub.s32 %s11, 1
    %s17 = ssub.s32 %s11, 2
    %s24 = sadd.s32 1, %s19
    %p25 = scmp.ge.s32.totalorder %s24, 1
    %s26 = scalar_select %p25, 0, %s24
    %s27 = sadd.s32 1, %s18
    %s28 = scalar_select %p25, %s27, %s18
    %p29 = scmp.ge.s32.totalorder %s28, 4
    %s30 = scalar_select %p29, 0, %s28
    %s31 = smul.u32 %s19, 8
    %s32 = ssub.s32 %s31, 1
    %p33 = scmp.gt.s32.totalorder %s32, 0
    %s34 = scalar_select %p33, %s32, 0
    %s35 = smul.u32 %s26, 8
    %s36 = ssub.s32 %s35, 1
    %p37 = scmp.gt.s32.totalorder %s36, 0
    %s38 = scalar_select %p37, %s36, 0
    %s39 = ssub.s32 %s18, %s30
    %s40 = ssub.s32 %s34, %s38
    %s41 = sor.u32 %s39, %s40
    %p42 = scmp.eq.s32.totalorder %s41, 0
    %s44 = sadd.s32 %s43, 1
    %s45 = scalar_select %p42, %s43, %s44
    %p48 = pneg %p42
    %p49 = scmp.eq.s32.totalorder %s11, 3
    %p50 = por %p48, %p49
    %p51 = scmp.ne.s32.totalorder %s43, %s46
    %p52 = scmp.eq.s32.totalorder %s11, 0
    %p53 = por %p51, %p52
    %p54 = scmp.ne.s32.totalorder %s43, %s46
    %p55 = scmp.eq.s32.totalorder %s16, 3
    %p56 = por %p54, %p55
    %p57 = scmp.ne.s32.totalorder %s46, %s47
    %p58 = scmp.eq.s32.totalorder %s16, 0
    %p59 = por %p57, %p58
    %p60 = scmp.ne.s32.totalorder %s46, %s47
    %p61 = scmp.eq.s32.totalorder %s17, 3
    %p62 = por %p60, %p61
    %p64 = scmp.ne.s32.totalorder %s47, %s63
    %p65 = scmp.eq.s32.totalorder %s17, 0
    %p66 = por %p64, %p65
    %s67 = ssub.s32 %s18, %s30
    %s68 = ssub.s32 %s19, %s26
    %s69 = sor.u32 %s67, %s68
    %p70 = scmp.eq.s32.totalorder %s69, 0
    %s72 = sadd.s32 %s71, 1
    %s73 = scalar_select %p70, %s71, %s72
    %p76 = pneg %p70
    %p77 = scmp.eq.s32.totalorder %s11, 3
    %p78 = por %p76, %p77
    %p79 = scmp.ne.s32.totalorder %s71, %s74
    %p80 = scmp.eq.s32.totalorder %s11, 0
    %p81 = por %p79, %p80
    %p82 = scmp.ne.s32.totalorder %s71, %s74
    %p83 = scmp.eq.s32.totalorder %s16, 3
    %p84 = por %p82, %p83
    %p85 = scmp.ne.s32.totalorder %s74, %s75
    %p86 = scmp.eq.s32.totalorder %s16, 0
    %p87 = por %p85, %p86
    %p88 = scmp.ne.s32.totalorder %s74, %s75
    %p89 = scmp.eq.s32.totalorder %s17, 3
    %p90 = por %p88, %p89
    %p92 = scmp.ne.s32.totalorder %s75, %s91
    %p93 = scmp.eq.s32.totalorder %s17, 0
    %p94 = por %p92, %p93
    %s95 = smul.u32 %s19, 8
    %s96 = sadd.s32 %s95, 8
    %p97 = scmp.lt.s32.totalorder %s96, 7
    %s98 = scalar_select %p97, %s96, 7
    %s99 = smul.u32 %s26, 8
    %s100 = sadd.s32 %s99, 8
    %p101 = scmp.lt.s32.totalorder %s100, 7
    %s102 = scalar_select %p101, %s100, 7
    %s103 = ssub.s32 %s18, %s30
    %s104 = ssub.s32 %s98, %s102
    %s105 = sor.u32 %s103, %s104
    %p106 = scmp.eq.s32.totalorder %s105, 0
    %s108 = sadd.s32 %s107, 1
    %s109 = scalar_select %p106, %s107, %s108
    %p112 = pneg %p106
    %p113 = scmp.eq.s32.totalorder %s11, 3
    %p114 = por %p112, %p113
    %p115 = scmp.ne.s32.totalorder %s107, %s110
    %p116 = scmp.eq.s32.totalorder %s11, 0
    %p117 = por %p115, %p116
    %p118 = scmp.ne.s32.totalorder %s107, %s110
    %p119 = scmp.eq.s32.totalorder %s16, 3
    %p120 = por %p118, %p119
    %p121 = scmp.ne.s32.totalorder %s110, %s111
    %p122 = scmp.eq.s32.totalorder %s16, 0
    %p123 = por %p121, %p122
    %p124 = scmp.ne.s32.totalorder %s110, %s111
    %p125 = scmp.eq.s32.totalorder %s17, 3
    %p126 = por %p124, %p125
    %p128 = scmp.ne.s32.totalorder %s111, %s127
    %p129 = scmp.eq.s32.totalorder %s17, 0
    %p130 = por %p128, %p129
    %s132 = sadd.s32 %s131, 1
    %p135 = scmp.eq.s32.totalorder %s11, 3
    %p136 = scmp.ne.s32.totalorder %s131, %s133
    %p137 = scmp.eq.s32.totalorder %s11, 0
    %p138 = por %p136, %p137
    %p139 = scmp.ne.s32.totalorder %s131, %s133
    %p140 = scmp.eq.s32.totalorder %s16, 3
    %p141 = por %p139, %p140
    %p142 = scmp.ne.s32.totalorder %s133, %s134
    %p143 = scmp.eq.s32.totalorder %s16, 0
    %p144 = por %p142, %p143
    %p145 = scmp.ne.s32.totalorder %s133, %s134
    %p146 = scmp.eq.s32.totalorder %s17, 3
    %p147 = por %p145, %p146
    %p149 = scmp.ne.s32.totalorder %s134, %s148
    %p150 = scmp.eq.s32.totalorder %s17, 0
    %p151 = por %p149, %p150
    %s153 = sadd.s32 %s152, 1
    %p156 = scmp.eq.s32.totalorder %s11, 3
    %p157 = scmp.ne.s32.totalorder %s152, %s154
    %p158 = scmp.eq.s32.totalorder %s11, 0
    %p159 = por %p157, %p158
    %p160 = scmp.ne.s32.totalorder %s152, %s154
    %p161 = scmp.eq.s32.totalorder %s16, 3
    %p162 = por %p160, %p161
    %p163 = scmp.ne.s32.totalorder %s154, %s155
    %p164 = scmp.eq.s32.totalorder %s16, 0
    %p165 = por %p163, %p164
    %p166 = scmp.ne.s32.totalorder %s154, %s155
    %p167 = scmp.eq.s32.totalorder %s17, 3
    %p168 = por %p166, %p167
    %p170 = scmp.ne.s32.totalorder %s155, %s169
    %p171 = scmp.eq.s32.totalorder %s17, 0
    %p172 = por %p170, %p171
    %s173 = ssub.s32 %s18, %s30
    %s174 = ssub.s32 %s19, %s26
    %s175 = sor.u32 %s173, %s174
    %p176 = scmp.eq.s32.totalorder %s175, 0
    %s178 = sadd.s32 %s177, 1
    %s179 = scalar_select %p176, %s177, %s178
    %p182 = pneg %p176
    %p183 = scmp.eq.s32.totalorder %s11, 3
    %p184 = por %p182, %p183
    %p185 = scmp.ne.s32.totalorder %s177, %s180
    %p186 = scmp.eq.s32.totalorder %s11, 0
    %p187 = por %p185, %p186
    %p188 = scmp.ne.s32.totalorder %s177, %s180
    %p189 = scmp.eq.s32.totalorder %s16, 3
    %p190 = por %p188, %p189
    %p191 = scmp.ne.s32.totalorder %s180, %s181
    %p192 = scmp.eq.s32.totalorder %s16, 0
    %p193 = por %p191, %p192
    %p194 = scmp.ne.s32.totalorder %s180, %s181
    %p195 = scmp.eq.s32.totalorder %s17, 3
    %p196 = por %p194, %p195
    %p198 = scmp.ne.s32.totalorder %s181, %s197
    %p199 = scmp.eq.s32.totalorder %s17, 0
    %p200 = por %p198, %p199
    %p201 = scmp.le.s32.totalorder 1, %s11
    %p202 = scmp.lt.s32.totalorder %s11, 5
    %p203 = pnand %p201, %p202
    %p204 = pneg %p203
    // Predicated region
    $region9: #{vgg_loss_forward.6} parent=5 // pred_check
      _
    $region10: #{vgg_loss_forward.6} parent=5 // pred_check_branch
      %206 = sbr.rel (%p203) target = $region12
    $region11: #{vgg_loss_forward.6} parent=5 // pred_region
      %s207 = ssub.s32 %s11, 1
      // Predicated region
      $region13: #{vgg_loss_forward.6} parent=11 // pred_check
        %p208 = pneg %p144
      $region14: #{vgg_loss_forward.6} parent=11 // pred_check_branch
        %210 = sbr.rel (%p208) target = $region16
      $region15: #{vgg_loss_forward.6} parent=11 // pred_region
        _
      $region16: #{vgg_loss_forward.6} parent=11 // pred_fallthru
        _
      // Predicated region
      $region17: #{vgg_loss_forward.6} parent=11 // pred_check
        %p211 = pneg %p165
      $region18: #{vgg_loss_forward.6} parent=11 // pred_check_branch
        %213 = sbr.rel (%p211) target = $region20
      $region19: #{vgg_loss_forward.6} parent=11 // pred_region
        _
      $region20: #{vgg_loss_forward.6} parent=11 // pred_fallthru
        _
    $region12: #{vgg_loss_forward.6} parent=5 // pred_fallthru
      _
    %p214 = scmp.lt.s32.totalorder %s11, 4
    // Predicated region
    $region21: #{vgg_loss_forward.6} parent=5 // pred_check
      %p215 = pneg %p214
    $region22: #{vgg_loss_forward.6} parent=5 // pred_check_branch
      %217 = sbr.rel (%p215) target = $region24
    $region23: #{vgg_loss_forward.6} parent=5 // pred_region
      // Predicated region
      $region25: #{vgg_loss_forward.6} parent=23 // pred_check
        %p218 = pneg %p53
      $region26: #{vgg_loss_forward.6} parent=23 // pred_check_branch
        %220 = sbr.rel (%p218) target = $region28
      $region27: #{vgg_loss_forward.6} parent=23 // pred_region
        %s221 = smul.u32 %s19, 8
        %s222 = ssub.s32 %s221, 1
        %p223 = scmp.gt.s32.totalorder %s222, 0
        %s224 = scalar_select %p223, %s222, 0
        %p225 = scmp.lt.s32.totalorder %s18, 3
        %s226 = scalar_select %p225, %s18, 3
        %p227 = scmp.lt.s32.totalorder %s224, 7
        %s228 = scalar_select %p227, %s224, 7
        %s229 = smul.addr %s226, 8
        %s230 = sadd.s32 %s228, %s229
        %s231 = smul.addr %s230, 4
        %s232 = scalar_lea.vmem %s0, %s231
        %s233 = smul.u32 %s19, 8
        %s234 = ssub.s32 %s233, 1
        %p235 = scmp.gt.s32.totalorder %s234, 0
        %s236 = scalar_select %p235, %s234, 0
      $region28: #{vgg_loss_forward.6} parent=23 // pred_fallthru
        _
      // Predicated region
      $region29: #{vgg_loss_forward.6} parent=23 // pred_check
        %p237 = pneg %p81
      $region30: #{vgg_loss_forward.6} parent=23 // pred_check_branch
        %239 = sbr.rel (%p237) target = $region32
      $region31: #{vgg_loss_forward.6} parent=23 // pred_region
        %s240 = smul.u32 8, %s19
        %p241 = scmp.lt.s32.totalorder %s18, 3
        %s242 = scalar_select %p241, %s18, 3
        %p243 = scmp.lt.s32.totalorder %s240, 7
        %s244 = scalar_select %p243, %s240, 7
        %s245 = smul.addr %s242, 8
        %s246 = sadd.s32 %s244, %s245
        %s247 = smul.addr %s246, 4
        %s248 = scalar_lea.vmem %s1, %s247
        %s249 = smul.u32 8, %s19
      $region32: #{vgg_loss_forward.6} parent=23 // pred_fallthru
        _
      // Predicated region
      $region33: #{vgg_loss_forward.6} parent=23 // pred_check
        %p250 = pneg %p117
      $region34: #{vgg_loss_forward.6} parent=23 // pred_check_branch
        %252 = sbr.rel (%p250) target = $region36
      $region35: #{vgg_loss_forward.6} parent=23 // pred_region
        %s253 = smul.u32 %s19, 8
        %s254 = sadd.s32 %s253, 8
        %p255 = scmp.lt.s32.totalorder %s254, 7
        %s256 = scalar_select %p255, %s254, 7
        %p257 = scmp.lt.s32.totalorder %s18, 3
        %s258 = scalar_select %p257, %s18, 3
        %p259 = scmp.lt.s32.totalorder %s256, 7
        %s260 = scalar_select %p259, %s256, 7
        %s261 = smul.addr %s258, 8
        %s262 = sadd.s32 %s260, %s261
        %s263 = smul.addr %s262, 4
        %s264 = scalar_lea.vmem %s2, %s263
        %s265 = smul.u32 %s19, 8
        %s266 = sadd.s32 %s265, 8
        %p267 = scmp.lt.s32.totalorder %s266, 7
        %s268 = scalar_select %p267, %s266, 7
      $region36: #{vgg_loss_forward.6} parent=23 // pred_fallthru
        _
    $region24: #{vgg_loss_forward.6} parent=5 // pred_fallthru
      _
    %p269 = scmp.le.s32.totalorder 1, %s11
    %p270 = scmp.lt.s32.totalorder %s11, 5
    %p271 = pnand %p269, %p270
    %p272 = pneg %p271
    // Predicated region
    $region37: #{vgg_loss_forward.6} parent=5 // pred_check
      _
    $region38: #{vgg_loss_forward.6} parent=5 // pred_check_branch
      %274 = sbr.rel (%p271) target = $region40
    $region39: #{vgg_loss_forward.6} parent=5 // pred_region
      %s275 = ssub.s32 %s11, 1
      %s276 = smul.u32 %s21, 8
      %s277 = ssub.s32 %s276, 1
      %p278 = scmp.gt.s32.totalorder %s277, 0
      %s279 = scalar_select %p278, %s277, 0
      %p280 = scmp.lt.s32.totalorder %s20, 3
      %s281 = scalar_select %p280, %s20, 3
      %p282 = scmp.lt.s32.totalorder %s279, 7
      %s283 = scalar_select %p282, %s279, 7
      %s284 = smul.addr %s281, 8
      %s285 = sadd.s32 %s283, %s284
      %s286 = smul.addr %s285, 4
      %s287 = scalar_lea.vmem %s0, %s286
      %p288 = pneg %p59
      %p289 = pneg %p56
      %s290 = smul.u32 8, %s21
      %p291 = scmp.lt.s32.totalorder %s20, 3
      %s292 = scalar_select %p291, %s20, 3
      %p293 = scmp.lt.s32.totalorder %s290, 7
      %s294 = scalar_select %p293, %s290, 7
      %s295 = smul.addr %s292, 8
      %s296 = sadd.s32 %s294, %s295
      %s297 = smul.addr %s296, 4
      %s298 = scalar_lea.vmem %s1, %s297
      %p299 = pneg %p87
      %p300 = pneg %p84
      %s301 = smul.u32 %s21, 8
      %s302 = sadd.s32 %s301, 8
      %p303 = scmp.lt.s32.totalorder %s302, 7
      %s304 = scalar_select %p303, %s302, 7
      %p305 = scmp.lt.s32.totalorder %s20, 3
      %s306 = scalar_select %p305, %s20, 3
      %p307 = scmp.lt.s32.totalorder %s304, 7
      %s308 = scalar_select %p307, %s304, 7
      %s309 = smul.addr %s306, 8
      %s310 = sadd.s32 %s308, %s309
      %s311 = smul.addr %s310, 4
      %s312 = scalar_lea.vmem %s2, %s311
      %p313 = pneg %p123
      %p314 = pneg %p120
      %p315 = pneg %p144
      %p316 = pneg %p141
      %p317 = pneg %p165
      %p318 = pneg %p162
      %p319 = pneg %p193
      %p320 = pneg %p190
      %s321 = smul.u32 8, %s21
      %p322 = scmp.lt.s32.totalorder %s20, 3
      %s323 = scalar_select %p322, %s20, 3
      %p324 = scmp.lt.s32.totalorder %s321, 7
      %s325 = scalar_select %p324, %s321, 7
      %s326 = smul.addr %s323, 8
      %s327 = sadd.s32 %s325, %s326
      %s328 = smul.addr %s327, 4
      %s329 = scalar_lea.vmem %s5, %s328
      %s330 = smul.u32 %s21, 8
      %s331 = ssub.s32 %s330, 1
      %p332 = scmp.gt.s32.totalorder %s331, 0
      %s333 = scalar_select %p332, %s331, 0
      %p334 = scmp.lt.s32.totalorder %s20, 3
      %s335 = scalar_select %p334, %s20, 3
      %p336 = scmp.lt.s32.totalorder %s333, 7
      %s337 = scalar_select %p336, %s333, 7
      %s338 = smul.addr %s335, 8
      %s339 = sadd.s32 %s337, %s338
      %s340 = smul.addr %s339, 4
      %s341 = scalar_lea.vmem %s0, %s340
      %s342 = smul.u32 %s21, 8
      %s343 = ssub.s32 %s342, 1
      %p344 = scmp.gt.s32.totalorder %s343, 0
      %s345 = scalar_select %p344, %s343, 0
      %s346 = smul.u32 8, %s21
      %p347 = scmp.lt.s32.totalorder %s20, 3
      %s348 = scalar_select %p347, %s20, 3
      %p349 = scmp.lt.s32.totalorder %s346, 7
      %s350 = scalar_select %p349, %s346, 7
      %s351 = smul.addr %s348, 8
      %s352 = sadd.s32 %s350, %s351
      %s353 = smul.addr %s352, 4
      %s354 = scalar_lea.vmem %s1, %s353
      %s355 = smul.u32 8, %s21
      %s356 = smul.u32 %s21, 8
      %s357 = sadd.s32 %s356, 8
      %p358 = scmp.lt.s32.totalorder %s357, 7
      %s359 = scalar_select %p358, %s357, 7
      %p360 = scmp.lt.s32.totalorder %s20, 3
      %s361 = scalar_select %p360, %s20, 3
      %p362 = scmp.lt.s32.totalorder %s359, 7
      %s363 = scalar_select %p362, %s359, 7
      %s364 = smul.addr %s361, 8
      %s365 = sadd.s32 %s363, %s364
      %s366 = smul.addr %s365, 4
      %s367 = scalar_lea.vmem %s2, %s366
      %s368 = smul.u32 %s21, 8
      %s369 = sadd.s32 %s368, 8
      %p370 = scmp.lt.s32.totalorder %s369, 7
      %s371 = scalar_select %p370, %s369, 7
      %s372 = smul.u32 8, %s21
      %p373 = scmp.lt.s32.totalorder %s20, 3
      %s374 = scalar_select %p373, %s20, 3
      %p375 = scmp.lt.s32.totalorder %s372, 7
      %s376 = scalar_select %p375, %s372, 7
      %s377 = smul.addr %s374, 8
      %s378 = sadd.s32 %s376, %s377
      %s379 = smul.addr %s378, 4
      %s380 = scalar_lea.vmem %s5, %s379
      %s381 = smul.u32 8, %s21
      %v383 = vld [vmem:[%s341] sm:$0xf]
      %v384 = vld [vmem:[%s354] sm:$0xf]
      %v385 = vld [vmem:[%s354 + $0x4] sm:$0xf]
      %v386 = vld [vmem:[%s354 + $0x8] sm:$0xf]
      %v387 = vld [vmem:[%s354 + $0xc] sm:$0xf]
      %v388 = vld [vmem:[%s354 + $0x10] sm:$0xf]
      %v389 = vld [vmem:[%s354 + $0x14] sm:$0xf]
      %v390 = vld [vmem:[%s354 + $0x18] sm:$0xf]
      %v391 = vld [vmem:[%s354 + $0x1c] sm:$0xf]
      %v392 = vld [vmem:[%s367] sm:$0xf]
      %p393 = scmp.eq.s32.totalorder %s21, 0
      %s394 = scalar_select %p393, 1, 0
      %v395 = vstv %s394
      %vm396 = vcmp.eq.s32.totalorder %v395, 1
      %v397 = vsel %vm396, 0, %v383
      %v398 = vsel %vm396, 0, %v392
      %v409 = vunpack.c.l.b16 %v397
      %v410 = vunpack.c.l.b16 %v384
      %v411 = vunpack.c.l.b16 %v385
      %v412 = vunpack.c.l.b16 %v386
      %v413 = vunpack.c.l.b16 %v387
      %v414 = vunpack.c.l.b16 %v388
      %v415 = vunpack.c.l.b16 %v389
      %v416 = vunpack.c.l.b16 %v390
      %v417 = vunpack.c.l.b16 %v391
      %v418 = vunpack.c.l.b16 %v398
      %v419 = vpack.c.b16 %v409, %v409
      %v420 = vpack.c.b16 %v410, %v410
      %v421 = vpack.c.b16 %v411, %v411
      %v422 = vpack.c.b16 %v412, %v412
      %v423 = vpack.c.b16 %v413, %v413
      %v424 = vpack.c.b16 %v414, %v414
      %v425 = vpack.c.b16 %v415, %v415
      %v426 = vpack.c.b16 %v416, %v416
      %v427 = vpack.c.b16 %v417, %v417
      %v428 = vpack.c.b16 %v418, %v418
      %v430 = vshrl.u32 %v419, 16
      %v432 = vrot.slane %v430, 7
      %v433 = vshll.u32 %v419, 16
      %v435 = vor.u32 %v432, %v433
      %v437 = vshrl.u32 %v420, 16
      %v439 = vrot.slane %v437, 7
      %v440 = vshll.u32 %v420, 16
      %v442 = vor.u32 %v439, %v440
      %v444 = vshrl.u32 %v421, 16
      %v446 = vrot.slane %v444, 7
      %v447 = vshll.u32 %v421, 16
      %v449 = vor.u32 %v446, %v447
      %v451 = vshrl.u32 %v422, 16
      %v453 = vrot.slane %v451, 7
      %v454 = vshll.u32 %v422, 16
      %v456 = vor.u32 %v453, %v454
      %v458 = vshrl.u32 %v423, 16
      %v460 = vrot.slane %v458, 7
      %v461 = vshll.u32 %v423, 16
      %v463 = vor.u32 %v460, %v461
      %v465 = vshrl.u32 %v424, 16
      %v467 = vrot.slane %v465, 7
      %v468 = vshll.u32 %v424, 16
      %v470 = vor.u32 %v467, %v468
      %v472 = vshrl.u32 %v425, 16
      %v474 = vrot.slane %v472, 7
      %v475 = vshll.u32 %v425, 16
      %v477 = vor.u32 %v474, %v475
      %v479 = vshrl.u32 %v426, 16
      %v481 = vrot.slane %v479, 7
      %v482 = vshll.u32 %v426, 16
      %v484 = vor.u32 %v481, %v482
      %v486 = vshrl.u32 %v427, 16
      %v488 = vrot.slane %v486, 7
      %v489 = vshll.u32 %v427, 16
      %v491 = vor.u32 %v488, %v489
      %v493 = vshrl.u32 %v428, 16
      %v495 = vrot.slane %v493, 7
      %v496 = vshll.u32 %v428, 16
      %v498 = vor.u32 %v495, %v496
      %vm509 = vcmask 1040384
      %vm510 = vsmask.f32 256
      %vm511 = vmand %vm509, %vm510
      %v512 = vsel %vm511, 0, %v435
      %v513 = vsel %vm511, 0, %v442
      %v514 = vsel %vm511, 0, %v449
      %v515 = vsel %vm511, 0, %v456
      %v516 = vsel %vm511, 0, %v463
      %v517 = vsel %vm511, 0, %v470
      %v518 = vsel %vm511, 0, %v477
      %v519 = vsel %vm511, 0, %v484
      %v520 = vsel %vm511, 0, %v491
      %v521 = vsel %vm511, 0, %v498
      %vm522 = vcmask 1044480
      %vm523 = vsmask.f32 4352
      %vm524 = vmand %vm522, %vm523
      %v525 = vsel %vm524, %v512, 0
      %v526 = vsel %vm524, %v513, 0
      %v527 = vsel %vm524, %v514, 0
      %v528 = vsel %vm524, %v515, 0
      %v529 = vsel %vm524, %v516, 0
      %v530 = vsel %vm524, %v517, 0
      %v531 = vsel %vm524, %v518, 0
      %v532 = vsel %vm524, %v519, 0
      %v533 = vsel %vm524, %v520, 0
      %v534 = vsel %vm524, %v521, 0
      %v536 = vshrl.u32 %v525, 16
      %v538 = vshll.u32 %v525, 16
      %v540 = vrot.slane %v538, 1
      %v541 = vor.u32 %v536, %v540
      %v543 = vshrl.u32 %v526, 16
      %v545 = vshll.u32 %v526, 16
      %v547 = vrot.slane %v545, 1
      %v548 = vor.u32 %v543, %v547
      %v550 = vshrl.u32 %v527, 16
      %v552 = vshll.u32 %v527, 16
      %v554 = vrot.slane %v552, 1
      %v555 = vor.u32 %v550, %v554
      %v557 = vshrl.u32 %v528, 16
      %v559 = vshll.u32 %v528, 16
      %v561 = vrot.slane %v559, 1
      %v562 = vor.u32 %v557, %v561
      %v564 = vshrl.u32 %v529, 16
      %v566 = vshll.u32 %v529, 16
      %v568 = vrot.slane %v566, 1
      %v569 = vor.u32 %v564, %v568
      %v571 = vshrl.u32 %v530, 16
      %v573 = vshll.u32 %v530, 16
      %v575 = vrot.slane %v573, 1
      %v576 = vor.u32 %v571, %v575
      %v578 = vshrl.u32 %v531, 16
      %v580 = vshll.u32 %v531, 16
      %v582 = vrot.slane %v580, 1
      %v583 = vor.u32 %v578, %v582
      %v585 = vshrl.u32 %v532, 16
      %v587 = vshll.u32 %v532, 16
      %v589 = vrot.slane %v587, 1
      %v590 = vor.u32 %v585, %v589
      %591 = vrot.lane.b32.xlu0 %v541, 64
      %v592 = vpop.permute.xlu0 %591
      %593 = vrot.lane.b32.xlu0 %v548, 64
      %v594 = vpop.permute.xlu0 %593
      %595 = vrot.lane.b32.xlu0 %v555, 64
      %v596 = vpop.permute.xlu0 %595
      %597 = vrot.lane.b32.xlu0 %v562, 64
      %v598 = vpop.permute.xlu0 %597
      %599 = vrot.lane.b32.xlu0 %v569, 64
      %v600 = vpop.permute.xlu0 %599
      %601 = vrot.lane.b32.xlu0 %v576, 64
      %v602 = vpop.permute.xlu0 %601
      %603 = vrot.lane.b32.xlu0 %v583, 64
      %v604 = vpop.permute.xlu0 %603
      %605 = vrot.lane.b32.xlu0 %v590, 64
      %v606 = vpop.permute.xlu0 %605
      %v615 = vrot.slane %v525, 1
      %v616 = vrot.slane %v526, 1
      %v617 = vrot.slane %v527, 1
      %v618 = vrot.slane %v528, 1
      %v619 = vrot.slane %v529, 1
      %v620 = vrot.slane %v530, 1
      %v621 = vrot.slane %v531, 1
      %v622 = vrot.slane %v532, 1
      %vm623 = vcmask 523264
      %v625 = vsel %vm623, %v525, %v592
      %v627 = vsel %vm623, %v526, %v594
      %v629 = vsel %vm623, %v527, %v596
      %v631 = vsel %vm623, %v528, %v598
      %v633 = vsel %vm623, %v529, %v600
      %v635 = vsel %vm623, %v530, %v602
      %v637 = vsel %vm623, %v531, %v604
      %v639 = vsel %vm623, %v532, %v606
      %v648 = vunpack.c.l.b16 %v625
      %v649 = vunpack.c.l.b16 %v615
      %v650 = vunpack.c.l.b16 %v627
      %v651 = vunpack.c.l.b16 %v616
      %v652 = vunpack.c.l.b16 %v629
      %v653 = vunpack.c.l.b16 %v617
      %v654 = vunpack.c.l.b16 %v631
      %v655 = vunpack.c.l.b16 %v618
      %v656 = vunpack.c.l.b16 %v633
      %v657 = vunpack.c.l.b16 %v619
      %v658 = vunpack.c.l.b16 %v635
      %v659 = vunpack.c.l.b16 %v620
      %v660 = vunpack.c.l.b16 %v637
      %v661 = vunpack.c.l.b16 %v621
      %v662 = vunpack.c.l.b16 %v639
      %v663 = vunpack.c.l.b16 %v622
      %v664 = vld [vmem:[%s3] sm:$0xf]
      %v665 = vld [vmem:[%s3 + $0x4] sm:$0xf]
      %v666 = vld [vmem:[%s3 + $0x8] sm:$0xf]
      %v667 = vld [vmem:[%s3 + $0xc] sm:$0xf]
      %v668 = vld [vmem:[%s3 + $0x10] sm:$0xf]
      %v669 = vld [vmem:[%s3 + $0x14] sm:$0xf]
      %v670 = vld [vmem:[%s3 + $0x18] sm:$0xf]
      %v671 = vld [vmem:[%s3 + $0x1c] sm:$0xf]
      %v672 = vld [vmem:[%s3 + $0x20] sm:$0xf]
      %v673 = vld [vmem:[%s3 + $0x24] sm:$0xf]
      %v674 = vld [vmem:[%s3 + $0x28] sm:$0xf]
      %v675 = vld [vmem:[%s3 + $0x2c] sm:$0xf]
      %v676 = vld [vmem:[%s3 + $0x30] sm:$0xf]
      %v677 = vld [vmem:[%s3 + $0x34] sm:$0xf]
      %v678 = vld [vmem:[%s3 + $0x38] sm:$0xf]
      %v679 = vld [vmem:[%s3 + $0x3c] sm:$0xf]
      %v680 = vld [vmem:[%s3 + $0x40] sm:$0xf]
      %v681 = vld [vmem:[%s3 + $0x44] sm:$0xf]
      %v682 = vld [vmem:[%s3 + $0x48] sm:$0xf]
      %v683 = vld [vmem:[%s3 + $0x4c] sm:$0xf]
      %v684 = vld [vmem:[%s3 + $0x50] sm:$0xf]
      %v685 = vld [vmem:[%s3 + $0x54] sm:$0xf]
      %v686 = vld [vmem:[%s3 + $0x58] sm:$0xf]
      %v687 = vld [vmem:[%s3 + $0x5c] sm:$0xf]
      %v689 = vshrl.u32 %v533, 16
      %v691 = vshll.u32 %v533, 16
      %v693 = vrot.slane %v691, 1
      %v694 = vor.u32 %v689, %v693
      %695 = vrot.lane.b32.xlu0 %v694, 64
      %v696 = vpop.permute.xlu0 %695
      %v698 = vrot.slane %v533, 1
      %v700 = vsel %vm623, %v533, %v696
      %v702 = vunpack.c.l.b16 %v700
      %v703 = vunpack.c.l.b16 %v698
      %s704 = scalar_lea.vmem %s3, 96
      %v705 = vld [vmem:[%s704] sm:$0xf]
      %v706 = vld [vmem:[%s704 + $0x4] sm:$0xf]
      %v707 = vld [vmem:[%s704 + $0x8] sm:$0xf]
      %v708 = vld [vmem:[%s704 + $0xc] sm:$0xf]
      %v709 = vld [vmem:[%s704 + $0x10] sm:$0xf]
      %v710 = vld [vmem:[%s704 + $0x14] sm:$0xf]
      %v711 = vld [vmem:[%s704 + $0x18] sm:$0xf]
      %v712 = vld [vmem:[%s704 + $0x1c] sm:$0xf]
      %v713 = vld [vmem:[%s704 + $0x20] sm:$0xf]
      %v714 = vld [vmem:[%s704 + $0x24] sm:$0xf]
      %v715 = vld [vmem:[%s704 + $0x28] sm:$0xf]
      %v716 = vld [vmem:[%s704 + $0x2c] sm:$0xf]
      %v717 = vld [vmem:[%s704 + $0x30] sm:$0xf]
      %v718 = vld [vmem:[%s704 + $0x34] sm:$0xf]
      %v719 = vld [vmem:[%s704 + $0x38] sm:$0xf]
      %v720 = vld [vmem:[%s704 + $0x3c] sm:$0xf]
      %v721 = vld [vmem:[%s704 + $0x40] sm:$0xf]
      %v722 = vld [vmem:[%s704 + $0x44] sm:$0xf]
      %v723 = vld [vmem:[%s704 + $0x48] sm:$0xf]
      %v724 = vld [vmem:[%s704 + $0x4c] sm:$0xf]
      %v725 = vld [vmem:[%s704 + $0x50] sm:$0xf]
      %v726 = vld [vmem:[%s704 + $0x54] sm:$0xf]
      %v727 = vld [vmem:[%s704 + $0x58] sm:$0xf]
      %v728 = vld [vmem:[%s704 + $0x5c] sm:$0xf]
      %v729 = vpack.c.b16 %v652, %v650
      %v730 = vpack.c.b16 %v653, %v651
      %v731 = vpack.c.b16 %v656, %v654
      %v732 = vpack.c.b16 %v657, %v655
      %v733 = vpack.c.b16 %v660, %v658
      %v734 = vpack.c.b16 %v661, %v659
      %v735 = vpack.c.b16 %v702, %v662
      %v736 = vpack.c.b16 %v703, %v663
      %v765 = vunpack.c.l.b16 %v705
      %v766 = vunpack.c.l.b16 %v706
      %v767 = vunpack.c.l.b16 %v707
      %v768 = vunpack.c.l.b16 %v708
      %v769 = vunpack.c.l.b16 %v709
      %v770 = vunpack.c.l.b16 %v710
      %v771 = vunpack.c.l.b16 %v711
      %v772 = vunpack.c.l.b16 %v712
      %v773 = vunpack.c.l.b16 %v713
      %v774 = vunpack.c.l.b16 %v714
      %v775 = vunpack.c.l.b16 %v715
      %v776 = vunpack.c.l.b16 %v716
      %v777 = vunpack.c.l.b16 %v717
      %v778 = vunpack.c.l.b16 %v718
      %v779 = vunpack.c.l.b16 %v719
      %v780 = vunpack.c.l.b16 %v720
      %v781 = vunpack.c.l.b16 %v721
      %v782 = vunpack.c.l.b16 %v722
      %v783 = vunpack.c.l.b16 %v723
      %v784 = vunpack.c.l.b16 %v724
      %v785 = vunpack.c.l.b16 %v725
      %v786 = vunpack.c.l.b16 %v726
      %v787 = vunpack.c.l.b16 %v727
      %v788 = vunpack.c.l.b16 %v728
      %v789 = vpack.c.b16 %v766, %v765
      %v790 = vpack.c.b16 %v768, %v767
      %v791 = vpack.c.b16 %v770, %v769
      %v792 = vpack.c.b16 %v772, %v771
      %v793 = vpack.c.b16 %v774, %v773
      %v794 = vpack.c.b16 %v776, %v775
      %v795 = vpack.c.b16 %v778, %v777
      %v796 = vpack.c.b16 %v780, %v779
      %v797 = vpack.c.b16 %v782, %v781
      %v798 = vpack.c.b16 %v784, %v783
      %v799 = vpack.c.b16 %v786, %v785
      %v800 = vpack.c.b16 %v788, %v787
      %v814 = vsel %vm623, %v730, 0
      %v817 = vsel %vm623, %v732, 0
      %v820 = vsel %vm623, %v734, 0
      %v823 = vsel %vm623, %v736, 0
      %825 = vmatprep.subr.bf16.mxu0 0
      %826 = vmatpush1.bf16.msra.mxu0 %v796
      %827 = vmatprep.subr.bf16.mxu0 0
      %828 = vmatpush1.bf16.msra.mxu0 %v795
      %829 = vmatprep.subr.bf16.mxu0 0
      %830 = vmatpush1.bf16.msra.mxu0 %v794
      %831 = vmatprep.subr.bf16.mxu0 0
      %832 = vmatpush1.bf16.msra.mxu0 %v793
      %833 = vmatprep.subr.bf16.mxu0 0
      %834 = vmatpush1.bf16.msra.mxu0 %v792
      %835 = vmatprep.subr.bf16.mxu0 0
      %836 = vmatpush1.bf16.msra.mxu0 %v791
      %837 = vmatprep.subr.bf16.mxu0 0
      %838 = vmatpush1.bf16.msra.mxu0 %v790
      %839 = vmatprep.subr.bf16.mxu0 0
      %840 = vmatpush1.bf16.msra.mxu0 %v789
      %841 = vmatprep.subr.bf16.mxu0 0
      %842 = vmatpush2.bf16.msra.mxu0 0
      %843 = vmatprep.subr.bf16.mxu0 0
      %844 = vmatpush2.bf16.msra.mxu0 0
      %845 = vmatprep.subr.bf16.mxu0 0
      %846 = vmatpush2.bf16.msra.mxu0 0
      %847 = vmatprep.subr.bf16.mxu0 0
      %848 = vmatpush2.bf16.msra.mxu0 0
      %849 = vmatprep.subr.bf16.mxu0 0
      %850 = vmatpush2.bf16.msra.mxu0 %v800
      %851 = vmatprep.subr.bf16.mxu0 0
      %852 = vmatpush2.bf16.msra.mxu0 %v799
      %853 = vmatprep.subr.bf16.mxu0 0
      %854 = vmatpush2.bf16.msra.mxu0 %v798
      %855 = vmatprep.subr.bf16.mxu0 0
      %856 = vmatpush2.bf16.msra.mxu0 %v797
      %857 = vmatprep.mubr.bf16.mxu0 %v814
      %858 = vmatmul.mubr.bf16.gmra.mxu0 %v729
      %v859 = vpop.f32.mrf.mxu0
      %v860 = vadd.f32 0.0, %v859
      %v861 = vpop.f32.mrf.mxu0
      %v862 = vpop.f32.mrf.mxu0
      %v863 = vadd.f32 0.0, %v862
      %v864 = vpop.f32.mrf.mxu0
      %865 = vmatprep.mubr.bf16.mxu0 %v817
      %866 = vmatmul.mubr.bf16.gmra.mxu0 %v731
      %v867 = vpop.f32.mrf.mxu0
      %v868 = vadd.f32 0.0, %v867
      %v869 = vpop.f32.mrf.mxu0
      %v870 = vpop.f32.mrf.mxu0
      %v871 = vadd.f32 0.0, %v870
      %v872 = vpop.f32.mrf.mxu0
      %873 = vmatprep.mubr.bf16.mxu0 %v820
      %874 = vmatmul.mubr.bf16.gmra.mxu0 %v733
      %v875 = vpop.f32.mrf.mxu0
      %v876 = vadd.f32 0.0, %v875
      %v877 = vpop.f32.mrf.mxu0
      %v878 = vpop.f32.mrf.mxu0
      %v879 = vadd.f32 0.0, %v878
      %v880 = vpop.f32.mrf.mxu0
      %881 = vmatprep.mubr.bf16.mxu0 %v823
      %882 = vmatmul.mubr.bf16.gmra.mxu0 %v735
      %v883 = vpop.f32.mrf.mxu0
      %v884 = vadd.f32 0.0, %v883
      %v885 = vpop.f32.mrf.mxu0
      %v886 = vpop.f32.mrf.mxu0
      %v887 = vadd.f32 0.0, %v886
      %v888 = vpop.f32.mrf.mxu0
      %889 = vdwg.mxu0
      %v890 = vpack.c.b16 %v650, %v648
      %v891 = vpack.c.b16 %v651, %v649
      %v892 = vpack.c.b16 %v654, %v652
      %v893 = vpack.c.b16 %v655, %v653
      %v894 = vpack.c.b16 %v658, %v656
      %v895 = vpack.c.b16 %v659, %v657
      %v896 = vpack.c.b16 %v662, %v660
      %v897 = vpack.c.b16 %v663, %v661
      %v926 = vunpack.c.l.b16 %v664
      %v927 = vunpack.c.l.b16 %v665
      %v928 = vunpack.c.l.b16 %v666
      %v929 = vunpack.c.l.b16 %v667
      %v930 = vunpack.c.l.b16 %v668
      %v931 = vunpack.c.l.b16 %v669
      %v932 = vunpack.c.l.b16 %v670
      %v933 = vunpack.c.l.b16 %v671
      %v934 = vunpack.c.l.b16 %v672
      %v935 = vunpack.c.l.b16 %v673
      %v936 = vunpack.c.l.b16 %v674
      %v937 = vunpack.c.l.b16 %v675
      %v938 = vunpack.c.l.b16 %v676
      %v939 = vunpack.c.l.b16 %v677
      %v940 = vunpack.c.l.b16 %v678
      %v941 = vunpack.c.l.b16 %v679
      %v942 = vunpack.c.l.b16 %v680
      %v943 = vunpack.c.l.b16 %v681
      %v944 = vunpack.c.l.b16 %v682
      %v945 = vunpack.c.l.b16 %v683
      %v946 = vunpack.c.l.b16 %v684
      %v947 = vunpack.c.l.b16 %v685
      %v948 = vunpack.c.l.b16 %v686
      %v949 = vunpack.c.l.b16 %v687
      %v950 = vpack.c.b16 %v927, %v926
      %v951 = vpack.c.b16 %v929, %v928
      %v952 = vpack.c.b16 %v931, %v930
      %v953 = vpack.c.b16 %v933, %v932
      %v954 = vpack.c.b16 %v935, %v934
      %v955 = vpack.c.b16 %v937, %v936
      %v956 = vpack.c.b16 %v939, %v938
      %v957 = vpack.c.b16 %v941, %v940
      %v958 = vpack.c.b16 %v943, %v942
      %v959 = vpack.c.b16 %v945, %v944
      %v960 = vpack.c.b16 %v947, %v946
      %v961 = vpack.c.b16 %v949, %v948
      %v975 = vsel %vm623, %v891, 0
      %v978 = vsel %vm623, %v893, 0
      %v981 = vsel %vm623, %v895, 0
      %v984 = vsel %vm623, %v897, 0
      %986 = vmatprep.subr.bf16.mxu0 0
      %987 = vmatpush1.bf16.msra.mxu0 %v957
      %988 = vmatprep.subr.bf16.mxu0 0
      %989 = vmatpush1.bf16.msra.mxu0 %v956
      %990 = vmatprep.subr.bf16.mxu0 0
      %991 = vmatpush1.bf16.msra.mxu0 %v955
      %992 = vmatprep.subr.bf16.mxu0 0
      %993 = vmatpush1.bf16.msra.mxu0 %v954
      %994 = vmatprep.subr.bf16.mxu0 0
      %995 = vmatpush1.bf16.msra.mxu0 %v953
      %996 = vmatprep.subr.bf16.mxu0 0
      %997 = vmatpush1.bf16.msra.mxu0 %v952
      %998 = vmatprep.subr.bf16.mxu0 0
      %999 = vmatpush1.bf16.msra.mxu0 %v951
      %1000 = vmatprep.subr.bf16.mxu0 0
      %1001 = vmatpush1.bf16.msra.mxu0 %v950
      %1002 = vmatprep.subr.bf16.mxu0 0
      %1003 = vmatpush2.bf16.msra.mxu0 0
      %1004 = vmatprep.subr.bf16.mxu0 0
      %1005 = vmatpush2.bf16.msra.mxu0 0
      %1006 = vmatprep.subr.bf16.mxu0 0
      %1007 = vmatpush2.bf16.msra.mxu0 0
      %1008 = vmatprep.subr.bf16.mxu0 0
      %1009 = vmatpush2.bf16.msra.mxu0 0
      %1010 = vmatprep.subr.bf16.mxu0 0
      %1011 = vmatpush2.bf16.msra.mxu0 %v961
      %1012 = vmatprep.subr.bf16.mxu0 0
      %1013 = vmatpush2.bf16.msra.mxu0 %v960
      %1014 = vmatprep.subr.bf16.mxu0 0
      %1015 = vmatpush2.bf16.msra.mxu0 %v959
      %1016 = vmatprep.subr.bf16.mxu0 0
      %1017 = vmatpush2.bf16.msra.mxu0 %v958
      %1018 = vmatprep.mubr.bf16.mxu0 %v975
      %1019 = vmatmul.mubr.bf16.gmra.mxu0 %v890
      %v1020 = vpop.f32.mrf.mxu0
      %v1021 = vadd.f32 %v860, %v1020
      %v1022 = vpop.f32.mrf.mxu0
      %v1023 = vpop.f32.mrf.mxu0
      %v1024 = vadd.f32 %v863, %v1023
      %v1025 = vpop.f32.mrf.mxu0
      %1026 = vmatprep.mubr.bf16.mxu0 %v978
      %1027 = vmatmul.mubr.bf16.gmra.mxu0 %v892
      %v1028 = vpop.f32.mrf.mxu0
      %v1029 = vadd.f32 %v868, %v1028
      %v1030 = vpop.f32.mrf.mxu0
      %v1031 = vpop.f32.mrf.mxu0
      %v1032 = vadd.f32 %v871, %v1031
      %v1033 = vpop.f32.mrf.mxu0
      %1034 = vmatprep.mubr.bf16.mxu0 %v981
      %1035 = vmatmul.mubr.bf16.gmra.mxu0 %v894
      %v1036 = vpop.f32.mrf.mxu0
      %v1037 = vadd.f32 %v876, %v1036
      %v1038 = vpop.f32.mrf.mxu0
      %v1039 = vpop.f32.mrf.mxu0
      %v1040 = vadd.f32 %v879, %v1039
      %v1041 = vpop.f32.mrf.mxu0
      %1042 = vmatprep.mubr.bf16.mxu0 %v984
      %1043 = vmatmul.mubr.bf16.gmra.mxu0 %v896
      %v1044 = vpop.f32.mrf.mxu0
      %v1045 = vadd.f32 %v884, %v1044
      %v1046 = vpop.f32.mrf.mxu0
      %v1047 = vpop.f32.mrf.mxu0
      %v1048 = vadd.f32 %v887, %v1047
      %v1049 = vpop.f32.mrf.mxu0
      %1050 = vdwg.mxu0
      %v1052 = vshrl.u32 %v534, 16
      %v1054 = vshll.u32 %v534, 16
      %v1056 = vrot.slane %v1054, 1
      %v1057 = vor.u32 %v1052, %v1056
      %1058 = vrot.lane.b32.xlu0 %v1057, 64
      %v1059 = vpop.permute.xlu0 %1058
      %v1061 = vrot.slane %v534, 1
      %v1063 = vsel %vm623, %v534, %v1059
      %v1065 = vunpack.c.l.b16 %v1063
      %v1066 = vunpack.c.l.b16 %v1061
      %s1067 = scalar_lea.vmem %s3, 192
      %v1068 = vld [vmem:[%s1067] sm:$0xf]
      %v1069 = vld [vmem:[%s1067 + $0x4] sm:$0xf]
      %v1070 = vld [vmem:[%s1067 + $0x8] sm:$0xf]
      %v1071 = vld [vmem:[%s1067 + $0xc] sm:$0xf]
      %v1072 = vld [vmem:[%s1067 + $0x10] sm:$0xf]
      %v1073 = vld [vmem:[%s1067 + $0x14] sm:$0xf]
      %v1074 = vld [vmem:[%s1067 + $0x18] sm:$0xf]
      %v1075 = vld [vmem:[%s1067 + $0x1c] sm:$0xf]
      %v1076 = vld [vmem:[%s1067 + $0x20] sm:$0xf]
      %v1077 = vld [vmem:[%s1067 + $0x24] sm:$0xf]
      %v1078 = vld [vmem:[%s1067 + $0x28] sm:$0xf]
      %v1079 = vld [vmem:[%s1067 + $0x2c] sm:$0xf]
      %v1080 = vld [vmem:[%s1067 + $0x30] sm:$0xf]
      %v1081 = vld [vmem:[%s1067 + $0x34] sm:$0xf]
      %v1082 = vld [vmem:[%s1067 + $0x38] sm:$0xf]
      %v1083 = vld [vmem:[%s1067 + $0x3c] sm:$0xf]
      %v1084 = vld [vmem:[%s1067 + $0x40] sm:$0xf]
      %v1085 = vld [vmem:[%s1067 + $0x44] sm:$0xf]
      %v1086 = vld [vmem:[%s1067 + $0x48] sm:$0xf]
      %v1087 = vld [vmem:[%s1067 + $0x4c] sm:$0xf]
      %v1088 = vld [vmem:[%s1067 + $0x50] sm:$0xf]
      %v1089 = vld [vmem:[%s1067 + $0x54] sm:$0xf]
      %v1090 = vld [vmem:[%s1067 + $0x58] sm:$0xf]
      %v1091 = vld [vmem:[%s1067 + $0x5c] sm:$0xf]
      %v1092 = vpack.c.b16 %v1065, %v702
      %v1093 = vpack.c.b16 %v1066, %v703
      %v1119 = vunpack.c.l.b16 %v1068
      %v1120 = vunpack.c.l.b16 %v1069
      %v1121 = vunpack.c.l.b16 %v1070
      %v1122 = vunpack.c.l.b16 %v1071
      %v1123 = vunpack.c.l.b16 %v1072
      %v1124 = vunpack.c.l.b16 %v1073
      %v1125 = vunpack.c.l.b16 %v1074
      %v1126 = vunpack.c.l.b16 %v1075
      %v1127 = vunpack.c.l.b16 %v1076
      %v1128 = vunpack.c.l.b16 %v1077
      %v1129 = vunpack.c.l.b16 %v1078
      %v1130 = vunpack.c.l.b16 %v1079
      %v1131 = vunpack.c.l.b16 %v1080
      %v1132 = vunpack.c.l.b16 %v1081
      %v1133 = vunpack.c.l.b16 %v1082
      %v1134 = vunpack.c.l.b16 %v1083
      %v1135 = vunpack.c.l.b16 %v1084
      %v1136 = vunpack.c.l.b16 %v1085
      %v1137 = vunpack.c.l.b16 %v1086
      %v1138 = vunpack.c.l.b16 %v1087
      %v1139 = vunpack.c.l.b16 %v1088
      %v1140 = vunpack.c.l.b16 %v1089
      %v1141 = vunpack.c.l.b16 %v1090
      %v1142 = vunpack.c.l.b16 %v1091
      %v1143 = vpack.c.b16 %v1120, %v1119
      %v1144 = vpack.c.b16 %v1122, %v1121
      %v1145 = vpack.c.b16 %v1124, %v1123
      %v1146 = vpack.c.b16 %v1126, %v1125
      %v1147 = vpack.c.b16 %v1128, %v1127
      %v1148 = vpack.c.b16 %v1130, %v1129
      %v1149 = vpack.c.b16 %v1132, %v1131
      %v1150 = vpack.c.b16 %v1134, %v1133
      %v1151 = vpack.c.b16 %v1136, %v1135
      %v1152 = vpack.c.b16 %v1138, %v1137
      %v1153 = vpack.c.b16 %v1140, %v1139
      %v1154 = vpack.c.b16 %v1142, %v1141
      %v1168 = vsel %vm623, %v1093, 0
      %1170 = vmatprep.subr.bf16.mxu0 0
      %1171 = vmatpush1.bf16.msra.mxu0 %v1150
      %1172 = vmatprep.subr.bf16.mxu0 0
      %1173 = vmatpush1.bf16.msra.mxu0 %v1149
      %1174 = vmatprep.subr.bf16.mxu0 0
      %1175 = vmatpush1.bf16.msra.mxu0 %v1148
      %1176 = vmatprep.subr.bf16.mxu0 0
      %1177 = vmatpush1.bf16.msra.mxu0 %v1147
      %1178 = vmatprep.subr.bf16.mxu0 0
      %1179 = vmatpush1.bf16.msra.mxu0 %v1146
      %1180 = vmatprep.subr.bf16.mxu0 0
      %1181 = vmatpush1.bf16.msra.mxu0 %v1145
      %1182 = vmatprep.subr.bf16.mxu0 0
      %1183 = vmatpush1.bf16.msra.mxu0 %v1144
      %1184 = vmatprep.subr.bf16.mxu0 0
      %1185 = vmatpush1.bf16.msra.mxu0 %v1143
      %1186 = vmatprep.subr.bf16.mxu0 0
      %1187 = vmatpush2.bf16.msra.mxu0 0
      %1188 = vmatprep.subr.bf16.mxu0 0
      %1189 = vmatpush2.bf16.msra.mxu0 0
      %1190 = vmatprep.subr.bf16.mxu0 0
      %1191 = vmatpush2.bf16.msra.mxu0 0
      %1192 = vmatprep.subr.bf16.mxu0 0
      %1193 = vmatpush2.bf16.msra.mxu0 0
      %1194 = vmatprep.subr.bf16.mxu0 0
      %1195 = vmatpush2.bf16.msra.mxu0 %v1154
      %1196 = vmatprep.subr.bf16.mxu0 0
      %1197 = vmatpush2.bf16.msra.mxu0 %v1153
      %1198 = vmatprep.subr.bf16.mxu0 0
      %1199 = vmatpush2.bf16.msra.mxu0 %v1152
      %1200 = vmatprep.subr.bf16.mxu0 0
      %1201 = vmatpush2.bf16.msra.mxu0 %v1151
      %1202 = vmatprep.mubr.bf16.mxu0 %v978
      %1203 = vmatmul.mubr.bf16.gmra.mxu0 %v892
      %v1204 = vpop.f32.mrf.mxu0
      %v1205 = vadd.f32 0.0, %v1204
      %v1206 = vpop.f32.mrf.mxu0
      %v1207 = vpop.f32.mrf.mxu0
      %v1208 = vadd.f32 0.0, %v1207
      %v1209 = vpop.f32.mrf.mxu0
      %1210 = vmatprep.mubr.bf16.mxu0 %v981
      %1211 = vmatmul.mubr.bf16.gmra.mxu0 %v894
      %v1212 = vpop.f32.mrf.mxu0
      %v1213 = vadd.f32 0.0, %v1212
      %v1214 = vpop.f32.mrf.mxu0
      %v1215 = vpop.f32.mrf.mxu0
      %v1216 = vadd.f32 0.0, %v1215
      %v1217 = vpop.f32.mrf.mxu0
      %1218 = vmatprep.mubr.bf16.mxu0 %v984
      %1219 = vmatmul.mubr.bf16.gmra.mxu0 %v896
      %v1220 = vpop.f32.mrf.mxu0
      %v1221 = vadd.f32 0.0, %v1220
      %v1222 = vpop.f32.mrf.mxu0
      %v1223 = vpop.f32.mrf.mxu0
      %v1224 = vadd.f32 0.0, %v1223
      %v1225 = vpop.f32.mrf.mxu0
      %1226 = vmatprep.mubr.bf16.mxu0 %v1168
      %1227 = vmatmul.mubr.bf16.gmra.mxu0 %v1092
      %v1228 = vpop.f32.mrf.mxu0
      %v1229 = vadd.f32 0.0, %v1228
      %v1230 = vpop.f32.mrf.mxu0
      %v1231 = vpop.f32.mrf.mxu0
      %v1232 = vadd.f32 0.0, %v1231
      %v1233 = vpop.f32.mrf.mxu0
      %1234 = vdwg.mxu0
      %v1235 = vadd.f32 %v1021, %v1205
      %v1236 = vadd.f32 %v1024, %v1208
      %v1237 = vadd.f32 %v1029, %v1213
      %v1238 = vadd.f32 %v1032, %v1216
      %v1239 = vadd.f32 %v1037, %v1221
      %v1240 = vadd.f32 %v1040, %v1224
      %v1241 = vadd.f32 %v1045, %v1229
      %v1242 = vadd.f32 %v1048, %v1232
      %v1243 = vld [vmem:[%s4] sm:$0x1]
      %v1245 = vlaneseq
      %v1246 = vshrl.u32 %v1245, 7
      %v1247 = vsub.s32 0, %v1246
      %v1248 = vrot.slane %v1243, %v1247
      %v1250 = vadd.f32 %v1235, %v1248
      %v1251 = vadd.f32 %v1236, %v1248
      %v1252 = vadd.f32 %v1237, %v1248
      %v1253 = vadd.f32 %v1238, %v1248
      %v1254 = vadd.f32 %v1239, %v1248
      %v1255 = vadd.f32 %v1240, %v1248
      %v1256 = vadd.f32 %v1241, %v1248
      %v1257 = vadd.f32 %v1242, %v1248
      %v1258 = vmax.f32 %v1250, 0.0
      %v1259 = vmax.f32 %v1251, 0.0
      %v1260 = vmax.f32 %v1252, 0.0
      %v1261 = vmax.f32 %v1253, 0.0
      %v1262 = vmax.f32 %v1254, 0.0
      %v1263 = vmax.f32 %v1255, 0.0
      %v1264 = vmax.f32 %v1256, 0.0
      %v1265 = vmax.f32 %v1257, 0.0
      %v1266 = vpack.c.bf16 %v1258, %v1258
      %v1267 = vpack.c.bf16 %v1259, %v1259
      %v1268 = vpack.c.bf16 %v1260, %v1260
      %v1269 = vpack.c.bf16 %v1261, %v1261
      %v1270 = vpack.c.bf16 %v1262, %v1262
      %v1271 = vpack.c.bf16 %v1263, %v1263
      %v1272 = vpack.c.bf16 %v1264, %v1264
      %v1273 = vpack.c.bf16 %v1265, %v1265
      %1274 = vst [vmem:[%s380] sm:$0xf] %v1266
      %1275 = vst [vmem:[%s380 + $0x4] sm:$0xf] %v1267
      %1276 = vst [vmem:[%s380 + $0x8] sm:$0xf] %v1268
      %1277 = vst [vmem:[%s380 + $0xc] sm:$0xf] %v1269
      %1278 = vst [vmem:[%s380 + $0x10] sm:$0xf] %v1270
      %1279 = vst [vmem:[%s380 + $0x14] sm:$0xf] %v1271
      %1280 = vst [vmem:[%s380 + $0x18] sm:$0xf] %v1272
      %1281 = vst [vmem:[%s380 + $0x1c] sm:$0xf] %v1273
      %s1282 = smul.u32 8, %s21
      %p1283 = scmp.lt.s32.totalorder %s20, 3
      %s1284 = scalar_select %p1283, %s20, 3
      %p1285 = scmp.lt.s32.totalorder %s1282, 7
      %s1286 = scalar_select %p1285, %s1282, 7
      %s1287 = smul.addr %s1284, 8
      %s1288 = sadd.s32 %s1286, %s1287
      %s1289 = smul.addr %s1288, 4
      %s1290 = scalar_lea.vmem %s5, %s1289
      // Predicated region
      $region41: #{vgg_loss_forward.6} parent=39 // pred_check
        %p1291 = pneg %p190
      $region42: #{vgg_loss_forward.6} parent=39 // pred_check_branch
        %1293 = sbr.rel (%p1291) target = $region44
      $region43: #{vgg_loss_forward.6} parent=39 // pred_region
        %s1294 = smul.u32 8, %s21
      $region44: #{vgg_loss_forward.6} parent=39 // pred_fallthru
        _
    $region40: #{vgg_loss_forward.6} parent=5 // pred_fallthru
      _
    %p1295 = scmp.le.s32.totalorder 2, %s11
    // Predicated region
    $region45: #{vgg_loss_forward.6} parent=5 // pred_check
      %p1296 = pneg %p1295
    $region46: #{vgg_loss_forward.6} parent=5 // pred_check_branch
      %1298 = sbr.rel (%p1296) target = $region48
    $region47: #{vgg_loss_forward.6} parent=5 // pred_region
      %s1299 = ssub.s32 %s11, 2
      // Predicated region
      $region49: #{vgg_loss_forward.6} parent=47 // pred_check
        %p1300 = pneg %p196
      $region50: #{vgg_loss_forward.6} parent=47 // pred_check_branch
        %1302 = sbr.rel (%p1300) target = $region52
      $region51: #{vgg_loss_forward.6} parent=47 // pred_region
        %s1303 = smul.u32 8, %s23
        %p1304 = scmp.lt.s32.totalorder %s22, 3
        %s1305 = scalar_select %p1304, %s22, 3
        %p1306 = scmp.lt.s32.totalorder %s1303, 7
        %s1307 = scalar_select %p1306, %s1303, 7
        %s1308 = smul.addr %s1305, 8
        %s1309 = sadd.s32 %s1307, %s1308
        %s1310 = smul.addr %s1309, 4
        %s1311 = scalar_lea.vmem %s5, %s1310
      $region52: #{vgg_loss_forward.6} parent=47 // pred_fallthru
        _
    $region48: #{vgg_loss_forward.6} parent=5 // pred_fallthru
      _
  $region6: #{vgg_loss_forward.6} parent=0 // loop_footer
    %s15 = sadd.s32 1, %s11
  $region7: #{vgg_loss_forward.6} parent=0 // loop_footer_branch
    %10 = sbr.rel target = $region3
  $region8: #{vgg_loss_forward.6} parent=0 // loop_exit
    _

// kernel: vgg_loss_forward.7
$region0: #{vgg_loss_forward.7}
  #allocation0 [shape = 'u32[]', space=smem, size = 0x4, offset = 0x4, fixed_abs, tag = 'smem constant byte address 0x4 - core index']
  #allocation1 [shape = 'u32[144,128]{1,0:T(1,128)}', space=vmem, size = 0x12000, scoped, tag = 'internal scratch']
  #allocation2 [shape = 'f32[1,128]{1,0:T(1,128)}', space=vmem, size = 0x200, scoped, tag = 'scratch operand']
  %s0 = inlined_call_operand.vmem [shape: bf16[4,8,8,128], index: 0, kind: input, shape index: {}, may-alias: {0,1,2,3,4,5}]
  %s1 = inlined_call_operand.vmem [shape: bf16[4,8,8,128], index: 1, kind: input, shape index: {}, may-alias: {0,1,2,3,4,5}]
  %s2 = inlined_call_operand.vmem [shape: bf16[4,8,8,128], index: 2, kind: input, shape index: {}, may-alias: {0,1,2,3,4,5}]
  %s3 = inlined_call_operand.vmem [shape: bf16[4,8,8,128], index: 3, kind: input, shape index: {}, may-alias: {0,1,2,3,4,5}]
  %s4 = inlined_call_operand.vmem [shape: bf16[4,8,8,128], index: 4, kind: input, shape index: {}, may-alias: {0,1,2,3,4,5}]
  %s5 = inlined_call_operand.vmem [shape: bf16[4,8,8,128], index: 5, kind: input, shape index: {}, may-alias: {0,1,2,3,4,5}]
  %s6 = inlined_call_operand.vmem [shape: bf16[3,384,128], index: 6, kind: input, shape index: {}]
  %s7 = inlined_call_operand.vmem [shape: f32[2,1,128], index: 7, kind: output, shape index: {}]
  %s8 = sld [smem:[#allocation0]]
  $region73: #{vgg_loss_forward.7} parent=0
    _
  %s10 = ssub.s32 1, %s8
  %s11 = scalar_select 0, %s10, %s8
  loop: start=0, step=1, limit=4
  $region2: #{vgg_loss_forward.7} parent=0 // loop_pre_header
    _
  $region3: #{vgg_loss_forward.7} parent=0 // loop_header
    %s13 = sphi 0, %s17
    %p14 = scmp.ge.s32.totalorder %s13, 4
    %s20 = sphi 0, %s32
    %s21 = sphi 0, %s28
    %s22 = sphi 0, %s20
    %s23 = sphi 0, %s21
    %s24 = sphi 0, %s22
    %s25 = sphi 0, %s23
    %s45 = sphi 0, %s47
    %s48 = sphi 0, %s45
    %s49 = sphi 0, %s48
    %s65 = sphi 0, %s49
    %s73 = sphi 0, %s75
    %s76 = sphi 0, %s73
    %s77 = sphi 0, %s76
    %s93 = sphi 0, %s77
    %s109 = sphi 0, %s111
    %s112 = sphi 0, %s109
    %s113 = sphi 0, %s112
    %s129 = sphi 0, %s113
    %s147 = sphi 0, %s149
    %s150 = sphi 0, %s147
    %s151 = sphi 0, %s150
    %s167 = sphi 0, %s151
    %s177 = sphi 0, %s179
    %s180 = sphi 0, %s177
    %s181 = sphi 0, %s180
    %s197 = sphi 0, %s181
    %s215 = sphi 0, %s217
    %s218 = sphi 0, %s215
    %s219 = sphi 0, %s218
    %s235 = sphi 0, %s219
    %s239 = sphi 0, %s239
    %s241 = sphi 0, %s239
    %s242 = sphi 0, %s241
    %s256 = sphi 0, %s242
    %s262 = sphi 0, %s264
    %s265 = sphi 0, %s262
    %s266 = sphi 0, %s265
    %s282 = sphi 0, %s266
  $region4: #{vgg_loss_forward.7} parent=0 // loop_header_branch
    %16 = sbr.rel (%p14) target = $region8
  $region5: #{vgg_loss_forward.7} parent=0 // loop_body
    %s18 = ssub.s32 %s13, 1
    %s19 = ssub.s32 %s13, 2
    %s26 = sadd.s32 1, %s21
    %p27 = scmp.ge.s32.totalorder %s26, 1
    %s28 = scalar_select %p27, 0, %s26
    %s29 = sadd.s32 1, %s20
    %s30 = scalar_select %p27, %s29, %s20
    %p31 = scmp.ge.s32.totalorder %s30, 2
    %s32 = scalar_select %p31, 0, %s30
    %s33 = smul.u32 %s21, 8
    %s34 = ssub.s32 %s33, 1
    %p35 = scmp.gt.s32.totalorder %s34, 0
    %s36 = scalar_select %p35, %s34, 0
    %s37 = smul.u32 %s28, 8
    %s38 = ssub.s32 %s37, 1
    %p39 = scmp.gt.s32.totalorder %s38, 0
    %s40 = scalar_select %p39, %s38, 0
    %s41 = ssub.s32 %s20, %s32
    %s42 = ssub.s32 %s36, %s40
    %s43 = sor.u32 %s41, %s42
    %p44 = scmp.eq.s32.totalorder %s43, 0
    %s46 = sadd.s32 %s45, 1
    %s47 = scalar_select %p44, %s45, %s46
    %p50 = pneg %p44
    %p51 = scmp.eq.s32.totalorder %s13, 1
    %p52 = por %p50, %p51
    %p53 = scmp.ne.s32.totalorder %s45, %s48
    %p54 = scmp.eq.s32.totalorder %s13, 0
    %p55 = por %p53, %p54
    %p56 = scmp.ne.s32.totalorder %s45, %s48
    %p57 = scmp.eq.s32.totalorder %s18, 1
    %p58 = por %p56, %p57
    %p59 = scmp.ne.s32.totalorder %s48, %s49
    %p60 = scmp.eq.s32.totalorder %s18, 0
    %p61 = por %p59, %p60
    %p62 = scmp.ne.s32.totalorder %s48, %s49
    %p63 = scmp.eq.s32.totalorder %s19, 1
    %p64 = por %p62, %p63
    %p66 = scmp.ne.s32.totalorder %s49, %s65
    %p67 = scmp.eq.s32.totalorder %s19, 0
    %p68 = por %p66, %p67
    %s69 = ssub.s32 %s20, %s32
    %s70 = ssub.s32 %s21, %s28
    %s71 = sor.u32 %s69, %s70
    %p72 = scmp.eq.s32.totalorder %s71, 0
    %s74 = sadd.s32 %s73, 1
    %s75 = scalar_select %p72, %s73, %s74
    %p78 = pneg %p72
    %p79 = scmp.eq.s32.totalorder %s13, 1
    %p80 = por %p78, %p79
    %p81 = scmp.ne.s32.totalorder %s73, %s76
    %p82 = scmp.eq.s32.totalorder %s13, 0
    %p83 = por %p81, %p82
    %p84 = scmp.ne.s32.totalorder %s73, %s76
    %p85 = scmp.eq.s32.totalorder %s18, 1
    %p86 = por %p84, %p85
    %p87 = scmp.ne.s32.totalorder %s76, %s77
    %p88 = scmp.eq.s32.totalorder %s18, 0
    %p89 = por %p87, %p88
    %p90 = scmp.ne.s32.totalorder %s76, %s77
    %p91 = scmp.eq.s32.totalorder %s19, 1
    %p92 = por %p90, %p91
    %p94 = scmp.ne.s32.totalorder %s77, %s93
    %p95 = scmp.eq.s32.totalorder %s19, 0
    %p96 = por %p94, %p95
    %s97 = smul.u32 %s21, 8
    %s98 = sadd.s32 %s97, 8
    %p99 = scmp.lt.s32.totalorder %s98, 7
    %s100 = scalar_select %p99, %s98, 7
    %s101 = smul.u32 %s28, 8
    %s102 = sadd.s32 %s101, 8
    %p103 = scmp.lt.s32.totalorder %s102, 7
    %s104 = scalar_select %p103, %s102, 7
    %s105 = ssub.s32 %s20, %s32
    %s106 = ssub.s32 %s100, %s104
    %s107 = sor.u32 %s105, %s106
    %p108 = scmp.eq.s32.totalorder %s107, 0
    %s110 = sadd.s32 %s109, 1
    %s111 = scalar_select %p108, %s109, %s110
    %p114 = pneg %p108
    %p115 = scmp.eq.s32.totalorder %s13, 1
    %p116 = por %p114, %p115
    %p117 = scmp.ne.s32.totalorder %s109, %s112
    %p118 = scmp.eq.s32.totalorder %s13, 0
    %p119 = por %p117, %p118
    %p120 = scmp.ne.s32.totalorder %s109, %s112
    %p121 = scmp.eq.s32.totalorder %s18, 1
    %p122 = por %p120, %p121
    %p123 = scmp.ne.s32.totalorder %s112, %s113
    %p124 = scmp.eq.s32.totalorder %s18, 0
    %p125 = por %p123, %p124
    %p126 = scmp.ne.s32.totalorder %s112, %s113
    %p127 = scmp.eq.s32.totalorder %s19, 1
    %p128 = por %p126, %p127
    %p130 = scmp.ne.s32.totalorder %s113, %s129
    %p131 = scmp.eq.s32.totalorder %s19, 0
    %p132 = por %p130, %p131
    %s133 = sadd.s32 %s20, 2
    %s134 = smul.u32 %s21, 8
    %s135 = ssub.s32 %s134, 1
    %p136 = scmp.gt.s32.totalorder %s135, 0
    %s137 = scalar_select %p136, %s135, 0
    %s138 = sadd.s32 %s32, 2
    %s139 = smul.u32 %s28, 8
    %s140 = ssub.s32 %s139, 1
    %p141 = scmp.gt.s32.totalorder %s140, 0
    %s142 = scalar_select %p141, %s140, 0
    %s143 = ssub.s32 %s133, %s138
    %s144 = ssub.s32 %s137, %s142
    %s145 = sor.u32 %s143, %s144
    %p146 = scmp.eq.s32.totalorder %s145, 0
    %s148 = sadd.s32 %s147, 1
    %s149 = scalar_select %p146, %s147, %s148
    %p152 = pneg %p146
    %p153 = scmp.eq.s32.totalorder %s13, 1
    %p154 = por %p152, %p153
    %p155 = scmp.ne.s32.totalorder %s147, %s150
    %p156 = scmp.eq.s32.totalorder %s13, 0
    %p157 = por %p155, %p156
    %p158 = scmp.ne.s32.totalorder %s147, %s150
    %p159 = scmp.eq.s32.totalorder %s18, 1
    %p160 = por %p158, %p159
    %p161 = scmp.ne.s32.totalorder %s150, %s151
    %p162 = scmp.eq.s32.totalorder %s18, 0
    %p163 = por %p161, %p162
    %p164 = scmp.ne.s32.totalorder %s150, %s151
    %p165 = scmp.eq.s32.totalorder %s19, 1
    %p166 = por %p164, %p165
    %p168 = scmp.ne.s32.totalorder %s151, %s167
    %p169 = scmp.eq.s32.totalorder %s19, 0
    %p170 = por %p168, %p169
    %s171 = sadd.s32 %s20, 2
    %s172 = sadd.s32 %s32, 2
    %s173 = ssub.s32 %s171, %s172
    %s174 = ssub.s32 %s21, %s28
    %s175 = sor.u32 %s173, %s174
    %p176 = scmp.eq.s32.totalorder %s175, 0
    %s178 = sadd.s32 %s177, 1
    %s179 = scalar_select %p176, %s177, %s178
    %p182 = pneg %p176
    %p183 = scmp.eq.s32.totalorder %s13, 1
    %p184 = por %p182, %p183
    %p185 = scmp.ne.s32.totalorder %s177, %s180
    %p186 = scmp.eq.s32.totalorder %s13, 0
    %p187 = por %p185, %p186
    %p188 = scmp.ne.s32.totalorder %s177, %s180
    %p189 = scmp.eq.s32.totalorder %s18, 1
    %p190 = por %p188, %p189
    %p191 = scmp.ne.s32.totalorder %s180, %s181
    %p192 = scmp.eq.s32.totalorder %s18, 0
    %p193 = por %p191, %p192
    %p194 = scmp.ne.s32.totalorder %s180, %s181
    %p195 = scmp.eq.s32.totalorder %s19, 1
    %p196 = por %p194, %p195
    %p198 = scmp.ne.s32.totalorder %s181, %s197
    %p199 = scmp.eq.s32.totalorder %s19, 0
    %p200 = por %p198, %p199
    %s201 = sadd.s32 %s20, 2
    %s202 = smul.u32 %s21, 8
    %s203 = sadd.s32 %s202, 8
    %p204 = scmp.lt.s32.totalorder %s203, 7
    %s205 = scalar_select %p204, %s203, 7
    %s206 = sadd.s32 %s32, 2
    %s207 = smul.u32 %s28, 8
    %s208 = sadd.s32 %s207, 8
    %p209 = scmp.lt.s32.totalorder %s208, 7
    %s210 = scalar_select %p209, %s208, 7
    %s211 = ssub.s32 %s201, %s206
    %s212 = ssub.s32 %s205, %s210
    %s213 = sor.u32 %s211, %s212
    %p214 = scmp.eq.s32.totalorder %s213, 0
    %s216 = sadd.s32 %s215, 1
    %s217 = scalar_select %p214, %s215, %s216
    %p220 = pneg %p214
    %p221 = scmp.eq.s32.totalorder %s13, 1
    %p222 = por %p220, %p221
    %p223 = scmp.ne.s32.totalorder %s215, %s218
    %p224 = scmp.eq.s32.totalorder %s13, 0
    %p225 = por %p223, %p224
    %p226 = scmp.ne.s32.totalorder %s215, %s218
    %p227 = scmp.eq.s32.totalorder %s18, 1
    %p228 = por %p226, %p227
    %p229 = scmp.ne.s32.totalorder %s218, %s219
    %p230 = scmp.eq.s32.totalorder %s18, 0
    %p231 = por %p229, %p230
    %p232 = scmp.ne.s32.totalorder %s218, %s219
    %p233 = scmp.eq.s32.totalorder %s19, 1
    %p234 = por %p232, %p233
    %p236 = scmp.ne.s32.totalorder %s219, %s235
    %p237 = scmp.eq.s32.totalorder %s19, 0
    %p238 = por %p236, %p237
    %s240 = sadd.s32 %s239, 1
    %p243 = scmp.eq.s32.totalorder %s13, 1
    %p244 = scmp.ne.s32.totalorder %s239, %s241
    %p245 = scmp.eq.s32.totalorder %s13, 0
    %p246 = por %p244, %p245
    %p247 = scmp.ne.s32.totalorder %s239, %s241
    %p248 = scmp.eq.s32.totalorder %s18, 1
    %p249 = por %p247, %p248
    %p250 = scmp.ne.s32.totalorder %s241, %s242
    %p251 = scmp.eq.s32.totalorder %s18, 0
    %p252 = por %p250, %p251
    %p253 = scmp.ne.s32.totalorder %s241, %s242
    %p254 = scmp.eq.s32.totalorder %s19, 1
    %p255 = por %p253, %p254
    %p257 = scmp.ne.s32.totalorder %s242, %s256
    %p258 = scmp.eq.s32.totalorder %s19, 0
    %p259 = por %p257, %p258
    %s260 = ssub.s32 %s20, %s32
    %p261 = scmp.eq.s32.totalorder %s260, 0
    %s263 = sadd.s32 %s262, 1
    %s264 = scalar_select %p261, %s262, %s263
    %p267 = pneg %p261
    %p268 = scmp.eq.s32.totalorder %s13, 1
    %p269 = por %p267, %p268
    %p270 = scmp.ne.s32.totalorder %s262, %s265
    %p271 = scmp.eq.s32.totalorder %s13, 0
    %p272 = por %p270, %p271
    %p273 = scmp.ne.s32.totalorder %s262, %s265
    %p274 = scmp.eq.s32.totalorder %s18, 1
    %p275 = por %p273, %p274
    %p276 = scmp.ne.s32.totalorder %s265, %s266
    %p277 = scmp.eq.s32.totalorder %s18, 0
    %p278 = por %p276, %p277
    %p279 = scmp.ne.s32.totalorder %s265, %s266
    %p280 = scmp.eq.s32.totalorder %s19, 1
    %p281 = por %p279, %p280
    %p283 = scmp.ne.s32.totalorder %s266, %s282
    %p284 = scmp.eq.s32.totalorder %s19, 0
    %p285 = por %p283, %p284
    %p286 = scmp.le.s32.totalorder 1, %s13
    %p287 = scmp.lt.s32.totalorder %s13, 3
    %p288 = pnand %p286, %p287
    %p289 = pneg %p288
    // Predicated region
    $region9: #{vgg_loss_forward.7} parent=5 // pred_check
      _
    $region10: #{vgg_loss_forward.7} parent=5 // pred_check_branch
      %291 = sbr.rel (%p288) target = $region12
    $region11: #{vgg_loss_forward.7} parent=5 // pred_region
      %s292 = ssub.s32 %s13, 1
      // Predicated region
      $region13: #{vgg_loss_forward.7} parent=11 // pred_check
        %p293 = pneg %p252
      $region14: #{vgg_loss_forward.7} parent=11 // pred_check_branch
        %295 = sbr.rel (%p293) target = $region16
      $region15: #{vgg_loss_forward.7} parent=11 // pred_region
        _
      $region16: #{vgg_loss_forward.7} parent=11 // pred_fallthru
        _
    $region12: #{vgg_loss_forward.7} parent=5 // pred_fallthru
      _
    %p296 = scmp.lt.s32.totalorder %s13, 2
    // Predicated region
    $region17: #{vgg_loss_forward.7} parent=5 // pred_check
      %p297 = pneg %p296
    $region18: #{vgg_loss_forward.7} parent=5 // pred_check_branch
      %299 = sbr.rel (%p297) target = $region20
    $region19: #{vgg_loss_forward.7} parent=5 // pred_region
      // Predicated region
      $region21: #{vgg_loss_forward.7} parent=19 // pred_check
        %p300 = pneg %p55
      $region22: #{vgg_loss_forward.7} parent=19 // pred_check_branch
        %302 = sbr.rel (%p300) target = $region24
      $region23: #{vgg_loss_forward.7} parent=19 // pred_region
        %s303 = smul.u32 %s21, 8
        %s304 = ssub.s32 %s303, 1
        %p305 = scmp.gt.s32.totalorder %s304, 0
        %s306 = scalar_select %p305, %s304, 0
        %p307 = scmp.lt.s32.totalorder %s20, 3
        %s308 = scalar_select %p307, %s20, 3
        %p309 = scmp.lt.s32.totalorder %s306, 7
        %s310 = scalar_select %p309, %s306, 7
        %s311 = smul.addr %s308, 8
        %s312 = sadd.s32 %s310, %s311
        %s313 = smul.addr %s312, 4
        %s314 = scalar_lea.vmem %s0, %s313
        %s315 = smul.u32 %s21, 8
        %s316 = ssub.s32 %s315, 1
        %p317 = scmp.gt.s32.totalorder %s316, 0
        %s318 = scalar_select %p317, %s316, 0
      $region24: #{vgg_loss_forward.7} parent=19 // pred_fallthru
        _
      // Predicated region
      $region25: #{vgg_loss_forward.7} parent=19 // pred_check
        %p319 = pneg %p83
      $region26: #{vgg_loss_forward.7} parent=19 // pred_check_branch
        %321 = sbr.rel (%p319) target = $region28
      $region27: #{vgg_loss_forward.7} parent=19 // pred_region
        %s322 = smul.u32 8, %s21
        %p323 = scmp.lt.s32.totalorder %s20, 3
        %s324 = scalar_select %p323, %s20, 3
        %p325 = scmp.lt.s32.totalorder %s322, 7
        %s326 = scalar_select %p325, %s322, 7
        %s327 = smul.addr %s324, 8
        %s328 = sadd.s32 %s326, %s327
        %s329 = smul.addr %s328, 4
        %s330 = scalar_lea.vmem %s1, %s329
        %s331 = smul.u32 8, %s21
      $region28: #{vgg_loss_forward.7} parent=19 // pred_fallthru
        _
      // Predicated region
      $region29: #{vgg_loss_forward.7} parent=19 // pred_check
        %p332 = pneg %p119
      $region30: #{vgg_loss_forward.7} parent=19 // pred_check_branch
        %334 = sbr.rel (%p332) target = $region32
      $region31: #{vgg_loss_forward.7} parent=19 // pred_region
        %s335 = smul.u32 %s21, 8
        %s336 = sadd.s32 %s335, 8
        %p337 = scmp.lt.s32.totalorder %s336, 7
        %s338 = scalar_select %p337, %s336, 7
        %p339 = scmp.lt.s32.totalorder %s20, 3
        %s340 = scalar_select %p339, %s20, 3
        %p341 = scmp.lt.s32.totalorder %s338, 7
        %s342 = scalar_select %p341, %s338, 7
        %s343 = smul.addr %s340, 8
        %s344 = sadd.s32 %s342, %s343
        %s345 = smul.addr %s344, 4
        %s346 = scalar_lea.vmem %s2, %s345
        %s347 = smul.u32 %s21, 8
        %s348 = sadd.s32 %s347, 8
        %p349 = scmp.lt.s32.totalorder %s348, 7
        %s350 = scalar_select %p349, %s348, 7
      $region32: #{vgg_loss_forward.7} parent=19 // pred_fallthru
        _
      // Predicated region
      $region33: #{vgg_loss_forward.7} parent=19 // pred_check
        %p351 = pneg %p157
      $region34: #{vgg_loss_forward.7} parent=19 // pred_check_branch
        %353 = sbr.rel (%p351) target = $region36
      $region35: #{vgg_loss_forward.7} parent=19 // pred_region
        %s354 = sadd.s32 %s20, 2
        %s355 = smul.u32 %s21, 8
        %s356 = ssub.s32 %s355, 1
        %p357 = scmp.gt.s32.totalorder %s356, 0
        %s358 = scalar_select %p357, %s356, 0
        %p359 = scmp.lt.s32.totalorder %s354, 3
        %s360 = scalar_select %p359, %s354, 3
        %p361 = scmp.lt.s32.totalorder %s358, 7
        %s362 = scalar_select %p361, %s358, 7
        %s363 = smul.addr %s360, 8
        %s364 = sadd.s32 %s362, %s363
        %s365 = smul.addr %s364, 4
        %s366 = scalar_lea.vmem %s3, %s365
        %s367 = sadd.s32 %s20, 2
        %s368 = smul.u32 %s21, 8
        %s369 = ssub.s32 %s368, 1
        %p370 = scmp.gt.s32.totalorder %s369, 0
        %s371 = scalar_select %p370, %s369, 0
      $region36: #{vgg_loss_forward.7} parent=19 // pred_fallthru
        _
      // Predicated region
      $region37: #{vgg_loss_forward.7} parent=19 // pred_check
        %p372 = pneg %p187
      $region38: #{vgg_loss_forward.7} parent=19 // pred_check_branch
        %374 = sbr.rel (%p372) target = $region40
      $region39: #{vgg_loss_forward.7} parent=19 // pred_region
        %s375 = sadd.s32 %s20, 2
        %s376 = smul.u32 8, %s21
        %p377 = scmp.lt.s32.totalorder %s375, 3
        %s378 = scalar_select %p377, %s375, 3
        %p379 = scmp.lt.s32.totalorder %s376, 7
        %s380 = scalar_select %p379, %s376, 7
        %s381 = smul.addr %s378, 8
        %s382 = sadd.s32 %s380, %s381
        %s383 = smul.addr %s382, 4
        %s384 = scalar_lea.vmem %s4, %s383
        %s385 = sadd.s32 %s20, 2
        %s386 = smul.u32 8, %s21
      $region40: #{vgg_loss_forward.7} parent=19 // pred_fallthru
        _
      // Predicated region
      $region41: #{vgg_loss_forward.7} parent=19 // pred_check
        %p387 = pneg %p225
      $region42: #{vgg_loss_forward.7} parent=19 // pred_check_branch
        %389 = sbr.rel (%p387) target = $region44
      $region43: #{vgg_loss_forward.7} parent=19 // pred_region
        %s390 = sadd.s32 %s20, 2
        %s391 = smul.u32 %s21, 8
        %s392 = sadd.s32 %s391, 8
        %p393 = scmp.lt.s32.totalorder %s392, 7
        %s394 = scalar_select %p393, %s392, 7
        %p395 = scmp.lt.s32.totalorder %s390, 3
        %s396 = scalar_select %p395, %s390, 3
        %p397 = scmp.lt.s32.totalorder %s394, 7
        %s398 = scalar_select %p397, %s394, 7
        %s399 = smul.addr %s396, 8
        %s400 = sadd.s32 %s398, %s399
        %s401 = smul.addr %s400, 4
        %s402 = scalar_lea.vmem %s5, %s401
        %s403 = sadd.s32 %s20, 2
        %s404 = smul.u32 %s21, 8
        %s405 = sadd.s32 %s404, 8
        %p406 = scmp.lt.s32.totalorder %s405, 7
        %s407 = scalar_select %p406, %s405, 7
      $region44: #{vgg_loss_forward.7} parent=19 // pred_fallthru
        _
    $region20: #{vgg_loss_forward.7} parent=5 // pred_fallthru
      _
    %p408 = scmp.le.s32.totalorder 1, %s13
    %p409 = scmp.lt.s32.totalorder %s13, 3
    %p410 = pnand %p408, %p409
    %p411 = pneg %p410
    // Predicated region
    $region45: #{vgg_loss_forward.7} parent=5 // pred_check
      _
    $region46: #{vgg_loss_forward.7} parent=5 // pred_check_branch
      %413 = sbr.rel (%p410) target = $region48
    $region47: #{vgg_loss_forward.7} parent=5 // pred_region
      %s414 = ssub.s32 %s13, 1
      %s415 = smul.u32 %s23, 8
      %s416 = ssub.s32 %s415, 1
      %p417 = scmp.gt.s32.totalorder %s416, 0
      %s418 = scalar_select %p417, %s416, 0
      %p419 = scmp.lt.s32.totalorder %s22, 3
      %s420 = scalar_select %p419, %s22, 3
      %p421 = scmp.lt.s32.totalorder %s418, 7
      %s422 = scalar_select %p421, %s418, 7
      %s423 = smul.addr %s420, 8
      %s424 = sadd.s32 %s422, %s423
      %s425 = smul.addr %s424, 4
      %s426 = scalar_lea.vmem %s0, %s425
      %p427 = pneg %p61
      %p428 = pneg %p58
      %s429 = smul.u32 8, %s23
      %p430 = scmp.lt.s32.totalorder %s22, 3
      %s431 = scalar_select %p430, %s22, 3
      %p432 = scmp.lt.s32.totalorder %s429, 7
      %s433 = scalar_select %p432, %s429, 7
      %s434 = smul.addr %s431, 8
      %s435 = sadd.s32 %s433, %s434
      %s436 = smul.addr %s435, 4
      %s437 = scalar_lea.vmem %s1, %s436
      %p438 = pneg %p89
      %p439 = pneg %p86
      %s440 = smul.u32 %s23, 8
      %s441 = sadd.s32 %s440, 8
      %p442 = scmp.lt.s32.totalorder %s441, 7
      %s443 = scalar_select %p442, %s441, 7
      %p444 = scmp.lt.s32.totalorder %s22, 3
      %s445 = scalar_select %p444, %s22, 3
      %p446 = scmp.lt.s32.totalorder %s443, 7
      %s447 = scalar_select %p446, %s443, 7
      %s448 = smul.addr %s445, 8
      %s449 = sadd.s32 %s447, %s448
      %s450 = smul.addr %s449, 4
      %s451 = scalar_lea.vmem %s2, %s450
      %p452 = pneg %p125
      %p453 = pneg %p122
      %s454 = sadd.s32 %s22, 2
      %s455 = smul.u32 %s23, 8
      %s456 = ssub.s32 %s455, 1
      %p457 = scmp.gt.s32.totalorder %s456, 0
      %s458 = scalar_select %p457, %s456, 0
      %p459 = scmp.lt.s32.totalorder %s454, 3
      %s460 = scalar_select %p459, %s454, 3
      %p461 = scmp.lt.s32.totalorder %s458, 7
      %s462 = scalar_select %p461, %s458, 7
      %s463 = smul.addr %s460, 8
      %s464 = sadd.s32 %s462, %s463
      %s465 = smul.addr %s464, 4
      %s466 = scalar_lea.vmem %s3, %s465
      %p467 = pneg %p163
      %p468 = pneg %p160
      %s469 = sadd.s32 %s22, 2
      %s470 = smul.u32 8, %s23
      %p471 = scmp.lt.s32.totalorder %s469, 3
      %s472 = scalar_select %p471, %s469, 3
      %p473 = scmp.lt.s32.totalorder %s470, 7
      %s474 = scalar_select %p473, %s470, 7
      %s475 = smul.addr %s472, 8
      %s476 = sadd.s32 %s474, %s475
      %s477 = smul.addr %s476, 4
      %s478 = scalar_lea.vmem %s4, %s477
      %p479 = pneg %p193
      %p480 = pneg %p190
      %s481 = sadd.s32 %s22, 2
      %s482 = smul.u32 %s23, 8
      %s483 = sadd.s32 %s482, 8
      %p484 = scmp.lt.s32.totalorder %s483, 7
      %s485 = scalar_select %p484, %s483, 7
      %p486 = scmp.lt.s32.totalorder %s481, 3
      %s487 = scalar_select %p486, %s481, 3
      %p488 = scmp.lt.s32.totalorder %s485, 7
      %s489 = scalar_select %p488, %s485, 7
      %s490 = smul.addr %s487, 8
      %s491 = sadd.s32 %s489, %s490
      %s492 = smul.addr %s491, 4
      %s493 = scalar_lea.vmem %s5, %s492
      %p494 = pneg %p231
      %p495 = pneg %p228
      %p496 = pneg %p252
      %p497 = pneg %p249
      %p498 = pneg %p278
      %p499 = pneg %p275
      %p500 = scmp.lt.s32.totalorder %s22, 1
      %s501 = scalar_select %p500, %s22, 1
      %s502 = scalar_lea.vmem %s7, %s501
      %s503 = smul.u32 %s23, 8
      %s504 = ssub.s32 %s503, 1
      %p505 = scmp.gt.s32.totalorder %s504, 0
      %s506 = scalar_select %p505, %s504, 0
      %p507 = scmp.lt.s32.totalorder %s22, 3
      %s508 = scalar_select %p507, %s22, 3
      %p509 = scmp.lt.s32.totalorder %s506, 7
      %s510 = scalar_select %p509, %s506, 7
      %s511 = smul.addr %s508, 8
      %s512 = sadd.s32 %s510, %s511
      %s513 = smul.addr %s512, 4
      %s514 = scalar_lea.vmem %s0, %s513
      %s515 = smul.u32 %s23, 8
      %s516 = ssub.s32 %s515, 1
      %p517 = scmp.gt.s32.totalorder %s516, 0
      %s518 = scalar_select %p517, %s516, 0
      %s519 = smul.u32 8, %s23
      %p520 = scmp.lt.s32.totalorder %s22, 3
      %s521 = scalar_select %p520, %s22, 3
      %p522 = scmp.lt.s32.totalorder %s519, 7
      %s523 = scalar_select %p522, %s519, 7
      %s524 = smul.addr %s521, 8
      %s525 = sadd.s32 %s523, %s524
      %s526 = smul.addr %s525, 4
      %s527 = scalar_lea.vmem %s1, %s526
      %s528 = smul.u32 8, %s23
      %s529 = smul.u32 %s23, 8
      %s530 = sadd.s32 %s529, 8
      %p531 = scmp.lt.s32.totalorder %s530, 7
      %s532 = scalar_select %p531, %s530, 7
      %p533 = scmp.lt.s32.totalorder %s22, 3
      %s534 = scalar_select %p533, %s22, 3
      %p535 = scmp.lt.s32.totalorder %s532, 7
      %s536 = scalar_select %p535, %s532, 7
      %s537 = smul.addr %s534, 8
      %s538 = sadd.s32 %s536, %s537
      %s539 = smul.addr %s538, 4
      %s540 = scalar_lea.vmem %s2, %s539
      %s541 = smul.u32 %s23, 8
      %s542 = sadd.s32 %s541, 8
      %p543 = scmp.lt.s32.totalorder %s542, 7
      %s544 = scalar_select %p543, %s542, 7
      %s545 = sadd.s32 %s22, 2
      %s546 = smul.u32 %s23, 8
      %s547 = ssub.s32 %s546, 1
      %p548 = scmp.gt.s32.totalorder %s547, 0
      %s549 = scalar_select %p548, %s547, 0
      %p550 = scmp.lt.s32.totalorder %s545, 3
      %s551 = scalar_select %p550, %s545, 3
      %p552 = scmp.lt.s32.totalorder %s549, 7
      %s553 = scalar_select %p552, %s549, 7
      %s554 = smul.addr %s551, 8
      %s555 = sadd.s32 %s553, %s554
      %s556 = smul.addr %s555, 4
      %s557 = scalar_lea.vmem %s3, %s556
      %s558 = sadd.s32 %s22, 2
      %s559 = smul.u32 %s23, 8
      %s560 = ssub.s32 %s559, 1
      %p561 = scmp.gt.s32.totalorder %s560, 0
      %s562 = scalar_select %p561, %s560, 0
      %s563 = sadd.s32 %s22, 2
      %s564 = smul.u32 8, %s23
      %p565 = scmp.lt.s32.totalorder %s563, 3
      %s566 = scalar_select %p565, %s563, 3
      %p567 = scmp.lt.s32.totalorder %s564, 7
      %s568 = scalar_select %p567, %s564, 7
      %s569 = smul.addr %s566, 8
      %s570 = sadd.s32 %s568, %s569
      %s571 = smul.addr %s570, 4
      %s572 = scalar_lea.vmem %s4, %s571
      %s573 = sadd.s32 %s22, 2
      %s574 = smul.u32 8, %s23
      %s575 = sadd.s32 %s22, 2
      %s576 = smul.u32 %s23, 8
      %s577 = sadd.s32 %s576, 8
      %p578 = scmp.lt.s32.totalorder %s577, 7
      %s579 = scalar_select %p578, %s577, 7
      %p580 = scmp.lt.s32.totalorder %s575, 3
      %s581 = scalar_select %p580, %s575, 3
      %p582 = scmp.lt.s32.totalorder %s579, 7
      %s583 = scalar_select %p582, %s579, 7
      %s584 = smul.addr %s581, 8
      %s585 = sadd.s32 %s583, %s584
      %s586 = smul.addr %s585, 4
      %s587 = scalar_lea.vmem %s5, %s586
      %s588 = sadd.s32 %s22, 2
      %s589 = smul.u32 %s23, 8
      %s590 = sadd.s32 %s589, 8
      %p591 = scmp.lt.s32.totalorder %s590, 7
      %s592 = scalar_select %p591, %s590, 7
      %p593 = scmp.lt.s32.totalorder %s22, 1
      %s594 = scalar_select %p593, %s22, 1
      %s595 = scalar_lea.vmem %s7, %s594
      %v597 = vld [vmem:[%s514] sm:$0xf]
      %v598 = vld [vmem:[%s557] sm:$0xf]
      %v599 = vunpack.c.l.bf16 %v597
      %v600 = vunpack.c.l.bf16 %v598
      %v601 = vsub.f32 %v599, %v600
      %v602 = vpack.c.bf16 %v601, %v601
      %v603 = vld [vmem:[%s527] sm:$0xf]
      %v604 = vld [vmem:[%s527 + $0x4] sm:$0xf]
      %v605 = vld [vmem:[%s527 + $0x8] sm:$0xf]
      %v606 = vld [vmem:[%s527 + $0xc] sm:$0xf]
      %v607 = vld [vmem:[%s527 + $0x10] sm:$0xf]
      %v608 = vld [vmem:[%s527 + $0x14] sm:$0xf]
      %v609 = vld [vmem:[%s527 + $0x18] sm:$0xf]
      %v610 = vld [vmem:[%s527 + $0x1c] sm:$0xf]
      %v611 = vld [vmem:[%s572] sm:$0xf]
      %v612 = vld [vmem:[%s572 + $0x4] sm:$0xf]
      %v613 = vld [vmem:[%s572 + $0x8] sm:$0xf]
      %v614 = vld [vmem:[%s572 + $0xc] sm:$0xf]
      %v615 = vld [vmem:[%s572 + $0x10] sm:$0xf]
      %v616 = vld [vmem:[%s572 + $0x14] sm:$0xf]
      %v617 = vld [vmem:[%s572 + $0x18] sm:$0xf]
      %v618 = vld [vmem:[%s572 + $0x1c] sm:$0xf]
      %v619 = vunpack.c.l.bf16 %v603
      %v620 = vunpack.c.l.bf16 %v604
      %v621 = vunpack.c.l.bf16 %v605
      %v622 = vunpack.c.l.bf16 %v606
      %v623 = vunpack.c.l.bf16 %v607
      %v624 = vunpack.c.l.bf16 %v608
      %v625 = vunpack.c.l.bf16 %v609
      %v626 = vunpack.c.l.bf16 %v610
      %v627 = vunpack.c.l.bf16 %v611
      %v628 = vunpack.c.l.bf16 %v612
      %v629 = vunpack.c.l.bf16 %v613
      %v630 = vunpack.c.l.bf16 %v614
      %v631 = vunpack.c.l.bf16 %v615
      %v632 = vunpack.c.l.bf16 %v616
      %v633 = vunpack.c.l.bf16 %v617
      %v634 = vunpack.c.l.bf16 %v618
      %v635 = vsub.f32 %v619, %v627
      %v636 = vsub.f32 %v620, %v628
      %v637 = vsub.f32 %v621, %v629
      %v638 = vsub.f32 %v622, %v630
      %v639 = vsub.f32 %v623, %v631
      %v640 = vsub.f32 %v624, %v632
      %v641 = vsub.f32 %v625, %v633
      %v642 = vsub.f32 %v626, %v634
      %v643 = vpack.c.bf16 %v635, %v635
      %v644 = vpack.c.bf16 %v636, %v636
      %v645 = vpack.c.bf16 %v637, %v637
      %v646 = vpack.c.bf16 %v638, %v638
      %v647 = vpack.c.bf16 %v639, %v639
      %v648 = vpack.c.bf16 %v640, %v640
      %v649 = vpack.c.bf16 %v641, %v641
      %v650 = vpack.c.bf16 %v642, %v642
      %v651 = vld [vmem:[%s540] sm:$0xf]
      %v652 = vld [vmem:[%s587] sm:$0xf]
      %v653 = vunpack.c.l.bf16 %v651
      %v654 = vunpack.c.l.bf16 %v652
      %v655 = vsub.f32 %v653, %v654
      %v656 = vpack.c.bf16 %v655, %v655
      %p657 = scmp.eq.s32.totalorder %s23, 0
      %s658 = scalar_select %p657, 1, 0
      %v659 = vstv %s658
      %vm660 = vcmp.eq.s32.totalorder %v659, 1
      %v661 = vsel %vm660, 0, %v602
      %v662 = vsel %vm660, 0, %v656
      %v664 = vshrl.u32 %v661, 16
      %v666 = vrot.slane %v664, 7
      %v667 = vshll.u32 %v661, 16
      %v669 = vor.u32 %v666, %v667
      %v671 = vshrl.u32 %v643, 16
      %v673 = vrot.slane %v671, 7
      %v674 = vshll.u32 %v643, 16
      %v676 = vor.u32 %v673, %v674
      %v678 = vshrl.u32 %v644, 16
      %v680 = vrot.slane %v678, 7
      %v681 = vshll.u32 %v644, 16
      %v683 = vor.u32 %v680, %v681
      %v685 = vshrl.u32 %v645, 16
      %v687 = vrot.slane %v685, 7
      %v688 = vshll.u32 %v645, 16
      %v690 = vor.u32 %v687, %v688
      %v692 = vshrl.u32 %v646, 16
      %v694 = vrot.slane %v692, 7
      %v695 = vshll.u32 %v646, 16
      %v697 = vor.u32 %v694, %v695
      %v699 = vshrl.u32 %v647, 16
      %v701 = vrot.slane %v699, 7
      %v702 = vshll.u32 %v647, 16
      %v704 = vor.u32 %v701, %v702
      %v706 = vshrl.u32 %v648, 16
      %v708 = vrot.slane %v706, 7
      %v709 = vshll.u32 %v648, 16
      %v711 = vor.u32 %v708, %v709
      %v713 = vshrl.u32 %v649, 16
      %v715 = vrot.slane %v713, 7
      %v716 = vshll.u32 %v649, 16
      %v718 = vor.u32 %v715, %v716
      %v720 = vshrl.u32 %v650, 16
      %v722 = vrot.slane %v720, 7
      %v723 = vshll.u32 %v650, 16
      %v725 = vor.u32 %v722, %v723
      %v727 = vshrl.u32 %v662, 16
      %v729 = vrot.slane %v727, 7
      %v730 = vshll.u32 %v662, 16
      %v732 = vor.u32 %v729, %v730
      %vm743 = vcmask 1040384
      %vm744 = vsmask.f32 256
      %vm745 = vmand %vm743, %vm744
      %v746 = vsel %vm745, 0, %v669
      %v747 = vsel %vm745, 0, %v676
      %v748 = vsel %vm745, 0, %v683
      %v749 = vsel %vm745, 0, %v690
      %v750 = vsel %vm745, 0, %v697
      %v751 = vsel %vm745, 0, %v704
      %v752 = vsel %vm745, 0, %v711
      %v753 = vsel %vm745, 0, %v718
      %v754 = vsel %vm745, 0, %v725
      %v755 = vsel %vm745, 0, %v732
      %vm756 = vcmask 1044480
      %vm757 = vsmask.f32 4352
      %vm758 = vmand %vm756, %vm757
      %v759 = vsel %vm758, %v746, 0
      %v760 = vsel %vm758, %v747, 0
      %v761 = vsel %vm758, %v748, 0
      %v762 = vsel %vm758, %v749, 0
      %v763 = vsel %vm758, %v750, 0
      %v764 = vsel %vm758, %v751, 0
      %v765 = vsel %vm758, %v752, 0
      %v766 = vsel %vm758, %v753, 0
      %v767 = vsel %vm758, %v754, 0
      %v768 = vsel %vm758, %v755, 0
      %v770 = vshrl.u32 %v759, 16
      %v772 = vshll.u32 %v759, 16
      %v774 = vrot.slane %v772, 1
      %v775 = vor.u32 %v770, %v774
      %v777 = vshrl.u32 %v760, 16
      %v779 = vshll.u32 %v760, 16
      %v781 = vrot.slane %v779, 1
      %v782 = vor.u32 %v777, %v781
      %v784 = vshrl.u32 %v761, 16
      %v786 = vshll.u32 %v761, 16
      %v788 = vrot.slane %v786, 1
      %v789 = vor.u32 %v784, %v788
      %v791 = vshrl.u32 %v762, 16
      %v793 = vshll.u32 %v762, 16
      %v795 = vrot.slane %v793, 1
      %v796 = vor.u32 %v791, %v795
      %v798 = vshrl.u32 %v763, 16
      %v800 = vshll.u32 %v763, 16
      %v802 = vrot.slane %v800, 1
      %v803 = vor.u32 %v798, %v802
      %v805 = vshrl.u32 %v764, 16
      %v807 = vshll.u32 %v764, 16
      %v809 = vrot.slane %v807, 1
      %v810 = vor.u32 %v805, %v809
      %v812 = vshrl.u32 %v765, 16
      %v814 = vshll.u32 %v765, 16
      %v816 = vrot.slane %v814, 1
      %v817 = vor.u32 %v812, %v816
      %v819 = vshrl.u32 %v766, 16
      %v821 = vshll.u32 %v766, 16
      %v823 = vrot.slane %v821, 1
      %v824 = vor.u32 %v819, %v823
      %v833 = vrot.slane %v759, 1
      %v834 = vrot.slane %v760, 1
      %v835 = vrot.slane %v761, 1
      %v836 = vrot.slane %v762, 1
      %v837 = vrot.slane %v763, 1
      %v838 = vrot.slane %v764, 1
      %v839 = vrot.slane %v765, 1
      %v840 = vrot.slane %v766, 1
      %v841 = vunpack.c.l.b16 %v759
      %v842 = vunpack.c.l.b16 %v775
      %v843 = vunpack.c.l.b16 %v833
      %v844 = vunpack.c.l.b16 %v760
      %v845 = vunpack.c.l.b16 %v782
      %v846 = vunpack.c.l.b16 %v834
      %v847 = vunpack.c.l.b16 %v761
      %v848 = vunpack.c.l.b16 %v789
      %v849 = vunpack.c.l.b16 %v835
      %v850 = vunpack.c.l.b16 %v762
      %v851 = vunpack.c.l.b16 %v796
      %v852 = vunpack.c.l.b16 %v836
      %v853 = vunpack.c.l.b16 %v763
      %v854 = vunpack.c.l.b16 %v803
      %v855 = vunpack.c.l.b16 %v837
      %v856 = vunpack.c.l.b16 %v764
      %v857 = vunpack.c.l.b16 %v810
      %v858 = vunpack.c.l.b16 %v838
      %v859 = vunpack.c.l.b16 %v765
      %v860 = vunpack.c.l.b16 %v817
      %v861 = vunpack.c.l.b16 %v839
      %v862 = vunpack.c.l.b16 %v766
      %v863 = vunpack.c.l.b16 %v824
      %v864 = vunpack.c.l.b16 %v840
      %v865 = vld [vmem:[%s6] sm:$0xf]
      %v866 = vld [vmem:[%s6 + $0x4] sm:$0xf]
      %v867 = vld [vmem:[%s6 + $0x8] sm:$0xf]
      %v868 = vld [vmem:[%s6 + $0xc] sm:$0xf]
      %v869 = vld [vmem:[%s6 + $0x10] sm:$0xf]
      %v870 = vld [vmem:[%s6 + $0x14] sm:$0xf]
      %v871 = vld [vmem:[%s6 + $0x18] sm:$0xf]
      %v872 = vld [vmem:[%s6 + $0x1c] sm:$0xf]
      %v873 = vld [vmem:[%s6 + $0x20] sm:$0xf]
      %v874 = vld [vmem:[%s6 + $0x24] sm:$0xf]
      %v875 = vld [vmem:[%s6 + $0x28] sm:$0xf]
      %v876 = vld [vmem:[%s6 + $0x2c] sm:$0xf]
      %v877 = vld [vmem:[%s6 + $0x30] sm:$0xf]
      %v878 = vld [vmem:[%s6 + $0x34] sm:$0xf]
      %v879 = vld [vmem:[%s6 + $0x38] sm:$0xf]
      %v880 = vld [vmem:[%s6 + $0x3c] sm:$0xf]
      %v881 = vld [vmem:[%s6 + $0x40] sm:$0xf]
      %v882 = vld [vmem:[%s6 + $0x44] sm:$0xf]
      %v883 = vld [vmem:[%s6 + $0x48] sm:$0xf]
      %v884 = vld [vmem:[%s6 + $0x4c] sm:$0xf]
      %v885 = vld [vmem:[%s6 + $0x50] sm:$0xf]
      %v886 = vld [vmem:[%s6 + $0x54] sm:$0xf]
      %v887 = vld [vmem:[%s6 + $0x58] sm:$0xf]
      %v888 = vld [vmem:[%s6 + $0x5c] sm:$0xf]
      %v889 = vld [vmem:[%s6 + $0x60] sm:$0xf]
      %v890 = vld [vmem:[%s6 + $0x64] sm:$0xf]
      %v891 = vld [vmem:[%s6 + $0x68] sm:$0xf]
      %v892 = vld [vmem:[%s6 + $0x6c] sm:$0xf]
      %v893 = vld [vmem:[%s6 + $0x70] sm:$0xf]
      %v894 = vld [vmem:[%s6 + $0x74] sm:$0xf]
      %v895 = vld [vmem:[%s6 + $0x78] sm:$0xf]
      %v896 = vld [vmem:[%s6 + $0x7c] sm:$0xf]
      %v897 = vld [vmem:[%s6 + $0x80] sm:$0xf]
      %v898 = vld [vmem:[%s6 + $0x84] sm:$0xf]
      %v899 = vld [vmem:[%s6 + $0x88] sm:$0xf]
      %v900 = vld [vmem:[%s6 + $0x8c] sm:$0xf]
      %v901 = vld [vmem:[%s6 + $0x90] sm:$0xf]
      %v902 = vld [vmem:[%s6 + $0x94] sm:$0xf]
      %v903 = vld [vmem:[%s6 + $0x98] sm:$0xf]
      %v904 = vld [vmem:[%s6 + $0x9c] sm:$0xf]
      %v905 = vld [vmem:[%s6 + $0xa0] sm:$0xf]
      %v906 = vld [vmem:[%s6 + $0xa4] sm:$0xf]
      %v907 = vld [vmem:[%s6 + $0xa8] sm:$0xf]
      %v908 = vld [vmem:[%s6 + $0xac] sm:$0xf]
      %v909 = vld [vmem:[%s6 + $0xb0] sm:$0xf]
      %v910 = vld [vmem:[%s6 + $0xb4] sm:$0xf]
      %v911 = vld [vmem:[%s6 + $0xb8] sm:$0xf]
      %v912 = vld [vmem:[%s6 + $0xbc] sm:$0xf]
      %v914 = vshrl.u32 %v767, 16
      %v916 = vshll.u32 %v767, 16
      %v918 = vrot.slane %v916, 1
      %v919 = vor.u32 %v914, %v918
      %v921 = vrot.slane %v767, 1
      %v922 = vunpack.c.l.b16 %v767
      %v923 = vunpack.c.l.b16 %v919
      %v924 = vunpack.c.l.b16 %v921
      %s925 = scalar_lea.vmem %s6, 192
      %v926 = vld [vmem:[%s925] sm:$0xf]
      %v927 = vld [vmem:[%s925 + $0x4] sm:$0xf]
      %v928 = vld [vmem:[%s925 + $0x8] sm:$0xf]
      %v929 = vld [vmem:[%s925 + $0xc] sm:$0xf]
      %v930 = vld [vmem:[%s925 + $0x10] sm:$0xf]
      %v931 = vld [vmem:[%s925 + $0x14] sm:$0xf]
      %v932 = vld [vmem:[%s925 + $0x18] sm:$0xf]
      %v933 = vld [vmem:[%s925 + $0x1c] sm:$0xf]
      %v934 = vld [vmem:[%s925 + $0x20] sm:$0xf]
      %v935 = vld [vmem:[%s925 + $0x24] sm:$0xf]
      %v936 = vld [vmem:[%s925 + $0x28] sm:$0xf]
      %v937 = vld [vmem:[%s925 + $0x2c] sm:$0xf]
      %v938 = vld [vmem:[%s925 + $0x30] sm:$0xf]
      %v939 = vld [vmem:[%s925 + $0x34] sm:$0xf]
      %v940 = vld [vmem:[%s925 + $0x38] sm:$0xf]
      %v941 = vld [vmem:[%s925 + $0x3c] sm:$0xf]
      %v942 = vld [vmem:[%s925 + $0x40] sm:$0xf]
      %v943 = vld [vmem:[%s925 + $0x44] sm:$0xf]
      %v944 = vld [vmem:[%s925 + $0x48] sm:$0xf]
      %v945 = vld [vmem:[%s925 + $0x4c] sm:$0xf]
      %v946 = vld [vmem:[%s925 + $0x50] sm:$0xf]
      %v947 = vld [vmem:[%s925 + $0x54] sm:$0xf]
      %v948 = vld [vmem:[%s925 + $0x58] sm:$0xf]
      %v949 = vld [vmem:[%s925 + $0x5c] sm:$0xf]
      %v950 = vld [vmem:[%s925 + $0x60] sm:$0xf]
      %v951 = vld [vmem:[%s925 + $0x64] sm:$0xf]
      %v952 = vld [vmem:[%s925 + $0x68] sm:$0xf]
      %v953 = vld [vmem:[%s925 + $0x6c] sm:$0xf]
      %v954 = vld [vmem:[%s925 + $0x70] sm:$0xf]
      %v955 = vld [vmem:[%s925 + $0x74] sm:$0xf]
      %v956 = vld [vmem:[%s925 + $0x78] sm:$0xf]
      %v957 = vld [vmem:[%s925 + $0x7c] sm:$0xf]
      %v958 = vld [vmem:[%s925 + $0x80] sm:$0xf]
      %v959 = vld [vmem:[%s925 + $0x84] sm:$0xf]
      %v960 = vld [vmem:[%s925 + $0x88] sm:$0xf]
      %v961 = vld [vmem:[%s925 + $0x8c] sm:$0xf]
      %v962 = vld [vmem:[%s925 + $0x90] sm:$0xf]
      %v963 = vld [vmem:[%s925 + $0x94] sm:$0xf]
      %v964 = vld [vmem:[%s925 + $0x98] sm:$0xf]
      %v965 = vld [vmem:[%s925 + $0x9c] sm:$0xf]
      %v966 = vld [vmem:[%s925 + $0xa0] sm:$0xf]
      %v967 = vld [vmem:[%s925 + $0xa4] sm:$0xf]
      %v968 = vld [vmem:[%s925 + $0xa8] sm:$0xf]
      %v969 = vld [vmem:[%s925 + $0xac] sm:$0xf]
      %v970 = vld [vmem:[%s925 + $0xb0] sm:$0xf]
      %v971 = vld [vmem:[%s925 + $0xb4] sm:$0xf]
      %v972 = vld [vmem:[%s925 + $0xb8] sm:$0xf]
      %v973 = vld [vmem:[%s925 + $0xbc] sm:$0xf]
      %v974 = vpack.c.b16 %v847, %v844
      %v975 = vpack.c.b16 %v848, %v845
      %v976 = vpack.c.b16 %v849, %v846
      %v977 = vpack.c.b16 %v853, %v850
      %v978 = vpack.c.b16 %v854, %v851
      %v979 = vpack.c.b16 %v855, %v852
      %v980 = vpack.c.b16 %v859, %v856
      %v981 = vpack.c.b16 %v860, %v857
      %v982 = vpack.c.b16 %v861, %v858
      %v983 = vpack.c.b16 %v922, %v862
      %v984 = vpack.c.b16 %v923, %v863
      %v985 = vpack.c.b16 %v924, %v864
      %v1046 = vunpack.c.l.b16 %v926
      %v1047 = vunpack.c.l.b16 %v927
      %v1048 = vunpack.c.l.b16 %v928
      %v1049 = vunpack.c.l.b16 %v929
      %v1050 = vunpack.c.l.b16 %v930
      %v1051 = vunpack.c.l.b16 %v931
      %v1052 = vunpack.c.l.b16 %v932
      %v1053 = vunpack.c.l.b16 %v933
      %v1054 = vunpack.c.l.b16 %v934
      %v1055 = vunpack.c.l.b16 %v935
      %v1056 = vunpack.c.l.b16 %v936
      %v1057 = vunpack.c.l.b16 %v937
      %v1058 = vunpack.c.l.b16 %v938
      %v1059 = vunpack.c.l.b16 %v939
      %v1060 = vunpack.c.l.b16 %v940
      %v1061 = vunpack.c.l.b16 %v941
      %v1062 = vunpack.c.l.b16 %v942
      %v1063 = vunpack.c.l.b16 %v943
      %v1064 = vunpack.c.l.b16 %v944
      %v1065 = vunpack.c.l.b16 %v945
      %v1066 = vunpack.c.l.b16 %v946
      %v1067 = vunpack.c.l.b16 %v947
      %v1068 = vunpack.c.l.b16 %v948
      %v1069 = vunpack.c.l.b16 %v949
      %v1070 = vunpack.c.l.b16 %v950
      %v1071 = vunpack.c.l.b16 %v951
      %v1072 = vunpack.c.l.b16 %v952
      %v1073 = vunpack.c.l.b16 %v953
      %v1074 = vunpack.c.l.b16 %v954
      %v1075 = vunpack.c.l.b16 %v955
      %v1076 = vunpack.c.l.b16 %v956
      %v1077 = vunpack.c.l.b16 %v957
      %v1078 = vunpack.c.l.b16 %v958
      %v1079 = vunpack.c.l.b16 %v959
      %v1080 = vunpack.c.l.b16 %v960
      %v1081 = vunpack.c.l.b16 %v961
      %v1082 = vunpack.c.l.b16 %v962
      %v1083 = vunpack.c.l.b16 %v963
      %v1084 = vunpack.c.l.b16 %v964
      %v1085 = vunpack.c.l.b16 %v965
      %v1086 = vunpack.c.l.b16 %v966
      %v1087 = vunpack.c.l.b16 %v967
      %v1088 = vunpack.c.l.b16 %v968
      %v1089 = vunpack.c.l.b16 %v969
      %v1090 = vunpack.c.l.b16 %v970
      %v1091 = vunpack.c.l.b16 %v971
      %v1092 = vunpack.c.l.b16 %v972
      %v1093 = vunpack.c.l.b16 %v973
      %v1094 = vpack.c.b16 %v1047, %v1046
      %v1095 = vpack.c.b16 %v1049, %v1048
      %v1096 = vpack.c.b16 %v1051, %v1050
      %v1097 = vpack.c.b16 %v1053, %v1052
      %v1098 = vpack.c.b16 %v1055, %v1054
      %v1099 = vpack.c.b16 %v1057, %v1056
      %v1100 = vpack.c.b16 %v1059, %v1058
      %v1101 = vpack.c.b16 %v1061, %v1060
      %v1102 = vpack.c.b16 %v1063, %v1062
      %v1103 = vpack.c.b16 %v1065, %v1064
      %v1104 = vpack.c.b16 %v1067, %v1066
      %v1105 = vpack.c.b16 %v1069, %v1068
      %v1106 = vpack.c.b16 %v1071, %v1070
      %v1107 = vpack.c.b16 %v1073, %v1072
      %v1108 = vpack.c.b16 %v1075, %v1074
      %v1109 = vpack.c.b16 %v1077, %v1076
      %v1110 = vpack.c.b16 %v1079, %v1078
      %v1111 = vpack.c.b16 %v1081, %v1080
      %v1112 = vpack.c.b16 %v1083, %v1082
      %v1113 = vpack.c.b16 %v1085, %v1084
      %v1114 = vpack.c.b16 %v1087, %v1086
      %v1115 = vpack.c.b16 %v1089, %v1088
      %v1116 = vpack.c.b16 %v1091, %v1090
      %v1117 = vpack.c.b16 %v1093, %v1092
      %1142 = vmatprep.subr.bf16.mxu0 0
      %1143 = vmatpush1.bf16.msra.mxu0 %v1101
      %1144 = vmatprep.subr.bf16.mxu0 0
      %1145 = vmatpush1.bf16.msra.mxu0 %v1100
      %1146 = vmatprep.subr.bf16.mxu0 0
      %1147 = vmatpush1.bf16.msra.mxu0 %v1099
      %1148 = vmatprep.subr.bf16.mxu0 0
      %1149 = vmatpush1.bf16.msra.mxu0 %v1098
      %1150 = vmatprep.subr.bf16.mxu0 0
      %1151 = vmatpush1.bf16.msra.mxu0 %v1097
      %1152 = vmatprep.subr.bf16.mxu0 0
      %1153 = vmatpush1.bf16.msra.mxu0 %v1096
      %1154 = vmatprep.subr.bf16.mxu0 0
      %1155 = vmatpush1.bf16.msra.mxu0 %v1095
      %1156 = vmatprep.subr.bf16.mxu0 0
      %1157 = vmatpush1.bf16.msra.mxu0 %v1094
      %1158 = vmatprep.subr.bf16.mxu0 0
      %1159 = vmatpush2.bf16.msra.mxu0 %v1109
      %1160 = vmatprep.subr.bf16.mxu0 0
      %1161 = vmatpush2.bf16.msra.mxu0 %v1108
      %1162 = vmatprep.subr.bf16.mxu0 0
      %1163 = vmatpush2.bf16.msra.mxu0 %v1107
      %1164 = vmatprep.subr.bf16.mxu0 0
      %1165 = vmatpush2.bf16.msra.mxu0 %v1106
      %1166 = vmatprep.subr.bf16.mxu0 0
      %1167 = vmatpush2.bf16.msra.mxu0 %v1105
      %1168 = vmatprep.subr.bf16.mxu0 0
      %1169 = vmatpush2.bf16.msra.mxu0 %v1104
      %1170 = vmatprep.subr.bf16.mxu0 0
      %1171 = vmatpush2.bf16.msra.mxu0 %v1103
      %1172 = vmatprep.subr.bf16.mxu0 0
      %1173 = vmatpush2.bf16.msra.mxu0 %v1102
      %1174 = vmatprep.mubr.bf16.mxu0 %v975
      %1175 = vmatmul.mubr.bf16.gmra.mxu0 %v974
      %v1176 = vpop.f32.mrf.mxu0
      %v1177 = vadd.f32 0.0, %v1176
      %v1178 = vpop.f32.mrf.mxu0
      %v1179 = vpop.f32.mrf.mxu0
      %v1180 = vadd.f32 0.0, %v1179
      %v1181 = vpop.f32.mrf.mxu0
      %1182 = vmatprep.mubr.bf16.mxu0 %v978
      %1183 = vmatmul.mubr.bf16.gmra.mxu0 %v977
      %v1184 = vpop.f32.mrf.mxu0
      %v1185 = vadd.f32 0.0, %v1184
      %v1186 = vpop.f32.mrf.mxu0
      %v1187 = vpop.f32.mrf.mxu0
      %v1188 = vadd.f32 0.0, %v1187
      %v1189 = vpop.f32.mrf.mxu0
      %1190 = vmatprep.mubr.bf16.mxu0 %v981
      %1191 = vmatmul.mubr.bf16.gmra.mxu0 %v980
      %v1192 = vpop.f32.mrf.mxu0
      %v1193 = vadd.f32 0.0, %v1192
      %v1194 = vpop.f32.mrf.mxu0
      %v1195 = vpop.f32.mrf.mxu0
      %v1196 = vadd.f32 0.0, %v1195
      %v1197 = vpop.f32.mrf.mxu0
      %1198 = vmatprep.mubr.bf16.mxu0 %v984
      %1199 = vmatmul.mubr.bf16.gmra.mxu0 %v983
      %v1200 = vpop.f32.mrf.mxu0
      %v1201 = vadd.f32 0.0, %v1200
      %v1202 = vpop.f32.mrf.mxu0
      %v1203 = vpop.f32.mrf.mxu0
      %v1204 = vadd.f32 0.0, %v1203
      %v1205 = vpop.f32.mrf.mxu0
      %1206 = vdwg.mxu0
      %1207 = vmatprep.subr.bf16.mxu0 0
      %1208 = vmatpush1.bf16.msra.mxu0 %v1117
      %1209 = vmatprep.subr.bf16.mxu0 0
      %1210 = vmatpush1.bf16.msra.mxu0 %v1116
      %1211 = vmatprep.subr.bf16.mxu0 0
      %1212 = vmatpush1.bf16.msra.mxu0 %v1115
      %1213 = vmatprep.subr.bf16.mxu0 0
      %1214 = vmatpush1.bf16.msra.mxu0 %v1114
      %1215 = vmatprep.subr.bf16.mxu0 0
      %1216 = vmatpush1.bf16.msra.mxu0 %v1113
      %1217 = vmatprep.subr.bf16.mxu0 0
      %1218 = vmatpush1.bf16.msra.mxu0 %v1112
      %1219 = vmatprep.subr.bf16.mxu0 0
      %1220 = vmatpush1.bf16.msra.mxu0 %v1111
      %1221 = vmatprep.subr.bf16.mxu0 0
      %1222 = vmatpush1.bf16.msra.mxu0 %v1110
      %1223 = vmatprep.subr.bf16.mxu0 0
      %1224 = vmatpush2.bf16.msra.mxu0 0
      %1225 = vmatprep.subr.bf16.mxu0 0
      %1226 = vmatpush2.bf16.msra.mxu0 0
      %1227 = vmatprep.subr.bf16.mxu0 0
      %1228 = vmatpush2.bf16.msra.mxu0 0
      %1229 = vmatprep.subr.bf16.mxu0 0
      %1230 = vmatpush2.bf16.msra.mxu0 0
      %1231 = vmatprep.subr.bf16.mxu0 0
      %1232 = vmatpush2.bf16.msra.mxu0 0
      %1233 = vmatprep.subr.bf16.mxu0 0
      %1234 = vmatpush2.bf16.msra.mxu0 0
      %1235 = vmatprep.subr.bf16.mxu0 0
      %1236 = vmatpush2.bf16.msra.mxu0 0
      %1237 = vmatprep.subr.bf16.mxu0 0
      %1238 = vmatpush2.bf16.msra.mxu0 0
      %1239 = vmatprep.mubr.bf16.mxu0 0
      %1240 = vmatmul.mubr.bf16.gmra.mxu0 %v976
      %v1241 = vpop.f32.mrf.mxu0
      %v1242 = vadd.f32 %v1177, %v1241
      %v1243 = vpop.f32.mrf.mxu0
      %v1244 = vpop.f32.mrf.mxu0
      %v1245 = vadd.f32 %v1180, %v1244
      %v1246 = vpop.f32.mrf.mxu0
      %1247 = vmatprep.mubr.bf16.mxu0 0
      %1248 = vmatmul.mubr.bf16.gmra.mxu0 %v979
      %v1249 = vpop.f32.mrf.mxu0
      %v1250 = vadd.f32 %v1185, %v1249
      %v1251 = vpop.f32.mrf.mxu0
      %v1252 = vpop.f32.mrf.mxu0
      %v1253 = vadd.f32 %v1188, %v1252
      %v1254 = vpop.f32.mrf.mxu0
      %1255 = vmatprep.mubr.bf16.mxu0 0
      %1256 = vmatmul.mubr.bf16.gmra.mxu0 %v982
      %v1257 = vpop.f32.mrf.mxu0
      %v1258 = vadd.f32 %v1193, %v1257
      %v1259 = vpop.f32.mrf.mxu0
      %v1260 = vpop.f32.mrf.mxu0
      %v1261 = vadd.f32 %v1196, %v1260
      %v1262 = vpop.f32.mrf.mxu0
      %1263 = vmatprep.mubr.bf16.mxu0 0
      %1264 = vmatmul.mubr.bf16.gmra.mxu0 %v985
      %v1265 = vpop.f32.mrf.mxu0
      %v1266 = vadd.f32 %v1201, %v1265
      %v1267 = vpop.f32.mrf.mxu0
      %v1268 = vpop.f32.mrf.mxu0
      %v1269 = vadd.f32 %v1204, %v1268
      %v1270 = vpop.f32.mrf.mxu0
      %1271 = vdwg.mxu0
      %v1272 = vpack.c.b16 %v844, %v841
      %v1273 = vpack.c.b16 %v845, %v842
      %v1274 = vpack.c.b16 %v846, %v843
      %v1275 = vpack.c.b16 %v850, %v847
      %v1276 = vpack.c.b16 %v851, %v848
      %v1277 = vpack.c.b16 %v852, %v849
      %v1278 = vpack.c.b16 %v856, %v853
      %v1279 = vpack.c.b16 %v857, %v854
      %v1280 = vpack.c.b16 %v858, %v855
      %v1281 = vpack.c.b16 %v862, %v859
      %v1282 = vpack.c.b16 %v863, %v860
      %v1283 = vpack.c.b16 %v864, %v861
      %v1344 = vunpack.c.l.b16 %v865
      %v1345 = vunpack.c.l.b16 %v866
      %v1346 = vunpack.c.l.b16 %v867
      %v1347 = vunpack.c.l.b16 %v868
      %v1348 = vunpack.c.l.b16 %v869
      %v1349 = vunpack.c.l.b16 %v870
      %v1350 = vunpack.c.l.b16 %v871
      %v1351 = vunpack.c.l.b16 %v872
      %v1352 = vunpack.c.l.b16 %v873
      %v1353 = vunpack.c.l.b16 %v874
      %v1354 = vunpack.c.l.b16 %v875
      %v1355 = vunpack.c.l.b16 %v876
      %v1356 = vunpack.c.l.b16 %v877
      %v1357 = vunpack.c.l.b16 %v878
      %v1358 = vunpack.c.l.b16 %v879
      %v1359 = vunpack.c.l.b16 %v880
      %v1360 = vunpack.c.l.b16 %v881
      %v1361 = vunpack.c.l.b16 %v882
      %v1362 = vunpack.c.l.b16 %v883
      %v1363 = vunpack.c.l.b16 %v884
      %v1364 = vunpack.c.l.b16 %v885
      %v1365 = vunpack.c.l.b16 %v886
      %v1366 = vunpack.c.l.b16 %v887
      %v1367 = vunpack.c.l.b16 %v888
      %v1368 = vunpack.c.l.b16 %v889
      %v1369 = vunpack.c.l.b16 %v890
      %v1370 = vunpack.c.l.b16 %v891
      %v1371 = vunpack.c.l.b16 %v892
      %v1372 = vunpack.c.l.b16 %v893
      %v1373 = vunpack.c.l.b16 %v894
      %v1374 = vunpack.c.l.b16 %v895
      %v1375 = vunpack.c.l.b16 %v896
      %v1376 = vunpack.c.l.b16 %v897
      %v1377 = vunpack.c.l.b16 %v898
      %v1378 = vunpack.c.l.b16 %v899
      %v1379 = vunpack.c.l.b16 %v900
      %v1380 = vunpack.c.l.b16 %v901
      %v1381 = vunpack.c.l.b16 %v902
      %v1382 = vunpack.c.l.b16 %v903
      %v1383 = vunpack.c.l.b16 %v904
      %v1384 = vunpack.c.l.b16 %v905
      %v1385 = vunpack.c.l.b16 %v906
      %v1386 = vunpack.c.l.b16 %v907
      %v1387 = vunpack.c.l.b16 %v908
      %v1388 = vunpack.c.l.b16 %v909
      %v1389 = vunpack.c.l.b16 %v910
      %v1390 = vunpack.c.l.b16 %v911
      %v1391 = vunpack.c.l.b16 %v912
      %v1392 = vpack.c.b16 %v1345, %v1344
      %v1393 = vpack.c.b16 %v1347, %v1346
      %v1394 = vpack.c.b16 %v1349, %v1348
      %v1395 = vpack.c.b16 %v1351, %v1350
      %v1396 = vpack.c.b16 %v1353, %v1352
      %v1397 = vpack.c.b16 %v1355, %v1354
      %v1398 = vpack.c.b16 %v1357, %v1356
      %v1399 = vpack.c.b16 %v1359, %v1358
      %v1400 = vpack.c.b16 %v1361, %v1360
      %v1401 = vpack.c.b16 %v1363, %v1362
      %v1402 = vpack.c.b16 %v1365, %v1364
      %v1403 = vpack.c.b16 %v1367, %v1366
      %v1404 = vpack.c.b16 %v1369, %v1368
      %v1405 = vpack.c.b16 %v1371, %v1370
      %v1406 = vpack.c.b16 %v1373, %v1372
      %v1407 = vpack.c.b16 %v1375, %v1374
      %v1408 = vpack.c.b16 %v1377, %v1376
      %v1409 = vpack.c.b16 %v1379, %v1378
      %v1410 = vpack.c.b16 %v1381, %v1380
      %v1411 = vpack.c.b16 %v1383, %v1382
      %v1412 = vpack.c.b16 %v1385, %v1384
      %v1413 = vpack.c.b16 %v1387, %v1386
      %v1414 = vpack.c.b16 %v1389, %v1388
      %v1415 = vpack.c.b16 %v1391, %v1390
      %1440 = vmatprep.subr.bf16.mxu0 0
      %1441 = vmatpush1.bf16.msra.mxu0 %v1399
      %1442 = vmatprep.subr.bf16.mxu0 0
      %1443 = vmatpush1.bf16.msra.mxu0 %v1398
      %1444 = vmatprep.subr.bf16.mxu0 0
      %1445 = vmatpush1.bf16.msra.mxu0 %v1397
      %1446 = vmatprep.subr.bf16.mxu0 0
      %1447 = vmatpush1.bf16.msra.mxu0 %v1396
      %1448 = vmatprep.subr.bf16.mxu0 0
      %1449 = vmatpush1.bf16.msra.mxu0 %v1395
      %1450 = vmatprep.subr.bf16.mxu0 0
      %1451 = vmatpush1.bf16.msra.mxu0 %v1394
      %1452 = vmatprep.subr.bf16.mxu0 0
      %1453 = vmatpush1.bf16.msra.mxu0 %v1393
      %1454 = vmatprep.subr.bf16.mxu0 0
      %1455 = vmatpush1.bf16.msra.mxu0 %v1392
      %1456 = vmatprep.subr.bf16.mxu0 0
      %1457 = vmatpush2.bf16.msra.mxu0 %v1407
      %1458 = vmatprep.subr.bf16.mxu0 0
      %1459 = vmatpush2.bf16.msra.mxu0 %v1406
      %1460 = vmatprep.subr.bf16.mxu0 0
      %1461 = vmatpush2.bf16.msra.mxu0 %v1405
      %1462 = vmatprep.subr.bf16.mxu0 0
      %1463 = vmatpush2.bf16.msra.mxu0 %v1404
      %1464 = vmatprep.subr.bf16.mxu0 0
      %1465 = vmatpush2.bf16.msra.mxu0 %v1403
      %1466 = vmatprep.subr.bf16.mxu0 0
      %1467 = vmatpush2.bf16.msra.mxu0 %v1402
      %1468 = vmatprep.subr.bf16.mxu0 0
      %1469 = vmatpush2.bf16.msra.mxu0 %v1401
      %1470 = vmatprep.subr.bf16.mxu0 0
      %1471 = vmatpush2.bf16.msra.mxu0 %v1400
      %1472 = vmatprep.mubr.bf16.mxu0 %v1273
      %1473 = vmatmul.mubr.bf16.gmra.mxu0 %v1272
      %v1474 = vpop.f32.mrf.mxu0
      %v1475 = vadd.f32 %v1242, %v1474
      %v1476 = vpop.f32.mrf.mxu0
      %v1477 = vpop.f32.mrf.mxu0
      %v1478 = vadd.f32 %v1245, %v1477
      %v1479 = vpop.f32.mrf.mxu0
      %1480 = vmatprep.mubr.bf16.mxu0 %v1276
      %1481 = vmatmul.mubr.bf16.gmra.mxu0 %v1275
      %v1482 = vpop.f32.mrf.mxu0
      %v1483 = vadd.f32 %v1250, %v1482
      %v1484 = vpop.f32.mrf.mxu0
      %v1485 = vpop.f32.mrf.mxu0
      %v1486 = vadd.f32 %v1253, %v1485
      %v1487 = vpop.f32.mrf.mxu0
      %1488 = vmatprep.mubr.bf16.mxu0 %v1279
      %1489 = vmatmul.mubr.bf16.gmra.mxu0 %v1278
      %v1490 = vpop.f32.mrf.mxu0
      %v1491 = vadd.f32 %v1258, %v1490
      %v1492 = vpop.f32.mrf.mxu0
      %v1493 = vpop.f32.mrf.mxu0
      %v1494 = vadd.f32 %v1261, %v1493
      %v1495 = vpop.f32.mrf.mxu0
      %1496 = vmatprep.mubr.bf16.mxu0 %v1282
      %1497 = vmatmul.mubr.bf16.gmra.mxu0 %v1281
      %v1498 = vpop.f32.mrf.mxu0
      %v1499 = vadd.f32 %v1266, %v1498
      %v1500 = vpop.f32.mrf.mxu0
      %v1501 = vpop.f32.mrf.mxu0
      %v1502 = vadd.f32 %v1269, %v1501
      %v1503 = vpop.f32.mrf.mxu0
      %1504 = vdwg.mxu0
      %1505 = vmatprep.subr.bf16.mxu0 0
      %1506 = vmatpush1.bf16.msra.mxu0 %v1415
      %1507 = vmatprep.subr.bf16.mxu0 0
      %1508 = vmatpush1.bf16.msra.mxu0 %v1414
      %1509 = vmatprep.subr.bf16.mxu0 0
      %1510 = vmatpush1.bf16.msra.mxu0 %v1413
      %1511 = vmatprep.subr.bf16.mxu0 0
      %1512 = vmatpush1.bf16.msra.mxu0 %v1412
      %1513 = vmatprep.subr.bf16.mxu0 0
      %1514 = vmatpush1.bf16.msra.mxu0 %v1411
      %1515 = vmatprep.subr.bf16.mxu0 0
      %1516 = vmatpush1.bf16.msra.mxu0 %v1410
      %1517 = vmatprep.subr.bf16.mxu0 0
      %1518 = vmatpush1.bf16.msra.mxu0 %v1409
      %1519 = vmatprep.subr.bf16.mxu0 0
      %1520 = vmatpush1.bf16.msra.mxu0 %v1408
      %1521 = vmatprep.subr.bf16.mxu0 0
      %1522 = vmatpush2.bf16.msra.mxu0 0
      %1523 = vmatprep.subr.bf16.mxu0 0
      %1524 = vmatpush2.bf16.msra.mxu0 0
      %1525 = vmatprep.subr.bf16.mxu0 0
      %1526 = vmatpush2.bf16.msra.mxu0 0
      %1527 = vmatprep.subr.bf16.mxu0 0
      %1528 = vmatpush2.bf16.msra.mxu0 0
      %1529 = vmatprep.subr.bf16.mxu0 0
      %1530 = vmatpush2.bf16.msra.mxu0 0
      %1531 = vmatprep.subr.bf16.mxu0 0
      %1532 = vmatpush2.bf16.msra.mxu0 0
      %1533 = vmatprep.subr.bf16.mxu0 0
      %1534 = vmatpush2.bf16.msra.mxu0 0
      %1535 = vmatprep.subr.bf16.mxu0 0
      %1536 = vmatpush2.bf16.msra.mxu0 0
      %1537 = vmatprep.mubr.bf16.mxu0 0
      %1538 = vmatmul.mubr.bf16.gmra.mxu0 %v1274
      %v1539 = vpop.f32.mrf.mxu0
      %v1540 = vadd.f32 %v1475, %v1539
      %v1541 = vpop.f32.mrf.mxu0
      %v1542 = vpop.f32.mrf.mxu0
      %v1543 = vadd.f32 %v1478, %v1542
      %v1544 = vpop.f32.mrf.mxu0
      %1545 = vmatprep.mubr.bf16.mxu0 0
      %1546 = vmatmul.mubr.bf16.gmra.mxu0 %v1277
      %v1547 = vpop.f32.mrf.mxu0
      %v1548 = vadd.f32 %v1483, %v1547
      %v1549 = vpop.f32.mrf.mxu0
      %v1550 = vpop.f32.mrf.mxu0
      %v1551 = vadd.f32 %v1486, %v1550
      %v1552 = vpop.f32.mrf.mxu0
      %1553 = vmatprep.mubr.bf16.mxu0 0
      %1554 = vmatmul.mubr.bf16.gmra.mxu0 %v1280
      %v1555 = vpop.f32.mrf.mxu0
      %v1556 = vadd.f32 %v1491, %v1555
      %v1557 = vpop.f32.mrf.mxu0
      %v1558 = vpop.f32.mrf.mxu0
      %v1559 = vadd.f32 %v1494, %v1558
      %v1560 = vpop.f32.mrf.mxu0
      %1561 = vmatprep.mubr.bf16.mxu0 0
      %1562 = vmatmul.mubr.bf16.gmra.mxu0 %v1283
      %v1563 = vpop.f32.mrf.mxu0
      %v1564 = vadd.f32 %v1499, %v1563
      %v1565 = vpop.f32.mrf.mxu0
      %v1566 = vpop.f32.mrf.mxu0
      %v1567 = vadd.f32 %v1502, %v1566
      %v1568 = vpop.f32.mrf.mxu0
      %1569 = vdwg.mxu0
      %v1571 = vshrl.u32 %v768, 16
      %v1573 = vshll.u32 %v768, 16
      %v1575 = vrot.slane %v1573, 1
      %v1576 = vor.u32 %v1571, %v1575
      %v1578 = vrot.slane %v768, 1
      %v1579 = vunpack.c.l.b16 %v768
      %v1580 = vunpack.c.l.b16 %v1576
      %v1581 = vunpack.c.l.b16 %v1578
      %s1582 = scalar_lea.vmem %s6, 384
      %v1583 = vld [vmem:[%s1582] sm:$0xf]
      %v1584 = vld [vmem:[%s1582 + $0x4] sm:$0xf]
      %v1585 = vld [vmem:[%s1582 + $0x8] sm:$0xf]
      %v1586 = vld [vmem:[%s1582 + $0xc] sm:$0xf]
      %v1587 = vld [vmem:[%s1582 + $0x10] sm:$0xf]
      %v1588 = vld [vmem:[%s1582 + $0x14] sm:$0xf]
      %v1589 = vld [vmem:[%s1582 + $0x18] sm:$0xf]
      %v1590 = vld [vmem:[%s1582 + $0x1c] sm:$0xf]
      %v1591 = vld [vmem:[%s1582 + $0x20] sm:$0xf]
      %v1592 = vld [vmem:[%s1582 + $0x24] sm:$0xf]
      %v1593 = vld [vmem:[%s1582 + $0x28] sm:$0xf]
      %v1594 = vld [vmem:[%s1582 + $0x2c] sm:$0xf]
      %v1595 = vld [vmem:[%s1582 + $0x30] sm:$0xf]
      %v1596 = vld [vmem:[%s1582 + $0x34] sm:$0xf]
      %v1597 = vld [vmem:[%s1582 + $0x38] sm:$0xf]
      %v1598 = vld [vmem:[%s1582 + $0x3c] sm:$0xf]
      %v1599 = vld [vmem:[%s1582 + $0x40] sm:$0xf]
      %v1600 = vld [vmem:[%s1582 + $0x44] sm:$0xf]
      %v1601 = vld [vmem:[%s1582 + $0x48] sm:$0xf]
      %v1602 = vld [vmem:[%s1582 + $0x4c] sm:$0xf]
      %v1603 = vld [vmem:[%s1582 + $0x50] sm:$0xf]
      %v1604 = vld [vmem:[%s1582 + $0x54] sm:$0xf]
      %v1605 = vld [vmem:[%s1582 + $0x58] sm:$0xf]
      %v1606 = vld [vmem:[%s1582 + $0x5c] sm:$0xf]
      %v1607 = vld [vmem:[%s1582 + $0x60] sm:$0xf]
      %v1608 = vld [vmem:[%s1582 + $0x64] sm:$0xf]
      %v1609 = vld [vmem:[%s1582 + $0x68] sm:$0xf]
      %v1610 = vld [vmem:[%s1582 + $0x6c] sm:$0xf]
      %v1611 = vld [vmem:[%s1582 + $0x70] sm:$0xf]
      %v1612 = vld [vmem:[%s1582 + $0x74] sm:$0xf]
      %v1613 = vld [vmem:[%s1582 + $0x78] sm:$0xf]
      %v1614 = vld [vmem:[%s1582 + $0x7c] sm:$0xf]
      %v1615 = vld [vmem:[%s1582 + $0x80] sm:$0xf]
      %v1616 = vld [vmem:[%s1582 + $0x84] sm:$0xf]
      %v1617 = vld [vmem:[%s1582 + $0x88] sm:$0xf]
      %v1618 = vld [vmem:[%s1582 + $0x8c] sm:$0xf]
      %v1619 = vld [vmem:[%s1582 + $0x90] sm:$0xf]
      %v1620 = vld [vmem:[%s1582 + $0x94] sm:$0xf]
      %v1621 = vld [vmem:[%s1582 + $0x98] sm:$0xf]
      %v1622 = vld [vmem:[%s1582 + $0x9c] sm:$0xf]
      %v1623 = vld [vmem:[%s1582 + $0xa0] sm:$0xf]
      %v1624 = vld [vmem:[%s1582 + $0xa4] sm:$0xf]
      %v1625 = vld [vmem:[%s1582 + $0xa8] sm:$0xf]
      %v1626 = vld [vmem:[%s1582 + $0xac] sm:$0xf]
      %v1627 = vld [vmem:[%s1582 + $0xb0] sm:$0xf]
      %v1628 = vld [vmem:[%s1582 + $0xb4] sm:$0xf]
      %v1629 = vld [vmem:[%s1582 + $0xb8] sm:$0xf]
      %v1630 = vld [vmem:[%s1582 + $0xbc] sm:$0xf]
      %v1631 = vpack.c.b16 %v1579, %v922
      %v1632 = vpack.c.b16 %v1580, %v923
      %v1633 = vpack.c.b16 %v1581, %v924
      %v1685 = vunpack.c.l.b16 %v1583
      %v1686 = vunpack.c.l.b16 %v1584
      %v1687 = vunpack.c.l.b16 %v1585
      %v1688 = vunpack.c.l.b16 %v1586
      %v1689 = vunpack.c.l.b16 %v1587
      %v1690 = vunpack.c.l.b16 %v1588
      %v1691 = vunpack.c.l.b16 %v1589
      %v1692 = vunpack.c.l.b16 %v1590
      %v1693 = vunpack.c.l.b16 %v1591
      %v1694 = vunpack.c.l.b16 %v1592
      %v1695 = vunpack.c.l.b16 %v1593
      %v1696 = vunpack.c.l.b16 %v1594
      %v1697 = vunpack.c.l.b16 %v1595
      %v1698 = vunpack.c.l.b16 %v1596
      %v1699 = vunpack.c.l.b16 %v1597
      %v1700 = vunpack.c.l.b16 %v1598
      %v1701 = vunpack.c.l.b16 %v1599
      %v1702 = vunpack.c.l.b16 %v1600
      %v1703 = vunpack.c.l.b16 %v1601
      %v1704 = vunpack.c.l.b16 %v1602
      %v1705 = vunpack.c.l.b16 %v1603
      %v1706 = vunpack.c.l.b16 %v1604
      %v1707 = vunpack.c.l.b16 %v1605
      %v1708 = vunpack.c.l.b16 %v1606
      %v1709 = vunpack.c.l.b16 %v1607
      %v1710 = vunpack.c.l.b16 %v1608
      %v1711 = vunpack.c.l.b16 %v1609
      %v1712 = vunpack.c.l.b16 %v1610
      %v1713 = vunpack.c.l.b16 %v1611
      %v1714 = vunpack.c.l.b16 %v1612
      %v1715 = vunpack.c.l.b16 %v1613
      %v1716 = vunpack.c.l.b16 %v1614
      %v1717 = vunpack.c.l.b16 %v1615
      %v1718 = vunpack.c.l.b16 %v1616
      %v1719 = vunpack.c.l.b16 %v1617
      %v1720 = vunpack.c.l.b16 %v1618
      %v1721 = vunpack.c.l.b16 %v1619
      %v1722 = vunpack.c.l.b16 %v1620
      %v1723 = vunpack.c.l.b16 %v1621
      %v1724 = vunpack.c.l.b16 %v1622
      %v1725 = vunpack.c.l.b16 %v1623
      %v1726 = vunpack.c.l.b16 %v1624
      %v1727 = vunpack.c.l.b16 %v1625
      %v1728 = vunpack.c.l.b16 %v1626
      %v1729 = vunpack.c.l.b16 %v1627
      %v1730 = vunpack.c.l.b16 %v1628
      %v1731 = vunpack.c.l.b16 %v1629
      %v1732 = vunpack.c.l.b16 %v1630
      %v1733 = vpack.c.b16 %v1686, %v1685
      %v1734 = vpack.c.b16 %v1688, %v1687
      %v1735 = vpack.c.b16 %v1690, %v1689
      %v1736 = vpack.c.b16 %v1692, %v1691
      %v1737 = vpack.c.b16 %v1694, %v1693
      %v1738 = vpack.c.b16 %v1696, %v1695
      %v1739 = vpack.c.b16 %v1698, %v1697
      %v1740 = vpack.c.b16 %v1700, %v1699
      %v1741 = vpack.c.b16 %v1702, %v1701
      %v1742 = vpack.c.b16 %v1704, %v1703
      %v1743 = vpack.c.b16 %v1706, %v1705
      %v1744 = vpack.c.b16 %v1708, %v1707
      %v1745 = vpack.c.b16 %v1710, %v1709
      %v1746 = vpack.c.b16 %v1712, %v1711
      %v1747 = vpack.c.b16 %v1714, %v1713
      %v1748 = vpack.c.b16 %v1716, %v1715
      %v1749 = vpack.c.b16 %v1718, %v1717
      %v1750 = vpack.c.b16 %v1720, %v1719
      %v1751 = vpack.c.b16 %v1722, %v1721
      %v1752 = vpack.c.b16 %v1724, %v1723
      %v1753 = vpack.c.b16 %v1726, %v1725
      %v1754 = vpack.c.b16 %v1728, %v1727
      %v1755 = vpack.c.b16 %v1730, %v1729
      %v1756 = vpack.c.b16 %v1732, %v1731
      %1781 = vmatprep.subr.bf16.mxu0 0
      %1782 = vmatpush1.bf16.msra.mxu0 %v1740
      %1783 = vmatprep.subr.bf16.mxu0 0
      %1784 = vmatpush1.bf16.msra.mxu0 %v1739
      %1785 = vmatprep.subr.bf16.mxu0 0
      %1786 = vmatpush1.bf16.msra.mxu0 %v1738
      %1787 = vmatprep.subr.bf16.mxu0 0
      %1788 = vmatpush1.bf16.msra.mxu0 %v1737
      %1789 = vmatprep.subr.bf16.mxu0 0
      %1790 = vmatpush1.bf16.msra.mxu0 %v1736
      %1791 = vmatprep.subr.bf16.mxu0 0
      %1792 = vmatpush1.bf16.msra.mxu0 %v1735
      %1793 = vmatprep.subr.bf16.mxu0 0
      %1794 = vmatpush1.bf16.msra.mxu0 %v1734
      %1795 = vmatprep.subr.bf16.mxu0 0
      %1796 = vmatpush1.bf16.msra.mxu0 %v1733
      %1797 = vmatprep.subr.bf16.mxu0 0
      %1798 = vmatpush2.bf16.msra.mxu0 %v1748
      %1799 = vmatprep.subr.bf16.mxu0 0
      %1800 = vmatpush2.bf16.msra.mxu0 %v1747
      %1801 = vmatprep.subr.bf16.mxu0 0
      %1802 = vmatpush2.bf16.msra.mxu0 %v1746
      %1803 = vmatprep.subr.bf16.mxu0 0
      %1804 = vmatpush2.bf16.msra.mxu0 %v1745
      %1805 = vmatprep.subr.bf16.mxu0 0
      %1806 = vmatpush2.bf16.msra.mxu0 %v1744
      %1807 = vmatprep.subr.bf16.mxu0 0
      %1808 = vmatpush2.bf16.msra.mxu0 %v1743
      %1809 = vmatprep.subr.bf16.mxu0 0
      %1810 = vmatpush2.bf16.msra.mxu0 %v1742
      %1811 = vmatprep.subr.bf16.mxu0 0
      %1812 = vmatpush2.bf16.msra.mxu0 %v1741
      %1813 = vmatprep.mubr.bf16.mxu0 %v1276
      %1814 = vmatmul.mubr.bf16.gmra.mxu0 %v1275
      %v1815 = vpop.f32.mrf.mxu0
      %v1816 = vadd.f32 0.0, %v1815
      %v1817 = vpop.f32.mrf.mxu0
      %v1818 = vpop.f32.mrf.mxu0
      %v1819 = vadd.f32 0.0, %v1818
      %v1820 = vpop.f32.mrf.mxu0
      %1821 = vmatprep.mubr.bf16.mxu0 %v1279
      %1822 = vmatmul.mubr.bf16.gmra.mxu0 %v1278
      %v1823 = vpop.f32.mrf.mxu0
      %v1824 = vadd.f32 0.0, %v1823
      %v1825 = vpop.f32.mrf.mxu0
      %v1826 = vpop.f32.mrf.mxu0
      %v1827 = vadd.f32 0.0, %v1826
      %v1828 = vpop.f32.mrf.mxu0
      %1829 = vmatprep.mubr.bf16.mxu0 %v1282
      %1830 = vmatmul.mubr.bf16.gmra.mxu0 %v1281
      %v1831 = vpop.f32.mrf.mxu0
      %v1832 = vadd.f32 0.0, %v1831
      %v1833 = vpop.f32.mrf.mxu0
      %v1834 = vpop.f32.mrf.mxu0
      %v1835 = vadd.f32 0.0, %v1834
      %v1836 = vpop.f32.mrf.mxu0
      %1837 = vmatprep.mubr.bf16.mxu0 %v1632
      %1838 = vmatmul.mubr.bf16.gmra.mxu0 %v1631
      %v1839 = vpop.f32.mrf.mxu0
      %v1840 = vadd.f32 0.0, %v1839
      %v1841 = vpop.f32.mrf.mxu0
      %v1842 = vpop.f32.mrf.mxu0
      %v1843 = vadd.f32 0.0, %v1842
      %v1844 = vpop.f32.mrf.mxu0
      %1845 = vdwg.mxu0
      %1846 = vmatprep.subr.bf16.mxu0 0
      %1847 = vmatpush1.bf16.msra.mxu0 %v1756
      %1848 = vmatprep.subr.bf16.mxu0 0
      %1849 = vmatpush1.bf16.msra.mxu0 %v1755
      %1850 = vmatprep.subr.bf16.mxu0 0
      %1851 = vmatpush1.bf16.msra.mxu0 %v1754
      %1852 = vmatprep.subr.bf16.mxu0 0
      %1853 = vmatpush1.bf16.msra.mxu0 %v1753
      %1854 = vmatprep.subr.bf16.mxu0 0
      %1855 = vmatpush1.bf16.msra.mxu0 %v1752
      %1856 = vmatprep.subr.bf16.mxu0 0
      %1857 = vmatpush1.bf16.msra.mxu0 %v1751
      %1858 = vmatprep.subr.bf16.mxu0 0
      %1859 = vmatpush1.bf16.msra.mxu0 %v1750
      %1860 = vmatprep.subr.bf16.mxu0 0
      %1861 = vmatpush1.bf16.msra.mxu0 %v1749
      %1862 = vmatprep.subr.bf16.mxu0 0
      %1863 = vmatpush2.bf16.msra.mxu0 0
      %1864 = vmatprep.subr.bf16.mxu0 0
      %1865 = vmatpush2.bf16.msra.mxu0 0
      %1866 = vmatprep.subr.bf16.mxu0 0
      %1867 = vmatpush2.bf16.msra.mxu0 0
      %1868 = vmatprep.subr.bf16.mxu0 0
      %1869 = vmatpush2.bf16.msra.mxu0 0
      %1870 = vmatprep.subr.bf16.mxu0 0
      %1871 = vmatpush2.bf16.msra.mxu0 0
      %1872 = vmatprep.subr.bf16.mxu0 0
      %1873 = vmatpush2.bf16.msra.mxu0 0
      %1874 = vmatprep.subr.bf16.mxu0 0
      %1875 = vmatpush2.bf16.msra.mxu0 0
      %1876 = vmatprep.subr.bf16.mxu0 0
      %1877 = vmatpush2.bf16.msra.mxu0 0
      %1878 = vmatprep.mubr.bf16.mxu0 0
      %1879 = vmatmul.mubr.bf16.gmra.mxu0 %v1277
      %v1880 = vpop.f32.mrf.mxu0
      %v1881 = vadd.f32 %v1816, %v1880
      %v1882 = vpop.f32.mrf.mxu0
      %v1883 = vpop.f32.mrf.mxu0
      %v1884 = vadd.f32 %v1819, %v1883
      %v1885 = vpop.f32.mrf.mxu0
      %1886 = vmatprep.mubr.bf16.mxu0 0
      %1887 = vmatmul.mubr.bf16.gmra.mxu0 %v1280
      %v1888 = vpop.f32.mrf.mxu0
      %v1889 = vadd.f32 %v1824, %v1888
      %v1890 = vpop.f32.mrf.mxu0
      %v1891 = vpop.f32.mrf.mxu0
      %v1892 = vadd.f32 %v1827, %v1891
      %v1893 = vpop.f32.mrf.mxu0
      %1894 = vmatprep.mubr.bf16.mxu0 0
      %1895 = vmatmul.mubr.bf16.gmra.mxu0 %v1283
      %v1896 = vpop.f32.mrf.mxu0
      %v1897 = vadd.f32 %v1832, %v1896
      %v1898 = vpop.f32.mrf.mxu0
      %v1899 = vpop.f32.mrf.mxu0
      %v1900 = vadd.f32 %v1835, %v1899
      %v1901 = vpop.f32.mrf.mxu0
      %1902 = vmatprep.mubr.bf16.mxu0 0
      %1903 = vmatmul.mubr.bf16.gmra.mxu0 %v1633
      %v1904 = vpop.f32.mrf.mxu0
      %v1905 = vadd.f32 %v1840, %v1904
      %v1906 = vpop.f32.mrf.mxu0
      %v1907 = vpop.f32.mrf.mxu0
      %v1908 = vadd.f32 %v1843, %v1907
      %v1909 = vpop.f32.mrf.mxu0
      %1910 = vdwg.mxu0
      %v1911 = vadd.f32 %v1540, %v1881
      %v1912 = vadd.f32 %v1543, %v1884
      %v1913 = vadd.f32 %v1548, %v1889
      %v1914 = vadd.f32 %v1551, %v1892
      %v1915 = vadd.f32 %v1556, %v1897
      %v1916 = vadd.f32 %v1559, %v1900
      %v1917 = vadd.f32 %v1564, %v1905
      %v1918 = vadd.f32 %v1567, %v1908
      %v1919 = vmul.f32 %v1911, %v1911
      %v1920 = vmul.f32 %v1912, %v1912
      %v1921 = vmul.f32 %v1913, %v1913
      %v1922 = vmul.f32 %v1914, %v1914
      %v1923 = vmul.f32 %v1915, %v1915
      %v1924 = vmul.f32 %v1916, %v1916
      %v1925 = vmul.f32 %v1917, %v1917
      %v1926 = vmul.f32 %v1918, %v1918
      %v1927 = vadd.f32 %v1919, %v1920
      %v1928 = vadd.f32 %v1927, %v1921
      %v1929 = vadd.f32 %v1928, %v1922
      %v1930 = vadd.f32 %v1929, %v1923
      %v1931 = vadd.f32 %v1930, %v1924
      %v1932 = vadd.f32 %v1931, %v1925
      %v1933 = vadd.f32 %v1932, %v1926
      %v1934 = vrot.slane %v1933, 4
      %v1935 = vadd.f32 %v1933, %v1934
      %v1936 = vrot.slane %v1935, 2
      %v1937 = vadd.f32 %v1935, %v1936
      %v1938 = vrot.slane %v1937, 1
      %v1939 = vadd.f32 %v1937, %v1938
      // Predicated region
      $region49: #{vgg_loss_forward.7} parent=47 // pred_check
        %p1940 = pneg %p657
      $region50: #{vgg_loss_forward.7} parent=47 // pred_check_branch
        %1942 = sbr.rel (%p1940) target = $region52
      $region51: #{vgg_loss_forward.7} parent=47 // pred_region
        %1943 = vst [vmem:[#allocation2] sm:$0x1] %v1939
      $region52: #{vgg_loss_forward.7} parent=47 // pred_fallthru
        _
      %p1944 = scmp.gt.s32.totalorder %s23, 0
      // Predicated region
      $region53: #{vgg_loss_forward.7} parent=47 // pred_check
        %p1945 = pneg %p1944
      $region54: #{vgg_loss_forward.7} parent=47 // pred_check_branch
        %1947 = sbr.rel (%p1945) target = $region56
      $region55: #{vgg_loss_forward.7} parent=47 // pred_region
        %v1948 = vld [vmem:[#allocation2] sm:$0x1]
        %v1949 = vadd.f32 %v1948, %v1939
        %1950 = vst [vmem:[#allocation2] sm:$0x1] %v1949
      $region56: #{vgg_loss_forward.7} parent=47 // pred_fallthru
        _
      // Predicated region
      $region57: #{vgg_loss_forward.7} parent=47 // pred_check
        %p1951 = pneg %p657
      $region58: #{vgg_loss_forward.7} parent=47 // pred_check_branch
        %1953 = sbr.rel (%p1951) target = $region60
      $region59: #{vgg_loss_forward.7} parent=47 // pred_region
        %v1954 = vld [vmem:[#allocation2] sm:$0x1]
        %1955 = vst [vmem:[%s595] sm:$0x1] %v1954
      $region60: #{vgg_loss_forward.7} parent=47 // pred_fallthru
        _
      %p1956 = scmp.lt.s32.totalorder %s22, 1
      %s1957 = scalar_select %p1956, %s22, 1
      %s1958 = scalar_lea.vmem %s7, %s1957
      // Predicated region
      $region61: #{vgg_loss_forward.7} parent=47 // pred_check
        %p1959 = pneg %p275
      $region62: #{vgg_loss_forward.7} parent=47 // pred_check_branch
        %1961 = sbr.rel (%p1959) target = $region64
      $region63: #{vgg_loss_forward.7} parent=47 // pred_region
        _
      $region64: #{vgg_loss_forward.7} parent=47 // pred_fallthru
        _
    $region48: #{vgg_loss_forward.7} parent=5 // pred_fallthru
      _
    %p1962 = scmp.le.s32.totalorder 2, %s13
    // Predicated region
    $region65: #{vgg_loss_forward.7} parent=5 // pred_check
      %p1963 = pneg %p1962
    $region66: #{vgg_loss_forward.7} parent=5 // pred_check_branch
      %1965 = sbr.rel (%p1963) target = $region68
    $region67: #{vgg_loss_forward.7} parent=5 // pred_region
      %s1966 = ssub.s32 %s13, 2
      // Predicated region
      $region69: #{vgg_loss_forward.7} parent=67 // pred_check
        %p1967 = pneg %p281
      $region70: #{vgg_loss_forward.7} parent=67 // pred_check_branch
        %1969 = sbr.rel (%p1967) target = $region72
      $region71: #{vgg_loss_forward.7} parent=67 // pred_region
        %p1970 = scmp.lt.s32.totalorder %s24, 1
        %s1971 = scalar_select %p1970, %s24, 1
        %s1972 = scalar_lea.vmem %s7, %s1971
      $region72: #{vgg_loss_forward.7} parent=67 // pred_fallthru
        _
    $region68: #{vgg_loss_forward.7} parent=5 // pred_fallthru
      _
  $region6: #{vgg_loss_forward.7} parent=0 // loop_footer
    %s17 = sadd.s32 1, %s13
  $region7: #{vgg_loss_forward.7} parent=0 // loop_footer_branch
    %12 = sbr.rel target = $region3
  $region8: #{vgg_loss_forward.7} parent=0 // loop_exit
    _

// kernel: vgg_loss_forward.5
$region0: #{vgg_loss_forward.5}
  #allocation0 [shape = 'u32[]', space=smem, size = 0x4, offset = 0x4, fixed_abs, tag = 'smem constant byte address 0x4 - core index']
  #allocation1 [shape = 'u32[144,128]{1,0:T(1,128)}', space=vmem, size = 0x12000, scoped, tag = 'internal scratch']
  %s0 = inlined_call_operand.vmem [shape: bf16[4,16,16,64], index: 0, kind: input, shape index: {}, may-alias: {0,1,2}]
  %s1 = inlined_call_operand.vmem [shape: bf16[4,16,16,64], index: 1, kind: input, shape index: {}, may-alias: {0,1,2}]
  %s2 = inlined_call_operand.vmem [shape: bf16[4,16,16,64], index: 2, kind: input, shape index: {}, may-alias: {0,1,2}]
  %s3 = inlined_call_operand.vmem [shape: bf16[3,192,64], index: 3, kind: input, shape index: {}]
  %s4 = inlined_call_operand.vmem [shape: f32[1,64], index: 4, kind: input, shape index: {}]
  %s5 = inlined_call_operand.vmem [shape: bf16[4,8,8,64], index: 5, kind: output, shape index: {}]
  %s6 = sld [smem:[#allocation0]]
  $region53: #{vgg_loss_forward.5} parent=0
    _
  %s8 = ssub.s32 1, %s6
  %s9 = scalar_select 0, %s8, %s6
  loop: start=0, step=1, limit=6
  $region2: #{vgg_loss_forward.5} parent=0 // loop_pre_header
    _
  $region3: #{vgg_loss_forward.5} parent=0 // loop_header
    %s11 = sphi 0, %s15
    %p12 = scmp.ge.s32.totalorder %s11, 6
    %s18 = sphi 0, %s30
    %s19 = sphi 0, %s26
    %s20 = sphi 0, %s18
    %s21 = sphi 0, %s19
    %s22 = sphi 0, %s20
    %s23 = sphi 0, %s21
    %s43 = sphi 0, %s45
    %s46 = sphi 0, %s43
    %s47 = sphi 0, %s46
    %s63 = sphi 0, %s47
    %s71 = sphi 0, %s73
    %s74 = sphi 0, %s71
    %s75 = sphi 0, %s74
    %s91 = sphi 0, %s75
    %s107 = sphi 0, %s109
    %s110 = sphi 0, %s107
    %s111 = sphi 0, %s110
    %s127 = sphi 0, %s111
    %s131 = sphi 0, %s131
    %s133 = sphi 0, %s131
    %s134 = sphi 0, %s133
    %s148 = sphi 0, %s134
    %s152 = sphi 0, %s152
    %s154 = sphi 0, %s152
    %s155 = sphi 0, %s154
    %s169 = sphi 0, %s155
    %s177 = sphi 0, %s179
    %s180 = sphi 0, %s177
    %s181 = sphi 0, %s180
    %s197 = sphi 0, %s181
  $region4: #{vgg_loss_forward.5} parent=0 // loop_header_branch
    %14 = sbr.rel (%p12) target = $region8
  $region5: #{vgg_loss_forward.5} parent=0 // loop_body
    %s16 = ssub.s32 %s11, 1
    %s17 = ssub.s32 %s11, 2
    %s24 = sadd.s32 1, %s19
    %p25 = scmp.ge.s32.totalorder %s24, 1
    %s26 = scalar_select %p25, 0, %s24
    %s27 = sadd.s32 1, %s18
    %s28 = scalar_select %p25, %s27, %s18
    %p29 = scmp.ge.s32.totalorder %s28, 4
    %s30 = scalar_select %p29, 0, %s28
    %s31 = smul.u32 %s19, 16
    %s32 = ssub.s32 %s31, 1
    %p33 = scmp.gt.s32.totalorder %s32, 0
    %s34 = scalar_select %p33, %s32, 0
    %s35 = smul.u32 %s26, 16
    %s36 = ssub.s32 %s35, 1
    %p37 = scmp.gt.s32.totalorder %s36, 0
    %s38 = scalar_select %p37, %s36, 0
    %s39 = ssub.s32 %s18, %s30
    %s40 = ssub.s32 %s34, %s38
    %s41 = sor.u32 %s39, %s40
    %p42 = scmp.eq.s32.totalorder %s41, 0
    %s44 = sadd.s32 %s43, 1
    %s45 = scalar_select %p42, %s43, %s44
    %p48 = pneg %p42
    %p49 = scmp.eq.s32.totalorder %s11, 3
    %p50 = por %p48, %p49
    %p51 = scmp.ne.s32.totalorder %s43, %s46
    %p52 = scmp.eq.s32.totalorder %s11, 0
    %p53 = por %p51, %p52
    %p54 = scmp.ne.s32.totalorder %s43, %s46
    %p55 = scmp.eq.s32.totalorder %s16, 3
    %p56 = por %p54, %p55
    %p57 = scmp.ne.s32.totalorder %s46, %s47
    %p58 = scmp.eq.s32.totalorder %s16, 0
    %p59 = por %p57, %p58
    %p60 = scmp.ne.s32.totalorder %s46, %s47
    %p61 = scmp.eq.s32.totalorder %s17, 3
    %p62 = por %p60, %p61
    %p64 = scmp.ne.s32.totalorder %s47, %s63
    %p65 = scmp.eq.s32.totalorder %s17, 0
    %p66 = por %p64, %p65
    %s67 = ssub.s32 %s18, %s30
    %s68 = ssub.s32 %s19, %s26
    %s69 = sor.u32 %s67, %s68
    %p70 = scmp.eq.s32.totalorder %s69, 0
    %s72 = sadd.s32 %s71, 1
    %s73 = scalar_select %p70, %s71, %s72
    %p76 = pneg %p70
    %p77 = scmp.eq.s32.totalorder %s11, 3
    %p78 = por %p76, %p77
    %p79 = scmp.ne.s32.totalorder %s71, %s74
    %p80 = scmp.eq.s32.totalorder %s11, 0
    %p81 = por %p79, %p80
    %p82 = scmp.ne.s32.totalorder %s71, %s74
    %p83 = scmp.eq.s32.totalorder %s16, 3
    %p84 = por %p82, %p83
    %p85 = scmp.ne.s32.totalorder %s74, %s75
    %p86 = scmp.eq.s32.totalorder %s16, 0
    %p87 = por %p85, %p86
    %p88 = scmp.ne.s32.totalorder %s74, %s75
    %p89 = scmp.eq.s32.totalorder %s17, 3
    %p90 = por %p88, %p89
    %p92 = scmp.ne.s32.totalorder %s75, %s91
    %p93 = scmp.eq.s32.totalorder %s17, 0
    %p94 = por %p92, %p93
    %s95 = smul.u32 %s19, 16
    %s96 = sadd.s32 %s95, 16
    %p97 = scmp.lt.s32.totalorder %s96, 15
    %s98 = scalar_select %p97, %s96, 15
    %s99 = smul.u32 %s26, 16
    %s100 = sadd.s32 %s99, 16
    %p101 = scmp.lt.s32.totalorder %s100, 15
    %s102 = scalar_select %p101, %s100, 15
    %s103 = ssub.s32 %s18, %s30
    %s104 = ssub.s32 %s98, %s102
    %s105 = sor.u32 %s103, %s104
    %p106 = scmp.eq.s32.totalorder %s105, 0
    %s108 = sadd.s32 %s107, 1
    %s109 = scalar_select %p106, %s107, %s108
    %p112 = pneg %p106
    %p113 = scmp.eq.s32.totalorder %s11, 3
    %p114 = por %p112, %p113
    %p115 = scmp.ne.s32.totalorder %s107, %s110
    %p116 = scmp.eq.s32.totalorder %s11, 0
    %p117 = por %p115, %p116
    %p118 = scmp.ne.s32.totalorder %s107, %s110
    %p119 = scmp.eq.s32.totalorder %s16, 3
    %p120 = por %p118, %p119
    %p121 = scmp.ne.s32.totalorder %s110, %s111
    %p122 = scmp.eq.s32.totalorder %s16, 0
    %p123 = por %p121, %p122
    %p124 = scmp.ne.s32.totalorder %s110, %s111
    %p125 = scmp.eq.s32.totalorder %s17, 3
    %p126 = por %p124, %p125
    %p128 = scmp.ne.s32.totalorder %s111, %s127
    %p129 = scmp.eq.s32.totalorder %s17, 0
    %p130 = por %p128, %p129
    %s132 = sadd.s32 %s131, 1
    %p135 = scmp.eq.s32.totalorder %s11, 3
    %p136 = scmp.ne.s32.totalorder %s131, %s133
    %p137 = scmp.eq.s32.totalorder %s11, 0
    %p138 = por %p136, %p137
    %p139 = scmp.ne.s32.totalorder %s131, %s133
    %p140 = scmp.eq.s32.totalorder %s16, 3
    %p141 = por %p139, %p140
    %p142 = scmp.ne.s32.totalorder %s133, %s134
    %p143 = scmp.eq.s32.totalorder %s16, 0
    %p144 = por %p142, %p143
    %p145 = scmp.ne.s32.totalorder %s133, %s134
    %p146 = scmp.eq.s32.totalorder %s17, 3
    %p147 = por %p145, %p146
    %p149 = scmp.ne.s32.totalorder %s134, %s148
    %p150 = scmp.eq.s32.totalorder %s17, 0
    %p151 = por %p149, %p150
    %s153 = sadd.s32 %s152, 1
    %p156 = scmp.eq.s32.totalorder %s11, 3
    %p157 = scmp.ne.s32.totalorder %s152, %s154
    %p158 = scmp.eq.s32.totalorder %s11, 0
    %p159 = por %p157, %p158
    %p160 = scmp.ne.s32.totalorder %s152, %s154
    %p161 = scmp.eq.s32.totalorder %s16, 3
    %p162 = por %p160, %p161
    %p163 = scmp.ne.s32.totalorder %s154, %s155
    %p164 = scmp.eq.s32.totalorder %s16, 0
    %p165 = por %p163, %p164
    %p166 = scmp.ne.s32.totalorder %s154, %s155
    %p167 = scmp.eq.s32.totalorder %s17, 3
    %p168 = por %p166, %p167
    %p170 = scmp.ne.s32.totalorder %s155, %s169
    %p171 = scmp.eq.s32.totalorder %s17, 0
    %p172 = por %p170, %p171
    %s173 = ssub.s32 %s18, %s30
    %s174 = ssub.s32 %s19, %s26
    %s175 = sor.u32 %s173, %s174
    %p176 = scmp.eq.s32.totalorder %s175, 0
    %s178 = sadd.s32 %s177, 1
    %s179 = scalar_select %p176, %s177, %s178
    %p182 = pneg %p176
    %p183 = scmp.eq.s32.totalorder %s11, 3
    %p184 = por %p182, %p183
    %p185 = scmp.ne.s32.totalorder %s177, %s180
    %p186 = scmp.eq.s32.totalorder %s11, 0
    %p187 = por %p185, %p186
    %p188 = scmp.ne.s32.totalorder %s177, %s180
    %p189 = scmp.eq.s32.totalorder %s16, 3
    %p190 = por %p188, %p189
    %p191 = scmp.ne.s32.totalorder %s180, %s181
    %p192 = scmp.eq.s32.totalorder %s16, 0
    %p193 = por %p191, %p192
    %p194 = scmp.ne.s32.totalorder %s180, %s181
    %p195 = scmp.eq.s32.totalorder %s17, 3
    %p196 = por %p194, %p195
    %p198 = scmp.ne.s32.totalorder %s181, %s197
    %p199 = scmp.eq.s32.totalorder %s17, 0
    %p200 = por %p198, %p199
    %p201 = scmp.le.s32.totalorder 1, %s11
    %p202 = scmp.lt.s32.totalorder %s11, 5
    %p203 = pnand %p201, %p202
    %p204 = pneg %p203
    // Predicated region
    $region9: #{vgg_loss_forward.5} parent=5 // pred_check
      _
    $region10: #{vgg_loss_forward.5} parent=5 // pred_check_branch
      %206 = sbr.rel (%p203) target = $region12
    $region11: #{vgg_loss_forward.5} parent=5 // pred_region
      %s207 = ssub.s32 %s11, 1
      // Predicated region
      $region13: #{vgg_loss_forward.5} parent=11 // pred_check
        %p208 = pneg %p144
      $region14: #{vgg_loss_forward.5} parent=11 // pred_check_branch
        %210 = sbr.rel (%p208) target = $region16
      $region15: #{vgg_loss_forward.5} parent=11 // pred_region
        _
      $region16: #{vgg_loss_forward.5} parent=11 // pred_fallthru
        _
      // Predicated region
      $region17: #{vgg_loss_forward.5} parent=11 // pred_check
        %p211 = pneg %p165
      $region18: #{vgg_loss_forward.5} parent=11 // pred_check_branch
        %213 = sbr.rel (%p211) target = $region20
      $region19: #{vgg_loss_forward.5} parent=11 // pred_region
        _
      $region20: #{vgg_loss_forward.5} parent=11 // pred_fallthru
        _
    $region12: #{vgg_loss_forward.5} parent=5 // pred_fallthru
      _
    %p214 = scmp.lt.s32.totalorder %s11, 4
    // Predicated region
    $region21: #{vgg_loss_forward.5} parent=5 // pred_check
      %p215 = pneg %p214
    $region22: #{vgg_loss_forward.5} parent=5 // pred_check_branch
      %217 = sbr.rel (%p215) target = $region24
    $region23: #{vgg_loss_forward.5} parent=5 // pred_region
      // Predicated region
      $region25: #{vgg_loss_forward.5} parent=23 // pred_check
        %p218 = pneg %p53
      $region26: #{vgg_loss_forward.5} parent=23 // pred_check_branch
        %220 = sbr.rel (%p218) target = $region28
      $region27: #{vgg_loss_forward.5} parent=23 // pred_region
        %s221 = smul.u32 %s19, 16
        %s222 = ssub.s32 %s221, 1
        %p223 = scmp.gt.s32.totalorder %s222, 0
        %s224 = scalar_select %p223, %s222, 0
        %p225 = scmp.lt.s32.totalorder %s18, 3
        %s226 = scalar_select %p225, %s18, 3
        %p227 = scmp.lt.s32.totalorder %s224, 15
        %s228 = scalar_select %p227, %s224, 15
        %s229 = smul.addr %s228, 2
        %s230 = smul.addr %s226, 32
        %s231 = sadd.s32 %s229, %s230
        %s232 = smul.addr %s231, 4
        %s233 = scalar_lea.vmem %s0, %s232
        %s234 = smul.u32 %s19, 16
        %s235 = ssub.s32 %s234, 1
        %p236 = scmp.gt.s32.totalorder %s235, 0
        %s237 = scalar_select %p236, %s235, 0
      $region28: #{vgg_loss_forward.5} parent=23 // pred_fallthru
        _
      // Predicated region
      $region29: #{vgg_loss_forward.5} parent=23 // pred_check
        %p238 = pneg %p81
      $region30: #{vgg_loss_forward.5} parent=23 // pred_check_branch
        %240 = sbr.rel (%p238) target = $region32
      $region31: #{vgg_loss_forward.5} parent=23 // pred_region
        %s241 = smul.u32 16, %s19
        %p242 = scmp.lt.s32.totalorder %s18, 3
        %s243 = scalar_select %p242, %s18, 3
        %p244 = scmp.lt.s32.totalorder %s241, 15
        %s245 = scalar_select %p244, %s241, 15
        %s246 = smul.addr %s245, 2
        %s247 = smul.addr %s243, 32
        %s248 = sadd.s32 %s246, %s247
        %s249 = smul.addr %s248, 4
        %s250 = scalar_lea.vmem %s1, %s249
        %s251 = smul.u32 16, %s19
      $region32: #{vgg_loss_forward.5} parent=23 // pred_fallthru
        _
      // Predicated region
      $region33: #{vgg_loss_forward.5} parent=23 // pred_check
        %p252 = pneg %p117
      $region34: #{vgg_loss_forward.5} parent=23 // pred_check_branch
        %254 = sbr.rel (%p252) target = $region36
      $region35: #{vgg_loss_forward.5} parent=23 // pred_region
        %s255 = smul.u32 %s19, 16
        %s256 = sadd.s32 %s255, 16
        %p257 = scmp.lt.s32.totalorder %s256, 15
        %s258 = scalar_select %p257, %s256, 15
        %p259 = scmp.lt.s32.totalorder %s18, 3
        %s260 = scalar_select %p259, %s18, 3
        %p261 = scmp.lt.s32.totalorder %s258, 15
        %s262 = scalar_select %p261, %s258, 15
        %s263 = smul.addr %s262, 2
        %s264 = smul.addr %s260, 32
        %s265 = sadd.s32 %s263, %s264
        %s266 = smul.addr %s265, 4
        %s267 = scalar_lea.vmem %s2, %s266
        %s268 = smul.u32 %s19, 16
        %s269 = sadd.s32 %s268, 16
        %p270 = scmp.lt.s32.totalorder %s269, 15
        %s271 = scalar_select %p270, %s269, 15
      $region36: #{vgg_loss_forward.5} parent=23 // pred_fallthru
        _
    $region24: #{vgg_loss_forward.5} parent=5 // pred_fallthru
      _
    %p272 = scmp.le.s32.totalorder 1, %s11
    %p273 = scmp.lt.s32.totalorder %s11, 5
    %p274 = pnand %p272, %p273
    %p275 = pneg %p274
    // Predicated region
    $region37: #{vgg_loss_forward.5} parent=5 // pred_check
      _
    $region38: #{vgg_loss_forward.5} parent=5 // pred_check_branch
      %277 = sbr.rel (%p274) target = $region40
    $region39: #{vgg_loss_forward.5} parent=5 // pred_region
      %s278 = ssub.s32 %s11, 1
      %s279 = smul.u32 %s21, 16
      %s280 = ssub.s32 %s279, 1
      %p281 = scmp.gt.s32.totalorder %s280, 0
      %s282 = scalar_select %p281, %s280, 0
      %p283 = scmp.lt.s32.totalorder %s20, 3
      %s284 = scalar_select %p283, %s20, 3
      %p285 = scmp.lt.s32.totalorder %s282, 15
      %s286 = scalar_select %p285, %s282, 15
      %s287 = smul.addr %s286, 2
      %s288 = smul.addr %s284, 32
      %s289 = sadd.s32 %s287, %s288
      %s290 = smul.addr %s289, 4
      %s291 = scalar_lea.vmem %s0, %s290
      %p292 = pneg %p59
      %p293 = pneg %p56
      %s294 = smul.u32 16, %s21
      %p295 = scmp.lt.s32.totalorder %s20, 3
      %s296 = scalar_select %p295, %s20, 3
      %p297 = scmp.lt.s32.totalorder %s294, 15
      %s298 = scalar_select %p297, %s294, 15
      %s299 = smul.addr %s298, 2
      %s300 = smul.addr %s296, 32
      %s301 = sadd.s32 %s299, %s300
      %s302 = smul.addr %s301, 4
      %s303 = scalar_lea.vmem %s1, %s302
      %p304 = pneg %p87
      %p305 = pneg %p84
      %s306 = smul.u32 %s21, 16
      %s307 = sadd.s32 %s306, 16
      %p308 = scmp.lt.s32.totalorder %s307, 15
      %s309 = scalar_select %p308, %s307, 15
      %p310 = scmp.lt.s32.totalorder %s20, 3
      %s311 = scalar_select %p310, %s20, 3
      %p312 = scmp.lt.s32.totalorder %s309, 15
      %s313 = scalar_select %p312, %s309, 15
      %s314 = smul.addr %s313, 2
      %s315 = smul.addr %s311, 32
      %s316 = sadd.s32 %s314, %s315
      %s317 = smul.addr %s316, 4
      %s318 = scalar_lea.vmem %s2, %s317
      %p319 = pneg %p123
      %p320 = pneg %p120
      %p321 = pneg %p144
      %p322 = pneg %p141
      %p323 = pneg %p165
      %p324 = pneg %p162
      %p325 = pneg %p193
      %p326 = pneg %p190
      %s327 = smul.u32 8, %s21
      %p328 = scmp.lt.s32.totalorder %s20, 3
      %s329 = scalar_select %p328, %s20, 3
      %p330 = scmp.lt.s32.totalorder %s327, 7
      %s331 = scalar_select %p330, %s327, 7
      %s332 = smul.addr %s329, 8
      %s333 = sadd.s32 %s331, %s332
      %s334 = smul.addr %s333, 4
      %s335 = scalar_lea.vmem %s5, %s334
      %s336 = smul.u32 %s21, 16
      %s337 = ssub.s32 %s336, 1
      %p338 = scmp.gt.s32.totalorder %s337, 0
      %s339 = scalar_select %p338, %s337, 0
      %p340 = scmp.lt.s32.totalorder %s20, 3
      %s341 = scalar_select %p340, %s20, 3
      %p342 = scmp.lt.s32.totalorder %s339, 15
      %s343 = scalar_select %p342, %s339, 15
      %s344 = smul.addr %s343, 2
      %s345 = smul.addr %s341, 32
      %s346 = sadd.s32 %s344, %s345
      %s347 = smul.addr %s346, 4
      %s348 = scalar_lea.vmem %s0, %s347
      %s349 = smul.u32 %s21, 16
      %s350 = ssub.s32 %s349, 1
      %p351 = scmp.gt.s32.totalorder %s350, 0
      %s352 = scalar_select %p351, %s350, 0
      %s353 = smul.u32 16, %s21
      %p354 = scmp.lt.s32.totalorder %s20, 3
      %s355 = scalar_select %p354, %s20, 3
      %p356 = scmp.lt.s32.totalorder %s353, 15
      %s357 = scalar_select %p356, %s353, 15
      %s358 = smul.addr %s357, 2
      %s359 = smul.addr %s355, 32
      %s360 = sadd.s32 %s358, %s359
      %s361 = smul.addr %s360, 4
      %s362 = scalar_lea.vmem %s1, %s361
      %s363 = smul.u32 16, %s21
      %s364 = smul.u32 %s21, 16
      %s365 = sadd.s32 %s364, 16
      %p366 = scmp.lt.s32.totalorder %s365, 15
      %s367 = scalar_select %p366, %s365, 15
      %p368 = scmp.lt.s32.totalorder %s20, 3
      %s369 = scalar_select %p368, %s20, 3
      %p370 = scmp.lt.s32.totalorder %s367, 15
      %s371 = scalar_select %p370, %s367, 15
      %s372 = smul.addr %s371, 2
      %s373 = smul.addr %s369, 32
      %s374 = sadd.s32 %s372, %s373
      %s375 = smul.addr %s374, 4
      %s376 = scalar_lea.vmem %s2, %s375
      %s377 = smul.u32 %s21, 16
      %s378 = sadd.s32 %s377, 16
      %p379 = scmp.lt.s32.totalorder %s378, 15
      %s380 = scalar_select %p379, %s378, 15
      %s381 = smul.u32 8, %s21
      %p382 = scmp.lt.s32.totalorder %s20, 3
      %s383 = scalar_select %p382, %s20, 3
      %p384 = scmp.lt.s32.totalorder %s381, 7
      %s385 = scalar_select %p384, %s381, 7
      %s386 = smul.addr %s383, 8
      %s387 = sadd.s32 %s385, %s386
      %s388 = smul.addr %s387, 4
      %s389 = scalar_lea.vmem %s5, %s388
      %s390 = smul.u32 8, %s21
      %v392 = vld [vmem:[%s348] sm:$0xf]
      %v393 = vld [vmem:[%s348 + $0x4] sm:$0xf]
      %v394 = vld [vmem:[%s362] sm:$0xf]
      %v395 = vld [vmem:[%s362 + $0x4] sm:$0xf]
      %v396 = vld [vmem:[%s362 + $0x8] sm:$0xf]
      %v397 = vld [vmem:[%s362 + $0xc] sm:$0xf]
      %v398 = vld [vmem:[%s362 + $0x10] sm:$0xf]
      %v399 = vld [vmem:[%s362 + $0x14] sm:$0xf]
      %v400 = vld [vmem:[%s362 + $0x18] sm:$0xf]
      %v401 = vld [vmem:[%s362 + $0x1c] sm:$0xf]
      %v402 = vld [vmem:[%s362 + $0x20] sm:$0xf]
      %v403 = vld [vmem:[%s362 + $0x24] sm:$0xf]
      %v404 = vld [vmem:[%s362 + $0x28] sm:$0xf]
      %v405 = vld [vmem:[%s362 + $0x2c] sm:$0xf]
      %v406 = vld [vmem:[%s362 + $0x30] sm:$0xf]
      %v407 = vld [vmem:[%s362 + $0x34] sm:$0xf]
      %v408 = vld [vmem:[%s362 + $0x38] sm:$0xf]
      %v409 = vld [vmem:[%s362 + $0x3c] sm:$0xf]
      %v410 = vld [vmem:[%s362 + $0x40] sm:$0xf]
      %v411 = vld [vmem:[%s362 + $0x44] sm:$0xf]
      %v412 = vld [vmem:[%s362 + $0x48] sm:$0xf]
      %v413 = vld [vmem:[%s362 + $0x4c] sm:$0xf]
      %v414 = vld [vmem:[%s362 + $0x50] sm:$0xf]
      %v415 = vld [vmem:[%s362 + $0x54] sm:$0xf]
      %v416 = vld [vmem:[%s362 + $0x58] sm:$0xf]
      %v417 = vld [vmem:[%s362 + $0x5c] sm:$0xf]
      %v418 = vld [vmem:[%s362 + $0x60] sm:$0xf]
      %v419 = vld [vmem:[%s362 + $0x64] sm:$0xf]
      %v420 = vld [vmem:[%s362 + $0x68] sm:$0xf]
      %v421 = vld [vmem:[%s362 + $0x6c] sm:$0xf]
      %v422 = vld [vmem:[%s362 + $0x70] sm:$0xf]
      %v423 = vld [vmem:[%s362 + $0x74] sm:$0xf]
      %v424 = vld [vmem:[%s362 + $0x78] sm:$0xf]
      %v425 = vld [vmem:[%s362 + $0x7c] sm:$0xf]
      %v426 = vld [vmem:[%s376] sm:$0xf]
      %v427 = vld [vmem:[%s376 + $0x4] sm:$0xf]
      %p428 = scmp.eq.s32.totalorder %s21, 0
      %s429 = scalar_select %p428, 1, 0
      %v430 = vstv %s429
      %vm431 = vcmp.eq.s32.totalorder %v430, 1
      %v432 = vsel %vm431, 0, %v392
      %v433 = vsel %vm431, 0, %v393
      %v434 = vsel %vm431, 0, %v426
      %v435 = vsel %vm431, 0, %v427
      %v472 = vunpack.c.l.b16 %v432
      %v473 = vunpack.c.l.b16 %v433
      %v474 = vunpack.c.l.b16 %v394
      %v475 = vunpack.c.l.b16 %v395
      %v476 = vunpack.c.l.b16 %v396
      %v477 = vunpack.c.l.b16 %v397
      %v478 = vunpack.c.l.b16 %v398
      %v479 = vunpack.c.l.b16 %v399
      %v480 = vunpack.c.l.b16 %v400
      %v481 = vunpack.c.l.b16 %v401
      %v482 = vunpack.c.l.b16 %v402
      %v483 = vunpack.c.l.b16 %v403
      %v484 = vunpack.c.l.b16 %v404
      %v485 = vunpack.c.l.b16 %v405
      %v486 = vunpack.c.l.b16 %v406
      %v487 = vunpack.c.l.b16 %v407
      %v488 = vunpack.c.l.b16 %v408
      %v489 = vunpack.c.l.b16 %v409
      %v490 = vunpack.c.l.b16 %v410
      %v491 = vunpack.c.l.b16 %v411
      %v492 = vunpack.c.l.b16 %v412
      %v493 = vunpack.c.l.b16 %v413
      %v494 = vunpack.c.l.b16 %v414
      %v495 = vunpack.c.l.b16 %v415
      %v496 = vunpack.c.l.b16 %v416
      %v497 = vunpack.c.l.b16 %v417
      %v498 = vunpack.c.l.b16 %v418
      %v499 = vunpack.c.l.b16 %v419
      %v500 = vunpack.c.l.b16 %v420
      %v501 = vunpack.c.l.b16 %v421
      %v502 = vunpack.c.l.b16 %v422
      %v503 = vunpack.c.l.b16 %v423
      %v504 = vunpack.c.l.b16 %v424
      %v505 = vunpack.c.l.b16 %v425
      %v506 = vunpack.c.l.b16 %v434
      %v507 = vunpack.c.l.b16 %v435
      %v508 = vpack.c.b16 %v473, %v472
      %v509 = vpack.c.b16 %v475, %v474
      %v510 = vpack.c.b16 %v477, %v476
      %v511 = vpack.c.b16 %v479, %v478
      %v512 = vpack.c.b16 %v481, %v480
      %v513 = vpack.c.b16 %v483, %v482
      %v514 = vpack.c.b16 %v485, %v484
      %v515 = vpack.c.b16 %v487, %v486
      %v516 = vpack.c.b16 %v489, %v488
      %v517 = vpack.c.b16 %v491, %v490
      %v518 = vpack.c.b16 %v493, %v492
      %v519 = vpack.c.b16 %v495, %v494
      %v520 = vpack.c.b16 %v497, %v496
      %v521 = vpack.c.b16 %v499, %v498
      %v522 = vpack.c.b16 %v501, %v500
      %v523 = vpack.c.b16 %v503, %v502
      %v524 = vpack.c.b16 %v505, %v504
      %v525 = vpack.c.b16 %v507, %v506
      %v527 = vshrl.u32 %v508, 16
      %v529 = vrot.slane %v527, 7
      %v530 = vshll.u32 %v508, 16
      %v532 = vor.u32 %v529, %v530
      %v534 = vshrl.u32 %v509, 16
      %v536 = vrot.slane %v534, 7
      %v537 = vshll.u32 %v509, 16
      %v539 = vor.u32 %v536, %v537
      %v541 = vshrl.u32 %v510, 16
      %v543 = vrot.slane %v541, 7
      %v544 = vshll.u32 %v510, 16
      %v546 = vor.u32 %v543, %v544
      %v548 = vshrl.u32 %v511, 16
      %v550 = vrot.slane %v548, 7
      %v551 = vshll.u32 %v511, 16
      %v553 = vor.u32 %v550, %v551
      %v555 = vshrl.u32 %v512, 16
      %v557 = vrot.slane %v555, 7
      %v558 = vshll.u32 %v512, 16
      %v560 = vor.u32 %v557, %v558
      %v562 = vshrl.u32 %v513, 16
      %v564 = vrot.slane %v562, 7
      %v565 = vshll.u32 %v513, 16
      %v567 = vor.u32 %v564, %v565
      %v569 = vshrl.u32 %v514, 16
      %v571 = vrot.slane %v569, 7
      %v572 = vshll.u32 %v514, 16
      %v574 = vor.u32 %v571, %v572
      %v576 = vshrl.u32 %v515, 16
      %v578 = vrot.slane %v576, 7
      %v579 = vshll.u32 %v515, 16
      %v581 = vor.u32 %v578, %v579
      %v583 = vshrl.u32 %v516, 16
      %v585 = vrot.slane %v583, 7
      %v586 = vshll.u32 %v516, 16
      %v588 = vor.u32 %v585, %v586
      %v590 = vshrl.u32 %v517, 16
      %v592 = vrot.slane %v590, 7
      %v593 = vshll.u32 %v517, 16
      %v595 = vor.u32 %v592, %v593
      %v597 = vshrl.u32 %v518, 16
      %v599 = vrot.slane %v597, 7
      %v600 = vshll.u32 %v518, 16
      %v602 = vor.u32 %v599, %v600
      %v604 = vshrl.u32 %v519, 16
      %v606 = vrot.slane %v604, 7
      %v607 = vshll.u32 %v519, 16
      %v609 = vor.u32 %v606, %v607
      %v611 = vshrl.u32 %v520, 16
      %v613 = vrot.slane %v611, 7
      %v614 = vshll.u32 %v520, 16
      %v616 = vor.u32 %v613, %v614
      %v618 = vshrl.u32 %v521, 16
      %v620 = vrot.slane %v618, 7
      %v621 = vshll.u32 %v521, 16
      %v623 = vor.u32 %v620, %v621
      %v625 = vshrl.u32 %v522, 16
      %v627 = vrot.slane %v625, 7
      %v628 = vshll.u32 %v522, 16
      %v630 = vor.u32 %v627, %v628
      %v632 = vshrl.u32 %v523, 16
      %v634 = vrot.slane %v632, 7
      %v635 = vshll.u32 %v523, 16
      %v637 = vor.u32 %v634, %v635
      %v639 = vshrl.u32 %v524, 16
      %v641 = vrot.slane %v639, 7
      %v642 = vshll.u32 %v524, 16
      %v644 = vor.u32 %v641, %v642
      %v646 = vshrl.u32 %v525, 16
      %v648 = vrot.slane %v646, 7
      %v649 = vshll.u32 %v525, 16
      %v651 = vor.u32 %v648, %v649
      %vm688 = vcmask 1040384
      %vm689 = vsmask.f32 256
      %vm690 = vmand %vm688, %vm689
      %v691 = vsel %vm690, 0, %v532
      %v692 = vsel %vm690, 0, %v539
      %v693 = vsel %vm690, 0, %v546
      %v694 = vsel %vm690, 0, %v553
      %v695 = vsel %vm690, 0, %v560
      %v696 = vsel %vm690, 0, %v567
      %v697 = vsel %vm690, 0, %v574
      %v698 = vsel %vm690, 0, %v581
      %v699 = vsel %vm690, 0, %v588
      %v700 = vsel %vm690, 0, %v595
      %v701 = vsel %vm690, 0, %v602
      %v702 = vsel %vm690, 0, %v609
      %v703 = vsel %vm690, 0, %v616
      %v704 = vsel %vm690, 0, %v623
      %v705 = vsel %vm690, 0, %v630
      %v706 = vsel %vm690, 0, %v637
      %v707 = vsel %vm690, 0, %v644
      %v708 = vsel %vm690, 0, %v651
      %v709 = vsel %vm690, %v529, 0
      %v710 = vsel %vm690, %v536, 0
      %v711 = vsel %vm690, %v543, 0
      %v712 = vsel %vm690, %v550, 0
      %v713 = vsel %vm690, %v557, 0
      %v714 = vsel %vm690, %v564, 0
      %v715 = vsel %vm690, %v571, 0
      %v716 = vsel %vm690, %v578, 0
      %v717 = vsel %vm690, %v585, 0
      %v718 = vsel %vm690, %v592, 0
      %v719 = vsel %vm690, %v599, 0
      %v720 = vsel %vm690, %v606, 0
      %v721 = vsel %vm690, %v613, 0
      %v722 = vsel %vm690, %v620, 0
      %v723 = vsel %vm690, %v627, 0
      %v724 = vsel %vm690, %v634, 0
      %v725 = vsel %vm690, %v641, 0
      %v726 = vsel %vm690, %v648, 0
      %vm727 = vsmask.f32 7424
      %v729 = vshrl.u32 %v691, 16
      %v731 = vshll.u32 %v691, 16
      %v733 = vrot.slane %v731, 1
      %v734 = vor.u32 %v729, %v733
      %v736 = vshll.u32 %v709, 16
      %v738 = vrot.slane %v736, 1
      %v739 = vsel %vm727, %v734, %v738
      %v741 = vshrl.u32 %v692, 16
      %v743 = vshll.u32 %v692, 16
      %v745 = vrot.slane %v743, 1
      %v746 = vor.u32 %v741, %v745
      %v748 = vshll.u32 %v710, 16
      %v750 = vrot.slane %v748, 1
      %v751 = vsel %vm727, %v746, %v750
      %v753 = vshrl.u32 %v693, 16
      %v755 = vshll.u32 %v693, 16
      %v757 = vrot.slane %v755, 1
      %v758 = vor.u32 %v753, %v757
      %v760 = vshll.u32 %v711, 16
      %v762 = vrot.slane %v760, 1
      %v763 = vsel %vm727, %v758, %v762
      %v765 = vshrl.u32 %v694, 16
      %v767 = vshll.u32 %v694, 16
      %v769 = vrot.slane %v767, 1
      %v770 = vor.u32 %v765, %v769
      %v772 = vshll.u32 %v712, 16
      %v774 = vrot.slane %v772, 1
      %v775 = vsel %vm727, %v770, %v774
      %v777 = vshrl.u32 %v695, 16
      %v779 = vshll.u32 %v695, 16
      %v781 = vrot.slane %v779, 1
      %v782 = vor.u32 %v777, %v781
      %v784 = vshll.u32 %v713, 16
      %v786 = vrot.slane %v784, 1
      %v787 = vsel %vm727, %v782, %v786
      %v789 = vshrl.u32 %v696, 16
      %v791 = vshll.u32 %v696, 16
      %v793 = vrot.slane %v791, 1
      %v794 = vor.u32 %v789, %v793
      %v796 = vshll.u32 %v714, 16
      %v798 = vrot.slane %v796, 1
      %v799 = vsel %vm727, %v794, %v798
      %v801 = vshrl.u32 %v697, 16
      %v803 = vshll.u32 %v697, 16
      %v805 = vrot.slane %v803, 1
      %v806 = vor.u32 %v801, %v805
      %v808 = vshll.u32 %v715, 16
      %v810 = vrot.slane %v808, 1
      %v811 = vsel %vm727, %v806, %v810
      %v813 = vshrl.u32 %v698, 16
      %v815 = vshll.u32 %v698, 16
      %v817 = vrot.slane %v815, 1
      %v818 = vor.u32 %v813, %v817
      %v820 = vshll.u32 %v716, 16
      %v822 = vrot.slane %v820, 1
      %v823 = vsel %vm727, %v818, %v822
      %v825 = vshrl.u32 %v699, 16
      %v827 = vshll.u32 %v699, 16
      %v829 = vrot.slane %v827, 1
      %v830 = vor.u32 %v825, %v829
      %v832 = vshll.u32 %v717, 16
      %v834 = vrot.slane %v832, 1
      %v835 = vsel %vm727, %v830, %v834
      %v837 = vshrl.u32 %v700, 16
      %v839 = vshll.u32 %v700, 16
      %v841 = vrot.slane %v839, 1
      %v842 = vor.u32 %v837, %v841
      %v844 = vshll.u32 %v718, 16
      %v846 = vrot.slane %v844, 1
      %v847 = vsel %vm727, %v842, %v846
      %v849 = vshrl.u32 %v701, 16
      %v851 = vshll.u32 %v701, 16
      %v853 = vrot.slane %v851, 1
      %v854 = vor.u32 %v849, %v853
      %v856 = vshll.u32 %v719, 16
      %v858 = vrot.slane %v856, 1
      %v859 = vsel %vm727, %v854, %v858
      %v861 = vshrl.u32 %v702, 16
      %v863 = vshll.u32 %v702, 16
      %v865 = vrot.slane %v863, 1
      %v866 = vor.u32 %v861, %v865
      %v868 = vshll.u32 %v720, 16
      %v870 = vrot.slane %v868, 1
      %v871 = vsel %vm727, %v866, %v870
      %v873 = vshrl.u32 %v703, 16
      %v875 = vshll.u32 %v703, 16
      %v877 = vrot.slane %v875, 1
      %v878 = vor.u32 %v873, %v877
      %v880 = vshll.u32 %v721, 16
      %v882 = vrot.slane %v880, 1
      %v883 = vsel %vm727, %v878, %v882
      %v885 = vshrl.u32 %v704, 16
      %v887 = vshll.u32 %v704, 16
      %v889 = vrot.slane %v887, 1
      %v890 = vor.u32 %v885, %v889
      %v892 = vshll.u32 %v722, 16
      %v894 = vrot.slane %v892, 1
      %v895 = vsel %vm727, %v890, %v894
      %v897 = vshrl.u32 %v705, 16
      %v899 = vshll.u32 %v705, 16
      %v901 = vrot.slane %v899, 1
      %v902 = vor.u32 %v897, %v901
      %v904 = vshll.u32 %v723, 16
      %v906 = vrot.slane %v904, 1
      %v907 = vsel %vm727, %v902, %v906
      %v909 = vshrl.u32 %v706, 16
      %v911 = vshll.u32 %v706, 16
      %v913 = vrot.slane %v911, 1
      %v914 = vor.u32 %v909, %v913
      %v916 = vshll.u32 %v724, 16
      %v918 = vrot.slane %v916, 1
      %v919 = vsel %vm727, %v914, %v918
      %920 = vrot.lane.b32.xlu0 %v739, 64
      %v921 = vpop.permute.xlu0 %920
      %922 = vrot.lane.b32.xlu0 %v751, 64
      %v923 = vpop.permute.xlu0 %922
      %924 = vrot.lane.b32.xlu0 %v763, 64
      %v925 = vpop.permute.xlu0 %924
      %926 = vrot.lane.b32.xlu0 %v775, 64
      %v927 = vpop.permute.xlu0 %926
      %928 = vrot.lane.b32.xlu0 %v787, 64
      %v929 = vpop.permute.xlu0 %928
      %930 = vrot.lane.b32.xlu0 %v799, 64
      %v931 = vpop.permute.xlu0 %930
      %932 = vrot.lane.b32.xlu0 %v811, 64
      %v933 = vpop.permute.xlu0 %932
      %934 = vrot.lane.b32.xlu0 %v823, 64
      %v935 = vpop.permute.xlu0 %934
      %936 = vrot.lane.b32.xlu0 %v835, 64
      %v937 = vpop.permute.xlu0 %936
      %938 = vrot.lane.b32.xlu0 %v847, 64
      %v939 = vpop.permute.xlu0 %938
      %940 = vrot.lane.b32.xlu0 %v859, 64
      %v941 = vpop.permute.xlu0 %940
      %942 = vrot.lane.b32.xlu0 %v871, 64
      %v943 = vpop.permute.xlu0 %942
      %944 = vrot.lane.b32.xlu0 %v883, 64
      %v945 = vpop.permute.xlu0 %944
      %946 = vrot.lane.b32.xlu0 %v895, 64
      %v947 = vpop.permute.xlu0 %946
      %948 = vrot.lane.b32.xlu0 %v907, 64
      %v949 = vpop.permute.xlu0 %948
      %950 = vrot.lane.b32.xlu0 %v919, 64
      %v951 = vpop.permute.xlu0 %950
      %vm984 = vcmask 1046528
      %v985 = vrot.slane %v691, 1
      %v986 = vrot.slane %v709, 1
      %v987 = vsel %vm984, %v985, %v986
      %v988 = vrot.slane %v692, 1
      %v989 = vrot.slane %v710, 1
      %v990 = vsel %vm984, %v988, %v989
      %v991 = vrot.slane %v693, 1
      %v992 = vrot.slane %v711, 1
      %v993 = vsel %vm984, %v991, %v992
      %v994 = vrot.slane %v694, 1
      %v995 = vrot.slane %v712, 1
      %v996 = vsel %vm984, %v994, %v995
      %v997 = vrot.slane %v695, 1
      %v998 = vrot.slane %v713, 1
      %v999 = vsel %vm984, %v997, %v998
      %v1000 = vrot.slane %v696, 1
      %v1001 = vrot.slane %v714, 1
      %v1002 = vsel %vm984, %v1000, %v1001
      %v1003 = vrot.slane %v697, 1
      %v1004 = vrot.slane %v715, 1
      %v1005 = vsel %vm984, %v1003, %v1004
      %v1006 = vrot.slane %v698, 1
      %v1007 = vrot.slane %v716, 1
      %v1008 = vsel %vm984, %v1006, %v1007
      %v1009 = vrot.slane %v699, 1
      %v1010 = vrot.slane %v717, 1
      %v1011 = vsel %vm984, %v1009, %v1010
      %v1012 = vrot.slane %v700, 1
      %v1013 = vrot.slane %v718, 1
      %v1014 = vsel %vm984, %v1012, %v1013
      %v1015 = vrot.slane %v701, 1
      %v1016 = vrot.slane %v719, 1
      %v1017 = vsel %vm984, %v1015, %v1016
      %v1018 = vrot.slane %v702, 1
      %v1019 = vrot.slane %v720, 1
      %v1020 = vsel %vm984, %v1018, %v1019
      %v1021 = vrot.slane %v703, 1
      %v1022 = vrot.slane %v721, 1
      %v1023 = vsel %vm984, %v1021, %v1022
      %v1024 = vrot.slane %v704, 1
      %v1025 = vrot.slane %v722, 1
      %v1026 = vsel %vm984, %v1024, %v1025
      %v1027 = vrot.slane %v705, 1
      %v1028 = vrot.slane %v723, 1
      %v1029 = vsel %vm984, %v1027, %v1028
      %v1030 = vrot.slane %v706, 1
      %v1031 = vrot.slane %v724, 1
      %v1032 = vsel %vm984, %v1030, %v1031
      %vm1033 = vcmask 523264
      %v1035 = vsel %vm1033, %v691, %v921
      %v1038 = vsel %vm1033, %v692, %v923
      %v1041 = vsel %vm1033, %v693, %v925
      %v1044 = vsel %vm1033, %v694, %v927
      %v1047 = vsel %vm1033, %v695, %v929
      %v1050 = vsel %vm1033, %v696, %v931
      %v1053 = vsel %vm1033, %v697, %v933
      %v1056 = vsel %vm1033, %v698, %v935
      %v1059 = vsel %vm1033, %v699, %v937
      %v1062 = vsel %vm1033, %v700, %v939
      %v1065 = vsel %vm1033, %v701, %v941
      %v1068 = vsel %vm1033, %v702, %v943
      %v1071 = vsel %vm1033, %v703, %v945
      %v1074 = vsel %vm1033, %v704, %v947
      %v1077 = vsel %vm1033, %v705, %v949
      %v1080 = vsel %vm1033, %v706, %v951
      %v1082 = vld [vmem:[%s3] sm:$0xf]
      %v1083 = vld [vmem:[%s3 + $0x4] sm:$0xf]
      %v1084 = vld [vmem:[%s3 + $0x8] sm:$0xf]
      %v1085 = vld [vmem:[%s3 + $0xc] sm:$0xf]
      %v1086 = vld [vmem:[%s3 + $0x10] sm:$0xf]
      %v1087 = vld [vmem:[%s3 + $0x14] sm:$0xf]
      %v1088 = vld [vmem:[%s3 + $0x18] sm:$0xf]
      %v1089 = vld [vmem:[%s3 + $0x1c] sm:$0xf]
      %v1090 = vld [vmem:[%s3 + $0x20] sm:$0xf]
      %v1091 = vld [vmem:[%s3 + $0x24] sm:$0xf]
      %v1092 = vld [vmem:[%s3 + $0x28] sm:$0xf]
      %v1093 = vld [vmem:[%s3 + $0x2c] sm:$0xf]
      %v1094 = vld [vmem:[%s3 + $0x30] sm:$0xf]
      %v1095 = vld [vmem:[%s3 + $0x34] sm:$0xf]
      %v1096 = vld [vmem:[%s3 + $0x38] sm:$0xf]
      %v1097 = vld [vmem:[%s3 + $0x3c] sm:$0xf]
      %v1098 = vld [vmem:[%s3 + $0x40] sm:$0xf]
      %v1099 = vld [vmem:[%s3 + $0x44] sm:$0xf]
      %v1100 = vld [vmem:[%s3 + $0x48] sm:$0xf]
      %v1101 = vld [vmem:[%s3 + $0x4c] sm:$0xf]
      %v1102 = vld [vmem:[%s3 + $0x50] sm:$0xf]
      %v1103 = vld [vmem:[%s3 + $0x54] sm:$0xf]
      %v1104 = vld [vmem:[%s3 + $0x58] sm:$0xf]
      %v1105 = vld [vmem:[%s3 + $0x5c] sm:$0xf]
      %v1107 = vshrl.u32 %v707, 16
      %v1109 = vshll.u32 %v707, 16
      %v1111 = vrot.slane %v1109, 1
      %v1112 = vor.u32 %v1107, %v1111
      %v1114 = vshll.u32 %v725, 16
      %v1116 = vrot.slane %v1114, 1
      %v1117 = vsel %vm727, %v1112, %v1116
      %1118 = vrot.lane.b32.xlu0 %v1117, 64
      %v1119 = vpop.permute.xlu0 %1118
      %v1122 = vrot.slane %v707, 1
      %v1123 = vrot.slane %v725, 1
      %v1124 = vsel %vm984, %v1122, %v1123
      %v1126 = vsel %vm1033, %v707, %v1119
      %s1128 = scalar_lea.vmem %s3, 96
      %v1129 = vld [vmem:[%s1128] sm:$0xf]
      %v1130 = vld [vmem:[%s1128 + $0x4] sm:$0xf]
      %v1131 = vld [vmem:[%s1128 + $0x8] sm:$0xf]
      %v1132 = vld [vmem:[%s1128 + $0xc] sm:$0xf]
      %v1133 = vld [vmem:[%s1128 + $0x10] sm:$0xf]
      %v1134 = vld [vmem:[%s1128 + $0x14] sm:$0xf]
      %v1135 = vld [vmem:[%s1128 + $0x18] sm:$0xf]
      %v1136 = vld [vmem:[%s1128 + $0x1c] sm:$0xf]
      %v1137 = vld [vmem:[%s1128 + $0x20] sm:$0xf]
      %v1138 = vld [vmem:[%s1128 + $0x24] sm:$0xf]
      %v1139 = vld [vmem:[%s1128 + $0x28] sm:$0xf]
      %v1140 = vld [vmem:[%s1128 + $0x2c] sm:$0xf]
      %v1141 = vld [vmem:[%s1128 + $0x30] sm:$0xf]
      %v1142 = vld [vmem:[%s1128 + $0x34] sm:$0xf]
      %v1143 = vld [vmem:[%s1128 + $0x38] sm:$0xf]
      %v1144 = vld [vmem:[%s1128 + $0x3c] sm:$0xf]
      %v1145 = vld [vmem:[%s1128 + $0x40] sm:$0xf]
      %v1146 = vld [vmem:[%s1128 + $0x44] sm:$0xf]
      %v1147 = vld [vmem:[%s1128 + $0x48] sm:$0xf]
      %v1148 = vld [vmem:[%s1128 + $0x4c] sm:$0xf]
      %v1149 = vld [vmem:[%s1128 + $0x50] sm:$0xf]
      %v1150 = vld [vmem:[%s1128 + $0x54] sm:$0xf]
      %v1151 = vld [vmem:[%s1128 + $0x58] sm:$0xf]
      %v1152 = vld [vmem:[%s1128 + $0x5c] sm:$0xf]
      %v1177 = vunpack.c.l.b16 %v1129
      %v1178 = vunpack.c.l.b16 %v1130
      %v1179 = vunpack.c.l.b16 %v1131
      %v1180 = vunpack.c.l.b16 %v1132
      %v1181 = vunpack.c.l.b16 %v1133
      %v1182 = vunpack.c.l.b16 %v1134
      %v1183 = vunpack.c.l.b16 %v1135
      %v1184 = vunpack.c.l.b16 %v1136
      %v1185 = vunpack.c.l.b16 %v1137
      %v1186 = vunpack.c.l.b16 %v1138
      %v1187 = vunpack.c.l.b16 %v1139
      %v1188 = vunpack.c.l.b16 %v1140
      %v1189 = vunpack.c.l.b16 %v1141
      %v1190 = vunpack.c.l.b16 %v1142
      %v1191 = vunpack.c.l.b16 %v1143
      %v1192 = vunpack.c.l.b16 %v1144
      %v1193 = vunpack.c.l.b16 %v1145
      %v1194 = vunpack.c.l.b16 %v1146
      %v1195 = vunpack.c.l.b16 %v1147
      %v1196 = vunpack.c.l.b16 %v1148
      %v1197 = vunpack.c.l.b16 %v1149
      %v1198 = vunpack.c.l.b16 %v1150
      %v1199 = vunpack.c.l.b16 %v1151
      %v1200 = vunpack.c.l.b16 %v1152
      %v1201 = vpack.c.b16 %v1178, %v1177
      %v1202 = vpack.c.b16 %v1180, %v1179
      %v1203 = vpack.c.b16 %v1182, %v1181
      %v1204 = vpack.c.b16 %v1184, %v1183
      %v1205 = vpack.c.b16 %v1186, %v1185
      %v1206 = vpack.c.b16 %v1188, %v1187
      %v1207 = vpack.c.b16 %v1190, %v1189
      %v1208 = vpack.c.b16 %v1192, %v1191
      %v1209 = vpack.c.b16 %v1194, %v1193
      %v1210 = vpack.c.b16 %v1196, %v1195
      %v1211 = vpack.c.b16 %v1198, %v1197
      %v1212 = vpack.c.b16 %v1200, %v1199
      %v1226 = vsel %vm1033, %v990, 0
      %v1229 = vsel %vm1033, %v993, 0
      %v1232 = vsel %vm1033, %v996, 0
      %v1235 = vsel %vm1033, %v999, 0
      %v1238 = vsel %vm1033, %v1002, 0
      %v1241 = vsel %vm1033, %v1005, 0
      %v1244 = vsel %vm1033, %v1008, 0
      %v1247 = vsel %vm1033, %v1011, 0
      %v1250 = vsel %vm1033, %v1014, 0
      %v1253 = vsel %vm1033, %v1017, 0
      %v1256 = vsel %vm1033, %v1020, 0
      %v1259 = vsel %vm1033, %v1023, 0
      %v1262 = vsel %vm1033, %v1026, 0
      %v1265 = vsel %vm1033, %v1029, 0
      %v1268 = vsel %vm1033, %v1032, 0
      %v1271 = vsel %vm1033, %v1124, 0
      %1273 = vmatprep.subr.bf16.mxu0 0
      %1274 = vmatpush1.bf16.msra.mxu0 %v1208
      %1275 = vmatprep.subr.bf16.mxu0 0
      %1276 = vmatpush1.bf16.msra.mxu0 %v1207
      %1277 = vmatprep.subr.bf16.mxu0 0
      %1278 = vmatpush1.bf16.msra.mxu0 %v1206
      %1279 = vmatprep.subr.bf16.mxu0 0
      %1280 = vmatpush1.bf16.msra.mxu0 %v1205
      %1281 = vmatprep.subr.bf16.mxu0 0
      %1282 = vmatpush1.bf16.msra.mxu0 %v1204
      %1283 = vmatprep.subr.bf16.mxu0 0
      %1284 = vmatpush1.bf16.msra.mxu0 %v1203
      %1285 = vmatprep.subr.bf16.mxu0 0
      %1286 = vmatpush1.bf16.msra.mxu0 %v1202
      %1287 = vmatprep.subr.bf16.mxu0 0
      %1288 = vmatpush1.bf16.msra.mxu0 %v1201
      %1289 = vmatprep.subr.bf16.mxu0 0
      %1290 = vmatpush2.bf16.msra.mxu0 0
      %1291 = vmatprep.subr.bf16.mxu0 0
      %1292 = vmatpush2.bf16.msra.mxu0 0
      %1293 = vmatprep.subr.bf16.mxu0 0
      %1294 = vmatpush2.bf16.msra.mxu0 0
      %1295 = vmatprep.subr.bf16.mxu0 0
      %1296 = vmatpush2.bf16.msra.mxu0 0
      %1297 = vmatprep.subr.bf16.mxu0 0
      %1298 = vmatpush2.bf16.msra.mxu0 %v1212
      %1299 = vmatprep.subr.bf16.mxu0 0
      %1300 = vmatpush2.bf16.msra.mxu0 %v1211
      %1301 = vmatprep.subr.bf16.mxu0 0
      %1302 = vmatpush2.bf16.msra.mxu0 %v1210
      %1303 = vmatprep.subr.bf16.mxu0 0
      %1304 = vmatpush2.bf16.msra.mxu0 %v1209
      %1305 = vmatprep.mubr.bf16.mxu0 %v1226
      %1306 = vmatmul.mubr.bf16.gmra.mxu0 %v1038
      %v1307 = vpop.f32.mrf.mxu0
      %v1308 = vadd.f32 0.0, %v1307
      %v1309 = vpop.f32.mrf.mxu0
      %v1310 = vpop.f32.mrf.mxu0
      %v1311 = vadd.f32 0.0, %v1310
      %v1312 = vpop.f32.mrf.mxu0
      %1313 = vmatprep.mubr.bf16.mxu0 %v1229
      %1314 = vmatmul.mubr.bf16.gmra.mxu0 %v1041
      %v1315 = vpop.f32.mrf.mxu0
      %v1316 = vadd.f32 0.0, %v1315
      %v1317 = vpop.f32.mrf.mxu0
      %v1318 = vpop.f32.mrf.mxu0
      %v1319 = vadd.f32 0.0, %v1318
      %v1320 = vpop.f32.mrf.mxu0
      %1321 = vmatprep.mubr.bf16.mxu0 %v1232
      %1322 = vmatmul.mubr.bf16.gmra.mxu0 %v1044
      %v1323 = vpop.f32.mrf.mxu0
      %v1324 = vadd.f32 0.0, %v1323
      %v1325 = vpop.f32.mrf.mxu0
      %v1326 = vpop.f32.mrf.mxu0
      %v1327 = vadd.f32 0.0, %v1326
      %v1328 = vpop.f32.mrf.mxu0
      %1329 = vmatprep.mubr.bf16.mxu0 %v1235
      %1330 = vmatmul.mubr.bf16.gmra.mxu0 %v1047
      %v1331 = vpop.f32.mrf.mxu0
      %v1332 = vadd.f32 0.0, %v1331
      %v1333 = vpop.f32.mrf.mxu0
      %v1334 = vpop.f32.mrf.mxu0
      %v1335 = vadd.f32 0.0, %v1334
      %v1336 = vpop.f32.mrf.mxu0
      %1337 = vmatprep.mubr.bf16.mxu0 %v1238
      %1338 = vmatmul.mubr.bf16.gmra.mxu0 %v1050
      %v1339 = vpop.f32.mrf.mxu0
      %v1340 = vadd.f32 0.0, %v1339
      %v1341 = vpop.f32.mrf.mxu0
      %v1342 = vpop.f32.mrf.mxu0
      %v1343 = vadd.f32 0.0, %v1342
      %v1344 = vpop.f32.mrf.mxu0
      %1345 = vmatprep.mubr.bf16.mxu0 %v1241
      %1346 = vmatmul.mubr.bf16.gmra.mxu0 %v1053
      %v1347 = vpop.f32.mrf.mxu0
      %v1348 = vadd.f32 0.0, %v1347
      %v1349 = vpop.f32.mrf.mxu0
      %v1350 = vpop.f32.mrf.mxu0
      %v1351 = vadd.f32 0.0, %v1350
      %v1352 = vpop.f32.mrf.mxu0
      %1353 = vmatprep.mubr.bf16.mxu0 %v1244
      %1354 = vmatmul.mubr.bf16.gmra.mxu0 %v1056
      %v1355 = vpop.f32.mrf.mxu0
      %v1356 = vadd.f32 0.0, %v1355
      %v1357 = vpop.f32.mrf.mxu0
      %v1358 = vpop.f32.mrf.mxu0
      %v1359 = vadd.f32 0.0, %v1358
      %v1360 = vpop.f32.mrf.mxu0
      %1361 = vmatprep.mubr.bf16.mxu0 %v1247
      %1362 = vmatmul.mubr.bf16.gmra.mxu0 %v1059
      %v1363 = vpop.f32.mrf.mxu0
      %v1364 = vadd.f32 0.0, %v1363
      %v1365 = vpop.f32.mrf.mxu0
      %v1366 = vpop.f32.mrf.mxu0
      %v1367 = vadd.f32 0.0, %v1366
      %v1368 = vpop.f32.mrf.mxu0
      %1369 = vmatprep.mubr.bf16.mxu0 %v1250
      %1370 = vmatmul.mubr.bf16.gmra.mxu0 %v1062
      %v1371 = vpop.f32.mrf.mxu0
      %v1372 = vadd.f32 0.0, %v1371
      %v1373 = vpop.f32.mrf.mxu0
      %v1374 = vpop.f32.mrf.mxu0
      %v1375 = vadd.f32 0.0, %v1374
      %v1376 = vpop.f32.mrf.mxu0
      %1377 = vmatprep.mubr.bf16.mxu0 %v1253
      %1378 = vmatmul.mubr.bf16.gmra.mxu0 %v1065
      %v1379 = vpop.f32.mrf.mxu0
      %v1380 = vadd.f32 0.0, %v1379
      %v1381 = vpop.f32.mrf.mxu0
      %v1382 = vpop.f32.mrf.mxu0
      %v1383 = vadd.f32 0.0, %v1382
      %v1384 = vpop.f32.mrf.mxu0
      %1385 = vmatprep.mubr.bf16.mxu0 %v1256
      %1386 = vmatmul.mubr.bf16.gmra.mxu0 %v1068
      %v1387 = vpop.f32.mrf.mxu0
      %v1388 = vadd.f32 0.0, %v1387
      %v1389 = vpop.f32.mrf.mxu0
      %v1390 = vpop.f32.mrf.mxu0
      %v1391 = vadd.f32 0.0, %v1390
      %v1392 = vpop.f32.mrf.mxu0
      %1393 = vmatprep.mubr.bf16.mxu0 %v1259
      %1394 = vmatmul.mubr.bf16.gmra.mxu0 %v1071
      %v1395 = vpop.f32.mrf.mxu0
      %v1396 = vadd.f32 0.0, %v1395
      %v1397 = vpop.f32.mrf.mxu0
      %v1398 = vpop.f32.mrf.mxu0
      %v1399 = vadd.f32 0.0, %v1398
      %v1400 = vpop.f32.mrf.mxu0
      %1401 = vmatprep.mubr.bf16.mxu0 %v1262
      %1402 = vmatmul.mubr.bf16.gmra.mxu0 %v1074
      %v1403 = vpop.f32.mrf.mxu0
      %v1404 = vadd.f32 0.0, %v1403
      %v1405 = vpop.f32.mrf.mxu0
      %v1406 = vpop.f32.mrf.mxu0
      %v1407 = vadd.f32 0.0, %v1406
      %v1408 = vpop.f32.mrf.mxu0
      %1409 = vmatprep.mubr.bf16.mxu0 %v1265
      %1410 = vmatmul.mubr.bf16.gmra.mxu0 %v1077
      %v1411 = vpop.f32.mrf.mxu0
      %v1412 = vadd.f32 0.0, %v1411
      %v1413 = vpop.f32.mrf.mxu0
      %v1414 = vpop.f32.mrf.mxu0
      %v1415 = vadd.f32 0.0, %v1414
      %v1416 = vpop.f32.mrf.mxu0
      %1417 = vmatprep.mubr.bf16.mxu0 %v1268
      %1418 = vmatmul.mubr.bf16.gmra.mxu0 %v1080
      %v1419 = vpop.f32.mrf.mxu0
      %v1420 = vadd.f32 0.0, %v1419
      %v1421 = vpop.f32.mrf.mxu0
      %v1422 = vpop.f32.mrf.mxu0
      %v1423 = vadd.f32 0.0, %v1422
      %v1424 = vpop.f32.mrf.mxu0
      %1425 = vmatprep.mubr.bf16.mxu0 %v1271
      %1426 = vmatmul.mubr.bf16.gmra.mxu0 %v1126
      %v1427 = vpop.f32.mrf.mxu0
      %v1428 = vadd.f32 0.0, %v1427
      %v1429 = vpop.f32.mrf.mxu0
      %v1430 = vpop.f32.mrf.mxu0
      %v1431 = vadd.f32 0.0, %v1430
      %v1432 = vpop.f32.mrf.mxu0
      %1433 = vdwg.mxu0
      %v1458 = vunpack.c.l.b16 %v1082
      %v1459 = vunpack.c.l.b16 %v1083
      %v1460 = vunpack.c.l.b16 %v1084
      %v1461 = vunpack.c.l.b16 %v1085
      %v1462 = vunpack.c.l.b16 %v1086
      %v1463 = vunpack.c.l.b16 %v1087
      %v1464 = vunpack.c.l.b16 %v1088
      %v1465 = vunpack.c.l.b16 %v1089
      %v1466 = vunpack.c.l.b16 %v1090
      %v1467 = vunpack.c.l.b16 %v1091
      %v1468 = vunpack.c.l.b16 %v1092
      %v1469 = vunpack.c.l.b16 %v1093
      %v1470 = vunpack.c.l.b16 %v1094
      %v1471 = vunpack.c.l.b16 %v1095
      %v1472 = vunpack.c.l.b16 %v1096
      %v1473 = vunpack.c.l.b16 %v1097
      %v1474 = vunpack.c.l.b16 %v1098
      %v1475 = vunpack.c.l.b16 %v1099
      %v1476 = vunpack.c.l.b16 %v1100
      %v1477 = vunpack.c.l.b16 %v1101
      %v1478 = vunpack.c.l.b16 %v1102
      %v1479 = vunpack.c.l.b16 %v1103
      %v1480 = vunpack.c.l.b16 %v1104
      %v1481 = vunpack.c.l.b16 %v1105
      %v1482 = vpack.c.b16 %v1459, %v1458
      %v1483 = vpack.c.b16 %v1461, %v1460
      %v1484 = vpack.c.b16 %v1463, %v1462
      %v1485 = vpack.c.b16 %v1465, %v1464
      %v1486 = vpack.c.b16 %v1467, %v1466
      %v1487 = vpack.c.b16 %v1469, %v1468
      %v1488 = vpack.c.b16 %v1471, %v1470
      %v1489 = vpack.c.b16 %v1473, %v1472
      %v1490 = vpack.c.b16 %v1475, %v1474
      %v1491 = vpack.c.b16 %v1477, %v1476
      %v1492 = vpack.c.b16 %v1479, %v1478
      %v1493 = vpack.c.b16 %v1481, %v1480
      %v1507 = vsel %vm1033, %v987, 0
      %1509 = vmatprep.subr.bf16.mxu0 0
      %1510 = vmatpush1.bf16.msra.mxu0 %v1489
      %1511 = vmatprep.subr.bf16.mxu0 0
      %1512 = vmatpush1.bf16.msra.mxu0 %v1488
      %1513 = vmatprep.subr.bf16.mxu0 0
      %1514 = vmatpush1.bf16.msra.mxu0 %v1487
      %1515 = vmatprep.subr.bf16.mxu0 0
      %1516 = vmatpush1.bf16.msra.mxu0 %v1486
      %1517 = vmatprep.subr.bf16.mxu0 0
      %1518 = vmatpush1.bf16.msra.mxu0 %v1485
      %1519 = vmatprep.subr.bf16.mxu0 0
      %1520 = vmatpush1.bf16.msra.mxu0 %v1484
      %1521 = vmatprep.subr.bf16.mxu0 0
      %1522 = vmatpush1.bf16.msra.mxu0 %v1483
      %1523 = vmatprep.subr.bf16.mxu0 0
      %1524 = vmatpush1.bf16.msra.mxu0 %v1482
      %1525 = vmatprep.subr.bf16.mxu0 0
      %1526 = vmatpush2.bf16.msra.mxu0 0
      %1527 = vmatprep.subr.bf16.mxu0 0
      %1528 = vmatpush2.bf16.msra.mxu0 0
      %1529 = vmatprep.subr.bf16.mxu0 0
      %1530 = vmatpush2.bf16.msra.mxu0 0
      %1531 = vmatprep.subr.bf16.mxu0 0
      %1532 = vmatpush2.bf16.msra.mxu0 0
      %1533 = vmatprep.subr.bf16.mxu0 0
      %1534 = vmatpush2.bf16.msra.mxu0 %v1493
      %1535 = vmatprep.subr.bf16.mxu0 0
      %1536 = vmatpush2.bf16.msra.mxu0 %v1492
      %1537 = vmatprep.subr.bf16.mxu0 0
      %1538 = vmatpush2.bf16.msra.mxu0 %v1491
      %1539 = vmatprep.subr.bf16.mxu0 0
      %1540 = vmatpush2.bf16.msra.mxu0 %v1490
      %1541 = vmatprep.mubr.bf16.mxu0 %v1507
      %1542 = vmatmul.mubr.bf16.gmra.mxu0 %v1035
      %v1543 = vpop.f32.mrf.mxu0
      %v1544 = vadd.f32 %v1308, %v1543
      %v1545 = vpop.f32.mrf.mxu0
      %v1546 = vpop.f32.mrf.mxu0
      %v1547 = vadd.f32 %v1311, %v1546
      %v1548 = vpop.f32.mrf.mxu0
      %1549 = vmatprep.mubr.bf16.mxu0 %v1226
      %1550 = vmatmul.mubr.bf16.gmra.mxu0 %v1038
      %v1551 = vpop.f32.mrf.mxu0
      %v1552 = vadd.f32 %v1316, %v1551
      %v1553 = vpop.f32.mrf.mxu0
      %v1554 = vpop.f32.mrf.mxu0
      %v1555 = vadd.f32 %v1319, %v1554
      %v1556 = vpop.f32.mrf.mxu0
      %1557 = vmatprep.mubr.bf16.mxu0 %v1229
      %1558 = vmatmul.mubr.bf16.gmra.mxu0 %v1041
      %v1559 = vpop.f32.mrf.mxu0
      %v1560 = vadd.f32 %v1324, %v1559
      %v1561 = vpop.f32.mrf.mxu0
      %v1562 = vpop.f32.mrf.mxu0
      %v1563 = vadd.f32 %v1327, %v1562
      %v1564 = vpop.f32.mrf.mxu0
      %1565 = vmatprep.mubr.bf16.mxu0 %v1232
      %1566 = vmatmul.mubr.bf16.gmra.mxu0 %v1044
      %v1567 = vpop.f32.mrf.mxu0
      %v1568 = vadd.f32 %v1332, %v1567
      %v1569 = vpop.f32.mrf.mxu0
      %v1570 = vpop.f32.mrf.mxu0
      %v1571 = vadd.f32 %v1335, %v1570
      %v1572 = vpop.f32.mrf.mxu0
      %1573 = vmatprep.mubr.bf16.mxu0 %v1235
      %1574 = vmatmul.mubr.bf16.gmra.mxu0 %v1047
      %v1575 = vpop.f32.mrf.mxu0
      %v1576 = vadd.f32 %v1340, %v1575
      %v1577 = vpop.f32.mrf.mxu0
      %v1578 = vpop.f32.mrf.mxu0
      %v1579 = vadd.f32 %v1343, %v1578
      %v1580 = vpop.f32.mrf.mxu0
      %1581 = vmatprep.mubr.bf16.mxu0 %v1238
      %1582 = vmatmul.mubr.bf16.gmra.mxu0 %v1050
      %v1583 = vpop.f32.mrf.mxu0
      %v1584 = vadd.f32 %v1348, %v1583
      %v1585 = vpop.f32.mrf.mxu0
      %v1586 = vpop.f32.mrf.mxu0
      %v1587 = vadd.f32 %v1351, %v1586
      %v1588 = vpop.f32.mrf.mxu0
      %1589 = vmatprep.mubr.bf16.mxu0 %v1241
      %1590 = vmatmul.mubr.bf16.gmra.mxu0 %v1053
      %v1591 = vpop.f32.mrf.mxu0
      %v1592 = vadd.f32 %v1356, %v1591
      %v1593 = vpop.f32.mrf.mxu0
      %v1594 = vpop.f32.mrf.mxu0
      %v1595 = vadd.f32 %v1359, %v1594
      %v1596 = vpop.f32.mrf.mxu0
      %1597 = vmatprep.mubr.bf16.mxu0 %v1244
      %1598 = vmatmul.mubr.bf16.gmra.mxu0 %v1056
      %v1599 = vpop.f32.mrf.mxu0
      %v1600 = vadd.f32 %v1364, %v1599
      %v1601 = vpop.f32.mrf.mxu0
      %v1602 = vpop.f32.mrf.mxu0
      %v1603 = vadd.f32 %v1367, %v1602
      %v1604 = vpop.f32.mrf.mxu0
      %1605 = vmatprep.mubr.bf16.mxu0 %v1247
      %1606 = vmatmul.mubr.bf16.gmra.mxu0 %v1059
      %v1607 = vpop.f32.mrf.mxu0
      %v1608 = vadd.f32 %v1372, %v1607
      %v1609 = vpop.f32.mrf.mxu0
      %v1610 = vpop.f32.mrf.mxu0
      %v1611 = vadd.f32 %v1375, %v1610
      %v1612 = vpop.f32.mrf.mxu0
      %1613 = vmatprep.mubr.bf16.mxu0 %v1250
      %1614 = vmatmul.mubr.bf16.gmra.mxu0 %v1062
      %v1615 = vpop.f32.mrf.mxu0
      %v1616 = vadd.f32 %v1380, %v1615
      %v1617 = vpop.f32.mrf.mxu0
      %v1618 = vpop.f32.mrf.mxu0
      %v1619 = vadd.f32 %v1383, %v1618
      %v1620 = vpop.f32.mrf.mxu0
      %1621 = vmatprep.mubr.bf16.mxu0 %v1253
      %1622 = vmatmul.mubr.bf16.gmra.mxu0 %v1065
      %v1623 = vpop.f32.mrf.mxu0
      %v1624 = vadd.f32 %v1388, %v1623
      %v1625 = vpop.f32.mrf.mxu0
      %v1626 = vpop.f32.mrf.mxu0
      %v1627 = vadd.f32 %v1391, %v1626
      %v1628 = vpop.f32.mrf.mxu0
      %1629 = vmatprep.mubr.bf16.mxu0 %v1256
      %1630 = vmatmul.mubr.bf16.gmra.mxu0 %v1068
      %v1631 = vpop.f32.mrf.mxu0
      %v1632 = vadd.f32 %v1396, %v1631
      %v1633 = vpop.f32.mrf.mxu0
      %v1634 = vpop.f32.mrf.mxu0
      %v1635 = vadd.f32 %v1399, %v1634
      %v1636 = vpop.f32.mrf.mxu0
      %1637 = vmatprep.mubr.bf16.mxu0 %v1259
      %1638 = vmatmul.mubr.bf16.gmra.mxu0 %v1071
      %v1639 = vpop.f32.mrf.mxu0
      %v1640 = vadd.f32 %v1404, %v1639
      %v1641 = vpop.f32.mrf.mxu0
      %v1642 = vpop.f32.mrf.mxu0
      %v1643 = vadd.f32 %v1407, %v1642
      %v1644 = vpop.f32.mrf.mxu0
      %1645 = vmatprep.mubr.bf16.mxu0 %v1262
      %1646 = vmatmul.mubr.bf16.gmra.mxu0 %v1074
      %v1647 = vpop.f32.mrf.mxu0
      %v1648 = vadd.f32 %v1412, %v1647
      %v1649 = vpop.f32.mrf.mxu0
      %v1650 = vpop.f32.mrf.mxu0
      %v1651 = vadd.f32 %v1415, %v1650
      %v1652 = vpop.f32.mrf.mxu0
      %1653 = vmatprep.mubr.bf16.mxu0 %v1265
      %1654 = vmatmul.mubr.bf16.gmra.mxu0 %v1077
      %v1655 = vpop.f32.mrf.mxu0
      %v1656 = vadd.f32 %v1420, %v1655
      %v1657 = vpop.f32.mrf.mxu0
      %v1658 = vpop.f32.mrf.mxu0
      %v1659 = vadd.f32 %v1423, %v1658
      %v1660 = vpop.f32.mrf.mxu0
      %1661 = vmatprep.mubr.bf16.mxu0 %v1268
      %1662 = vmatmul.mubr.bf16.gmra.mxu0 %v1080
      %v1663 = vpop.f32.mrf.mxu0
      %v1664 = vadd.f32 %v1428, %v1663
      %v1665 = vpop.f32.mrf.mxu0
      %v1666 = vpop.f32.mrf.mxu0
      %v1667 = vadd.f32 %v1431, %v1666
      %v1668 = vpop.f32.mrf.mxu0
      %1669 = vdwg.mxu0
      %v1671 = vshrl.u32 %v708, 16
      %v1673 = vshll.u32 %v708, 16
      %v1675 = vrot.slane %v1673, 1
      %v1676 = vor.u32 %v1671, %v1675
      %v1678 = vshll.u32 %v726, 16
      %v1680 = vrot.slane %v1678, 1
      %v1681 = vsel %vm727, %v1676, %v1680
      %1682 = vrot.lane.b32.xlu0 %v1681, 64
      %v1683 = vpop.permute.xlu0 %1682
      %v1686 = vrot.slane %v708, 1
      %v1687 = vrot.slane %v726, 1
      %v1688 = vsel %vm984, %v1686, %v1687
      %v1690 = vsel %vm1033, %v708, %v1683
      %s1692 = scalar_lea.vmem %s3, 192
      %v1693 = vld [vmem:[%s1692] sm:$0xf]
      %v1694 = vld [vmem:[%s1692 + $0x4] sm:$0xf]
      %v1695 = vld [vmem:[%s1692 + $0x8] sm:$0xf]
      %v1696 = vld [vmem:[%s1692 + $0xc] sm:$0xf]
      %v1697 = vld [vmem:[%s1692 + $0x10] sm:$0xf]
      %v1698 = vld [vmem:[%s1692 + $0x14] sm:$0xf]
      %v1699 = vld [vmem:[%s1692 + $0x18] sm:$0xf]
      %v1700 = vld [vmem:[%s1692 + $0x1c] sm:$0xf]
      %v1701 = vld [vmem:[%s1692 + $0x20] sm:$0xf]
      %v1702 = vld [vmem:[%s1692 + $0x24] sm:$0xf]
      %v1703 = vld [vmem:[%s1692 + $0x28] sm:$0xf]
      %v1704 = vld [vmem:[%s1692 + $0x2c] sm:$0xf]
      %v1705 = vld [vmem:[%s1692 + $0x30] sm:$0xf]
      %v1706 = vld [vmem:[%s1692 + $0x34] sm:$0xf]
      %v1707 = vld [vmem:[%s1692 + $0x38] sm:$0xf]
      %v1708 = vld [vmem:[%s1692 + $0x3c] sm:$0xf]
      %v1709 = vld [vmem:[%s1692 + $0x40] sm:$0xf]
      %v1710 = vld [vmem:[%s1692 + $0x44] sm:$0xf]
      %v1711 = vld [vmem:[%s1692 + $0x48] sm:$0xf]
      %v1712 = vld [vmem:[%s1692 + $0x4c] sm:$0xf]
      %v1713 = vld [vmem:[%s1692 + $0x50] sm:$0xf]
      %v1714 = vld [vmem:[%s1692 + $0x54] sm:$0xf]
      %v1715 = vld [vmem:[%s1692 + $0x58] sm:$0xf]
      %v1716 = vld [vmem:[%s1692 + $0x5c] sm:$0xf]
      %v1741 = vunpack.c.l.b16 %v1693
      %v1742 = vunpack.c.l.b16 %v1694
      %v1743 = vunpack.c.l.b16 %v1695
      %v1744 = vunpack.c.l.b16 %v1696
      %v1745 = vunpack.c.l.b16 %v1697
      %v1746 = vunpack.c.l.b16 %v1698
      %v1747 = vunpack.c.l.b16 %v1699
      %v1748 = vunpack.c.l.b16 %v1700
      %v1749 = vunpack.c.l.b16 %v1701
      %v1750 = vunpack.c.l.b16 %v1702
      %v1751 = vunpack.c.l.b16 %v1703
      %v1752 = vunpack.c.l.b16 %v1704
      %v1753 = vunpack.c.l.b16 %v1705
      %v1754 = vunpack.c.l.b16 %v1706
      %v1755 = vunpack.c.l.b16 %v1707
      %v1756 = vunpack.c.l.b16 %v1708
      %v1757 = vunpack.c.l.b16 %v1709
      %v1758 = vunpack.c.l.b16 %v1710
      %v1759 = vunpack.c.l.b16 %v1711
      %v1760 = vunpack.c.l.b16 %v1712
      %v1761 = vunpack.c.l.b16 %v1713
      %v1762 = vunpack.c.l.b16 %v1714
      %v1763 = vunpack.c.l.b16 %v1715
      %v1764 = vunpack.c.l.b16 %v1716
      %v1765 = vpack.c.b16 %v1742, %v1741
      %v1766 = vpack.c.b16 %v1744, %v1743
      %v1767 = vpack.c.b16 %v1746, %v1745
      %v1768 = vpack.c.b16 %v1748, %v1747
      %v1769 = vpack.c.b16 %v1750, %v1749
      %v1770 = vpack.c.b16 %v1752, %v1751
      %v1771 = vpack.c.b16 %v1754, %v1753
      %v1772 = vpack.c.b16 %v1756, %v1755
      %v1773 = vpack.c.b16 %v1758, %v1757
      %v1774 = vpack.c.b16 %v1760, %v1759
      %v1775 = vpack.c.b16 %v1762, %v1761
      %v1776 = vpack.c.b16 %v1764, %v1763
      %v1790 = vsel %vm1033, %v1688, 0
      %1792 = vmatprep.subr.bf16.mxu0 0
      %1793 = vmatpush1.bf16.msra.mxu0 %v1772
      %1794 = vmatprep.subr.bf16.mxu0 0
      %1795 = vmatpush1.bf16.msra.mxu0 %v1771
      %1796 = vmatprep.subr.bf16.mxu0 0
      %1797 = vmatpush1.bf16.msra.mxu0 %v1770
      %1798 = vmatprep.subr.bf16.mxu0 0
      %1799 = vmatpush1.bf16.msra.mxu0 %v1769
      %1800 = vmatprep.subr.bf16.mxu0 0
      %1801 = vmatpush1.bf16.msra.mxu0 %v1768
      %1802 = vmatprep.subr.bf16.mxu0 0
      %1803 = vmatpush1.bf16.msra.mxu0 %v1767
      %1804 = vmatprep.subr.bf16.mxu0 0
      %1805 = vmatpush1.bf16.msra.mxu0 %v1766
      %1806 = vmatprep.subr.bf16.mxu0 0
      %1807 = vmatpush1.bf16.msra.mxu0 %v1765
      %1808 = vmatprep.subr.bf16.mxu0 0
      %1809 = vmatpush2.bf16.msra.mxu0 0
      %1810 = vmatprep.subr.bf16.mxu0 0
      %1811 = vmatpush2.bf16.msra.mxu0 0
      %1812 = vmatprep.subr.bf16.mxu0 0
      %1813 = vmatpush2.bf16.msra.mxu0 0
      %1814 = vmatprep.subr.bf16.mxu0 0
      %1815 = vmatpush2.bf16.msra.mxu0 0
      %1816 = vmatprep.subr.bf16.mxu0 0
      %1817 = vmatpush2.bf16.msra.mxu0 %v1776
      %1818 = vmatprep.subr.bf16.mxu0 0
      %1819 = vmatpush2.bf16.msra.mxu0 %v1775
      %1820 = vmatprep.subr.bf16.mxu0 0
      %1821 = vmatpush2.bf16.msra.mxu0 %v1774
      %1822 = vmatprep.subr.bf16.mxu0 0
      %1823 = vmatpush2.bf16.msra.mxu0 %v1773
      %1824 = vmatprep.mubr.bf16.mxu0 %v1229
      %1825 = vmatmul.mubr.bf16.gmra.mxu0 %v1041
      %v1826 = vpop.f32.mrf.mxu0
      %v1827 = vadd.f32 0.0, %v1826
      %v1828 = vpop.f32.mrf.mxu0
      %v1829 = vpop.f32.mrf.mxu0
      %v1830 = vadd.f32 0.0, %v1829
      %v1831 = vpop.f32.mrf.mxu0
      %1832 = vmatprep.mubr.bf16.mxu0 %v1232
      %1833 = vmatmul.mubr.bf16.gmra.mxu0 %v1044
      %v1834 = vpop.f32.mrf.mxu0
      %v1835 = vadd.f32 0.0, %v1834
      %v1836 = vpop.f32.mrf.mxu0
      %v1837 = vpop.f32.mrf.mxu0
      %v1838 = vadd.f32 0.0, %v1837
      %v1839 = vpop.f32.mrf.mxu0
      %1840 = vmatprep.mubr.bf16.mxu0 %v1235
      %1841 = vmatmul.mubr.bf16.gmra.mxu0 %v1047
      %v1842 = vpop.f32.mrf.mxu0
      %v1843 = vadd.f32 0.0, %v1842
      %v1844 = vpop.f32.mrf.mxu0
      %v1845 = vpop.f32.mrf.mxu0
      %v1846 = vadd.f32 0.0, %v1845
      %v1847 = vpop.f32.mrf.mxu0
      %1848 = vmatprep.mubr.bf16.mxu0 %v1238
      %1849 = vmatmul.mubr.bf16.gmra.mxu0 %v1050
      %v1850 = vpop.f32.mrf.mxu0
      %v1851 = vadd.f32 0.0, %v1850
      %v1852 = vpop.f32.mrf.mxu0
      %v1853 = vpop.f32.mrf.mxu0
      %v1854 = vadd.f32 0.0, %v1853
      %v1855 = vpop.f32.mrf.mxu0
      %1856 = vmatprep.mubr.bf16.mxu0 %v1241
      %1857 = vmatmul.mubr.bf16.gmra.mxu0 %v1053
      %v1858 = vpop.f32.mrf.mxu0
      %v1859 = vadd.f32 0.0, %v1858
      %v1860 = vpop.f32.mrf.mxu0
      %v1861 = vpop.f32.mrf.mxu0
      %v1862 = vadd.f32 0.0, %v1861
      %v1863 = vpop.f32.mrf.mxu0
      %1864 = vmatprep.mubr.bf16.mxu0 %v1244
      %1865 = vmatmul.mubr.bf16.gmra.mxu0 %v1056
      %v1866 = vpop.f32.mrf.mxu0
      %v1867 = vadd.f32 0.0, %v1866
      %v1868 = vpop.f32.mrf.mxu0
      %v1869 = vpop.f32.mrf.mxu0
      %v1870 = vadd.f32 0.0, %v1869
      %v1871 = vpop.f32.mrf.mxu0
      %1872 = vmatprep.mubr.bf16.mxu0 %v1247
      %1873 = vmatmul.mubr.bf16.gmra.mxu0 %v1059
      %v1874 = vpop.f32.mrf.mxu0
      %v1875 = vadd.f32 0.0, %v1874
      %v1876 = vpop.f32.mrf.mxu0
      %v1877 = vpop.f32.mrf.mxu0
      %v1878 = vadd.f32 0.0, %v1877
      %v1879 = vpop.f32.mrf.mxu0
      %1880 = vmatprep.mubr.bf16.mxu0 %v1250
      %1881 = vmatmul.mubr.bf16.gmra.mxu0 %v1062
      %v1882 = vpop.f32.mrf.mxu0
      %v1883 = vadd.f32 0.0, %v1882
      %v1884 = vpop.f32.mrf.mxu0
      %v1885 = vpop.f32.mrf.mxu0
      %v1886 = vadd.f32 0.0, %v1885
      %v1887 = vpop.f32.mrf.mxu0
      %1888 = vmatprep.mubr.bf16.mxu0 %v1253
      %1889 = vmatmul.mubr.bf16.gmra.mxu0 %v1065
      %v1890 = vpop.f32.mrf.mxu0
      %v1891 = vadd.f32 0.0, %v1890
      %v1892 = vpop.f32.mrf.mxu0
      %v1893 = vpop.f32.mrf.mxu0
      %v1894 = vadd.f32 0.0, %v1893
      %v1895 = vpop.f32.mrf.mxu0
      %1896 = vmatprep.mubr.bf16.mxu0 %v1256
      %1897 = vmatmul.mubr.bf16.gmra.mxu0 %v1068
      %v1898 = vpop.f32.mrf.mxu0
      %v1899 = vadd.f32 0.0, %v1898
      %v1900 = vpop.f32.mrf.mxu0
      %v1901 = vpop.f32.mrf.mxu0
      %v1902 = vadd.f32 0.0, %v1901
      %v1903 = vpop.f32.mrf.mxu0
      %1904 = vmatprep.mubr.bf16.mxu0 %v1259
      %1905 = vmatmul.mubr.bf16.gmra.mxu0 %v1071
      %v1906 = vpop.f32.mrf.mxu0
      %v1907 = vadd.f32 0.0, %v1906
      %v1908 = vpop.f32.mrf.mxu0
      %v1909 = vpop.f32.mrf.mxu0
      %v1910 = vadd.f32 0.0, %v1909
      %v1911 = vpop.f32.mrf.mxu0
      %1912 = vmatprep.mubr.bf16.mxu0 %v1262
      %1913 = vmatmul.mubr.bf16.gmra.mxu0 %v1074
      %v1914 = vpop.f32.mrf.mxu0
      %v1915 = vadd.f32 0.0, %v1914
      %v1916 = vpop.f32.mrf.mxu0
      %v1917 = vpop.f32.mrf.mxu0
      %v1918 = vadd.f32 0.0, %v1917
      %v1919 = vpop.f32.mrf.mxu0
      %1920 = vmatprep.mubr.bf16.mxu0 %v1265
      %1921 = vmatmul.mubr.bf16.gmra.mxu0 %v1077
      %v1922 = vpop.f32.mrf.mxu0
      %v1923 = vadd.f32 0.0, %v1922
      %v1924 = vpop.f32.mrf.mxu0
      %v1925 = vpop.f32.mrf.mxu0
      %v1926 = vadd.f32 0.0, %v1925
      %v1927 = vpop.f32.mrf.mxu0
      %1928 = vmatprep.mubr.bf16.mxu0 %v1268
      %1929 = vmatmul.mubr.bf16.gmra.mxu0 %v1080
      %v1930 = vpop.f32.mrf.mxu0
      %v1931 = vadd.f32 0.0, %v1930
      %v1932 = vpop.f32.mrf.mxu0
      %v1933 = vpop.f32.mrf.mxu0
      %v1934 = vadd.f32 0.0, %v1933
      %v1935 = vpop.f32.mrf.mxu0
      %1936 = vmatprep.mubr.bf16.mxu0 %v1271
      %1937 = vmatmul.mubr.bf16.gmra.mxu0 %v1126
      %v1938 = vpop.f32.mrf.mxu0
      %v1939 = vadd.f32 0.0, %v1938
      %v1940 = vpop.f32.mrf.mxu0
      %v1941 = vpop.f32.mrf.mxu0
      %v1942 = vadd.f32 0.0, %v1941
      %v1943 = vpop.f32.mrf.mxu0
      %1944 = vmatprep.mubr.bf16.mxu0 %v1790
      %1945 = vmatmul.mubr.bf16.gmra.mxu0 %v1690
      %v1946 = vpop.f32.mrf.mxu0
      %v1947 = vadd.f32 0.0, %v1946
      %v1948 = vpop.f32.mrf.mxu0
      %v1949 = vpop.f32.mrf.mxu0
      %v1950 = vadd.f32 0.0, %v1949
      %v1951 = vpop.f32.mrf.mxu0
      %1952 = vdwg.mxu0
      %v1953 = vadd.f32 %v1544, %v1827
      %v1954 = vadd.f32 %v1547, %v1830
      %v1955 = vadd.f32 %v1552, %v1835
      %v1956 = vadd.f32 %v1555, %v1838
      %v1957 = vadd.f32 %v1560, %v1843
      %v1958 = vadd.f32 %v1563, %v1846
      %v1959 = vadd.f32 %v1568, %v1851
      %v1960 = vadd.f32 %v1571, %v1854
      %v1961 = vadd.f32 %v1576, %v1859
      %v1962 = vadd.f32 %v1579, %v1862
      %v1963 = vadd.f32 %v1584, %v1867
      %v1964 = vadd.f32 %v1587, %v1870
      %v1965 = vadd.f32 %v1592, %v1875
      %v1966 = vadd.f32 %v1595, %v1878
      %v1967 = vadd.f32 %v1600, %v1883
      %v1968 = vadd.f32 %v1603, %v1886
      %v1969 = vadd.f32 %v1608, %v1891
      %v1970 = vadd.f32 %v1611, %v1894
      %v1971 = vadd.f32 %v1616, %v1899
      %v1972 = vadd.f32 %v1619, %v1902
      %v1973 = vadd.f32 %v1624, %v1907
      %v1974 = vadd.f32 %v1627, %v1910
      %v1975 = vadd.f32 %v1632, %v1915
      %v1976 = vadd.f32 %v1635, %v1918
      %v1977 = vadd.f32 %v1640, %v1923
      %v1978 = vadd.f32 %v1643, %v1926
      %v1979 = vadd.f32 %v1648, %v1931
      %v1980 = vadd.f32 %v1651, %v1934
      %v1981 = vadd.f32 %v1656, %v1939
      %v1982 = vadd.f32 %v1659, %v1942
      %v1983 = vadd.f32 %v1664, %v1947
      %v1984 = vadd.f32 %v1667, %v1950
      %v1985 = vld [vmem:[%s4] sm:$0x1]
      %v1987 = vlaneseq
      %v1988 = vshrl.u32 %v1987, 7
      %v1989 = vsub.s32 0, %v1988
      %v1990 = vrot.slane %v1985, %v1989
      %v1992 = vadd.f32 %v1953, %v1990
      %v1993 = vadd.f32 %v1954, %v1990
      %v1994 = vadd.f32 %v1955, %v1990
      %v1995 = vadd.f32 %v1956, %v1990
      %v1996 = vadd.f32 %v1957, %v1990
      %v1997 = vadd.f32 %v1958, %v1990
      %v1998 = vadd.f32 %v1959, %v1990
      %v1999 = vadd.f32 %v1960, %v1990
      %v2000 = vadd.f32 %v1961, %v1990
      %v2001 = vadd.f32 %v1962, %v1990
      %v2002 = vadd.f32 %v1963, %v1990
      %v2003 = vadd.f32 %v1964, %v1990
      %v2004 = vadd.f32 %v1965, %v1990
      %v2005 = vadd.f32 %v1966, %v1990
      %v2006 = vadd.f32 %v1967, %v1990
      %v2007 = vadd.f32 %v1968, %v1990
      %v2008 = vadd.f32 %v1969, %v1990
      %v2009 = vadd.f32 %v1970, %v1990
      %v2010 = vadd.f32 %v1971, %v1990
      %v2011 = vadd.f32 %v1972, %v1990
      %v2012 = vadd.f32 %v1973, %v1990
      %v2013 = vadd.f32 %v1974, %v1990
      %v2014 = vadd.f32 %v1975, %v1990
      %v2015 = vadd.f32 %v1976, %v1990
      %v2016 = vadd.f32 %v1977, %v1990
      %v2017 = vadd.f32 %v1978, %v1990
      %v2018 = vadd.f32 %v1979, %v1990
      %v2019 = vadd.f32 %v1980, %v1990
      %v2020 = vadd.f32 %v1981, %v1990
      %v2021 = vadd.f32 %v1982, %v1990
      %v2022 = vadd.f32 %v1983, %v1990
      %v2023 = vadd.f32 %v1984, %v1990
      %v2024 = vmax.f32 %v1992, 0.0
      %v2025 = vmax.f32 %v1993, 0.0
      %v2026 = vmax.f32 %v1994, 0.0
      %v2027 = vmax.f32 %v1995, 0.0
      %v2028 = vmax.f32 %v1996, 0.0
      %v2029 = vmax.f32 %v1997, 0.0
      %v2030 = vmax.f32 %v1998, 0.0
      %v2031 = vmax.f32 %v1999, 0.0
      %v2032 = vmax.f32 %v2000, 0.0
      %v2033 = vmax.f32 %v2001, 0.0
      %v2034 = vmax.f32 %v2002, 0.0
      %v2035 = vmax.f32 %v2003, 0.0
      %v2036 = vmax.f32 %v2004, 0.0
      %v2037 = vmax.f32 %v2005, 0.0
      %v2038 = vmax.f32 %v2006, 0.0
      %v2039 = vmax.f32 %v2007, 0.0
      %v2040 = vmax.f32 %v2008, 0.0
      %v2041 = vmax.f32 %v2009, 0.0
      %v2042 = vmax.f32 %v2010, 0.0
      %v2043 = vmax.f32 %v2011, 0.0
      %v2044 = vmax.f32 %v2012, 0.0
      %v2045 = vmax.f32 %v2013, 0.0
      %v2046 = vmax.f32 %v2014, 0.0
      %v2047 = vmax.f32 %v2015, 0.0
      %v2048 = vmax.f32 %v2016, 0.0
      %v2049 = vmax.f32 %v2017, 0.0
      %v2050 = vmax.f32 %v2018, 0.0
      %v2051 = vmax.f32 %v2019, 0.0
      %v2052 = vmax.f32 %v2020, 0.0
      %v2053 = vmax.f32 %v2021, 0.0
      %v2054 = vmax.f32 %v2022, 0.0
      %v2055 = vmax.f32 %v2023, 0.0
      %v2088 = vcombine.high %v2024, %v2024
      %v2090 = vunpack.c.l.s4 1983009808
      %v2091 = vunpack.c.0.s8 %v2090
      %v2092 = vlaneseq
      %v2093 = vshrl.u32 %v2092, 7
      %v2094 = vsub.s32 %v2091, %v2093
      %v2095 = vrot.slane %v2024, %v2094
      %v2097 = vunpack.c.l.s4 1983009808
      %v2098 = vunpack.c.0.s8 %v2097
      %v2099 = vlaneseq
      %v2100 = vshrl.u32 %v2099, 7
      %v2101 = vsub.s32 %v2098, %v2100
      %v2102 = vrot.slane %v2088, %v2101
      %v2103 = vcombine.high %v2095, %v2095
      %v2104 = vcombine.high %v2102, %v2102
      %v2105 = vcombine.high %v2025, %v2025
      %v2107 = vunpack.c.l.s4 1983009808
      %v2108 = vunpack.c.0.s8 %v2107
      %v2109 = vlaneseq
      %v2110 = vshrl.u32 %v2109, 7
      %v2111 = vsub.s32 %v2108, %v2110
      %v2112 = vrot.slane %v2025, %v2111
      %v2114 = vunpack.c.l.s4 1983009808
      %v2115 = vunpack.c.0.s8 %v2114
      %v2116 = vlaneseq
      %v2117 = vshrl.u32 %v2116, 7
      %v2118 = vsub.s32 %v2115, %v2117
      %v2119 = vrot.slane %v2105, %v2118
      %v2120 = vcombine.high %v2112, %v2112
      %v2121 = vcombine.high %v2119, %v2119
      %v2122 = vcombine.high %v2026, %v2026
      %v2124 = vunpack.c.l.s4 1983009808
      %v2125 = vunpack.c.0.s8 %v2124
      %v2126 = vlaneseq
      %v2127 = vshrl.u32 %v2126, 7
      %v2128 = vsub.s32 %v2125, %v2127
      %v2129 = vrot.slane %v2026, %v2128
      %v2131 = vunpack.c.l.s4 1983009808
      %v2132 = vunpack.c.0.s8 %v2131
      %v2133 = vlaneseq
      %v2134 = vshrl.u32 %v2133, 7
      %v2135 = vsub.s32 %v2132, %v2134
      %v2136 = vrot.slane %v2122, %v2135
      %v2137 = vcombine.high %v2129, %v2129
      %v2138 = vcombine.high %v2136, %v2136
      %v2139 = vcombine.high %v2027, %v2027
      %v2141 = vunpack.c.l.s4 1983009808
      %v2142 = vunpack.c.0.s8 %v2141
      %v2143 = vlaneseq
      %v2144 = vshrl.u32 %v2143, 7
      %v2145 = vsub.s32 %v2142, %v2144
      %v2146 = vrot.slane %v2027, %v2145
      %v2148 = vunpack.c.l.s4 1983009808
      %v2149 = vunpack.c.0.s8 %v2148
      %v2150 = vlaneseq
      %v2151 = vshrl.u32 %v2150, 7
      %v2152 = vsub.s32 %v2149, %v2151
      %v2153 = vrot.slane %v2139, %v2152
      %v2154 = vcombine.high %v2146, %v2146
      %v2155 = vcombine.high %v2153, %v2153
      %v2156 = vcombine.high %v2028, %v2028
      %v2158 = vunpack.c.l.s4 1983009808
      %v2159 = vunpack.c.0.s8 %v2158
      %v2160 = vlaneseq
      %v2161 = vshrl.u32 %v2160, 7
      %v2162 = vsub.s32 %v2159, %v2161
      %v2163 = vrot.slane %v2028, %v2162
      %v2165 = vunpack.c.l.s4 1983009808
      %v2166 = vunpack.c.0.s8 %v2165
      %v2167 = vlaneseq
      %v2168 = vshrl.u32 %v2167, 7
      %v2169 = vsub.s32 %v2166, %v2168
      %v2170 = vrot.slane %v2156, %v2169
      %v2171 = vcombine.high %v2163, %v2163
      %v2172 = vcombine.high %v2170, %v2170
      %v2173 = vcombine.high %v2029, %v2029
      %v2175 = vunpack.c.l.s4 1983009808
      %v2176 = vunpack.c.0.s8 %v2175
      %v2177 = vlaneseq
      %v2178 = vshrl.u32 %v2177, 7
      %v2179 = vsub.s32 %v2176, %v2178
      %v2180 = vrot.slane %v2029, %v2179
      %v2182 = vunpack.c.l.s4 1983009808
      %v2183 = vunpack.c.0.s8 %v2182
      %v2184 = vlaneseq
      %v2185 = vshrl.u32 %v2184, 7
      %v2186 = vsub.s32 %v2183, %v2185
      %v2187 = vrot.slane %v2173, %v2186
      %v2188 = vcombine.high %v2180, %v2180
      %v2189 = vcombine.high %v2187, %v2187
      %v2190 = vcombine.high %v2030, %v2030
      %v2192 = vunpack.c.l.s4 1983009808
      %v2193 = vunpack.c.0.s8 %v2192
      %v2194 = vlaneseq
      %v2195 = vshrl.u32 %v2194, 7
      %v2196 = vsub.s32 %v2193, %v2195
      %v2197 = vrot.slane %v2030, %v2196
      %v2199 = vunpack.c.l.s4 1983009808
      %v2200 = vunpack.c.0.s8 %v2199
      %v2201 = vlaneseq
      %v2202 = vshrl.u32 %v2201, 7
      %v2203 = vsub.s32 %v2200, %v2202
      %v2204 = vrot.slane %v2190, %v2203
      %v2205 = vcombine.high %v2197, %v2197
      %v2206 = vcombine.high %v2204, %v2204
      %v2207 = vcombine.high %v2031, %v2031
      %v2209 = vunpack.c.l.s4 1983009808
      %v2210 = vunpack.c.0.s8 %v2209
      %v2211 = vlaneseq
      %v2212 = vshrl.u32 %v2211, 7
      %v2213 = vsub.s32 %v2210, %v2212
      %v2214 = vrot.slane %v2031, %v2213
      %v2216 = vunpack.c.l.s4 1983009808
      %v2217 = vunpack.c.0.s8 %v2216
      %v2218 = vlaneseq
      %v2219 = vshrl.u32 %v2218, 7
      %v2220 = vsub.s32 %v2217, %v2219
      %v2221 = vrot.slane %v2207, %v2220
      %v2222 = vcombine.high %v2214, %v2214
      %v2223 = vcombine.high %v2221, %v2221
      %v2224 = vcombine.high %v2032, %v2032
      %v2226 = vunpack.c.l.s4 1983009808
      %v2227 = vunpack.c.0.s8 %v2226
      %v2228 = vlaneseq
      %v2229 = vshrl.u32 %v2228, 7
      %v2230 = vsub.s32 %v2227, %v2229
      %v2231 = vrot.slane %v2032, %v2230
      %v2233 = vunpack.c.l.s4 1983009808
      %v2234 = vunpack.c.0.s8 %v2233
      %v2235 = vlaneseq
      %v2236 = vshrl.u32 %v2235, 7
      %v2237 = vsub.s32 %v2234, %v2236
      %v2238 = vrot.slane %v2224, %v2237
      %v2239 = vcombine.high %v2231, %v2231
      %v2240 = vcombine.high %v2238, %v2238
      %v2241 = vcombine.high %v2033, %v2033
      %v2243 = vunpack.c.l.s4 1983009808
      %v2244 = vunpack.c.0.s8 %v2243
      %v2245 = vlaneseq
      %v2246 = vshrl.u32 %v2245, 7
      %v2247 = vsub.s32 %v2244, %v2246
      %v2248 = vrot.slane %v2033, %v2247
      %v2250 = vunpack.c.l.s4 1983009808
      %v2251 = vunpack.c.0.s8 %v2250
      %v2252 = vlaneseq
      %v2253 = vshrl.u32 %v2252, 7
      %v2254 = vsub.s32 %v2251, %v2253
      %v2255 = vrot.slane %v2241, %v2254
      %v2256 = vcombine.high %v2248, %v2248
      %v2257 = vcombine.high %v2255, %v2255
      %v2258 = vcombine.high %v2034, %v2034
      %v2260 = vunpack.c.l.s4 1983009808
      %v2261 = vunpack.c.0.s8 %v2260
      %v2262 = vlaneseq
      %v2263 = vshrl.u32 %v2262, 7
      %v2264 = vsub.s32 %v2261, %v2263
      %v2265 = vrot.slane %v2034, %v2264
      %v2267 = vunpack.c.l.s4 1983009808
      %v2268 = vunpack.c.0.s8 %v2267
      %v2269 = vlaneseq
      %v2270 = vshrl.u32 %v2269, 7
      %v2271 = vsub.s32 %v2268, %v2270
      %v2272 = vrot.slane %v2258, %v2271
      %v2273 = vcombine.high %v2265, %v2265
      %v2274 = vcombine.high %v2272, %v2272
      %v2275 = vcombine.high %v2035, %v2035
      %v2277 = vunpack.c.l.s4 1983009808
      %v2278 = vunpack.c.0.s8 %v2277
      %v2279 = vlaneseq
      %v2280 = vshrl.u32 %v2279, 7
      %v2281 = vsub.s32 %v2278, %v2280
      %v2282 = vrot.slane %v2035, %v2281
      %v2284 = vunpack.c.l.s4 1983009808
      %v2285 = vunpack.c.0.s8 %v2284
      %v2286 = vlaneseq
      %v2287 = vshrl.u32 %v2286, 7
      %v2288 = vsub.s32 %v2285, %v2287
      %v2289 = vrot.slane %v2275, %v2288
      %v2290 = vcombine.high %v2282, %v2282
      %v2291 = vcombine.high %v2289, %v2289
      %v2292 = vcombine.high %v2036, %v2036
      %v2294 = vunpack.c.l.s4 1983009808
      %v2295 = vunpack.c.0.s8 %v2294
      %v2296 = vlaneseq
      %v2297 = vshrl.u32 %v2296, 7
      %v2298 = vsub.s32 %v2295, %v2297
      %v2299 = vrot.slane %v2036, %v2298
      %v2301 = vunpack.c.l.s4 1983009808
      %v2302 = vunpack.c.0.s8 %v2301
      %v2303 = vlaneseq
      %v2304 = vshrl.u32 %v2303, 7
      %v2305 = vsub.s32 %v2302, %v2304
      %v2306 = vrot.slane %v2292, %v2305
      %v2307 = vcombine.high %v2299, %v2299
      %v2308 = vcombine.high %v2306, %v2306
      %v2309 = vcombine.high %v2037, %v2037
      %v2311 = vunpack.c.l.s4 1983009808
      %v2312 = vunpack.c.0.s8 %v2311
      %v2313 = vlaneseq
      %v2314 = vshrl.u32 %v2313, 7
      %v2315 = vsub.s32 %v2312, %v2314
      %v2316 = vrot.slane %v2037, %v2315
      %v2318 = vunpack.c.l.s4 1983009808
      %v2319 = vunpack.c.0.s8 %v2318
      %v2320 = vlaneseq
      %v2321 = vshrl.u32 %v2320, 7
      %v2322 = vsub.s32 %v2319, %v2321
      %v2323 = vrot.slane %v2309, %v2322
      %v2324 = vcombine.high %v2316, %v2316
      %v2325 = vcombine.high %v2323, %v2323
      %v2326 = vcombine.high %v2038, %v2038
      %v2328 = vunpack.c.l.s4 1983009808
      %v2329 = vunpack.c.0.s8 %v2328
      %v2330 = vlaneseq
      %v2331 = vshrl.u32 %v2330, 7
      %v2332 = vsub.s32 %v2329, %v2331
      %v2333 = vrot.slane %v2038, %v2332
      %v2335 = vunpack.c.l.s4 1983009808
      %v2336 = vunpack.c.0.s8 %v2335
      %v2337 = vlaneseq
      %v2338 = vshrl.u32 %v2337, 7
      %v2339 = vsub.s32 %v2336, %v2338
      %v2340 = vrot.slane %v2326, %v2339
      %v2341 = vcombine.high %v2333, %v2333
      %v2342 = vcombine.high %v2340, %v2340
      %v2343 = vcombine.high %v2039, %v2039
      %v2345 = vunpack.c.l.s4 1983009808
      %v2346 = vunpack.c.0.s8 %v2345
      %v2347 = vlaneseq
      %v2348 = vshrl.u32 %v2347, 7
      %v2349 = vsub.s32 %v2346, %v2348
      %v2350 = vrot.slane %v2039, %v2349
      %v2352 = vunpack.c.l.s4 1983009808
      %v2353 = vunpack.c.0.s8 %v2352
      %v2354 = vlaneseq
      %v2355 = vshrl.u32 %v2354, 7
      %v2356 = vsub.s32 %v2353, %v2355
      %v2357 = vrot.slane %v2343, %v2356
      %v2358 = vcombine.high %v2350, %v2350
      %v2359 = vcombine.high %v2357, %v2357
      %v2360 = vcombine.high %v2040, %v2040
      %v2362 = vunpack.c.l.s4 1983009808
      %v2363 = vunpack.c.0.s8 %v2362
      %v2364 = vlaneseq
      %v2365 = vshrl.u32 %v2364, 7
      %v2366 = vsub.s32 %v2363, %v2365
      %v2367 = vrot.slane %v2040, %v2366
      %v2369 = vunpack.c.l.s4 1983009808
      %v2370 = vunpack.c.0.s8 %v2369
      %v2371 = vlaneseq
      %v2372 = vshrl.u32 %v2371, 7
      %v2373 = vsub.s32 %v2370, %v2372
      %v2374 = vrot.slane %v2360, %v2373
      %v2375 = vcombine.high %v2367, %v2367
      %v2376 = vcombine.high %v2374, %v2374
      %v2377 = vcombine.high %v2041, %v2041
      %v2379 = vunpack.c.l.s4 1983009808
      %v2380 = vunpack.c.0.s8 %v2379
      %v2381 = vlaneseq
      %v2382 = vshrl.u32 %v2381, 7
      %v2383 = vsub.s32 %v2380, %v2382
      %v2384 = vrot.slane %v2041, %v2383
      %v2386 = vunpack.c.l.s4 1983009808
      %v2387 = vunpack.c.0.s8 %v2386
      %v2388 = vlaneseq
      %v2389 = vshrl.u32 %v2388, 7
      %v2390 = vsub.s32 %v2387, %v2389
      %v2391 = vrot.slane %v2377, %v2390
      %v2392 = vcombine.high %v2384, %v2384
      %v2393 = vcombine.high %v2391, %v2391
      %v2394 = vcombine.high %v2042, %v2042
      %v2396 = vunpack.c.l.s4 1983009808
      %v2397 = vunpack.c.0.s8 %v2396
      %v2398 = vlaneseq
      %v2399 = vshrl.u32 %v2398, 7
      %v2400 = vsub.s32 %v2397, %v2399
      %v2401 = vrot.slane %v2042, %v2400
      %v2403 = vunpack.c.l.s4 1983009808
      %v2404 = vunpack.c.0.s8 %v2403
      %v2405 = vlaneseq
      %v2406 = vshrl.u32 %v2405, 7
      %v2407 = vsub.s32 %v2404, %v2406
      %v2408 = vrot.slane %v2394, %v2407
      %v2409 = vcombine.high %v2401, %v2401
      %v2410 = vcombine.high %v2408, %v2408
      %v2411 = vcombine.high %v2043, %v2043
      %v2413 = vunpack.c.l.s4 1983009808
      %v2414 = vunpack.c.0.s8 %v2413
      %v2415 = vlaneseq
      %v2416 = vshrl.u32 %v2415, 7
      %v2417 = vsub.s32 %v2414, %v2416
      %v2418 = vrot.slane %v2043, %v2417
      %v2420 = vunpack.c.l.s4 1983009808
      %v2421 = vunpack.c.0.s8 %v2420
      %v2422 = vlaneseq
      %v2423 = vshrl.u32 %v2422, 7
      %v2424 = vsub.s32 %v2421, %v2423
      %v2425 = vrot.slane %v2411, %v2424
      %v2426 = vcombine.high %v2418, %v2418
      %v2427 = vcombine.high %v2425, %v2425
      %v2428 = vcombine.high %v2044, %v2044
      %v2430 = vunpack.c.l.s4 1983009808
      %v2431 = vunpack.c.0.s8 %v2430
      %v2432 = vlaneseq
      %v2433 = vshrl.u32 %v2432, 7
      %v2434 = vsub.s32 %v2431, %v2433
      %v2435 = vrot.slane %v2044, %v2434
      %v2437 = vunpack.c.l.s4 1983009808
      %v2438 = vunpack.c.0.s8 %v2437
      %v2439 = vlaneseq
      %v2440 = vshrl.u32 %v2439, 7
      %v2441 = vsub.s32 %v2438, %v2440
      %v2442 = vrot.slane %v2428, %v2441
      %v2443 = vcombine.high %v2435, %v2435
      %v2444 = vcombine.high %v2442, %v2442
      %v2445 = vcombine.high %v2045, %v2045
      %v2447 = vunpack.c.l.s4 1983009808
      %v2448 = vunpack.c.0.s8 %v2447
      %v2449 = vlaneseq
      %v2450 = vshrl.u32 %v2449, 7
      %v2451 = vsub.s32 %v2448, %v2450
      %v2452 = vrot.slane %v2045, %v2451
      %v2454 = vunpack.c.l.s4 1983009808
      %v2455 = vunpack.c.0.s8 %v2454
      %v2456 = vlaneseq
      %v2457 = vshrl.u32 %v2456, 7
      %v2458 = vsub.s32 %v2455, %v2457
      %v2459 = vrot.slane %v2445, %v2458
      %v2460 = vcombine.high %v2452, %v2452
      %v2461 = vcombine.high %v2459, %v2459
      %v2462 = vcombine.high %v2046, %v2046
      %v2464 = vunpack.c.l.s4 1983009808
      %v2465 = vunpack.c.0.s8 %v2464
      %v2466 = vlaneseq
      %v2467 = vshrl.u32 %v2466, 7
      %v2468 = vsub.s32 %v2465, %v2467
      %v2469 = vrot.slane %v2046, %v2468
      %v2471 = vunpack.c.l.s4 1983009808
      %v2472 = vunpack.c.0.s8 %v2471
      %v2473 = vlaneseq
      %v2474 = vshrl.u32 %v2473, 7
      %v2475 = vsub.s32 %v2472, %v2474
      %v2476 = vrot.slane %v2462, %v2475
      %v2477 = vcombine.high %v2469, %v2469
      %v2478 = vcombine.high %v2476, %v2476
      %v2479 = vcombine.high %v2047, %v2047
      %v2481 = vunpack.c.l.s4 1983009808
      %v2482 = vunpack.c.0.s8 %v2481
      %v2483 = vlaneseq
      %v2484 = vshrl.u32 %v2483, 7
      %v2485 = vsub.s32 %v2482, %v2484
      %v2486 = vrot.slane %v2047, %v2485
      %v2488 = vunpack.c.l.s4 1983009808
      %v2489 = vunpack.c.0.s8 %v2488
      %v2490 = vlaneseq
      %v2491 = vshrl.u32 %v2490, 7
      %v2492 = vsub.s32 %v2489, %v2491
      %v2493 = vrot.slane %v2479, %v2492
      %v2494 = vcombine.high %v2486, %v2486
      %v2495 = vcombine.high %v2493, %v2493
      %v2496 = vcombine.high %v2048, %v2048
      %v2498 = vunpack.c.l.s4 1983009808
      %v2499 = vunpack.c.0.s8 %v2498
      %v2500 = vlaneseq
      %v2501 = vshrl.u32 %v2500, 7
      %v2502 = vsub.s32 %v2499, %v2501
      %v2503 = vrot.slane %v2048, %v2502
      %v2505 = vunpack.c.l.s4 1983009808
      %v2506 = vunpack.c.0.s8 %v2505
      %v2507 = vlaneseq
      %v2508 = vshrl.u32 %v2507, 7
      %v2509 = vsub.s32 %v2506, %v2508
      %v2510 = vrot.slane %v2496, %v2509
      %v2511 = vcombine.high %v2503, %v2503
      %v2512 = vcombine.high %v2510, %v2510
      %v2513 = vcombine.high %v2049, %v2049
      %v2515 = vunpack.c.l.s4 1983009808
      %v2516 = vunpack.c.0.s8 %v2515
      %v2517 = vlaneseq
      %v2518 = vshrl.u32 %v2517, 7
      %v2519 = vsub.s32 %v2516, %v2518
      %v2520 = vrot.slane %v2049, %v2519
      %v2522 = vunpack.c.l.s4 1983009808
      %v2523 = vunpack.c.0.s8 %v2522
      %v2524 = vlaneseq
      %v2525 = vshrl.u32 %v2524, 7
      %v2526 = vsub.s32 %v2523, %v2525
      %v2527 = vrot.slane %v2513, %v2526
      %v2528 = vcombine.high %v2520, %v2520
      %v2529 = vcombine.high %v2527, %v2527
      %v2530 = vcombine.high %v2050, %v2050
      %v2532 = vunpack.c.l.s4 1983009808
      %v2533 = vunpack.c.0.s8 %v2532
      %v2534 = vlaneseq
      %v2535 = vshrl.u32 %v2534, 7
      %v2536 = vsub.s32 %v2533, %v2535
      %v2537 = vrot.slane %v2050, %v2536
      %v2539 = vunpack.c.l.s4 1983009808
      %v2540 = vunpack.c.0.s8 %v2539
      %v2541 = vlaneseq
      %v2542 = vshrl.u32 %v2541, 7
      %v2543 = vsub.s32 %v2540, %v2542
      %v2544 = vrot.slane %v2530, %v2543
      %v2545 = vcombine.high %v2537, %v2537
      %v2546 = vcombine.high %v2544, %v2544
      %v2547 = vcombine.high %v2051, %v2051
      %v2549 = vunpack.c.l.s4 1983009808
      %v2550 = vunpack.c.0.s8 %v2549
      %v2551 = vlaneseq
      %v2552 = vshrl.u32 %v2551, 7
      %v2553 = vsub.s32 %v2550, %v2552
      %v2554 = vrot.slane %v2051, %v2553
      %v2556 = vunpack.c.l.s4 1983009808
      %v2557 = vunpack.c.0.s8 %v2556
      %v2558 = vlaneseq
      %v2559 = vshrl.u32 %v2558, 7
      %v2560 = vsub.s32 %v2557, %v2559
      %v2561 = vrot.slane %v2547, %v2560
      %v2562 = vcombine.high %v2554, %v2554
      %v2563 = vcombine.high %v2561, %v2561
      %v2564 = vcombine.high %v2052, %v2052
      %v2566 = vunpack.c.l.s4 1983009808
      %v2567 = vunpack.c.0.s8 %v2566
      %v2568 = vlaneseq
      %v2569 = vshrl.u32 %v2568, 7
      %v2570 = vsub.s32 %v2567, %v2569
      %v2571 = vrot.slane %v2052, %v2570
      %v2573 = vunpack.c.l.s4 1983009808
      %v2574 = vunpack.c.0.s8 %v2573
      %v2575 = vlaneseq
      %v2576 = vshrl.u32 %v2575, 7
      %v2577 = vsub.s32 %v2574, %v2576
      %v2578 = vrot.slane %v2564, %v2577
      %v2579 = vcombine.high %v2571, %v2571
      %v2580 = vcombine.high %v2578, %v2578
      %v2581 = vcombine.high %v2053, %v2053
      %v2583 = vunpack.c.l.s4 1983009808
      %v2584 = vunpack.c.0.s8 %v2583
      %v2585 = vlaneseq
      %v2586 = vshrl.u32 %v2585, 7
      %v2587 = vsub.s32 %v2584, %v2586
      %v2588 = vrot.slane %v2053, %v2587
      %v2590 = vunpack.c.l.s4 1983009808
      %v2591 = vunpack.c.0.s8 %v2590
      %v2592 = vlaneseq
      %v2593 = vshrl.u32 %v2592, 7
      %v2594 = vsub.s32 %v2591, %v2593
      %v2595 = vrot.slane %v2581, %v2594
      %v2596 = vcombine.high %v2588, %v2588
      %v2597 = vcombine.high %v2595, %v2595
      %v2598 = vcombine.high %v2054, %v2054
      %v2600 = vunpack.c.l.s4 1983009808
      %v2601 = vunpack.c.0.s8 %v2600
      %v2602 = vlaneseq
      %v2603 = vshrl.u32 %v2602, 7
      %v2604 = vsub.s32 %v2601, %v2603
      %v2605 = vrot.slane %v2054, %v2604
      %v2607 = vunpack.c.l.s4 1983009808
      %v2608 = vunpack.c.0.s8 %v2607
      %v2609 = vlaneseq
      %v2610 = vshrl.u32 %v2609, 7
      %v2611 = vsub.s32 %v2608, %v2610
      %v2612 = vrot.slane %v2598, %v2611
      %v2613 = vcombine.high %v2605, %v2605
      %v2614 = vcombine.high %v2612, %v2612
      %v2615 = vcombine.high %v2055, %v2055
      %v2617 = vunpack.c.l.s4 1983009808
      %v2618 = vunpack.c.0.s8 %v2617
      %v2619 = vlaneseq
      %v2620 = vshrl.u32 %v2619, 7
      %v2621 = vsub.s32 %v2618, %v2620
      %v2622 = vrot.slane %v2055, %v2621
      %v2624 = vunpack.c.l.s4 1983009808
      %v2625 = vunpack.c.0.s8 %v2624
      %v2626 = vlaneseq
      %v2627 = vshrl.u32 %v2626, 7
      %v2628 = vsub.s32 %v2625, %v2627
      %v2629 = vrot.slane %v2615, %v2628
      %v2630 = vcombine.high %v2622, %v2622
      %v2631 = vcombine.high %v2629, %v2629
      %vm2760 = vcmask 517120
      %v2761 = vsel %vm2760, %v2095, -inf
      %v2762 = vrot.slane %v2761, 4
      %v2763 = vmax.f32 %v2761, %v2762
      %v2764 = vrot.slane %v2763, 2
      %v2765 = vmax.f32 %v2763, %v2764
      %v2766 = vrot.slane %v2765, 1
      %v2767 = vmax.f32 %v2765, %v2766
      %v2768 = vsel %vm2760, %v2103, -inf
      %v2769 = vrot.slane %v2768, 4
      %v2770 = vmax.f32 %v2768, %v2769
      %v2771 = vrot.slane %v2770, 2
      %v2772 = vmax.f32 %v2770, %v2771
      %v2773 = vrot.slane %v2772, 1
      %v2774 = vmax.f32 %v2772, %v2773
      %v2775 = vsel %vm2760, %v2102, -inf
      %v2776 = vrot.slane %v2775, 4
      %v2777 = vmax.f32 %v2775, %v2776
      %v2778 = vrot.slane %v2777, 2
      %v2779 = vmax.f32 %v2777, %v2778
      %v2780 = vrot.slane %v2779, 1
      %v2781 = vmax.f32 %v2779, %v2780
      %v2782 = vsel %vm2760, %v2104, -inf
      %v2783 = vrot.slane %v2782, 4
      %v2784 = vmax.f32 %v2782, %v2783
      %v2785 = vrot.slane %v2784, 2
      %v2786 = vmax.f32 %v2784, %v2785
      %v2787 = vrot.slane %v2786, 1
      %v2788 = vmax.f32 %v2786, %v2787
      %v2789 = vsel %vm2760, %v2112, -inf
      %v2790 = vrot.slane %v2789, 4
      %v2791 = vmax.f32 %v2789, %v2790
      %v2792 = vrot.slane %v2791, 2
      %v2793 = vmax.f32 %v2791, %v2792
      %v2794 = vrot.slane %v2793, 1
      %v2795 = vmax.f32 %v2793, %v2794
      %v2796 = vsel %vm2760, %v2120, -inf
      %v2797 = vrot.slane %v2796, 4
      %v2798 = vmax.f32 %v2796, %v2797
      %v2799 = vrot.slane %v2798, 2
      %v2800 = vmax.f32 %v2798, %v2799
      %v2801 = vrot.slane %v2800, 1
      %v2802 = vmax.f32 %v2800, %v2801
      %v2803 = vsel %vm2760, %v2119, -inf
      %v2804 = vrot.slane %v2803, 4
      %v2805 = vmax.f32 %v2803, %v2804
      %v2806 = vrot.slane %v2805, 2
      %v2807 = vmax.f32 %v2805, %v2806
      %v2808 = vrot.slane %v2807, 1
      %v2809 = vmax.f32 %v2807, %v2808
      %v2810 = vsel %vm2760, %v2121, -inf
      %v2811 = vrot.slane %v2810, 4
      %v2812 = vmax.f32 %v2810, %v2811
      %v2813 = vrot.slane %v2812, 2
      %v2814 = vmax.f32 %v2812, %v2813
      %v2815 = vrot.slane %v2814, 1
      %v2816 = vmax.f32 %v2814, %v2815
      %v2817 = vsel %vm2760, %v2129, -inf
      %v2818 = vrot.slane %v2817, 4
      %v2819 = vmax.f32 %v2817, %v2818
      %v2820 = vrot.slane %v2819, 2
      %v2821 = vmax.f32 %v2819, %v2820
      %v2822 = vrot.slane %v2821, 1
      %v2823 = vmax.f32 %v2821, %v2822
      %v2824 = vsel %vm2760, %v2137, -inf
      %v2825 = vrot.slane %v2824, 4
      %v2826 = vmax.f32 %v2824, %v2825
      %v2827 = vrot.slane %v2826, 2
      %v2828 = vmax.f32 %v2826, %v2827
      %v2829 = vrot.slane %v2828, 1
      %v2830 = vmax.f32 %v2828, %v2829
      %v2831 = vsel %vm2760, %v2136, -inf
      %v2832 = vrot.slane %v2831, 4
      %v2833 = vmax.f32 %v2831, %v2832
      %v2834 = vrot.slane %v2833, 2
      %v2835 = vmax.f32 %v2833, %v2834
      %v2836 = vrot.slane %v2835, 1
      %v2837 = vmax.f32 %v2835, %v2836
      %v2838 = vsel %vm2760, %v2138, -inf
      %v2839 = vrot.slane %v2838, 4
      %v2840 = vmax.f32 %v2838, %v2839
      %v2841 = vrot.slane %v2840, 2
      %v2842 = vmax.f32 %v2840, %v2841
      %v2843 = vrot.slane %v2842, 1
      %v2844 = vmax.f32 %v2842, %v2843
      %v2845 = vsel %vm2760, %v2146, -inf
      %v2846 = vrot.slane %v2845, 4
      %v2847 = vmax.f32 %v2845, %v2846
      %v2848 = vrot.slane %v2847, 2
      %v2849 = vmax.f32 %v2847, %v2848
      %v2850 = vrot.slane %v2849, 1
      %v2851 = vmax.f32 %v2849, %v2850
      %v2852 = vsel %vm2760, %v2154, -inf
      %v2853 = vrot.slane %v2852, 4
      %v2854 = vmax.f32 %v2852, %v2853
      %v2855 = vrot.slane %v2854, 2
      %v2856 = vmax.f32 %v2854, %v2855
      %v2857 = vrot.slane %v2856, 1
      %v2858 = vmax.f32 %v2856, %v2857
      %v2859 = vsel %vm2760, %v2153, -inf
      %v2860 = vrot.slane %v2859, 4
      %v2861 = vmax.f32 %v2859, %v2860
      %v2862 = vrot.slane %v2861, 2
      %v2863 = vmax.f32 %v2861, %v2862
      %v2864 = vrot.slane %v2863, 1
      %v2865 = vmax.f32 %v2863, %v2864
      %v2866 = vsel %vm2760, %v2155, -inf
      %v2867 = vrot.slane %v2866, 4
      %v2868 = vmax.f32 %v2866, %v2867
      %v2869 = vrot.slane %v2868, 2
      %v2870 = vmax.f32 %v2868, %v2869
      %v2871 = vrot.slane %v2870, 1
      %v2872 = vmax.f32 %v2870, %v2871
      %v2873 = vsel %vm2760, %v2163, -inf
      %v2874 = vrot.slane %v2873, 4
      %v2875 = vmax.f32 %v2873, %v2874
      %v2876 = vrot.slane %v2875, 2
      %v2877 = vmax.f32 %v2875, %v2876
      %v2878 = vrot.slane %v2877, 1
      %v2879 = vmax.f32 %v2877, %v2878
      %v2880 = vsel %vm2760, %v2171, -inf
      %v2881 = vrot.slane %v2880, 4
      %v2882 = vmax.f32 %v2880, %v2881
      %v2883 = vrot.slane %v2882, 2
      %v2884 = vmax.f32 %v2882, %v2883
      %v2885 = vrot.slane %v2884, 1
      %v2886 = vmax.f32 %v2884, %v2885
      %v2887 = vsel %vm2760, %v2170, -inf
      %v2888 = vrot.slane %v2887, 4
      %v2889 = vmax.f32 %v2887, %v2888
      %v2890 = vrot.slane %v2889, 2
      %v2891 = vmax.f32 %v2889, %v2890
      %v2892 = vrot.slane %v2891, 1
      %v2893 = vmax.f32 %v2891, %v2892
      %v2894 = vsel %vm2760, %v2172, -inf
      %v2895 = vrot.slane %v2894, 4
      %v2896 = vmax.f32 %v2894, %v2895
      %v2897 = vrot.slane %v2896, 2
      %v2898 = vmax.f32 %v2896, %v2897
      %v2899 = vrot.slane %v2898, 1
      %v2900 = vmax.f32 %v2898, %v2899
      %v2901 = vsel %vm2760, %v2180, -inf
      %v2902 = vrot.slane %v2901, 4
      %v2903 = vmax.f32 %v2901, %v2902
      %v2904 = vrot.slane %v2903, 2
      %v2905 = vmax.f32 %v2903, %v2904
      %v2906 = vrot.slane %v2905, 1
      %v2907 = vmax.f32 %v2905, %v2906
      %v2908 = vsel %vm2760, %v2188, -inf
      %v2909 = vrot.slane %v2908, 4
      %v2910 = vmax.f32 %v2908, %v2909
      %v2911 = vrot.slane %v2910, 2
      %v2912 = vmax.f32 %v2910, %v2911
      %v2913 = vrot.slane %v2912, 1
      %v2914 = vmax.f32 %v2912, %v2913
      %v2915 = vsel %vm2760, %v2187, -inf
      %v2916 = vrot.slane %v2915, 4
      %v2917 = vmax.f32 %v2915, %v2916
      %v2918 = vrot.slane %v2917, 2
      %v2919 = vmax.f32 %v2917, %v2918
      %v2920 = vrot.slane %v2919, 1
      %v2921 = vmax.f32 %v2919, %v2920
      %v2922 = vsel %vm2760, %v2189, -inf
      %v2923 = vrot.slane %v2922, 4
      %v2924 = vmax.f32 %v2922, %v2923
      %v2925 = vrot.slane %v2924, 2
      %v2926 = vmax.f32 %v2924, %v2925
      %v2927 = vrot.slane %v2926, 1
      %v2928 = vmax.f32 %v2926, %v2927
      %v2929 = vsel %vm2760, %v2197, -inf
      %v2930 = vrot.slane %v2929, 4
      %v2931 = vmax.f32 %v2929, %v2930
      %v2932 = vrot.slane %v2931, 2
      %v2933 = vmax.f32 %v2931, %v2932
      %v2934 = vrot.slane %v2933, 1
      %v2935 = vmax.f32 %v2933, %v2934
      %v2936 = vsel %vm2760, %v2205, -inf
      %v2937 = vrot.slane %v2936, 4
      %v2938 = vmax.f32 %v2936, %v2937
      %v2939 = vrot.slane %v2938, 2
      %v2940 = vmax.f32 %v2938, %v2939
      %v2941 = vrot.slane %v2940, 1
      %v2942 = vmax.f32 %v2940, %v2941
      %v2943 = vsel %vm2760, %v2204, -inf
      %v2944 = vrot.slane %v2943, 4
      %v2945 = vmax.f32 %v2943, %v2944
      %v2946 = vrot.slane %v2945, 2
      %v2947 = vmax.f32 %v2945, %v2946
      %v2948 = vrot.slane %v2947, 1
      %v2949 = vmax.f32 %v2947, %v2948
      %v2950 = vsel %vm2760, %v2206, -inf
      %v2951 = vrot.slane %v2950, 4
      %v2952 = vmax.f32 %v2950, %v2951
      %v2953 = vrot.slane %v2952, 2
      %v2954 = vmax.f32 %v2952, %v2953
      %v2955 = vrot.slane %v2954, 1
      %v2956 = vmax.f32 %v2954, %v2955
      %v2957 = vsel %vm2760, %v2214, -inf
      %v2958 = vrot.slane %v2957, 4
      %v2959 = vmax.f32 %v2957, %v2958
      %v2960 = vrot.slane %v2959, 2
      %v2961 = vmax.f32 %v2959, %v2960
      %v2962 = vrot.slane %v2961, 1
      %v2963 = vmax.f32 %v2961, %v2962
      %v2964 = vsel %vm2760, %v2222, -inf
      %v2965 = vrot.slane %v2964, 4
      %v2966 = vmax.f32 %v2964, %v2965
      %v2967 = vrot.slane %v2966, 2
      %v2968 = vmax.f32 %v2966, %v2967
      %v2969 = vrot.slane %v2968, 1
      %v2970 = vmax.f32 %v2968, %v2969
      %v2971 = vsel %vm2760, %v2221, -inf
      %v2972 = vrot.slane %v2971, 4
      %v2973 = vmax.f32 %v2971, %v2972
      %v2974 = vrot.slane %v2973, 2
      %v2975 = vmax.f32 %v2973, %v2974
      %v2976 = vrot.slane %v2975, 1
      %v2977 = vmax.f32 %v2975, %v2976
      %v2978 = vsel %vm2760, %v2223, -inf
      %v2979 = vrot.slane %v2978, 4
      %v2980 = vmax.f32 %v2978, %v2979
      %v2981 = vrot.slane %v2980, 2
      %v2982 = vmax.f32 %v2980, %v2981
      %v2983 = vrot.slane %v2982, 1
      %v2984 = vmax.f32 %v2982, %v2983
      %v2985 = vsel %vm2760, %v2231, -inf
      %v2986 = vrot.slane %v2985, 4
      %v2987 = vmax.f32 %v2985, %v2986
      %v2988 = vrot.slane %v2987, 2
      %v2989 = vmax.f32 %v2987, %v2988
      %v2990 = vrot.slane %v2989, 1
      %v2991 = vmax.f32 %v2989, %v2990
      %v2992 = vsel %vm2760, %v2239, -inf
      %v2993 = vrot.slane %v2992, 4
      %v2994 = vmax.f32 %v2992, %v2993
      %v2995 = vrot.slane %v2994, 2
      %v2996 = vmax.f32 %v2994, %v2995
      %v2997 = vrot.slane %v2996, 1
      %v2998 = vmax.f32 %v2996, %v2997
      %v2999 = vsel %vm2760, %v2238, -inf
      %v3000 = vrot.slane %v2999, 4
      %v3001 = vmax.f32 %v2999, %v3000
      %v3002 = vrot.slane %v3001, 2
      %v3003 = vmax.f32 %v3001, %v3002
      %v3004 = vrot.slane %v3003, 1
      %v3005 = vmax.f32 %v3003, %v3004
      %v3006 = vsel %vm2760, %v2240, -inf
      %v3007 = vrot.slane %v3006, 4
      %v3008 = vmax.f32 %v3006, %v3007
      %v3009 = vrot.slane %v3008, 2
      %v3010 = vmax.f32 %v3008, %v3009
      %v3011 = vrot.slane %v3010, 1
      %v3012 = vmax.f32 %v3010, %v3011
      %v3013 = vsel %vm2760, %v2248, -inf
      %v3014 = vrot.slane %v3013, 4
      %v3015 = vmax.f32 %v3013, %v3014
      %v3016 = vrot.slane %v3015, 2
      %v3017 = vmax.f32 %v3015, %v3016
      %v3018 = vrot.slane %v3017, 1
      %v3019 = vmax.f32 %v3017, %v3018
      %v3020 = vsel %vm2760, %v2256, -inf
      %v3021 = vrot.slane %v3020, 4
      %v3022 = vmax.f32 %v3020, %v3021
      %v3023 = vrot.slane %v3022, 2
      %v3024 = vmax.f32 %v3022, %v3023
      %v3025 = vrot.slane %v3024, 1
      %v3026 = vmax.f32 %v3024, %v3025
      %v3027 = vsel %vm2760, %v2255, -inf
      %v3028 = vrot.slane %v3027, 4
      %v3029 = vmax.f32 %v3027, %v3028
      %v3030 = vrot.slane %v3029, 2
      %v3031 = vmax.f32 %v3029, %v3030
      %v3032 = vrot.slane %v3031, 1
      %v3033 = vmax.f32 %v3031, %v3032
      %v3034 = vsel %vm2760, %v2257, -inf
      %v3035 = vrot.slane %v3034, 4
      %v3036 = vmax.f32 %v3034, %v3035
      %v3037 = vrot.slane %v3036, 2
      %v3038 = vmax.f32 %v3036, %v3037
      %v3039 = vrot.slane %v3038, 1
      %v3040 = vmax.f32 %v3038, %v3039
      %v3041 = vsel %vm2760, %v2265, -inf
      %v3042 = vrot.slane %v3041, 4
      %v3043 = vmax.f32 %v3041, %v3042
      %v3044 = vrot.slane %v3043, 2
      %v3045 = vmax.f32 %v3043, %v3044
      %v3046 = vrot.slane %v3045, 1
      %v3047 = vmax.f32 %v3045, %v3046
      %v3048 = vsel %vm2760, %v2273, -inf
      %v3049 = vrot.slane %v3048, 4
      %v3050 = vmax.f32 %v3048, %v3049
      %v3051 = vrot.slane %v3050, 2
      %v3052 = vmax.f32 %v3050, %v3051
      %v3053 = vrot.slane %v3052, 1
      %v3054 = vmax.f32 %v3052, %v3053
      %v3055 = vsel %vm2760, %v2272, -inf
      %v3056 = vrot.slane %v3055, 4
      %v3057 = vmax.f32 %v3055, %v3056
      %v3058 = vrot.slane %v3057, 2
      %v3059 = vmax.f32 %v3057, %v3058
      %v3060 = vrot.slane %v3059, 1
      %v3061 = vmax.f32 %v3059, %v3060
      %v3062 = vsel %vm2760, %v2274, -inf
      %v3063 = vrot.slane %v3062, 4
      %v3064 = vmax.f32 %v3062, %v3063
      %v3065 = vrot.slane %v3064, 2
      %v3066 = vmax.f32 %v3064, %v3065
      %v3067 = vrot.slane %v3066, 1
      %v3068 = vmax.f32 %v3066, %v3067
      %v3069 = vsel %vm2760, %v2282, -inf
      %v3070 = vrot.slane %v3069, 4
      %v3071 = vmax.f32 %v3069, %v3070
      %v3072 = vrot.slane %v3071, 2
      %v3073 = vmax.f32 %v3071, %v3072
      %v3074 = vrot.slane %v3073, 1
      %v3075 = vmax.f32 %v3073, %v3074
      %v3076 = vsel %vm2760, %v2290, -inf
      %v3077 = vrot.slane %v3076, 4
      %v3078 = vmax.f32 %v3076, %v3077
      %v3079 = vrot.slane %v3078, 2
      %v3080 = vmax.f32 %v3078, %v3079
      %v3081 = vrot.slane %v3080, 1
      %v3082 = vmax.f32 %v3080, %v3081
      %v3083 = vsel %vm2760, %v2289, -inf
      %v3084 = vrot.slane %v3083, 4
      %v3085 = vmax.f32 %v3083, %v3084
      %v3086 = vrot.slane %v3085, 2
      %v3087 = vmax.f32 %v3085, %v3086
      %v3088 = vrot.slane %v3087, 1
      %v3089 = vmax.f32 %v3087, %v3088
      %v3090 = vsel %vm2760, %v2291, -inf
      %v3091 = vrot.slane %v3090, 4
      %v3092 = vmax.f32 %v3090, %v3091
      %v3093 = vrot.slane %v3092, 2
      %v3094 = vmax.f32 %v3092, %v3093
      %v3095 = vrot.slane %v3094, 1
      %v3096 = vmax.f32 %v3094, %v3095
      %v3097 = vsel %vm2760, %v2299, -inf
      %v3098 = vrot.slane %v3097, 4
      %v3099 = vmax.f32 %v3097, %v3098
      %v3100 = vrot.slane %v3099, 2
      %v3101 = vmax.f32 %v3099, %v3100
      %v3102 = vrot.slane %v3101, 1
      %v3103 = vmax.f32 %v3101, %v3102
      %v3104 = vsel %vm2760, %v2307, -inf
      %v3105 = vrot.slane %v3104, 4
      %v3106 = vmax.f32 %v3104, %v3105
      %v3107 = vrot.slane %v3106, 2
      %v3108 = vmax.f32 %v3106, %v3107
      %v3109 = vrot.slane %v3108, 1
      %v3110 = vmax.f32 %v3108, %v3109
      %v3111 = vsel %vm2760, %v2306, -inf
      %v3112 = vrot.slane %v3111, 4
      %v3113 = vmax.f32 %v3111, %v3112
      %v3114 = vrot.slane %v3113, 2
      %v3115 = vmax.f32 %v3113, %v3114
      %v3116 = vrot.slane %v3115, 1
      %v3117 = vmax.f32 %v3115, %v3116
      %v3118 = vsel %vm2760, %v2308, -inf
      %v3119 = vrot.slane %v3118, 4
      %v3120 = vmax.f32 %v3118, %v3119
      %v3121 = vrot.slane %v3120, 2
      %v3122 = vmax.f32 %v3120, %v3121
      %v3123 = vrot.slane %v3122, 1
      %v3124 = vmax.f32 %v3122, %v3123
      %v3125 = vsel %vm2760, %v2316, -inf
      %v3126 = vrot.slane %v3125, 4
      %v3127 = vmax.f32 %v3125, %v3126
      %v3128 = vrot.slane %v3127, 2
      %v3129 = vmax.f32 %v3127, %v3128
      %v3130 = vrot.slane %v3129, 1
      %v3131 = vmax.f32 %v3129, %v3130
      %v3132 = vsel %vm2760, %v2324, -inf
      %v3133 = vrot.slane %v3132, 4
      %v3134 = vmax.f32 %v3132, %v3133
      %v3135 = vrot.slane %v3134, 2
      %v3136 = vmax.f32 %v3134, %v3135
      %v3137 = vrot.slane %v3136, 1
      %v3138 = vmax.f32 %v3136, %v3137
      %v3139 = vsel %vm2760, %v2323, -inf
      %v3140 = vrot.slane %v3139, 4
      %v3141 = vmax.f32 %v3139, %v3140
      %v3142 = vrot.slane %v3141, 2
      %v3143 = vmax.f32 %v3141, %v3142
      %v3144 = vrot.slane %v3143, 1
      %v3145 = vmax.f32 %v3143, %v3144
      %v3146 = vsel %vm2760, %v2325, -inf
      %v3147 = vrot.slane %v3146, 4
      %v3148 = vmax.f32 %v3146, %v3147
      %v3149 = vrot.slane %v3148, 2
      %v3150 = vmax.f32 %v3148, %v3149
      %v3151 = vrot.slane %v3150, 1
      %v3152 = vmax.f32 %v3150, %v3151
      %v3153 = vsel %vm2760, %v2333, -inf
      %v3154 = vrot.slane %v3153, 4
      %v3155 = vmax.f32 %v3153, %v3154
      %v3156 = vrot.slane %v3155, 2
      %v3157 = vmax.f32 %v3155, %v3156
      %v3158 = vrot.slane %v3157, 1
      %v3159 = vmax.f32 %v3157, %v3158
      %v3160 = vsel %vm2760, %v2341, -inf
      %v3161 = vrot.slane %v3160, 4
      %v3162 = vmax.f32 %v3160, %v3161
      %v3163 = vrot.slane %v3162, 2
      %v3164 = vmax.f32 %v3162, %v3163
      %v3165 = vrot.slane %v3164, 1
      %v3166 = vmax.f32 %v3164, %v3165
      %v3167 = vsel %vm2760, %v2340, -inf
      %v3168 = vrot.slane %v3167, 4
      %v3169 = vmax.f32 %v3167, %v3168
      %v3170 = vrot.slane %v3169, 2
      %v3171 = vmax.f32 %v3169, %v3170
      %v3172 = vrot.slane %v3171, 1
      %v3173 = vmax.f32 %v3171, %v3172
      %v3174 = vsel %vm2760, %v2342, -inf
      %v3175 = vrot.slane %v3174, 4
      %v3176 = vmax.f32 %v3174, %v3175
      %v3177 = vrot.slane %v3176, 2
      %v3178 = vmax.f32 %v3176, %v3177
      %v3179 = vrot.slane %v3178, 1
      %v3180 = vmax.f32 %v3178, %v3179
      %v3181 = vsel %vm2760, %v2350, -inf
      %v3182 = vrot.slane %v3181, 4
      %v3183 = vmax.f32 %v3181, %v3182
      %v3184 = vrot.slane %v3183, 2
      %v3185 = vmax.f32 %v3183, %v3184
      %v3186 = vrot.slane %v3185, 1
      %v3187 = vmax.f32 %v3185, %v3186
      %v3188 = vsel %vm2760, %v2358, -inf
      %v3189 = vrot.slane %v3188, 4
      %v3190 = vmax.f32 %v3188, %v3189
      %v3191 = vrot.slane %v3190, 2
      %v3192 = vmax.f32 %v3190, %v3191
      %v3193 = vrot.slane %v3192, 1
      %v3194 = vmax.f32 %v3192, %v3193
      %v3195 = vsel %vm2760, %v2357, -inf
      %v3196 = vrot.slane %v3195, 4
      %v3197 = vmax.f32 %v3195, %v3196
      %v3198 = vrot.slane %v3197, 2
      %v3199 = vmax.f32 %v3197, %v3198
      %v3200 = vrot.slane %v3199, 1
      %v3201 = vmax.f32 %v3199, %v3200
      %v3202 = vsel %vm2760, %v2359, -inf
      %v3203 = vrot.slane %v3202, 4
      %v3204 = vmax.f32 %v3202, %v3203
      %v3205 = vrot.slane %v3204, 2
      %v3206 = vmax.f32 %v3204, %v3205
      %v3207 = vrot.slane %v3206, 1
      %v3208 = vmax.f32 %v3206, %v3207
      %v3209 = vsel %vm2760, %v2367, -inf
      %v3210 = vrot.slane %v3209, 4
      %v3211 = vmax.f32 %v3209, %v3210
      %v3212 = vrot.slane %v3211, 2
      %v3213 = vmax.f32 %v3211, %v3212
      %v3214 = vrot.slane %v3213, 1
      %v3215 = vmax.f32 %v3213, %v3214
      %v3216 = vsel %vm2760, %v2375, -inf
      %v3217 = vrot.slane %v3216, 4
      %v3218 = vmax.f32 %v3216, %v3217
      %v3219 = vrot.slane %v3218, 2
      %v3220 = vmax.f32 %v3218, %v3219
      %v3221 = vrot.slane %v3220, 1
      %v3222 = vmax.f32 %v3220, %v3221
      %v3223 = vsel %vm2760, %v2374, -inf
      %v3224 = vrot.slane %v3223, 4
      %v3225 = vmax.f32 %v3223, %v3224
      %v3226 = vrot.slane %v3225, 2
      %v3227 = vmax.f32 %v3225, %v3226
      %v3228 = vrot.slane %v3227, 1
      %v3229 = vmax.f32 %v3227, %v3228
      %v3230 = vsel %vm2760, %v2376, -inf
      %v3231 = vrot.slane %v3230, 4
      %v3232 = vmax.f32 %v3230, %v3231
      %v3233 = vrot.slane %v3232, 2
      %v3234 = vmax.f32 %v3232, %v3233
      %v3235 = vrot.slane %v3234, 1
      %v3236 = vmax.f32 %v3234, %v3235
      %v3237 = vsel %vm2760, %v2384, -inf
      %v3238 = vrot.slane %v3237, 4
      %v3239 = vmax.f32 %v3237, %v3238
      %v3240 = vrot.slane %v3239, 2
      %v3241 = vmax.f32 %v3239, %v3240
      %v3242 = vrot.slane %v3241, 1
      %v3243 = vmax.f32 %v3241, %v3242
      %v3244 = vsel %vm2760, %v2392, -inf
      %v3245 = vrot.slane %v3244, 4
      %v3246 = vmax.f32 %v3244, %v3245
      %v3247 = vrot.slane %v3246, 2
      %v3248 = vmax.f32 %v3246, %v3247
      %v3249 = vrot.slane %v3248, 1
      %v3250 = vmax.f32 %v3248, %v3249
      %v3251 = vsel %vm2760, %v2391, -inf
      %v3252 = vrot.slane %v3251, 4
      %v3253 = vmax.f32 %v3251, %v3252
      %v3254 = vrot.slane %v3253, 2
      %v3255 = vmax.f32 %v3253, %v3254
      %v3256 = vrot.slane %v3255, 1
      %v3257 = vmax.f32 %v3255, %v3256
      %v3258 = vsel %vm2760, %v2393, -inf
      %v3259 = vrot.slane %v3258, 4
      %v3260 = vmax.f32 %v3258, %v3259
      %v3261 = vrot.slane %v3260, 2
      %v3262 = vmax.f32 %v3260, %v3261
      %v3263 = vrot.slane %v3262, 1
      %v3264 = vmax.f32 %v3262, %v3263
      %v3265 = vsel %vm2760, %v2401, -inf
      %v3266 = vrot.slane %v3265, 4
      %v3267 = vmax.f32 %v3265, %v3266
      %v3268 = vrot.slane %v3267, 2
      %v3269 = vmax.f32 %v3267, %v3268
      %v3270 = vrot.slane %v3269, 1
      %v3271 = vmax.f32 %v3269, %v3270
      %v3272 = vsel %vm2760, %v2409, -inf
      %v3273 = vrot.slane %v3272, 4
      %v3274 = vmax.f32 %v3272, %v3273
      %v3275 = vrot.slane %v3274, 2
      %v3276 = vmax.f32 %v3274, %v3275
      %v3277 = vrot.slane %v3276, 1
      %v3278 = vmax.f32 %v3276, %v3277
      %v3279 = vsel %vm2760, %v2408, -inf
      %v3280 = vrot.slane %v3279, 4
      %v3281 = vmax.f32 %v3279, %v3280
      %v3282 = vrot.slane %v3281, 2
      %v3283 = vmax.f32 %v3281, %v3282
      %v3284 = vrot.slane %v3283, 1
      %v3285 = vmax.f32 %v3283, %v3284
      %v3286 = vsel %vm2760, %v2410, -inf
      %v3287 = vrot.slane %v3286, 4
      %v3288 = vmax.f32 %v3286, %v3287
      %v3289 = vrot.slane %v3288, 2
      %v3290 = vmax.f32 %v3288, %v3289
      %v3291 = vrot.slane %v3290, 1
      %v3292 = vmax.f32 %v3290, %v3291
      %v3293 = vsel %vm2760, %v2418, -inf
      %v3294 = vrot.slane %v3293, 4
      %v3295 = vmax.f32 %v3293, %v3294
      %v3296 = vrot.slane %v3295, 2
      %v3297 = vmax.f32 %v3295, %v3296
      %v3298 = vrot.slane %v3297, 1
      %v3299 = vmax.f32 %v3297, %v3298
      %v3300 = vsel %vm2760, %v2426, -inf
      %v3301 = vrot.slane %v3300, 4
      %v3302 = vmax.f32 %v3300, %v3301
      %v3303 = vrot.slane %v3302, 2
      %v3304 = vmax.f32 %v3302, %v3303
      %v3305 = vrot.slane %v3304, 1
      %v3306 = vmax.f32 %v3304, %v3305
      %v3307 = vsel %vm2760, %v2425, -inf
      %v3308 = vrot.slane %v3307, 4
      %v3309 = vmax.f32 %v3307, %v3308
      %v3310 = vrot.slane %v3309, 2
      %v3311 = vmax.f32 %v3309, %v3310
      %v3312 = vrot.slane %v3311, 1
      %v3313 = vmax.f32 %v3311, %v3312
      %v3314 = vsel %vm2760, %v2427, -inf
      %v3315 = vrot.slane %v3314, 4
      %v3316 = vmax.f32 %v3314, %v3315
      %v3317 = vrot.slane %v3316, 2
      %v3318 = vmax.f32 %v3316, %v3317
      %v3319 = vrot.slane %v3318, 1
      %v3320 = vmax.f32 %v3318, %v3319
      %v3321 = vsel %vm2760, %v2435, -inf
      %v3322 = vrot.slane %v3321, 4
      %v3323 = vmax.f32 %v3321, %v3322
      %v3324 = vrot.slane %v3323, 2
      %v3325 = vmax.f32 %v3323, %v3324
      %v3326 = vrot.slane %v3325, 1
      %v3327 = vmax.f32 %v3325, %v3326
      %v3328 = vsel %vm2760, %v2443, -inf
      %v3329 = vrot.slane %v3328, 4
      %v3330 = vmax.f32 %v3328, %v3329
      %v3331 = vrot.slane %v3330, 2
      %v3332 = vmax.f32 %v3330, %v3331
      %v3333 = vrot.slane %v3332, 1
      %v3334 = vmax.f32 %v3332, %v3333
      %v3335 = vsel %vm2760, %v2442, -inf
      %v3336 = vrot.slane %v3335, 4
      %v3337 = vmax.f32 %v3335, %v3336
      %v3338 = vrot.slane %v3337, 2
      %v3339 = vmax.f32 %v3337, %v3338
      %v3340 = vrot.slane %v3339, 1
      %v3341 = vmax.f32 %v3339, %v3340
      %v3342 = vsel %vm2760, %v2444, -inf
      %v3343 = vrot.slane %v3342, 4
      %v3344 = vmax.f32 %v3342, %v3343
      %v3345 = vrot.slane %v3344, 2
      %v3346 = vmax.f32 %v3344, %v3345
      %v3347 = vrot.slane %v3346, 1
      %v3348 = vmax.f32 %v3346, %v3347
      %v3349 = vsel %vm2760, %v2452, -inf
      %v3350 = vrot.slane %v3349, 4
      %v3351 = vmax.f32 %v3349, %v3350
      %v3352 = vrot.slane %v3351, 2
      %v3353 = vmax.f32 %v3351, %v3352
      %v3354 = vrot.slane %v3353, 1
      %v3355 = vmax.f32 %v3353, %v3354
      %v3356 = vsel %vm2760, %v2460, -inf
      %v3357 = vrot.slane %v3356, 4
      %v3358 = vmax.f32 %v3356, %v3357
      %v3359 = vrot.slane %v3358, 2
      %v3360 = vmax.f32 %v3358, %v3359
      %v3361 = vrot.slane %v3360, 1
      %v3362 = vmax.f32 %v3360, %v3361
      %v3363 = vsel %vm2760, %v2459, -inf
      %v3364 = vrot.slane %v3363, 4
      %v3365 = vmax.f32 %v3363, %v3364
      %v3366 = vrot.slane %v3365, 2
      %v3367 = vmax.f32 %v3365, %v3366
      %v3368 = vrot.slane %v3367, 1
      %v3369 = vmax.f32 %v3367, %v3368
      %v3370 = vsel %vm2760, %v2461, -inf
      %v3371 = vrot.slane %v3370, 4
      %v3372 = vmax.f32 %v3370, %v3371
      %v3373 = vrot.slane %v3372, 2
      %v3374 = vmax.f32 %v3372, %v3373
      %v3375 = vrot.slane %v3374, 1
      %v3376 = vmax.f32 %v3374, %v3375
      %v3377 = vsel %vm2760, %v2469, -inf
      %v3378 = vrot.slane %v3377, 4
      %v3379 = vmax.f32 %v3377, %v3378
      %v3380 = vrot.slane %v3379, 2
      %v3381 = vmax.f32 %v3379, %v3380
      %v3382 = vrot.slane %v3381, 1
      %v3383 = vmax.f32 %v3381, %v3382
      %v3384 = vsel %vm2760, %v2477, -inf
      %v3385 = vrot.slane %v3384, 4
      %v3386 = vmax.f32 %v3384, %v3385
      %v3387 = vrot.slane %v3386, 2
      %v3388 = vmax.f32 %v3386, %v3387
      %v3389 = vrot.slane %v3388, 1
      %v3390 = vmax.f32 %v3388, %v3389
      %v3391 = vsel %vm2760, %v2476, -inf
      %v3392 = vrot.slane %v3391, 4
      %v3393 = vmax.f32 %v3391, %v3392
      %v3394 = vrot.slane %v3393, 2
      %v3395 = vmax.f32 %v3393, %v3394
      %v3396 = vrot.slane %v3395, 1
      %v3397 = vmax.f32 %v3395, %v3396
      %v3398 = vsel %vm2760, %v2478, -inf
      %v3399 = vrot.slane %v3398, 4
      %v3400 = vmax.f32 %v3398, %v3399
      %v3401 = vrot.slane %v3400, 2
      %v3402 = vmax.f32 %v3400, %v3401
      %v3403 = vrot.slane %v3402, 1
      %v3404 = vmax.f32 %v3402, %v3403
      %v3405 = vsel %vm2760, %v2486, -inf
      %v3406 = vrot.slane %v3405, 4
      %v3407 = vmax.f32 %v3405, %v3406
      %v3408 = vrot.slane %v3407, 2
      %v3409 = vmax.f32 %v3407, %v3408
      %v3410 = vrot.slane %v3409, 1
      %v3411 = vmax.f32 %v3409, %v3410
      %v3412 = vsel %vm2760, %v2494, -inf
      %v3413 = vrot.slane %v3412, 4
      %v3414 = vmax.f32 %v3412, %v3413
      %v3415 = vrot.slane %v3414, 2
      %v3416 = vmax.f32 %v3414, %v3415
      %v3417 = vrot.slane %v3416, 1
      %v3418 = vmax.f32 %v3416, %v3417
      %v3419 = vsel %vm2760, %v2493, -inf
      %v3420 = vrot.slane %v3419, 4
      %v3421 = vmax.f32 %v3419, %v3420
      %v3422 = vrot.slane %v3421, 2
      %v3423 = vmax.f32 %v3421, %v3422
      %v3424 = vrot.slane %v3423, 1
      %v3425 = vmax.f32 %v3423, %v3424
      %v3426 = vsel %vm2760, %v2495, -inf
      %v3427 = vrot.slane %v3426, 4
      %v3428 = vmax.f32 %v3426, %v3427
      %v3429 = vrot.slane %v3428, 2
      %v3430 = vmax.f32 %v3428, %v3429
      %v3431 = vrot.slane %v3430, 1
      %v3432 = vmax.f32 %v3430, %v3431
      %v3433 = vsel %vm2760, %v2503, -inf
      %v3434 = vrot.slane %v3433, 4
      %v3435 = vmax.f32 %v3433, %v3434
      %v3436 = vrot.slane %v3435, 2
      %v3437 = vmax.f32 %v3435, %v3436
      %v3438 = vrot.slane %v3437, 1
      %v3439 = vmax.f32 %v3437, %v3438
      %v3440 = vsel %vm2760, %v2511, -inf
      %v3441 = vrot.slane %v3440, 4
      %v3442 = vmax.f32 %v3440, %v3441
      %v3443 = vrot.slane %v3442, 2
      %v3444 = vmax.f32 %v3442, %v3443
      %v3445 = vrot.slane %v3444, 1
      %v3446 = vmax.f32 %v3444, %v3445
      %v3447 = vsel %vm2760, %v2510, -inf
      %v3448 = vrot.slane %v3447, 4
      %v3449 = vmax.f32 %v3447, %v3448
      %v3450 = vrot.slane %v3449, 2
      %v3451 = vmax.f32 %v3449, %v3450
      %v3452 = vrot.slane %v3451, 1
      %v3453 = vmax.f32 %v3451, %v3452
      %v3454 = vsel %vm2760, %v2512, -inf
      %v3455 = vrot.slane %v3454, 4
      %v3456 = vmax.f32 %v3454, %v3455
      %v3457 = vrot.slane %v3456, 2
      %v3458 = vmax.f32 %v3456, %v3457
      %v3459 = vrot.slane %v3458, 1
      %v3460 = vmax.f32 %v3458, %v3459
      %v3461 = vsel %vm2760, %v2520, -inf
      %v3462 = vrot.slane %v3461, 4
      %v3463 = vmax.f32 %v3461, %v3462
      %v3464 = vrot.slane %v3463, 2
      %v3465 = vmax.f32 %v3463, %v3464
      %v3466 = vrot.slane %v3465, 1
      %v3467 = vmax.f32 %v3465, %v3466
      %v3468 = vsel %vm2760, %v2528, -inf
      %v3469 = vrot.slane %v3468, 4
      %v3470 = vmax.f32 %v3468, %v3469
      %v3471 = vrot.slane %v3470, 2
      %v3472 = vmax.f32 %v3470, %v3471
      %v3473 = vrot.slane %v3472, 1
      %v3474 = vmax.f32 %v3472, %v3473
      %v3475 = vsel %vm2760, %v2527, -inf
      %v3476 = vrot.slane %v3475, 4
      %v3477 = vmax.f32 %v3475, %v3476
      %v3478 = vrot.slane %v3477, 2
      %v3479 = vmax.f32 %v3477, %v3478
      %v3480 = vrot.slane %v3479, 1
      %v3481 = vmax.f32 %v3479, %v3480
      %v3482 = vsel %vm2760, %v2529, -inf
      %v3483 = vrot.slane %v3482, 4
      %v3484 = vmax.f32 %v3482, %v3483
      %v3485 = vrot.slane %v3484, 2
      %v3486 = vmax.f32 %v3484, %v3485
      %v3487 = vrot.slane %v3486, 1
      %v3488 = vmax.f32 %v3486, %v3487
      %v3489 = vsel %vm2760, %v2537, -inf
      %v3490 = vrot.slane %v3489, 4
      %v3491 = vmax.f32 %v3489, %v3490
      %v3492 = vrot.slane %v3491, 2
      %v3493 = vmax.f32 %v3491, %v3492
      %v3494 = vrot.slane %v3493, 1
      %v3495 = vmax.f32 %v3493, %v3494
      %v3496 = vsel %vm2760, %v2545, -inf
      %v3497 = vrot.slane %v3496, 4
      %v3498 = vmax.f32 %v3496, %v3497
      %v3499 = vrot.slane %v3498, 2
      %v3500 = vmax.f32 %v3498, %v3499
      %v3501 = vrot.slane %v3500, 1
      %v3502 = vmax.f32 %v3500, %v3501
      %v3503 = vsel %vm2760, %v2544, -inf
      %v3504 = vrot.slane %v3503, 4
      %v3505 = vmax.f32 %v3503, %v3504
      %v3506 = vrot.slane %v3505, 2
      %v3507 = vmax.f32 %v3505, %v3506
      %v3508 = vrot.slane %v3507, 1
      %v3509 = vmax.f32 %v3507, %v3508
      %v3510 = vsel %vm2760, %v2546, -inf
      %v3511 = vrot.slane %v3510, 4
      %v3512 = vmax.f32 %v3510, %v3511
      %v3513 = vrot.slane %v3512, 2
      %v3514 = vmax.f32 %v3512, %v3513
      %v3515 = vrot.slane %v3514, 1
      %v3516 = vmax.f32 %v3514, %v3515
      %v3517 = vsel %vm2760, %v2554, -inf
      %v3518 = vrot.slane %v3517, 4
      %v3519 = vmax.f32 %v3517, %v3518
      %v3520 = vrot.slane %v3519, 2
      %v3521 = vmax.f32 %v3519, %v3520
      %v3522 = vrot.slane %v3521, 1
      %v3523 = vmax.f32 %v3521, %v3522
      %v3524 = vsel %vm2760, %v2562, -inf
      %v3525 = vrot.slane %v3524, 4
      %v3526 = vmax.f32 %v3524, %v3525
      %v3527 = vrot.slane %v3526, 2
      %v3528 = vmax.f32 %v3526, %v3527
      %v3529 = vrot.slane %v3528, 1
      %v3530 = vmax.f32 %v3528, %v3529
      %v3531 = vsel %vm2760, %v2561, -inf
      %v3532 = vrot.slane %v3531, 4
      %v3533 = vmax.f32 %v3531, %v3532
      %v3534 = vrot.slane %v3533, 2
      %v3535 = vmax.f32 %v3533, %v3534
      %v3536 = vrot.slane %v3535, 1
      %v3537 = vmax.f32 %v3535, %v3536
      %v3538 = vsel %vm2760, %v2563, -inf
      %v3539 = vrot.slane %v3538, 4
      %v3540 = vmax.f32 %v3538, %v3539
      %v3541 = vrot.slane %v3540, 2
      %v3542 = vmax.f32 %v3540, %v3541
      %v3543 = vrot.slane %v3542, 1
      %v3544 = vmax.f32 %v3542, %v3543
      %v3545 = vsel %vm2760, %v2571, -inf
      %v3546 = vrot.slane %v3545, 4
      %v3547 = vmax.f32 %v3545, %v3546
      %v3548 = vrot.slane %v3547, 2
      %v3549 = vmax.f32 %v3547, %v3548
      %v3550 = vrot.slane %v3549, 1
      %v3551 = vmax.f32 %v3549, %v3550
      %v3552 = vsel %vm2760, %v2579, -inf
      %v3553 = vrot.slane %v3552, 4
      %v3554 = vmax.f32 %v3552, %v3553
      %v3555 = vrot.slane %v3554, 2
      %v3556 = vmax.f32 %v3554, %v3555
      %v3557 = vrot.slane %v3556, 1
      %v3558 = vmax.f32 %v3556, %v3557
      %v3559 = vsel %vm2760, %v2578, -inf
      %v3560 = vrot.slane %v3559, 4
      %v3561 = vmax.f32 %v3559, %v3560
      %v3562 = vrot.slane %v3561, 2
      %v3563 = vmax.f32 %v3561, %v3562
      %v3564 = vrot.slane %v3563, 1
      %v3565 = vmax.f32 %v3563, %v3564
      %v3566 = vsel %vm2760, %v2580, -inf
      %v3567 = vrot.slane %v3566, 4
      %v3568 = vmax.f32 %v3566, %v3567
      %v3569 = vrot.slane %v3568, 2
      %v3570 = vmax.f32 %v3568, %v3569
      %v3571 = vrot.slane %v3570, 1
      %v3572 = vmax.f32 %v3570, %v3571
      %v3573 = vsel %vm2760, %v2588, -inf
      %v3574 = vrot.slane %v3573, 4
      %v3575 = vmax.f32 %v3573, %v3574
      %v3576 = vrot.slane %v3575, 2
      %v3577 = vmax.f32 %v3575, %v3576
      %v3578 = vrot.slane %v3577, 1
      %v3579 = vmax.f32 %v3577, %v3578
      %v3580 = vsel %vm2760, %v2596, -inf
      %v3581 = vrot.slane %v3580, 4
      %v3582 = vmax.f32 %v3580, %v3581
      %v3583 = vrot.slane %v3582, 2
      %v3584 = vmax.f32 %v3582, %v3583
      %v3585 = vrot.slane %v3584, 1
      %v3586 = vmax.f32 %v3584, %v3585
      %v3587 = vsel %vm2760, %v2595, -inf
      %v3588 = vrot.slane %v3587, 4
      %v3589 = vmax.f32 %v3587, %v3588
      %v3590 = vrot.slane %v3589, 2
      %v3591 = vmax.f32 %v3589, %v3590
      %v3592 = vrot.slane %v3591, 1
      %v3593 = vmax.f32 %v3591, %v3592
      %v3594 = vsel %vm2760, %v2597, -inf
      %v3595 = vrot.slane %v3594, 4
      %v3596 = vmax.f32 %v3594, %v3595
      %v3597 = vrot.slane %v3596, 2
      %v3598 = vmax.f32 %v3596, %v3597
      %v3599 = vrot.slane %v3598, 1
      %v3600 = vmax.f32 %v3598, %v3599
      %v3601 = vsel %vm2760, %v2605, -inf
      %v3602 = vrot.slane %v3601, 4
      %v3603 = vmax.f32 %v3601, %v3602
      %v3604 = vrot.slane %v3603, 2
      %v3605 = vmax.f32 %v3603, %v3604
      %v3606 = vrot.slane %v3605, 1
      %v3607 = vmax.f32 %v3605, %v3606
      %v3608 = vsel %vm2760, %v2613, -inf
      %v3609 = vrot.slane %v3608, 4
      %v3610 = vmax.f32 %v3608, %v3609
      %v3611 = vrot.slane %v3610, 2
      %v3612 = vmax.f32 %v3610, %v3611
      %v3613 = vrot.slane %v3612, 1
      %v3614 = vmax.f32 %v3612, %v3613
      %v3615 = vsel %vm2760, %v2612, -inf
      %v3616 = vrot.slane %v3615, 4
      %v3617 = vmax.f32 %v3615, %v3616
      %v3618 = vrot.slane %v3617, 2
      %v3619 = vmax.f32 %v3617, %v3618
      %v3620 = vrot.slane %v3619, 1
      %v3621 = vmax.f32 %v3619, %v3620
      %v3622 = vsel %vm2760, %v2614, -inf
      %v3623 = vrot.slane %v3622, 4
      %v3624 = vmax.f32 %v3622, %v3623
      %v3625 = vrot.slane %v3624, 2
      %v3626 = vmax.f32 %v3624, %v3625
      %v3627 = vrot.slane %v3626, 1
      %v3628 = vmax.f32 %v3626, %v3627
      %v3629 = vsel %vm2760, %v2622, -inf
      %v3630 = vrot.slane %v3629, 4
      %v3631 = vmax.f32 %v3629, %v3630
      %v3632 = vrot.slane %v3631, 2
      %v3633 = vmax.f32 %v3631, %v3632
      %v3634 = vrot.slane %v3633, 1
      %v3635 = vmax.f32 %v3633, %v3634
      %v3636 = vsel %vm2760, %v2630, -inf
      %v3637 = vrot.slane %v3636, 4
      %v3638 = vmax.f32 %v3636, %v3637
      %v3639 = vrot.slane %v3638, 2
      %v3640 = vmax.f32 %v3638, %v3639
      %v3641 = vrot.slane %v3640, 1
      %v3642 = vmax.f32 %v3640, %v3641
      %v3643 = vsel %vm2760, %v2629, -inf
      %v3644 = vrot.slane %v3643, 4
      %v3645 = vmax.f32 %v3643, %v3644
      %v3646 = vrot.slane %v3645, 2
      %v3647 = vmax.f32 %v3645, %v3646
      %v3648 = vrot.slane %v3647, 1
      %v3649 = vmax.f32 %v3647, %v3648
      %v3650 = vsel %vm2760, %v2631, -inf
      %v3651 = vrot.slane %v3650, 4
      %v3652 = vmax.f32 %v3650, %v3651
      %v3653 = vrot.slane %v3652, 2
      %v3654 = vmax.f32 %v3652, %v3653
      %v3655 = vrot.slane %v3654, 1
      %v3656 = vmax.f32 %v3654, %v3655
      %v3657 = vsel %vm1033, %v2767, -inf
      %v3658 = vsel %vm1033, %v2823, -inf
      %v3659 = vmax.f32 %v3657, %v3658
      %v3660 = vsel %vm1033, %v2774, -inf
      %v3661 = vsel %vm1033, %v2830, -inf
      %v3662 = vmax.f32 %v3660, %v3661
      %v3663 = vsel %vm1033, %v2781, -inf
      %v3664 = vsel %vm1033, %v2837, -inf
      %v3665 = vmax.f32 %v3663, %v3664
      %v3666 = vsel %vm1033, %v2788, -inf
      %v3667 = vsel %vm1033, %v2844, -inf
      %v3668 = vmax.f32 %v3666, %v3667
      %v3669 = vsel %vm1033, %v2795, -inf
      %v3670 = vsel %vm1033, %v2851, -inf
      %v3671 = vmax.f32 %v3669, %v3670
      %v3672 = vsel %vm1033, %v2802, -inf
      %v3673 = vsel %vm1033, %v2858, -inf
      %v3674 = vmax.f32 %v3672, %v3673
      %v3675 = vsel %vm1033, %v2809, -inf
      %v3676 = vsel %vm1033, %v2865, -inf
      %v3677 = vmax.f32 %v3675, %v3676
      %v3678 = vsel %vm1033, %v2816, -inf
      %v3679 = vsel %vm1033, %v2872, -inf
      %v3680 = vmax.f32 %v3678, %v3679
      %v3681 = vsel %vm1033, %v2879, -inf
      %v3682 = vsel %vm1033, %v2935, -inf
      %v3683 = vmax.f32 %v3681, %v3682
      %v3684 = vsel %vm1033, %v2886, -inf
      %v3685 = vsel %vm1033, %v2942, -inf
      %v3686 = vmax.f32 %v3684, %v3685
      %v3687 = vsel %vm1033, %v2893, -inf
      %v3688 = vsel %vm1033, %v2949, -inf
      %v3689 = vmax.f32 %v3687, %v3688
      %v3690 = vsel %vm1033, %v2900, -inf
      %v3691 = vsel %vm1033, %v2956, -inf
      %v3692 = vmax.f32 %v3690, %v3691
      %v3693 = vsel %vm1033, %v2907, -inf
      %v3694 = vsel %vm1033, %v2963, -inf
      %v3695 = vmax.f32 %v3693, %v3694
      %v3696 = vsel %vm1033, %v2914, -inf
      %v3697 = vsel %vm1033, %v2970, -inf
      %v3698 = vmax.f32 %v3696, %v3697
      %v3699 = vsel %vm1033, %v2921, -inf
      %v3700 = vsel %vm1033, %v2977, -inf
      %v3701 = vmax.f32 %v3699, %v3700
      %v3702 = vsel %vm1033, %v2928, -inf
      %v3703 = vsel %vm1033, %v2984, -inf
      %v3704 = vmax.f32 %v3702, %v3703
      %v3705 = vsel %vm1033, %v2991, -inf
      %v3706 = vsel %vm1033, %v3047, -inf
      %v3707 = vmax.f32 %v3705, %v3706
      %v3708 = vsel %vm1033, %v2998, -inf
      %v3709 = vsel %vm1033, %v3054, -inf
      %v3710 = vmax.f32 %v3708, %v3709
      %v3711 = vsel %vm1033, %v3005, -inf
      %v3712 = vsel %vm1033, %v3061, -inf
      %v3713 = vmax.f32 %v3711, %v3712
      %v3714 = vsel %vm1033, %v3012, -inf
      %v3715 = vsel %vm1033, %v3068, -inf
      %v3716 = vmax.f32 %v3714, %v3715
      %v3717 = vsel %vm1033, %v3019, -inf
      %v3718 = vsel %vm1033, %v3075, -inf
      %v3719 = vmax.f32 %v3717, %v3718
      %v3720 = vsel %vm1033, %v3026, -inf
      %v3721 = vsel %vm1033, %v3082, -inf
      %v3722 = vmax.f32 %v3720, %v3721
      %v3723 = vsel %vm1033, %v3033, -inf
      %v3724 = vsel %vm1033, %v3089, -inf
      %v3725 = vmax.f32 %v3723, %v3724
      %v3726 = vsel %vm1033, %v3040, -inf
      %v3727 = vsel %vm1033, %v3096, -inf
      %v3728 = vmax.f32 %v3726, %v3727
      %v3729 = vsel %vm1033, %v3103, -inf
      %v3730 = vsel %vm1033, %v3159, -inf
      %v3731 = vmax.f32 %v3729, %v3730
      %v3732 = vsel %vm1033, %v3110, -inf
      %v3733 = vsel %vm1033, %v3166, -inf
      %v3734 = vmax.f32 %v3732, %v3733
      %v3735 = vsel %vm1033, %v3117, -inf
      %v3736 = vsel %vm1033, %v3173, -inf
      %v3737 = vmax.f32 %v3735, %v3736
      %v3738 = vsel %vm1033, %v3124, -inf
      %v3739 = vsel %vm1033, %v3180, -inf
      %v3740 = vmax.f32 %v3738, %v3739
      %v3741 = vsel %vm1033, %v3131, -inf
      %v3742 = vsel %vm1033, %v3187, -inf
      %v3743 = vmax.f32 %v3741, %v3742
      %v3744 = vsel %vm1033, %v3138, -inf
      %v3745 = vsel %vm1033, %v3194, -inf
      %v3746 = vmax.f32 %v3744, %v3745
      %v3747 = vsel %vm1033, %v3145, -inf
      %v3748 = vsel %vm1033, %v3201, -inf
      %v3749 = vmax.f32 %v3747, %v3748
      %v3750 = vsel %vm1033, %v3152, -inf
      %v3751 = vsel %vm1033, %v3208, -inf
      %v3752 = vmax.f32 %v3750, %v3751
      %v3753 = vsel %vm1033, %v3215, -inf
      %v3754 = vsel %vm1033, %v3271, -inf
      %v3755 = vmax.f32 %v3753, %v3754
      %v3756 = vsel %vm1033, %v3222, -inf
      %v3757 = vsel %vm1033, %v3278, -inf
      %v3758 = vmax.f32 %v3756, %v3757
      %v3759 = vsel %vm1033, %v3229, -inf
      %v3760 = vsel %vm1033, %v3285, -inf
      %v3761 = vmax.f32 %v3759, %v3760
      %v3762 = vsel %vm1033, %v3236, -inf
      %v3763 = vsel %vm1033, %v3292, -inf
      %v3764 = vmax.f32 %v3762, %v3763
      %v3765 = vsel %vm1033, %v3243, -inf
      %v3766 = vsel %vm1033, %v3299, -inf
      %v3767 = vmax.f32 %v3765, %v3766
      %v3768 = vsel %vm1033, %v3250, -inf
      %v3769 = vsel %vm1033, %v3306, -inf
      %v3770 = vmax.f32 %v3768, %v3769
      %v3771 = vsel %vm1033, %v3257, -inf
      %v3772 = vsel %vm1033, %v3313, -inf
      %v3773 = vmax.f32 %v3771, %v3772
      %v3774 = vsel %vm1033, %v3264, -inf
      %v3775 = vsel %vm1033, %v3320, -inf
      %v3776 = vmax.f32 %v3774, %v3775
      %v3777 = vsel %vm1033, %v3327, -inf
      %v3778 = vsel %vm1033, %v3383, -inf
      %v3779 = vmax.f32 %v3777, %v3778
      %v3780 = vsel %vm1033, %v3334, -inf
      %v3781 = vsel %vm1033, %v3390, -inf
      %v3782 = vmax.f32 %v3780, %v3781
      %v3783 = vsel %vm1033, %v3341, -inf
      %v3784 = vsel %vm1033, %v3397, -inf
      %v3785 = vmax.f32 %v3783, %v3784
      %v3786 = vsel %vm1033, %v3348, -inf
      %v3787 = vsel %vm1033, %v3404, -inf
      %v3788 = vmax.f32 %v3786, %v3787
      %v3789 = vsel %vm1033, %v3355, -inf
      %v3790 = vsel %vm1033, %v3411, -inf
      %v3791 = vmax.f32 %v3789, %v3790
      %v3792 = vsel %vm1033, %v3362, -inf
      %v3793 = vsel %vm1033, %v3418, -inf
      %v3794 = vmax.f32 %v3792, %v3793
      %v3795 = vsel %vm1033, %v3369, -inf
      %v3796 = vsel %vm1033, %v3425, -inf
      %v3797 = vmax.f32 %v3795, %v3796
      %v3798 = vsel %vm1033, %v3376, -inf
      %v3799 = vsel %vm1033, %v3432, -inf
      %v3800 = vmax.f32 %v3798, %v3799
      %v3801 = vsel %vm1033, %v3439, -inf
      %v3802 = vsel %vm1033, %v3495, -inf
      %v3803 = vmax.f32 %v3801, %v3802
      %v3804 = vsel %vm1033, %v3446, -inf
      %v3805 = vsel %vm1033, %v3502, -inf
      %v3806 = vmax.f32 %v3804, %v3805
      %v3807 = vsel %vm1033, %v3453, -inf
      %v3808 = vsel %vm1033, %v3509, -inf
      %v3809 = vmax.f32 %v3807, %v3808
      %v3810 = vsel %vm1033, %v3460, -inf
      %v3811 = vsel %vm1033, %v3516, -inf
      %v3812 = vmax.f32 %v3810, %v3811
      %v3813 = vsel %vm1033, %v3467, -inf
      %v3814 = vsel %vm1033, %v3523, -inf
      %v3815 = vmax.f32 %v3813, %v3814
      %v3816 = vsel %vm1033, %v3474, -inf
      %v3817 = vsel %vm1033, %v3530, -inf
      %v3818 = vmax.f32 %v3816, %v3817
      %v3819 = vsel %vm1033, %v3481, -inf
      %v3820 = vsel %vm1033, %v3537, -inf
      %v3821 = vmax.f32 %v3819, %v3820
      %v3822 = vsel %vm1033, %v3488, -inf
      %v3823 = vsel %vm1033, %v3544, -inf
      %v3824 = vmax.f32 %v3822, %v3823
      %v3825 = vsel %vm1033, %v3551, -inf
      %v3826 = vsel %vm1033, %v3607, -inf
      %v3827 = vmax.f32 %v3825, %v3826
      %v3828 = vsel %vm1033, %v3558, -inf
      %v3829 = vsel %vm1033, %v3614, -inf
      %v3830 = vmax.f32 %v3828, %v3829
      %v3831 = vsel %vm1033, %v3565, -inf
      %v3832 = vsel %vm1033, %v3621, -inf
      %v3833 = vmax.f32 %v3831, %v3832
      %v3834 = vsel %vm1033, %v3572, -inf
      %v3835 = vsel %vm1033, %v3628, -inf
      %v3836 = vmax.f32 %v3834, %v3835
      %v3837 = vsel %vm1033, %v3579, -inf
      %v3838 = vsel %vm1033, %v3635, -inf
      %v3839 = vmax.f32 %v3837, %v3838
      %v3840 = vsel %vm1033, %v3586, -inf
      %v3841 = vsel %vm1033, %v3642, -inf
      %v3842 = vmax.f32 %v3840, %v3841
      %v3843 = vsel %vm1033, %v3593, -inf
      %v3844 = vsel %vm1033, %v3649, -inf
      %v3845 = vmax.f32 %v3843, %v3844
      %v3846 = vsel %vm1033, %v3600, -inf
      %v3847 = vsel %vm1033, %v3656, -inf
      %v3848 = vmax.f32 %v3846, %v3847
      %v3849 = vpack.c.bf16 %v3659, %v3659
      %v3850 = vpack.c.bf16 %v3662, %v3662
      %v3851 = vpack.c.bf16 %v3665, %v3665
      %v3852 = vpack.c.bf16 %v3668, %v3668
      %v3853 = vpack.c.bf16 %v3671, %v3671
      %v3854 = vpack.c.bf16 %v3674, %v3674
      %v3855 = vpack.c.bf16 %v3677, %v3677
      %v3856 = vpack.c.bf16 %v3680, %v3680
      %v3857 = vpack.c.bf16 %v3683, %v3683
      %v3858 = vpack.c.bf16 %v3686, %v3686
      %v3859 = vpack.c.bf16 %v3689, %v3689
      %v3860 = vpack.c.bf16 %v3692, %v3692
      %v3861 = vpack.c.bf16 %v3695, %v3695
      %v3862 = vpack.c.bf16 %v3698, %v3698
      %v3863 = vpack.c.bf16 %v3701, %v3701
      %v3864 = vpack.c.bf16 %v3704, %v3704
      %v3865 = vpack.c.bf16 %v3707, %v3707
      %v3866 = vpack.c.bf16 %v3710, %v3710
      %v3867 = vpack.c.bf16 %v3713, %v3713
      %v3868 = vpack.c.bf16 %v3716, %v3716
      %v3869 = vpack.c.bf16 %v3719, %v3719
      %v3870 = vpack.c.bf16 %v3722, %v3722
      %v3871 = vpack.c.bf16 %v3725, %v3725
      %v3872 = vpack.c.bf16 %v3728, %v3728
      %v3873 = vpack.c.bf16 %v3731, %v3731
      %v3874 = vpack.c.bf16 %v3734, %v3734
      %v3875 = vpack.c.bf16 %v3737, %v3737
      %v3876 = vpack.c.bf16 %v3740, %v3740
      %v3877 = vpack.c.bf16 %v3743, %v3743
      %v3878 = vpack.c.bf16 %v3746, %v3746
      %v3879 = vpack.c.bf16 %v3749, %v3749
      %v3880 = vpack.c.bf16 %v3752, %v3752
      %v3881 = vpack.c.bf16 %v3755, %v3755
      %v3882 = vpack.c.bf16 %v3758, %v3758
      %v3883 = vpack.c.bf16 %v3761, %v3761
      %v3884 = vpack.c.bf16 %v3764, %v3764
      %v3885 = vpack.c.bf16 %v3767, %v3767
      %v3886 = vpack.c.bf16 %v3770, %v3770
      %v3887 = vpack.c.bf16 %v3773, %v3773
      %v3888 = vpack.c.bf16 %v3776, %v3776
      %v3889 = vpack.c.bf16 %v3779, %v3779
      %v3890 = vpack.c.bf16 %v3782, %v3782
      %v3891 = vpack.c.bf16 %v3785, %v3785
      %v3892 = vpack.c.bf16 %v3788, %v3788
      %v3893 = vpack.c.bf16 %v3791, %v3791
      %v3894 = vpack.c.bf16 %v3794, %v3794
      %v3895 = vpack.c.bf16 %v3797, %v3797
      %v3896 = vpack.c.bf16 %v3800, %v3800
      %v3897 = vpack.c.bf16 %v3803, %v3803
      %v3898 = vpack.c.bf16 %v3806, %v3806
      %v3899 = vpack.c.bf16 %v3809, %v3809
      %v3900 = vpack.c.bf16 %v3812, %v3812
      %v3901 = vpack.c.bf16 %v3815, %v3815
      %v3902 = vpack.c.bf16 %v3818, %v3818
      %v3903 = vpack.c.bf16 %v3821, %v3821
      %v3904 = vpack.c.bf16 %v3824, %v3824
      %v3905 = vpack.c.bf16 %v3827, %v3827
      %v3906 = vpack.c.bf16 %v3830, %v3830
      %v3907 = vpack.c.bf16 %v3833, %v3833
      %v3908 = vpack.c.bf16 %v3836, %v3836
      %v3909 = vpack.c.bf16 %v3839, %v3839
      %v3910 = vpack.c.bf16 %v3842, %v3842
      %v3911 = vpack.c.bf16 %v3845, %v3845
      %v3912 = vpack.c.bf16 %v3848, %v3848
      %v3977 = vunpack.c.l.b16 %v3849
      %v3978 = vunpack.c.l.b16 %v3850
      %v3979 = vunpack.c.l.b16 %v3851
      %v3980 = vunpack.c.l.b16 %v3852
      %v3981 = vunpack.c.l.b16 %v3853
      %v3982 = vunpack.c.l.b16 %v3854
      %v3983 = vunpack.c.l.b16 %v3855
      %v3984 = vunpack.c.l.b16 %v3856
      %v3985 = vunpack.c.l.b16 %v3857
      %v3986 = vunpack.c.l.b16 %v3858
      %v3987 = vunpack.c.l.b16 %v3859
      %v3988 = vunpack.c.l.b16 %v3860
      %v3989 = vunpack.c.l.b16 %v3861
      %v3990 = vunpack.c.l.b16 %v3862
      %v3991 = vunpack.c.l.b16 %v3863
      %v3992 = vunpack.c.l.b16 %v3864
      %v3993 = vunpack.c.l.b16 %v3865
      %v3994 = vunpack.c.l.b16 %v3866
      %v3995 = vunpack.c.l.b16 %v3867
      %v3996 = vunpack.c.l.b16 %v3868
      %v3997 = vunpack.c.l.b16 %v3869
      %v3998 = vunpack.c.l.b16 %v3870
      %v3999 = vunpack.c.l.b16 %v3871
      %v4000 = vunpack.c.l.b16 %v3872
      %v4001 = vunpack.c.l.b16 %v3873
      %v4002 = vunpack.c.l.b16 %v3874
      %v4003 = vunpack.c.l.b16 %v3875
      %v4004 = vunpack.c.l.b16 %v3876
      %v4005 = vunpack.c.l.b16 %v3877
      %v4006 = vunpack.c.l.b16 %v3878
      %v4007 = vunpack.c.l.b16 %v3879
      %v4008 = vunpack.c.l.b16 %v3880
      %v4009 = vunpack.c.l.b16 %v3881
      %v4010 = vunpack.c.l.b16 %v3882
      %v4011 = vunpack.c.l.b16 %v3883
      %v4012 = vunpack.c.l.b16 %v3884
      %v4013 = vunpack.c.l.b16 %v3885
      %v4014 = vunpack.c.l.b16 %v3886
      %v4015 = vunpack.c.l.b16 %v3887
      %v4016 = vunpack.c.l.b16 %v3888
      %v4017 = vunpack.c.l.b16 %v3889
      %v4018 = vunpack.c.l.b16 %v3890
      %v4019 = vunpack.c.l.b16 %v3891
      %v4020 = vunpack.c.l.b16 %v3892
      %v4021 = vunpack.c.l.b16 %v3893
      %v4022 = vunpack.c.l.b16 %v3894
      %v4023 = vunpack.c.l.b16 %v3895
      %v4024 = vunpack.c.l.b16 %v3896
      %v4025 = vunpack.c.l.b16 %v3897
      %v4026 = vunpack.c.l.b16 %v3898
      %v4027 = vunpack.c.l.b16 %v3899
      %v4028 = vunpack.c.l.b16 %v3900
      %v4029 = vunpack.c.l.b16 %v3901
      %v4030 = vunpack.c.l.b16 %v3902
      %v4031 = vunpack.c.l.b16 %v3903
      %v4032 = vunpack.c.l.b16 %v3904
      %v4033 = vunpack.c.l.b16 %v3905
      %v4034 = vunpack.c.l.b16 %v3906
      %v4035 = vunpack.c.l.b16 %v3907
      %v4036 = vunpack.c.l.b16 %v3908
      %v4037 = vunpack.c.l.b16 %v3909
      %v4038 = vunpack.c.l.b16 %v3910
      %v4039 = vunpack.c.l.b16 %v3911
      %v4040 = vunpack.c.l.b16 %v3912
      %v4041 = vpack.c.b16 %v3977, %v3977
      %v4042 = vpack.c.b16 %v3978, %v3978
      %v4043 = vpack.c.b16 %v3979, %v3979
      %v4044 = vpack.c.b16 %v3980, %v3980
      %v4045 = vpack.c.b16 %v3981, %v3981
      %v4046 = vpack.c.b16 %v3982, %v3982
      %v4047 = vpack.c.b16 %v3983, %v3983
      %v4048 = vpack.c.b16 %v3984, %v3984
      %v4049 = vpack.c.b16 %v3985, %v3985
      %v4050 = vpack.c.b16 %v3986, %v3986
      %v4051 = vpack.c.b16 %v3987, %v3987
      %v4052 = vpack.c.b16 %v3988, %v3988
      %v4053 = vpack.c.b16 %v3989, %v3989
      %v4054 = vpack.c.b16 %v3990, %v3990
      %v4055 = vpack.c.b16 %v3991, %v3991
      %v4056 = vpack.c.b16 %v3992, %v3992
      %v4057 = vpack.c.b16 %v3993, %v3993
      %v4058 = vpack.c.b16 %v3994, %v3994
      %v4059 = vpack.c.b16 %v3995, %v3995
      %v4060 = vpack.c.b16 %v3996, %v3996
      %v4061 = vpack.c.b16 %v3997, %v3997
      %v4062 = vpack.c.b16 %v3998, %v3998
      %v4063 = vpack.c.b16 %v3999, %v3999
      %v4064 = vpack.c.b16 %v4000, %v4000
      %v4065 = vpack.c.b16 %v4001, %v4001
      %v4066 = vpack.c.b16 %v4002, %v4002
      %v4067 = vpack.c.b16 %v4003, %v4003
      %v4068 = vpack.c.b16 %v4004, %v4004
      %v4069 = vpack.c.b16 %v4005, %v4005
      %v4070 = vpack.c.b16 %v4006, %v4006
      %v4071 = vpack.c.b16 %v4007, %v4007
      %v4072 = vpack.c.b16 %v4008, %v4008
      %v4073 = vpack.c.b16 %v4009, %v4009
      %v4074 = vpack.c.b16 %v4010, %v4010
      %v4075 = vpack.c.b16 %v4011, %v4011
      %v4076 = vpack.c.b16 %v4012, %v4012
      %v4077 = vpack.c.b16 %v4013, %v4013
      %v4078 = vpack.c.b16 %v4014, %v4014
      %v4079 = vpack.c.b16 %v4015, %v4015
      %v4080 = vpack.c.b16 %v4016, %v4016
      %v4081 = vpack.c.b16 %v4017, %v4017
      %v4082 = vpack.c.b16 %v4018, %v4018
      %v4083 = vpack.c.b16 %v4019, %v4019
      %v4084 = vpack.c.b16 %v4020, %v4020
      %v4085 = vpack.c.b16 %v4021, %v4021
      %v4086 = vpack.c.b16 %v4022, %v4022
      %v4087 = vpack.c.b16 %v4023, %v4023
      %v4088 = vpack.c.b16 %v4024, %v4024
      %v4089 = vpack.c.b16 %v4025, %v4025
      %v4090 = vpack.c.b16 %v4026, %v4026
      %v4091 = vpack.c.b16 %v4027, %v4027
      %v4092 = vpack.c.b16 %v4028, %v4028
      %v4093 = vpack.c.b16 %v4029, %v4029
      %v4094 = vpack.c.b16 %v4030, %v4030
      %v4095 = vpack.c.b16 %v4031, %v4031
      %v4096 = vpack.c.b16 %v4032, %v4032
      %v4097 = vpack.c.b16 %v4033, %v4033
      %v4098 = vpack.c.b16 %v4034, %v4034
      %v4099 = vpack.c.b16 %v4035, %v4035
      %v4100 = vpack.c.b16 %v4036, %v4036
      %v4101 = vpack.c.b16 %v4037, %v4037
      %v4102 = vpack.c.b16 %v4038, %v4038
      %v4103 = vpack.c.b16 %v4039, %v4039
      %v4104 = vpack.c.b16 %v4040, %v4040
      %v4105 = vunpack.c.l.b16 %v4041
      %v4106 = vunpack.c.l.b16 %v4042
      %v4107 = vunpack.c.l.b16 %v4043
      %v4108 = vunpack.c.l.b16 %v4044
      %v4109 = vunpack.c.l.b16 %v4045
      %v4110 = vunpack.c.l.b16 %v4046
      %v4111 = vunpack.c.l.b16 %v4047
      %v4112 = vunpack.c.l.b16 %v4048
      %v4113 = vunpack.c.l.b16 %v4049
      %v4114 = vunpack.c.l.b16 %v4050
      %v4115 = vunpack.c.l.b16 %v4051
      %v4116 = vunpack.c.l.b16 %v4052
      %v4117 = vunpack.c.l.b16 %v4053
      %v4118 = vunpack.c.l.b16 %v4054
      %v4119 = vunpack.c.l.b16 %v4055
      %v4120 = vunpack.c.l.b16 %v4056
      %v4121 = vunpack.c.l.b16 %v4057
      %v4122 = vunpack.c.l.b16 %v4058
      %v4123 = vunpack.c.l.b16 %v4059
      %v4124 = vunpack.c.l.b16 %v4060
      %v4125 = vunpack.c.l.b16 %v4061
      %v4126 = vunpack.c.l.b16 %v4062
      %v4127 = vunpack.c.l.b16 %v4063
      %v4128 = vunpack.c.l.b16 %v4064
      %v4129 = vunpack.c.l.b16 %v4065
      %v4130 = vunpack.c.l.b16 %v4066
      %v4131 = vunpack.c.l.b16 %v4067
      %v4132 = vunpack.c.l.b16 %v4068
      %v4133 = vunpack.c.l.b16 %v4069
      %v4134 = vunpack.c.l.b16 %v4070
      %v4135 = vunpack.c.l.b16 %v4071
      %v4136 = vunpack.c.l.b16 %v4072
      %v4137 = vunpack.c.l.b16 %v4073
      %v4138 = vunpack.c.l.b16 %v4074
      %v4139 = vunpack.c.l.b16 %v4075
      %v4140 = vunpack.c.l.b16 %v4076
      %v4141 = vunpack.c.l.b16 %v4077
      %v4142 = vunpack.c.l.b16 %v4078
      %v4143 = vunpack.c.l.b16 %v4079
      %v4144 = vunpack.c.l.b16 %v4080
      %v4145 = vunpack.c.l.b16 %v4081
      %v4146 = vunpack.c.l.b16 %v4082
      %v4147 = vunpack.c.l.b16 %v4083
      %v4148 = vunpack.c.l.b16 %v4084
      %v4149 = vunpack.c.l.b16 %v4085
      %v4150 = vunpack.c.l.b16 %v4086
      %v4151 = vunpack.c.l.b16 %v4087
      %v4152 = vunpack.c.l.b16 %v4088
      %v4153 = vunpack.c.l.b16 %v4089
      %v4154 = vunpack.c.l.b16 %v4090
      %v4155 = vunpack.c.l.b16 %v4091
      %v4156 = vunpack.c.l.b16 %v4092
      %v4157 = vunpack.c.l.b16 %v4093
      %v4158 = vunpack.c.l.b16 %v4094
      %v4159 = vunpack.c.l.b16 %v4095
      %v4160 = vunpack.c.l.b16 %v4096
      %v4161 = vunpack.c.l.b16 %v4097
      %v4162 = vunpack.c.l.b16 %v4098
      %v4163 = vunpack.c.l.b16 %v4099
      %v4164 = vunpack.c.l.b16 %v4100
      %v4165 = vunpack.c.l.b16 %v4101
      %v4166 = vunpack.c.l.b16 %v4102
      %v4167 = vunpack.c.l.b16 %v4103
      %v4168 = vunpack.c.l.b16 %v4104
      %vm4169 = vcmask 1041409
      %v4170 = vsel %vm4169, %v4106, %v4105
      %vm4171 = vcmask 1042434
      %v4172 = vsel %vm4171, %v4107, %v4170
      %vm4173 = vcmask 1043459
      %v4174 = vsel %vm4173, %v4108, %v4172
      %vm4175 = vcmask 1044484
      %v4176 = vsel %vm4175, %v4109, %v4174
      %vm4177 = vcmask 1045509
      %v4178 = vsel %vm4177, %v4110, %v4176
      %vm4179 = vcmask 1046534
      %v4180 = vsel %vm4179, %v4111, %v4178
      %vm4181 = vcmask 1047559
      %v4182 = vsel %vm4181, %v4112, %v4180
      %v4183 = vsel %vm4169, %v4114, %v4113
      %v4184 = vsel %vm4171, %v4115, %v4183
      %v4185 = vsel %vm4173, %v4116, %v4184
      %v4186 = vsel %vm4175, %v4117, %v4185
      %v4187 = vsel %vm4177, %v4118, %v4186
      %v4188 = vsel %vm4179, %v4119, %v4187
      %v4189 = vsel %vm4181, %v4120, %v4188
      %v4190 = vsel %vm4169, %v4122, %v4121
      %v4191 = vsel %vm4171, %v4123, %v4190
      %v4192 = vsel %vm4173, %v4124, %v4191
      %v4193 = vsel %vm4175, %v4125, %v4192
      %v4194 = vsel %vm4177, %v4126, %v4193
      %v4195 = vsel %vm4179, %v4127, %v4194
      %v4196 = vsel %vm4181, %v4128, %v4195
      %v4197 = vsel %vm4169, %v4130, %v4129
      %v4198 = vsel %vm4171, %v4131, %v4197
      %v4199 = vsel %vm4173, %v4132, %v4198
      %v4200 = vsel %vm4175, %v4133, %v4199
      %v4201 = vsel %vm4177, %v4134, %v4200
      %v4202 = vsel %vm4179, %v4135, %v4201
      %v4203 = vsel %vm4181, %v4136, %v4202
      %v4204 = vsel %vm4169, %v4138, %v4137
      %v4205 = vsel %vm4171, %v4139, %v4204
      %v4206 = vsel %vm4173, %v4140, %v4205
      %v4207 = vsel %vm4175, %v4141, %v4206
      %v4208 = vsel %vm4177, %v4142, %v4207
      %v4209 = vsel %vm4179, %v4143, %v4208
      %v4210 = vsel %vm4181, %v4144, %v4209
      %v4211 = vsel %vm4169, %v4146, %v4145
      %v4212 = vsel %vm4171, %v4147, %v4211
      %v4213 = vsel %vm4173, %v4148, %v4212
      %v4214 = vsel %vm4175, %v4149, %v4213
      %v4215 = vsel %vm4177, %v4150, %v4214
      %v4216 = vsel %vm4179, %v4151, %v4215
      %v4217 = vsel %vm4181, %v4152, %v4216
      %v4218 = vsel %vm4169, %v4154, %v4153
      %v4219 = vsel %vm4171, %v4155, %v4218
      %v4220 = vsel %vm4173, %v4156, %v4219
      %v4221 = vsel %vm4175, %v4157, %v4220
      %v4222 = vsel %vm4177, %v4158, %v4221
      %v4223 = vsel %vm4179, %v4159, %v4222
      %v4224 = vsel %vm4181, %v4160, %v4223
      %v4225 = vsel %vm4169, %v4162, %v4161
      %v4226 = vsel %vm4171, %v4163, %v4225
      %v4227 = vsel %vm4173, %v4164, %v4226
      %v4228 = vsel %vm4175, %v4165, %v4227
      %v4229 = vsel %vm4177, %v4166, %v4228
      %v4230 = vsel %vm4179, %v4167, %v4229
      %v4231 = vsel %vm4181, %v4168, %v4230
      %v4232 = vpack.c.b16 %v4182, %v4182
      %v4233 = vpack.c.b16 %v4189, %v4189
      %v4234 = vpack.c.b16 %v4196, %v4196
      %v4235 = vpack.c.b16 %v4203, %v4203
      %v4236 = vpack.c.b16 %v4210, %v4210
      %v4237 = vpack.c.b16 %v4217, %v4217
      %v4238 = vpack.c.b16 %v4224, %v4224
      %v4239 = vpack.c.b16 %v4231, %v4231
      %vm4248 = vcmask 519168
      %4249 = vst.msk [vmem:[%s389] sm:$0xf] %vm4248, %v4232
      %4250 = vst.msk [vmem:[%s389 + $0x4] sm:$0xf] %vm4248, %v4233
      %4251 = vst.msk [vmem:[%s389 + $0x8] sm:$0xf] %vm4248, %v4234
      %4252 = vst.msk [vmem:[%s389 + $0xc] sm:$0xf] %vm4248, %v4235
      %4253 = vst.msk [vmem:[%s389 + $0x10] sm:$0xf] %vm4248, %v4236
      %4254 = vst.msk [vmem:[%s389 + $0x14] sm:$0xf] %vm4248, %v4237
      %4255 = vst.msk [vmem:[%s389 + $0x18] sm:$0xf] %vm4248, %v4238
      %4256 = vst.msk [vmem:[%s389 + $0x1c] sm:$0xf] %vm4248, %v4239
      %s4257 = smul.u32 8, %s21
      %p4258 = scmp.lt.s32.totalorder %s20, 3
      %s4259 = scalar_select %p4258, %s20, 3
      %p4260 = scmp.lt.s32.totalorder %s4257, 7
      %s4261 = scalar_select %p4260, %s4257, 7
      %s4262 = smul.addr %s4259, 8
      %s4263 = sadd.s32 %s4261, %s4262
      %s4264 = smul.addr %s4263, 4
      %s4265 = scalar_lea.vmem %s5, %s4264
      // Predicated region
      $region41: #{vgg_loss_forward.5} parent=39 // pred_check
        %p4266 = pneg %p190
      $region42: #{vgg_loss_forward.5} parent=39 // pred_check_branch
        %4268 = sbr.rel (%p4266) target = $region44
      $region43: #{vgg_loss_forward.5} parent=39 // pred_region
        %s4269 = smul.u32 8, %s21
      $region44: #{vgg_loss_forward.5} parent=39 // pred_fallthru
        _
    $region40: #{vgg_loss_forward.5} parent=5 // pred_fallthru
      _
    %p4270 = scmp.le.s32.totalorder 2, %s11
    // Predicated region
    $region45: #{vgg_loss_forward.5} parent=5 // pred_check
      %p4271 = pneg %p4270
    $region46: #{vgg_loss_forward.5} parent=5 // pred_check_branch
      %4273 = sbr.rel (%p4271) target = $region48
    $region47: #{vgg_loss_forward.5} parent=5 // pred_region
      %s4274 = ssub.s32 %s11, 2
      // Predicated region
      $region49: #{vgg_loss_forward.5} parent=47 // pred_check
        %p4275 = pneg %p196
      $region50: #{vgg_loss_forward.5} parent=47 // pred_check_branch
        %4277 = sbr.rel (%p4275) target = $region52
      $region51: #{vgg_loss_forward.5} parent=47 // pred_region
        %s4278 = smul.u32 8, %s23
        %p4279 = scmp.lt.s32.totalorder %s22, 3
        %s4280 = scalar_select %p4279, %s22, 3
        %p4281 = scmp.lt.s32.totalorder %s4278, 7
        %s4282 = scalar_select %p4281, %s4278, 7
        %s4283 = smul.addr %s4280, 8
        %s4284 = sadd.s32 %s4282, %s4283
        %s4285 = smul.addr %s4284, 4
        %s4286 = scalar_lea.vmem %s5, %s4285
      $region52: #{vgg_loss_forward.5} parent=47 // pred_fallthru
        _
    $region48: #{vgg_loss_forward.5} parent=5 // pred_fallthru
      _
  $region6: #{vgg_loss_forward.5} parent=0 // loop_footer
    %s15 = sadd.s32 1, %s11
  $region7: #{vgg_loss_forward.5} parent=0 // loop_footer_branch
    %10 = sbr.rel target = $region3
  $region8: #{vgg_loss_forward.5} parent=0 // loop_exit
    _

</llo_original>
